<compile_context>
chip_gen: v7x
topology: tpu7x:2x2x1
jax: 0.10.0
libtpu: 0.0.40
codegen_flags: <defaults>
</compile_context>

<pallas_src>
import functools

import numpy as np
import jax
import jax.numpy as jnp
from jax import lax
from jax.experimental import pallas as pl
from jax.experimental.pallas import tpu as pltpu

# Matmul-operand dtype.  Kept f32 so the numeric check against the f32 reference is
# tight; flip to jnp.bfloat16 on v6e/v7x to halve HBM/VMEM traffic (accumulation stays
# f32 via preferred_element_type).  Elementwise math stays f32 (v5e VPU has no bf16).
_DOT_DT = jnp.float32

_VMEM_LIMIT = 32 * 1024 * 1024        # explicit scoped-VMEM budget (safe v5e/v6e/v7x)


def _dot(a, b):
    return jnp.dot(a.astype(_DOT_DT), b.astype(_DOT_DT),
                   preferred_element_type=jnp.float32)


def _broadcast_spec(arr):
    nd = arr.ndim
    return pl.BlockSpec(arr.shape, lambda *_: (0,) * nd)


# ----------------------------- Pallas kernels ------------------------------------ #

def _head_kernel(x1_ref, x2_ref, p_ref, upw_ref, upb_ref,
                 wg_ref, bg_ref, wx_ref, bx_ref, wp_ref, bp_ref,
                 wca_ref, wcb_ref, bc_ref, o_ref):
    """Fused: upconv(k=2,s=2) + in-kernel pixel shuffle + attention gate + cat-1x1.

    Block = (1 batch, th input rows) -> (1 batch, 2*th output rows).
    """
    _, th, w, cin = x1_ref.shape
    _, th2, w2, cout = o_ref.shape

    x1f = x1_ref[0].reshape(th * w, cin)                       # (th*w, Cin)

    # Zero-insertion interleave matrices: p[dx] is (w2, w) with p[dx][2j+dx, j] = 1.
    p0 = jnp.broadcast_to(p_ref[0][None], (th, w2, w))
    p1 = jnp.broadcast_to(p_ref[1][None], (th, w2, w))

    def dy_rows(dy):
        # ConvTranspose2d quadrants: up[2i+dy, 2j+dx, :] = x1[i, j, :] @ W[:, :, dy, dx]
        a = _dot(x1f, upw_ref[dy, 0]).reshape(th, w, cout)      # dx = 0
        b = _dot(x1f, upw_ref[dy, 1]).reshape(th, w, cout)      # dx = 1
        rows = (jnp.einsum('iJw,iwc->iJc', p0, a, preferred_element_type=jnp.float32)
                + jnp.einsum('iJw,iwc->iJc', p1, b, preferred_element_type=jnp.float32))
        return rows + upb_ref[...]                              # (th, w2, Cout)

    r0 = dy_rows(0)                                             # output rows 2i
    r1 = dy_rows(1)                                             # output rows 2i + 1
    # Row interleave: leading-axis stack + merge -> layout-free.
    up = jnp.stack([r0, r1], axis=1).reshape(th2, w2, cout)

    upf = up.reshape(th2 * w2, cout)
    x2f = x2_ref[0].reshape(th2 * w2, cout)

    # Attention gate (1x1 convs with eval-mode BN folded into the weights).
    g1 = _dot(upf, wg_ref[...]) + bg_ref[...]
    xl = _dot(x2f, wx_ref[...]) + bx_ref[...]
    a = jnp.maximum(g1 + xl, 0.0)
    psi = _dot(a, wp_ref[...]) + bp_ref[...]                    # (M, 1)
    psi = pl.reciprocal(1.0 + jnp.exp(-psi), approx=True)       # sigmoid (EUP slot)
    x3f = x2f * psi                                             # gate the skip tensor

    # concat([x3, up], channel) @ W == x3 @ W[:C] + up @ W[C:]
    y = _dot(x3f, wca_ref[...]) + _dot(upf, wcb_ref[...]) + bc_ref[...]
    o_ref[0] = y.reshape(th2, w2, cout)


def _tail_kernel(y_ref, w_ref, b_ref, o_ref, xp_ref, *, t):
    """Fused: n_rblocks x (recurrent conv3x3 + folded BN + ReLU) + outer residual.

    One batch image per grid step.  H shifts are leading-axis concats (no relayout);
    the W direction uses a single W-padded scratch with 3 column taps per conv.
    """
    _, h, w, c = y_ref.shape
    n_rblocks = w_ref.shape[0]
    y = y_ref[0]                                                # (h, w, c)
    zr = jnp.zeros((1, w, c), jnp.float32)

    xp_ref[...] = jnp.zeros(xp_ref.shape, xp_ref.dtype)         # zero W border once

    def conv_bn_relu(x, wk, bk):
        # Channel-concat of the three row-shifted copies of x.
        xcat = jnp.concatenate(
            [jnp.concatenate([zr, x[:-1]], axis=0),             # in[i-1, j, :]
             x,                                                 # in[i,   j, :]
             jnp.concatenate([x[1:], zr], axis=0)],             # in[i+1, j, :]
            axis=-1)                                            # (h, w, 3c)
        xp_ref[:, 1:w + 1, :] = xcat                            # borders stay zero
        acc = _dot(xp_ref[:, 0:w, :].reshape(h * w, 3 * c), wk[0])        # col j-1
        acc = acc + _dot(xp_ref[:, 1:w + 1, :].reshape(h * w, 3 * c), wk[1])  # col j
        acc = acc + _dot(xp_ref[:, 2:w + 2, :].reshape(h * w, 3 * c), wk[2])  # col j+1
        return jnp.maximum(acc.reshape(h, w, c) + bk, 0.0)      # bias added once

    z = y
    for rb in range(n_rblocks):                                 # small, static
        wk = w_ref[rb]                                          # (3, 3c, c)
        bk = b_ref[rb]                                          # (1, c)
        x1 = conv_bn_relu(z, wk, bk)
        x1 = lax.fori_loop(
            0, t - 1,
            lambda _, a, z=z, wk=wk, bk=bk: conv_bn_relu(z + a, wk, bk),
            x1)
        z = x1
    o_ref[0] = y + z                                            # outer residual


# ----------------------------- parameters ---------------------------------------- #

def init_raw_params(key, in_channels, out_channels, n_rblocks):
    """Deterministic parameters in PyTorch layouts."""
    f_int = out_channels // 2
    ks = iter(jax.random.split(key, 16))

    def nrm(shape, s):
        return s * jax.random.normal(next(ks), shape, jnp.float32)

    raw = {
        "up_w": nrm((in_channels, out_channels, 2, 2), 0.2),   # ConvTranspose2d (I,O,kH,kW)
        "up_b": nrm((out_channels,), 0.1),
        "att_wg": nrm((f_int, out_channels), 0.3),             # 1x1 convs: (Cout, Cin)
        "att_bg": nrm((f_int,), 0.1),
        "att_wx": nrm((f_int, out_channels), 0.3),
        "att_bx": nrm((f_int,), 0.1),
        "att_wp": nrm((1, f_int), 0.5),
        "att_bp": nrm((1,), 0.1),
        "rc_w": nrm((out_channels, 2 * out_channels), 0.2),
        "rc_b": nrm((out_channels,), 0.1),
        "rblocks": [(nrm((out_channels, out_channels, 3, 3), 0.15),
                     nrm((out_channels,), 0.1)) for _ in range(n_rblocks)],
    }
    return raw


def to_kernel_params(raw, in_channels, out_channels):
    """Fold eval-mode BN and convert to kernel (NHWC / matmul) layouts."""
    eps = 1e-5
    bn_s = np.float32(1.0 / np.sqrt(1.0 + eps))  # gamma=1, beta=0, mean=0, var=1
    f_int = out_channels // 2
    c = out_channels
    p = {}
    # ConvTranspose2d weight (I, O, kH, kW) -> quadrant matmuls up_wq[dy, dx]: (Cin, Cout)
    p["up_wq"] = jnp.transpose(raw["up_w"], (2, 3, 0, 1))
    p["up_b"] = raw["up_b"].reshape(1, c)
    p["att_wg"] = (raw["att_wg"] * bn_s).T                     # (Cout, Fint)
    p["att_bg"] = (raw["att_bg"] * bn_s).reshape(1, f_int)
    p["att_wx"] = (raw["att_wx"] * bn_s).T
    p["att_bx"] = (raw["att_bx"] * bn_s).reshape(1, f_int)
    p["att_wp"] = (raw["att_wp"] * bn_s).T                     # (Fint, 1)
    p["att_bp"] = (raw["att_bp"] * bn_s).reshape(1, 1)
    w1 = raw["rc_w"].T                                         # (2C, C)
    p["rc_w_a"] = w1[:c, :]                                    # multiplies x3
    p["rc_w_b"] = w1[c:, :]                                    # multiplies upconv output
    p["rc_b"] = raw["rc_b"].reshape(1, c)
    rb_w, rb_b = [], []
    for (w3, b3) in raw["rblocks"]:
        w9 = (w3 * bn_s).transpose(2, 3, 1, 0)                 # (kH, kW, Cin, Cout)
        # per-kx weight (3C, C), rows ordered (ky, ci) to match the row-shift concat
        rb_w.append(jnp.stack([w9[:, kx].reshape(3 * c, c) for kx in range(3)], 0))
        rb_b.append((b3 * bn_s).reshape(1, c))
    p["rb_w"] = jnp.stack(rb_w, 0)                             # (n_rblocks, 3, 3C, C)
    p["rb_b"] = jnp.stack(rb_b, 0)                             # (n_rblocks, 1, C)
    return p


# ----------------------------- forward (Pallas) ----------------------------------- #

def attr_up_forward(params, n_recursions, x1_nchw, x2_nchw, *, row_tile=4):
    x1 = jnp.transpose(x1_nchw, (0, 2, 3, 1))   # (N, H, W, Cin)
    x2 = jnp.transpose(x2_nchw, (0, 2, 3, 1))   # (N, 2H, 2W, Cout)
    n, h, w, cin = x1.shape
    _, h2, w2, cout = x2.shape
    assert h2 == 2 * h and w2 == 2 * w

    # Row tile for the head kernel (raise at realistic resolutions; must divide H).
    th = min(row_tile, h)
    while h % th:
        th -= 1

    # Zero-insertion interleave matrices for the in-kernel 2x2 pixel shuffle.
    pmat = np.zeros((2, w2, w), np.float32)
    pmat[0, 2 * np.arange(w), np.arange(w)] = 1.0
    pmat[1, 2 * np.arange(w) + 1, np.arange(w)] = 1.0
    pmat = jnp.asarray(pmat)

    head_args = (x1, x2, pmat, params["up_wq"], params["up_b"],
                 params["att_wg"], params["att_bg"],
                 params["att_wx"], params["att_bx"],
                 params["att_wp"], params["att_bp"],
                 params["rc_w_a"], params["rc_w_b"], params["rc_b"])
    head_in_specs = (
        [pl.BlockSpec((1, th, w, cin), lambda b, r: (b, r, 0, 0)),
         pl.BlockSpec((1, 2 * th, w2, cout), lambda b, r: (b, r, 0, 0))]
        + [_broadcast_spec(a) for a in head_args[2:]])

    y = pl.pallas_call(
        _head_kernel,
        grid=(n, h // th),
        in_specs=head_in_specs,
        out_specs=pl.BlockSpec((1, 2 * th, w2, cout), lambda b, r: (b, r, 0, 0)),
        out_shape=jax.ShapeDtypeStruct((n, h2, w2, cout), jnp.float32),
        compiler_params=pltpu.CompilerParams(
            dimension_semantics=("parallel", "parallel"),
            vmem_limit_bytes=_VMEM_LIMIT),
    )(*head_args)

    tail = functools.partial(_tail_kernel, t=n_recursions)
    out = pl.pallas_call(
        tail,
        grid=(n,),
        in_specs=[pl.BlockSpec((1, h2, w2, cout), lambda b: (b, 0, 0, 0)),
                  _broadcast_spec(params["rb_w"]),
                  _broadcast_spec(params["rb_b"])],
        out_specs=pl.BlockSpec((1, h2, w2, cout), lambda b: (b, 0, 0, 0)),
        out_shape=jax.ShapeDtypeStruct((n, h2, w2, cout), jnp.float32),
        scratch_shapes=[pltpu.VMEM((h2, w2 + 2, 3 * cout), jnp.float32)],
        compiler_params=pltpu.CompilerParams(
            dimension_semantics=("parallel",),
            vmem_limit_bytes=_VMEM_LIMIT),
    )(y, params["rb_w"], params["rb_b"])

    return jnp.transpose(out, (0, 3, 1, 2))      # back to NCHW


# ----------------------------- pure-JAX reference --------------------------------- #

def torch_reference(raw, x1_nchw, x2_nchw, n_recursions):
    eps = 1e-5
    bn = lambda y: y * (1.0 / np.sqrt(1.0 + eps))
    hi = lax.Precision.HIGHEST

    def conv1x1(x, w, b):
        return jnp.einsum("nihw,oi->nohw", x, w, precision=hi) + b.reshape(1, -1, 1, 1)

    def conv3x3(x, w, b):
        y = lax.conv_general_dilated(x, w, window_strides=(1, 1),
                                     padding=((1, 1), (1, 1)),
                                     dimension_numbers=("NCHW", "OIHW", "NCHW"),
                                     precision=hi)
        return y + b.reshape(1, -1, 1, 1)

    up = jnp.einsum("nihw,iokl->nohkwl", x1_nchw, raw["up_w"], precision=hi)
    n, co, h, _, w, _ = up.shape
    up = up.reshape(n, co, 2 * h, 2 * w) + raw["up_b"].reshape(1, -1, 1, 1)

    g1 = bn(conv1x1(up, raw["att_wg"], raw["att_bg"]))
    l1 = bn(conv1x1(x2_nchw, raw["att_wx"], raw["att_bx"]))
    a = jnp.maximum(g1 + l1, 0.0)
    psi = jax.nn.sigmoid(bn(conv1x1(a, raw["att_wp"], raw["att_bp"])))
    x3 = x2_nchw * psi

    cat = jnp.concatenate([x3, up], axis=1)
    y0 = conv1x1(cat, raw["rc_w"], raw["rc_b"])

    z = y0
    for (w3, b3) in raw["rblocks"]:
        cbr = lambda t, w3=w3, b3=b3: jnp.maximum(bn(conv3x3(t, w3, b3)), 0.0)
        z1 = cbr(z)
        for _ in range(n_recursions - 1):
            z1 = cbr(z + z1)
        z = z1
    return y0 + z


# ----------------------------------- main ----------------------------------------- #

if __name__ == "__main__":
    in_channels, out_channels = 8, 4
    n_rblocks, n_recursions = 2, 2
    N, H, W = 2, 8, 8

    key = jax.random.PRNGKey(0)
    k_par, k_x1, k_x2 = jax.random.split(key, 3)

    raw = init_raw_params(k_par, in_channels, out_channels, n_rblocks)
    params = to_kernel_params(raw, in_channels, out_channels)

    x1 = jax.random.normal(k_x1, (N, in_channels, H, W), jnp.float32)
    x2 = jax.random.normal(k_x2, (N, out_channels, 2 * H, 2 * W), jnp.float32)

    fwd = jax.jit(lambda a, b: attr_up_forward(params, n_recursions, a, b))
    out = jax.block_until_ready(fwd(x1, x2))

    ref = jax.block_until_ready(torch_reference(raw, x1, x2, n_recursions))

    assert out.shape == (N, out_channels, 2 * H, 2 * W)
    np.testing.assert_allclose(np.asarray(out), np.asarray(ref), rtol=2e-2, atol=2e-2)
    print("KERNEL_OK")
</pallas_src>

<mosaic_0001>
module attributes {stable_mosaic.version = 11 : i64} {
  func.func @_tail_kernel(%arg0: i32, %arg1: memref<1x16x16x4xf32, #tpu.memory_space<vmem>>, %arg2: memref<2x3x12x4xf32, #tpu.memory_space<vmem>>, %arg3: memref<2x1x4xf32, #tpu.memory_space<vmem>>, %arg4: memref<1x16x16x4xf32, #tpu.memory_space<vmem>>, %arg5: memref<16x18x12xf32, #tpu.memory_space<vmem>>) attributes {dimension_semantics = [#tpu.dimension_semantics<parallel>], iteration_bounds = array<i64: 2>, scalar_prefetch = 0 : i64, scratch_operands = 1 : i64, tpu.core_type = #tpu.core_type<tc>, window_params = [{transform_indices = @transform_0, window_bounds = array<i64: 1, 16, 16, 4>}, {pipeline_mode = #tpu.pipeline_mode<synchronous>, transform_indices = @transform_1, window_bounds = array<i64: 2, 3, 12, 4>}, {pipeline_mode = #tpu.pipeline_mode<synchronous>, transform_indices = @transform_2, window_bounds = array<i64: 2, 1, 4>}, {transform_indices = @transform_3, window_bounds = array<i64: 1, 16, 16, 4>}]} {
    %c0 = arith.constant 0 : index
    %c0_0 = arith.constant 0 : index
    %c0_1 = arith.constant 0 : index
    %c0_2 = arith.constant 0 : index
    %0 = vector.load %arg1[%c0, %c0_0, %c0_1, %c0_2] : memref<1x16x16x4xf32, #tpu.memory_space<vmem>>, vector<1x16x16x4xf32>
    %1 = vector.shape_cast %0 : vector<1x16x16x4xf32> to vector<16x16x4xf32>
    %cst = arith.constant 0.000000e+00 : f32
    %2 = vector.broadcast %cst : f32 to vector<1x16x4xf32>
    %cst_3 = arith.constant 0.000000e+00 : f32
    %3 = vector.broadcast %cst_3 : f32 to vector<16x18x12xf32>
    %c0_4 = arith.constant 0 : index
    %c0_5 = arith.constant 0 : index
    %c0_6 = arith.constant 0 : index
    %4 = vector.load %arg5[%c0_4, %c0_5, %c0_6] : memref<16x18x12xf32, #tpu.memory_space<vmem>>, vector<16x18x12xf32>
    tpu.vector_store %arg5[%c0_4, %c0_5, %c0_6], %3 {strides = array<i32>} : memref<16x18x12xf32, #tpu.memory_space<vmem>>, vector<16x18x12xf32>,
    %c0_7 = arith.constant 0 : index
    %c0_8 = arith.constant 0 : index
    %c0_9 = arith.constant 0 : index
    %c0_10 = arith.constant 0 : index
    %5 = vector.load %arg2[%c0_7, %c0_8, %c0_9, %c0_10] : memref<2x3x12x4xf32, #tpu.memory_space<vmem>>, vector<1x3x12x4xf32>
    %6 = vector.shape_cast %5 : vector<1x3x12x4xf32> to vector<3x12x4xf32>
    %c0_11 = arith.constant 0 : index
    %c0_12 = arith.constant 0 : index
    %c0_13 = arith.constant 0 : index
    %7 = vector.load %arg3[%c0_11, %c0_12, %c0_13] : memref<2x1x4xf32, #tpu.memory_space<vmem>>, vector<1x1x4xf32>
    %8 = vector.shape_cast %7 : vector<1x1x4xf32> to vector<1x4xf32>
    %9 = vector.extract_strided_slice %1 {offsets = [0, 0, 0], sizes = [15, 16, 4], strides = [1, 1, 1]} : vector<16x16x4xf32> to vector<15x16x4xf32>
    %10 = tpu.concatenate %2, %9 in 0 : vector<1x16x4xf32>, vector<15x16x4xf32> -> vector<16x16x4xf32>
    %11 = vector.extract_strided_slice %1 {offsets = [1, 0, 0], sizes = [15, 16, 4], strides = [1, 1, 1]} : vector<16x16x4xf32> to vector<15x16x4xf32>
    %12 = tpu.concatenate %11, %2 in 0 : vector<15x16x4xf32>, vector<1x16x4xf32> -> vector<16x16x4xf32>
    %13 = tpu.concatenate %10, %1, %12 in 2 : vector<16x16x4xf32>, vector<16x16x4xf32>, vector<16x16x4xf32> -> vector<16x16x12xf32>
    %c0_14 = arith.constant 0 : index
    %c1 = arith.constant 1 : index
    %c0_15 = arith.constant 0 : index
    %14 = vector.load %arg5[%c0_14, %c1, %c0_15] : memref<16x18x12xf32, #tpu.memory_space<vmem>>, vector<16x16x12xf32>
    tpu.vector_store %arg5[%c0_14, %c1, %c0_15], %13 {strides = array<i32>} : memref<16x18x12xf32, #tpu.memory_space<vmem>>, vector<16x16x12xf32>,
    %c0_16 = arith.constant 0 : index
    %c0_17 = arith.constant 0 : index
    %c0_18 = arith.constant 0 : index
    %15 = vector.load %arg5[%c0_16, %c0_17, %c0_18] : memref<16x18x12xf32, #tpu.memory_space<vmem>>, vector<16x16x12xf32>
    %16 = vector.shape_cast %15 : vector<16x16x12xf32> to vector<256x12xf32>
    %17 = vector.extract_strided_slice %6 {offsets = [0, 0, 0], sizes = [1, 12, 4], strides = [1, 1, 1]} : vector<3x12x4xf32> to vector<1x12x4xf32>
    %18 = vector.shape_cast %17 : vector<1x12x4xf32> to vector<12x4xf32>
    %cst_19 = arith.constant dense<0.000000e+00> : vector<256x4xf32>
    %19 = tpu.matmul %16, %18, %cst_19 {dimension_numbers = #tpu.dot_dimension_numbers<[1], [0], [0], [1], [0, 0, 1, 1], [], []>} : vector<256x12xf32>, vector<12x4xf32>, vector<256x4xf32> -> vector<256x4xf32>
    %c0_20 = arith.constant 0 : index
    %c1_21 = arith.constant 1 : index
    %c0_22 = arith.constant 0 : index
    %20 = vector.load %arg5[%c0_20, %c1_21, %c0_22] : memref<16x18x12xf32, #tpu.memory_space<vmem>>, vector<16x16x12xf32>
    %21 = vector.shape_cast %20 : vector<16x16x12xf32> to vector<256x12xf32>
    %22 = vector.extract_strided_slice %6 {offsets = [1, 0, 0], sizes = [1, 12, 4], strides = [1, 1, 1]} : vector<3x12x4xf32> to vector<1x12x4xf32>
    %23 = vector.shape_cast %22 : vector<1x12x4xf32> to vector<12x4xf32>
    %cst_23 = arith.constant dense<0.000000e+00> : vector<256x4xf32>
    %24 = tpu.matmul %21, %23, %cst_23 {dimension_numbers = #tpu.dot_dimension_numbers<[1], [0], [0], [1], [0, 0, 1, 1], [], []>} : vector<256x12xf32>, vector<12x4xf32>, vector<256x4xf32> -> vector<256x4xf32>
    %25 = arith.addf %19, %24 : vector<256x4xf32>
    %c0_24 = arith.constant 0 : index
    %c2 = arith.constant 2 : index
    %c0_25 = arith.constant 0 : index
    %26 = vector.load %arg5[%c0_24, %c2, %c0_25] : memref<16x18x12xf32, #tpu.memory_space<vmem>>, vector<16x16x12xf32>
    %27 = vector.shape_cast %26 : vector<16x16x12xf32> to vector<256x12xf32>
    %28 = vector.extract_strided_slice %6 {offsets = [2, 0, 0], sizes = [1, 12, 4], strides = [1, 1, 1]} : vector<3x12x4xf32> to vector<1x12x4xf32>
    %29 = vector.shape_cast %28 : vector<1x12x4xf32> to vector<12x4xf32>
    %cst_26 = arith.constant dense<0.000000e+00> : vector<256x4xf32>
    %30 = tpu.matmul %27, %29, %cst_26 {dimension_numbers = #tpu.dot_dimension_numbers<[1], [0], [0], [1], [0, 0, 1, 1], [], []>} : vector<256x12xf32>, vector<12x4xf32>, vector<256x4xf32> -> vector<256x4xf32>
    %31 = arith.addf %25, %30 : vector<256x4xf32>
    %32 = vector.shape_cast %31 : vector<256x4xf32> to vector<16x16x4xf32>
    %33 = vector.shape_cast %8 : vector<1x4xf32> to vector<1x1x4xf32>
    %34 = vector.broadcast %33 : vector<1x1x4xf32> to vector<16x16x4xf32>
    %35 = arith.addf %32, %34 : vector<16x16x4xf32>
    %cst_27 = arith.constant 0.000000e+00 : f32
    %36 = vector.broadcast %cst_27 : f32 to vector<16x16x4xf32>
    %37 = arith.maximumf %35, %36 : vector<16x16x4xf32>
    %c0_i32 = arith.constant 0 : i32
    %38 = arith.addf %1, %37 : vector<16x16x4xf32>
    %39 = vector.extract_strided_slice %38 {offsets = [0, 0, 0], sizes = [15, 16, 4], strides = [1, 1, 1]} : vector<16x16x4xf32> to vector<15x16x4xf32>
    %40 = tpu.concatenate %2, %39 in 0 : vector<1x16x4xf32>, vector<15x16x4xf32> -> vector<16x16x4xf32>
    %41 = vector.extract_strided_slice %38 {offsets = [1, 0, 0], sizes = [15, 16, 4], strides = [1, 1, 1]} : vector<16x16x4xf32> to vector<15x16x4xf32>
    %42 = tpu.concatenate %41, %2 in 0 : vector<15x16x4xf32>, vector<1x16x4xf32> -> vector<16x16x4xf32>
    %43 = tpu.concatenate %40, %38, %42 in 2 : vector<16x16x4xf32>, vector<16x16x4xf32>, vector<16x16x4xf32> -> vector<16x16x12xf32>
    %c0_28 = arith.constant 0 : index
    %c1_29 = arith.constant 1 : index
    %c0_30 = arith.constant 0 : index
    %44 = vector.load %arg5[%c0_28, %c1_29, %c0_30] : memref<16x18x12xf32, #tpu.memory_space<vmem>>, vector<16x16x12xf32>
    tpu.vector_store %arg5[%c0_28, %c1_29, %c0_30], %43 {strides = array<i32>} : memref<16x18x12xf32, #tpu.memory_space<vmem>>, vector<16x16x12xf32>,
    %c0_31 = arith.constant 0 : index
    %c0_32 = arith.constant 0 : index
    %c0_33 = arith.constant 0 : index
    %45 = vector.load %arg5[%c0_31, %c0_32, %c0_33] : memref<16x18x12xf32, #tpu.memory_space<vmem>>, vector<16x16x12xf32>
    %46 = vector.shape_cast %45 : vector<16x16x12xf32> to vector<256x12xf32>
    %47 = vector.extract_strided_slice %6 {offsets = [0, 0, 0], sizes = [1, 12, 4], strides = [1, 1, 1]} : vector<3x12x4xf32> to vector<1x12x4xf32>
    %48 = vector.shape_cast %47 : vector<1x12x4xf32> to vector<12x4xf32>
    %cst_34 = arith.constant dense<0.000000e+00> : vector<256x4xf32>
    %49 = tpu.matmul %46, %48, %cst_34 {dimension_numbers = #tpu.dot_dimension_numbers<[1], [0], [0], [1], [0, 0, 1, 1], [], []>} : vector<256x12xf32>, vector<12x4xf32>, vector<256x4xf32> -> vector<256x4xf32>
    %c0_35 = arith.constant 0 : index
    %c1_36 = arith.constant 1 : index
    %c0_37 = arith.constant 0 : index
    %50 = vector.load %arg5[%c0_35, %c1_36, %c0_37] : memref<16x18x12xf32, #tpu.memory_space<vmem>>, vector<16x16x12xf32>
    %51 = vector.shape_cast %50 : vector<16x16x12xf32> to vector<256x12xf32>
    %52 = vector.extract_strided_slice %6 {offsets = [1, 0, 0], sizes = [1, 12, 4], strides = [1, 1, 1]} : vector<3x12x4xf32> to vector<1x12x4xf32>
    %53 = vector.shape_cast %52 : vector<1x12x4xf32> to vector<12x4xf32>
    %cst_38 = arith.constant dense<0.000000e+00> : vector<256x4xf32>
    %54 = tpu.matmul %51, %53, %cst_38 {dimension_numbers = #tpu.dot_dimension_numbers<[1], [0], [0], [1], [0, 0, 1, 1], [], []>} : vector<256x12xf32>, vector<12x4xf32>, vector<256x4xf32> -> vector<256x4xf32>
    %55 = arith.addf %49, %54 : vector<256x4xf32>
    %c0_39 = arith.constant 0 : index
    %c2_40 = arith.constant 2 : index
    %c0_41 = arith.constant 0 : index
    %56 = vector.load %arg5[%c0_39, %c2_40, %c0_41] : memref<16x18x12xf32, #tpu.memory_space<vmem>>, vector<16x16x12xf32>
    %57 = vector.shape_cast %56 : vector<16x16x12xf32> to vector<256x12xf32>
    %58 = vector.extract_strided_slice %6 {offsets = [2, 0, 0], sizes = [1, 12, 4], strides = [1, 1, 1]} : vector<3x12x4xf32> to vector<1x12x4xf32>
    %59 = vector.shape_cast %58 : vector<1x12x4xf32> to vector<12x4xf32>
    %cst_42 = arith.constant dense<0.000000e+00> : vector<256x4xf32>
    %60 = tpu.matmul %57, %59, %cst_42 {dimension_numbers = #tpu.dot_dimension_numbers<[1], [0], [0], [1], [0, 0, 1, 1], [], []>} : vector<256x12xf32>, vector<12x4xf32>, vector<256x4xf32> -> vector<256x4xf32>
    %61 = arith.addf %55, %60 : vector<256x4xf32>
    %62 = vector.shape_cast %61 : vector<256x4xf32> to vector<16x16x4xf32>
    %63 = vector.shape_cast %8 : vector<1x4xf32> to vector<1x1x4xf32>
    %64 = vector.broadcast %63 : vector<1x1x4xf32> to vector<16x16x4xf32>
    %65 = arith.addf %62, %64 : vector<16x16x4xf32>
    %cst_43 = arith.constant 0.000000e+00 : f32
    %66 = vector.broadcast %cst_43 : f32 to vector<16x16x4xf32>
    %67 = arith.maximumf %65, %66 : vector<16x16x4xf32>
    %c1_44 = arith.constant 1 : index
    %c0_45 = arith.constant 0 : index
    %c0_46 = arith.constant 0 : index
    %c0_47 = arith.constant 0 : index
    %68 = vector.load %arg2[%c1_44, %c0_45, %c0_46, %c0_47] : memref<2x3x12x4xf32, #tpu.memory_space<vmem>>, vector<1x3x12x4xf32>
    %69 = vector.shape_cast %68 : vector<1x3x12x4xf32> to vector<3x12x4xf32>
    %c1_48 = arith.constant 1 : index
    %c0_49 = arith.constant 0 : index
    %c0_50 = arith.constant 0 : index
    %70 = vector.load %arg3[%c1_48, %c0_49, %c0_50] : memref<2x1x4xf32, #tpu.memory_space<vmem>>, vector<1x1x4xf32>
    %71 = vector.shape_cast %70 : vector<1x1x4xf32> to vector<1x4xf32>
    %72 = vector.extract_strided_slice %67 {offsets = [0, 0, 0], sizes = [15, 16, 4], strides = [1, 1, 1]} : vector<16x16x4xf32> to vector<15x16x4xf32>
    %73 = tpu.concatenate %2, %72 in 0 : vector<1x16x4xf32>, vector<15x16x4xf32> -> vector<16x16x4xf32>
    %74 = vector.extract_strided_slice %67 {offsets = [1, 0, 0], sizes = [15, 16, 4], strides = [1, 1, 1]} : vector<16x16x4xf32> to vector<15x16x4xf32>
    %75 = tpu.concatenate %74, %2 in 0 : vector<15x16x4xf32>, vector<1x16x4xf32> -> vector<16x16x4xf32>
    %76 = tpu.concatenate %73, %67, %75 in 2 : vector<16x16x4xf32>, vector<16x16x4xf32>, vector<16x16x4xf32> -> vector<16x16x12xf32>
    %c0_51 = arith.constant 0 : index
    %c1_52 = arith.constant 1 : index
    %c0_53 = arith.constant 0 : index
    %77 = vector.load %arg5[%c0_51, %c1_52, %c0_53] : memref<16x18x12xf32, #tpu.memory_space<vmem>>, vector<16x16x12xf32>
    tpu.vector_store %arg5[%c0_51, %c1_52, %c0_53], %76 {strides = array<i32>} : memref<16x18x12xf32, #tpu.memory_space<vmem>>, vector<16x16x12xf32>,
    %c0_54 = arith.constant 0 : index
    %c0_55 = arith.constant 0 : index
    %c0_56 = arith.constant 0 : index
    %78 = vector.load %arg5[%c0_54, %c0_55, %c0_56] : memref<16x18x12xf32, #tpu.memory_space<vmem>>, vector<16x16x12xf32>
    %79 = vector.shape_cast %78 : vector<16x16x12xf32> to vector<256x12xf32>
    %80 = vector.extract_strided_slice %69 {offsets = [0, 0, 0], sizes = [1, 12, 4], strides = [1, 1, 1]} : vector<3x12x4xf32> to vector<1x12x4xf32>
    %81 = vector.shape_cast %80 : vector<1x12x4xf32> to vector<12x4xf32>
    %cst_57 = arith.constant dense<0.000000e+00> : vector<256x4xf32>
    %82 = tpu.matmul %79, %81, %cst_57 {dimension_numbers = #tpu.dot_dimension_numbers<[1], [0], [0], [1], [0, 0, 1, 1], [], []>} : vector<256x12xf32>, vector<12x4xf32>, vector<256x4xf32> -> vector<256x4xf32>
    %c0_58 = arith.constant 0 : index
    %c1_59 = arith.constant 1 : index
    %c0_60 = arith.constant 0 : index
    %83 = vector.load %arg5[%c0_58, %c1_59, %c0_60] : memref<16x18x12xf32, #tpu.memory_space<vmem>>, vector<16x16x12xf32>
    %84 = vector.shape_cast %83 : vector<16x16x12xf32> to vector<256x12xf32>
    %85 = vector.extract_strided_slice %69 {offsets = [1, 0, 0], sizes = [1, 12, 4], strides = [1, 1, 1]} : vector<3x12x4xf32> to vector<1x12x4xf32>
    %86 = vector.shape_cast %85 : vector<1x12x4xf32> to vector<12x4xf32>
    %cst_61 = arith.constant dense<0.000000e+00> : vector<256x4xf32>
    %87 = tpu.matmul %84, %86, %cst_61 {dimension_numbers = #tpu.dot_dimension_numbers<[1], [0], [0], [1], [0, 0, 1, 1], [], []>} : vector<256x12xf32>, vector<12x4xf32>, vector<256x4xf32> -> vector<256x4xf32>
    %88 = arith.addf %82, %87 : vector<256x4xf32>
    %c0_62 = arith.constant 0 : index
    %c2_63 = arith.constant 2 : index
    %c0_64 = arith.constant 0 : index
    %89 = vector.load %arg5[%c0_62, %c2_63, %c0_64] : memref<16x18x12xf32, #tpu.memory_space<vmem>>, vector<16x16x12xf32>
    %90 = vector.shape_cast %89 : vector<16x16x12xf32> to vector<256x12xf32>
    %91 = vector.extract_strided_slice %69 {offsets = [2, 0, 0], sizes = [1, 12, 4], strides = [1, 1, 1]} : vector<3x12x4xf32> to vector<1x12x4xf32>
    %92 = vector.shape_cast %91 : vector<1x12x4xf32> to vector<12x4xf32>
    %cst_65 = arith.constant dense<0.000000e+00> : vector<256x4xf32>
    %93 = tpu.matmul %90, %92, %cst_65 {dimension_numbers = #tpu.dot_dimension_numbers<[1], [0], [0], [1], [0, 0, 1, 1], [], []>} : vector<256x12xf32>, vector<12x4xf32>, vector<256x4xf32> -> vector<256x4xf32>
    %94 = arith.addf %88, %93 : vector<256x4xf32>
    %95 = vector.shape_cast %94 : vector<256x4xf32> to vector<16x16x4xf32>
    %96 = vector.shape_cast %71 : vector<1x4xf32> to vector<1x1x4xf32>
    %97 = vector.broadcast %96 : vector<1x1x4xf32> to vector<16x16x4xf32>
    %98 = arith.addf %95, %97 : vector<16x16x4xf32>
    %cst_66 = arith.constant 0.000000e+00 : f32
    %99 = vector.broadcast %cst_66 : f32 to vector<16x16x4xf32>
    %100 = arith.maximumf %98, %99 : vector<16x16x4xf32>
    %c0_i32_67 = arith.constant 0 : i32
    %101 = arith.addf %67, %100 : vector<16x16x4xf32>
    %102 = vector.extract_strided_slice %101 {offsets = [0, 0, 0], sizes = [15, 16, 4], strides = [1, 1, 1]} : vector<16x16x4xf32> to vector<15x16x4xf32>
    %103 = tpu.concatenate %2, %102 in 0 : vector<1x16x4xf32>, vector<15x16x4xf32> -> vector<16x16x4xf32>
    %104 = vector.extract_strided_slice %101 {offsets = [1, 0, 0], sizes = [15, 16, 4], strides = [1, 1, 1]} : vector<16x16x4xf32> to vector<15x16x4xf32>
    %105 = tpu.concatenate %104, %2 in 0 : vector<15x16x4xf32>, vector<1x16x4xf32> -> vector<16x16x4xf32>
    %106 = tpu.concatenate %103, %101, %105 in 2 : vector<16x16x4xf32>, vector<16x16x4xf32>, vector<16x16x4xf32> -> vector<16x16x12xf32>
    %c0_68 = arith.constant 0 : index
    %c1_69 = arith.constant 1 : index
    %c0_70 = arith.constant 0 : index
    %107 = vector.load %arg5[%c0_68, %c1_69, %c0_70] : memref<16x18x12xf32, #tpu.memory_space<vmem>>, vector<16x16x12xf32>
    tpu.vector_store %arg5[%c0_68, %c1_69, %c0_70], %106 {strides = array<i32>} : memref<16x18x12xf32, #tpu.memory_space<vmem>>, vector<16x16x12xf32>,
    %c0_71 = arith.constant 0 : index
    %c0_72 = arith.constant 0 : index
    %c0_73 = arith.constant 0 : index
    %108 = vector.load %arg5[%c0_71, %c0_72, %c0_73] : memref<16x18x12xf32, #tpu.memory_space<vmem>>, vector<16x16x12xf32>
    %109 = vector.shape_cast %108 : vector<16x16x12xf32> to vector<256x12xf32>
    %110 = vector.extract_strided_slice %69 {offsets = [0, 0, 0], sizes = [1, 12, 4], strides = [1, 1, 1]} : vector<3x12x4xf32> to vector<1x12x4xf32>
    %111 = vector.shape_cast %110 : vector<1x12x4xf32> to vector<12x4xf32>
    %cst_74 = arith.constant dense<0.000000e+00> : vector<256x4xf32>
    %112 = tpu.matmul %109, %111, %cst_74 {dimension_numbers = #tpu.dot_dimension_numbers<[1], [0], [0], [1], [0, 0, 1, 1], [], []>} : vector<256x12xf32>, vector<12x4xf32>, vector<256x4xf32> -> vector<256x4xf32>
    %c0_75 = arith.constant 0 : index
    %c1_76 = arith.constant 1 : index
    %c0_77 = arith.constant 0 : index
    %113 = vector.load %arg5[%c0_75, %c1_76, %c0_77] : memref<16x18x12xf32, #tpu.memory_space<vmem>>, vector<16x16x12xf32>
    %114 = vector.shape_cast %113 : vector<16x16x12xf32> to vector<256x12xf32>
    %115 = vector.extract_strided_slice %69 {offsets = [1, 0, 0], sizes = [1, 12, 4], strides = [1, 1, 1]} : vector<3x12x4xf32> to vector<1x12x4xf32>
    %116 = vector.shape_cast %115 : vector<1x12x4xf32> to vector<12x4xf32>
    %cst_78 = arith.constant dense<0.000000e+00> : vector<256x4xf32>
    %117 = tpu.matmul %114, %116, %cst_78 {dimension_numbers = #tpu.dot_dimension_numbers<[1], [0], [0], [1], [0, 0, 1, 1], [], []>} : vector<256x12xf32>, vector<12x4xf32>, vector<256x4xf32> -> vector<256x4xf32>
    %118 = arith.addf %112, %117 : vector<256x4xf32>
    %c0_79 = arith.constant 0 : index
    %c2_80 = arith.constant 2 : index
    %c0_81 = arith.constant 0 : index
    %119 = vector.load %arg5[%c0_79, %c2_80, %c0_81] : memref<16x18x12xf32, #tpu.memory_space<vmem>>, vector<16x16x12xf32>
    %120 = vector.shape_cast %119 : vector<16x16x12xf32> to vector<256x12xf32>
    %121 = vector.extract_strided_slice %69 {offsets = [2, 0, 0], sizes = [1, 12, 4], strides = [1, 1, 1]} : vector<3x12x4xf32> to vector<1x12x4xf32>
    %122 = vector.shape_cast %121 : vector<1x12x4xf32> to vector<12x4xf32>
    %cst_82 = arith.constant dense<0.000000e+00> : vector<256x4xf32>
    %123 = tpu.matmul %120, %122, %cst_82 {dimension_numbers = #tpu.dot_dimension_numbers<[1], [0], [0], [1], [0, 0, 1, 1], [], []>} : vector<256x12xf32>, vector<12x4xf32>, vector<256x4xf32> -> vector<256x4xf32>
    %124 = arith.addf %118, %123 : vector<256x4xf32>
    %125 = vector.shape_cast %124 : vector<256x4xf32> to vector<16x16x4xf32>
    %126 = vector.shape_cast %71 : vector<1x4xf32> to vector<1x1x4xf32>
    %127 = vector.broadcast %126 : vector<1x1x4xf32> to vector<16x16x4xf32>
    %128 = arith.addf %125, %127 : vector<16x16x4xf32>
    %cst_83 = arith.constant 0.000000e+00 : f32
    %129 = vector.broadcast %cst_83 : f32 to vector<16x16x4xf32>
    %130 = arith.maximumf %128, %129 : vector<16x16x4xf32>
    %131 = arith.addf %1, %130 : vector<16x16x4xf32>
    %c0_84 = arith.constant 0 : index
    %c0_85 = arith.constant 0 : index
    %c0_86 = arith.constant 0 : index
    %c0_87 = arith.constant 0 : index
    %132 = vector.load %arg4[%c0_84, %c0_85, %c0_86, %c0_87] : memref<1x16x16x4xf32, #tpu.memory_space<vmem>>, vector<1x16x16x4xf32>
    %133 = vector.shape_cast %132 : vector<1x16x16x4xf32> to vector<16x16x4xf32>
    %134 = vector.shape_cast %131 : vector<16x16x4xf32> to vector<1x16x16x4xf32>
    tpu.vector_store %arg4[%c0_84, %c0_85, %c0_86, %c0_87], %134 {strides = array<i32>} : memref<1x16x16x4xf32, #tpu.memory_space<vmem>>, vector<1x16x16x4xf32>,
    return
  }
  func.func @transform_0(%arg0: i32) -> (i32, i32, i32, i32) {
    %c0_i32 = arith.constant 0 : i32
    %c0_i32_0 = arith.constant 0 : i32
    %c0_i32_1 = arith.constant 0 : i32
    %c0_i32_2 = arith.constant 0 : i32
    return %arg0, %c0_i32, %c0_i32_0, %c0_i32_1 : i32, i32, i32, i32
  }
  func.func @transform_1(%arg0: i32) -> (i32, i32, i32, i32) {
    %c0_i32 = arith.constant 0 : i32
    %c0_i32_0 = arith.constant 0 : i32
    %c0_i32_1 = arith.constant 0 : i32
    %c0_i32_2 = arith.constant 0 : i32
    %c0_i32_3 = arith.constant 0 : i32
    return %c0_i32, %c0_i32_0, %c0_i32_1, %c0_i32_2 : i32, i32, i32, i32
  }
  func.func @transform_2(%arg0: i32) -> (i32, i32, i32) {
    %c0_i32 = arith.constant 0 : i32
    %c0_i32_0 = arith.constant 0 : i32
    %c0_i32_1 = arith.constant 0 : i32
    %c0_i32_2 = arith.constant 0 : i32
    return %c0_i32, %c0_i32_0, %c0_i32_1 : i32, i32, i32
  }
  func.func @transform_3(%arg0: i32) -> (i32, i32, i32, i32) {
    %c0_i32 = arith.constant 0 : i32
    %c0_i32_0 = arith.constant 0 : i32
    %c0_i32_1 = arith.constant 0 : i32
    %c0_i32_2 = arith.constant 0 : i32
    return %arg0, %c0_i32, %c0_i32_0, %c0_i32_1 : i32, i32, i32, i32
  }
}

module attributes {stable_mosaic.version = 11 : i64} {
  func.func @_head_kernel(%arg0: i32, %arg1: i32, %arg2: memref<1x4x8x8xf32, #tpu.memory_space<vmem>>, %arg3: memref<1x8x16x4xf32, #tpu.memory_space<vmem>>, %arg4: memref<2x16x8xf32, #tpu.memory_space<vmem>>, %arg5: memref<2x2x8x4xf32, #tpu.memory_space<vmem>>, %arg6: memref<1x4xf32, #tpu.memory_space<vmem>>, %arg7: memref<4x2xf32, #tpu.memory_space<vmem>>, %arg8: memref<1x2xf32, #tpu.memory_space<vmem>>, %arg9: memref<4x2xf32, #tpu.memory_space<vmem>>, %arg10: memref<1x2xf32, #tpu.memory_space<vmem>>, %arg11: memref<2x1xf32, #tpu.memory_space<vmem>>, %arg12: memref<1x1xf32, #tpu.memory_space<vmem>>, %arg13: memref<4x4xf32, #tpu.memory_space<vmem>>, %arg14: memref<4x4xf32, #tpu.memory_space<vmem>>, %arg15: memref<1x4xf32, #tpu.memory_space<vmem>>, %arg16: memref<1x8x16x4xf32, #tpu.memory_space<vmem>>) attributes {dimension_semantics = [#tpu.dimension_semantics<parallel>, #tpu.dimension_semantics<parallel>], iteration_bounds = array<i64: 2, 2>, scalar_prefetch = 0 : i64, scratch_operands = 0 : i64, tpu.core_type = #tpu.core_type<tc>, window_params = [{transform_indices = @transform_0, window_bounds = array<i64: 1, 4, 8, 8>}, {transform_indices = @transform_1, window_bounds = array<i64: 1, 8, 16, 4>}, {pipeline_mode = #tpu.pipeline_mode<synchronous>, transform_indices = @transform_2, window_bounds = array<i64: 2, 16, 8>}, {pipeline_mode = #tpu.pipeline_mode<synchronous>, transform_indices = @transform_3, window_bounds = array<i64: 2, 2, 8, 4>}, {pipeline_mode = #tpu.pipeline_mode<synchronous>, transform_indices = @transform_4, window_bounds = array<i64: 1, 4>}, {pipeline_mode = #tpu.pipeline_mode<synchronous>, transform_indices = @transform_5, window_bounds = array<i64: 4, 2>}, {pipeline_mode = #tpu.pipeline_mode<synchronous>, transform_indices = @transform_6, window_bounds = array<i64: 1, 2>}, {pipeline_mode = #tpu.pipeline_mode<synchronous>, transform_indices = @transform_7, window_bounds = array<i64: 4, 2>}, {pipeline_mode = #tpu.pipeline_mode<synchronous>, transform_indices = @transform_8, window_bounds = array<i64: 1, 2>}, {pipeline_mode = #tpu.pipeline_mode<synchronous>, transform_indices = @transform_9, window_bounds = array<i64: 2, 1>}, {pipeline_mode = #tpu.pipeline_mode<synchronous>, transform_indices = @transform_10, window_bounds = array<i64: 1, 1>}, {pipeline_mode = #tpu.pipeline_mode<synchronous>, transform_indices = @transform_11, window_bounds = array<i64: 4, 4>}, {pipeline_mode = #tpu.pipeline_mode<synchronous>, transform_indices = @transform_12, window_bounds = array<i64: 4, 4>}, {pipeline_mode = #tpu.pipeline_mode<synchronous>, transform_indices = @transform_13, window_bounds = array<i64: 1, 4>}, {transform_indices = @transform_14, window_bounds = array<i64: 1, 8, 16, 4>}]} {
    %c0 = arith.constant 0 : index
    %c0_0 = arith.constant 0 : index
    %c0_1 = arith.constant 0 : index
    %c0_2 = arith.constant 0 : index
    %0 = vector.load %arg2[%c0, %c0_0, %c0_1, %c0_2] : memref<1x4x8x8xf32, #tpu.memory_space<vmem>>, vector<1x4x8x8xf32>
    %1 = vector.shape_cast %0 : vector<1x4x8x8xf32> to vector<4x8x8xf32>
    %2 = vector.shape_cast %1 : vector<4x8x8xf32> to vector<32x8xf32>
    %c0_3 = arith.constant 0 : index
    %c0_4 = arith.constant 0 : index
    %c0_5 = arith.constant 0 : index
    %3 = vector.load %arg4[%c0_3, %c0_4, %c0_5] : memref<2x16x8xf32, #tpu.memory_space<vmem>>, vector<1x16x8xf32>
    %4 = vector.shape_cast %3 : vector<1x16x8xf32> to vector<16x8xf32>
    %5 = vector.shape_cast %4 : vector<16x8xf32> to vector<1x16x8xf32>
    %6 = vector.shape_cast %5 : vector<1x16x8xf32> to vector<1x16x8xf32>
    %7 = vector.broadcast %6 : vector<1x16x8xf32> to vector<4x16x8xf32>
    %c1 = arith.constant 1 : index
    %c0_6 = arith.constant 0 : index
    %c0_7 = arith.constant 0 : index
    %8 = vector.load %arg4[%c1, %c0_6, %c0_7] : memref<2x16x8xf32, #tpu.memory_space<vmem>>, vector<1x16x8xf32>
    %9 = vector.shape_cast %8 : vector<1x16x8xf32> to vector<16x8xf32>
    %10 = vector.shape_cast %9 : vector<16x8xf32> to vector<1x16x8xf32>
    %11 = vector.shape_cast %10 : vector<1x16x8xf32> to vector<1x16x8xf32>
    %12 = vector.broadcast %11 : vector<1x16x8xf32> to vector<4x16x8xf32>
    %c0_8 = arith.constant 0 : index
    %c0_9 = arith.constant 0 : index
    %c0_10 = arith.constant 0 : index
    %c0_11 = arith.constant 0 : index
    %13 = vector.load %arg5[%c0_8, %c0_9, %c0_10, %c0_11] : memref<2x2x8x4xf32, #tpu.memory_space<vmem>>, vector<1x1x8x4xf32>
    %14 = vector.shape_cast %13 : vector<1x1x8x4xf32> to vector<8x4xf32>
    %cst = arith.constant dense<0.000000e+00> : vector<32x4xf32>
    %15 = tpu.matmul %2, %14, %cst {dimension_numbers = #tpu.dot_dimension_numbers<[1], [0], [0], [1], [0, 0, 1, 1], [], []>} : vector<32x8xf32>, vector<8x4xf32>, vector<32x4xf32> -> vector<32x4xf32>
    %16 = vector.shape_cast %15 : vector<32x4xf32> to vector<4x8x4xf32>
    %c0_12 = arith.constant 0 : index
    %c1_13 = arith.constant 1 : index
    %c0_14 = arith.constant 0 : index
    %c0_15 = arith.constant 0 : index
    %17 = vector.load %arg5[%c0_12, %c1_13, %c0_14, %c0_15] : memref<2x2x8x4xf32, #tpu.memory_space<vmem>>, vector<1x1x8x4xf32>
    %18 = vector.shape_cast %17 : vector<1x1x8x4xf32> to vector<8x4xf32>
    %cst_16 = arith.constant dense<0.000000e+00> : vector<32x4xf32>
    %19 = tpu.matmul %2, %18, %cst_16 {dimension_numbers = #tpu.dot_dimension_numbers<[1], [0], [0], [1], [0, 0, 1, 1], [], []>} : vector<32x8xf32>, vector<8x4xf32>, vector<32x4xf32> -> vector<32x4xf32>
    %20 = vector.shape_cast %19 : vector<32x4xf32> to vector<4x8x4xf32>
    "tpu.trace_start"() <{level = 10 : i32, message = "iJw,iwc->iJc"}> : () -> ()
    %cst_17 = arith.constant dense<0.000000e+00> : vector<4x16x4xf32>
    %21 = tpu.matmul %7, %16, %cst_17 {dimension_numbers = #tpu.dot_dimension_numbers<[2], [1], [1], [2], [0, 0, 0, 1, 1, 2], [0], [0]>} : vector<4x16x8xf32>, vector<4x8x4xf32>, vector<4x16x4xf32> -> vector<4x16x4xf32>
    %cst_18 = arith.constant dense<0.000000e+00> : vector<4x16x4xf32>
    %22 = tpu.matmul %12, %20, %cst_18 {dimension_numbers = #tpu.dot_dimension_numbers<[2], [1], [1], [2], [0, 0, 0, 1, 1, 2], [0], [0]>} : vector<4x16x8xf32>, vector<4x8x4xf32>, vector<4x16x4xf32> -> vector<4x16x4xf32>
    "tpu.trace_stop"() : () -> ()
    %23 = arith.addf %21, %22 : vector<4x16x4xf32>
    %c0_19 = arith.constant 0 : index
    %c0_20 = arith.constant 0 : index
    %24 = vector.load %arg6[%c0_19, %c0_20] : memref<1x4xf32, #tpu.memory_space<vmem>>, vector<1x4xf32>
    %25 = vector.shape_cast %24 : vector<1x4xf32> to vector<1x1x4xf32>
    %26 = vector.broadcast %25 : vector<1x1x4xf32> to vector<4x16x4xf32>
    %27 = arith.addf %23, %26 : vector<4x16x4xf32>
    %c1_21 = arith.constant 1 : index
    %c0_22 = arith.constant 0 : index
    %c0_23 = arith.constant 0 : index
    %c0_24 = arith.constant 0 : index
    %28 = vector.load %arg5[%c1_21, %c0_22, %c0_23, %c0_24] : memref<2x2x8x4xf32, #tpu.memory_space<vmem>>, vector<1x1x8x4xf32>
    %29 = vector.shape_cast %28 : vector<1x1x8x4xf32> to vector<8x4xf32>
    %cst_25 = arith.constant dense<0.000000e+00> : vector<32x4xf32>
    %30 = tpu.matmul %2, %29, %cst_25 {dimension_numbers = #tpu.dot_dimension_numbers<[1], [0], [0], [1], [0, 0, 1, 1], [], []>} : vector<32x8xf32>, vector<8x4xf32>, vector<32x4xf32> -> vector<32x4xf32>
    %31 = vector.shape_cast %30 : vector<32x4xf32> to vector<4x8x4xf32>
    %c1_26 = arith.constant 1 : index
    %c1_27 = arith.constant 1 : index
    %c0_28 = arith.constant 0 : index
    %c0_29 = arith.constant 0 : index
    %32 = vector.load %arg5[%c1_26, %c1_27, %c0_28, %c0_29] : memref<2x2x8x4xf32, #tpu.memory_space<vmem>>, vector<1x1x8x4xf32>
    %33 = vector.shape_cast %32 : vector<1x1x8x4xf32> to vector<8x4xf32>
    %cst_30 = arith.constant dense<0.000000e+00> : vector<32x4xf32>
    %34 = tpu.matmul %2, %33, %cst_30 {dimension_numbers = #tpu.dot_dimension_numbers<[1], [0], [0], [1], [0, 0, 1, 1], [], []>} : vector<32x8xf32>, vector<8x4xf32>, vector<32x4xf32> -> vector<32x4xf32>
    %35 = vector.shape_cast %34 : vector<32x4xf32> to vector<4x8x4xf32>
    "tpu.trace_start"() <{level = 10 : i32, message = "iJw,iwc->iJc"}> : () -> ()
    %cst_31 = arith.constant dense<0.000000e+00> : vector<4x16x4xf32>
    %36 = tpu.matmul %7, %31, %cst_31 {dimension_numbers = #tpu.dot_dimension_numbers<[2], [1], [1], [2], [0, 0, 0, 1, 1, 2], [0], [0]>} : vector<4x16x8xf32>, vector<4x8x4xf32>, vector<4x16x4xf32> -> vector<4x16x4xf32>
    %cst_32 = arith.constant dense<0.000000e+00> : vector<4x16x4xf32>
    %37 = tpu.matmul %12, %35, %cst_32 {dimension_numbers = #tpu.dot_dimension_numbers<[2], [1], [1], [2], [0, 0, 0, 1, 1, 2], [0], [0]>} : vector<4x16x8xf32>, vector<4x8x4xf32>, vector<4x16x4xf32> -> vector<4x16x4xf32>
    "tpu.trace_stop"() : () -> ()
    %38 = arith.addf %36, %37 : vector<4x16x4xf32>
    %c0_33 = arith.constant 0 : index
    %c0_34 = arith.constant 0 : index
    %39 = vector.load %arg6[%c0_33, %c0_34] : memref<1x4xf32, #tpu.memory_space<vmem>>, vector<1x4xf32>
    %40 = vector.shape_cast %39 : vector<1x4xf32> to vector<1x1x4xf32>
    %41 = vector.broadcast %40 : vector<1x1x4xf32> to vector<4x16x4xf32>
    %42 = arith.addf %38, %41 : vector<4x16x4xf32>
    %43 = vector.shape_cast %27 : vector<4x16x4xf32> to vector<4x1x16x4xf32>
    %44 = vector.shape_cast %42 : vector<4x16x4xf32> to vector<4x1x16x4xf32>
    %45 = tpu.concatenate %43, %44 in 1 : vector<4x1x16x4xf32>, vector<4x1x16x4xf32> -> vector<4x2x16x4xf32>
    %46 = vector.shape_cast %45 : vector<4x2x16x4xf32> to vector<8x16x4xf32>
    %47 = vector.shape_cast %46 : vector<8x16x4xf32> to vector<128x4xf32>
    %c0_35 = arith.constant 0 : index
    %c0_36 = arith.constant 0 : index
    %c0_37 = arith.constant 0 : index
    %c0_38 = arith.constant 0 : index
    %48 = vector.load %arg3[%c0_35, %c0_36, %c0_37, %c0_38] : memref<1x8x16x4xf32, #tpu.memory_space<vmem>>, vector<1x8x16x4xf32>
    %49 = vector.shape_cast %48 : vector<1x8x16x4xf32> to vector<8x16x4xf32>
    %50 = vector.shape_cast %49 : vector<8x16x4xf32> to vector<128x4xf32>
    %c0_39 = arith.constant 0 : index
    %c0_40 = arith.constant 0 : index
    %51 = vector.load %arg7[%c0_39, %c0_40] : memref<4x2xf32, #tpu.memory_space<vmem>>, vector<4x2xf32>
    %cst_41 = arith.constant dense<0.000000e+00> : vector<128x2xf32>
    %52 = tpu.matmul %47, %51, %cst_41 {dimension_numbers = #tpu.dot_dimension_numbers<[1], [0], [0], [1], [0, 0, 1, 1], [], []>} : vector<128x4xf32>, vector<4x2xf32>, vector<128x2xf32> -> vector<128x2xf32>
    %c0_42 = arith.constant 0 : index
    %c0_43 = arith.constant 0 : index
    %53 = vector.load %arg8[%c0_42, %c0_43] : memref<1x2xf32, #tpu.memory_space<vmem>>, vector<1x2xf32>
    %54 = vector.broadcast %53 : vector<1x2xf32> to vector<128x2xf32>
    %55 = arith.addf %52, %54 : vector<128x2xf32>
    %c0_44 = arith.constant 0 : index
    %c0_45 = arith.constant 0 : index
    %56 = vector.load %arg9[%c0_44, %c0_45] : memref<4x2xf32, #tpu.memory_space<vmem>>, vector<4x2xf32>
    %cst_46 = arith.constant dense<0.000000e+00> : vector<128x2xf32>
    %57 = tpu.matmul %50, %56, %cst_46 {dimension_numbers = #tpu.dot_dimension_numbers<[1], [0], [0], [1], [0, 0, 1, 1], [], []>} : vector<128x4xf32>, vector<4x2xf32>, vector<128x2xf32> -> vector<128x2xf32>
    %c0_47 = arith.constant 0 : index
    %c0_48 = arith.constant 0 : index
    %58 = vector.load %arg10[%c0_47, %c0_48] : memref<1x2xf32, #tpu.memory_space<vmem>>, vector<1x2xf32>
    %59 = vector.broadcast %58 : vector<1x2xf32> to vector<128x2xf32>
    %60 = arith.addf %57, %59 : vector<128x2xf32>
    %61 = arith.addf %55, %60 : vector<128x2xf32>
    %cst_49 = arith.constant 0.000000e+00 : f32
    %62 = vector.broadcast %cst_49 : f32 to vector<128x2xf32>
    %63 = arith.maximumf %61, %62 : vector<128x2xf32>
    %c0_50 = arith.constant 0 : index
    %c0_51 = arith.constant 0 : index
    %64 = vector.load %arg11[%c0_50, %c0_51] : memref<2x1xf32, #tpu.memory_space<vmem>>, vector<2x1xf32>
    %cst_52 = arith.constant dense<0.000000e+00> : vector<128x1xf32>
    %65 = tpu.matmul %63, %64, %cst_52 {dimension_numbers = #tpu.dot_dimension_numbers<[1], [0], [0], [1], [0, 0, 1, 1], [], []>} : vector<128x2xf32>, vector<2x1xf32>, vector<128x1xf32> -> vector<128x1xf32>
    %c0_53 = arith.constant 0 : index
    %c0_54 = arith.constant 0 : index
    %66 = vector.load %arg12[%c0_53, %c0_54] : memref<1x1xf32, #tpu.memory_space<vmem>>, vector<1x1xf32>
    %67 = vector.broadcast %66 : vector<1x1xf32> to vector<128x1xf32>
    %68 = arith.addf %65, %67 : vector<128x1xf32>
    %cst_55 = arith.constant 0.000000e+00 : f32
    %69 = vector.broadcast %cst_55 : f32 to vector<128x1xf32>
    %70 = arith.subf %69, %68 : vector<128x1xf32>
    %71 = math.exp %70 : vector<128x1xf32>
    %cst_56 = arith.constant 1.000000e+00 : f32
    %72 = vector.broadcast %cst_56 : f32 to vector<128x1xf32>
    %73 = arith.addf %72, %71 : vector<128x1xf32>
    %74 = tpu.reciprocal %73 {approx = true} : vector<128x1xf32> -> vector<128x1xf32>
    %75 = vector.broadcast %74 : vector<128x1xf32> to vector<128x4xf32>
    %76 = arith.mulf %50, %75 : vector<128x4xf32>
    %c0_57 = arith.constant 0 : index
    %c0_58 = arith.constant 0 : index
    %77 = vector.load %arg13[%c0_57, %c0_58] : memref<4x4xf32, #tpu.memory_space<vmem>>, vector<4x4xf32>
    %cst_59 = arith.constant dense<0.000000e+00> : vector<128x4xf32>
    %78 = tpu.matmul %76, %77, %cst_59 {dimension_numbers = #tpu.dot_dimension_numbers<[1], [0], [0], [1], [0, 0, 1, 1], [], []>} : vector<128x4xf32>, vector<4x4xf32>, vector<128x4xf32> -> vector<128x4xf32>
    %c0_60 = arith.constant 0 : index
    %c0_61 = arith.constant 0 : index
    %79 = vector.load %arg14[%c0_60, %c0_61] : memref<4x4xf32, #tpu.memory_space<vmem>>, vector<4x4xf32>
    %cst_62 = arith.constant dense<0.000000e+00> : vector<128x4xf32>
    %80 = tpu.matmul %47, %79, %cst_62 {dimension_numbers = #tpu.dot_dimension_numbers<[1], [0], [0], [1], [0, 0, 1, 1], [], []>} : vector<128x4xf32>, vector<4x4xf32>, vector<128x4xf32> -> vector<128x4xf32>
    %81 = arith.addf %78, %80 : vector<128x4xf32>
    %c0_63 = arith.constant 0 : index
    %c0_64 = arith.constant 0 : index
    %82 = vector.load %arg15[%c0_63, %c0_64] : memref<1x4xf32, #tpu.memory_space<vmem>>, vector<1x4xf32>
    %83 = vector.broadcast %82 : vector<1x4xf32> to vector<128x4xf32>
    %84 = arith.addf %81, %83 : vector<128x4xf32>
    %85 = vector.shape_cast %84 : vector<128x4xf32> to vector<8x16x4xf32>
    %c0_65 = arith.constant 0 : index
    %c0_66 = arith.constant 0 : index
    %c0_67 = arith.constant 0 : index
    %c0_68 = arith.constant 0 : index
    %86 = vector.load %arg16[%c0_65, %c0_66, %c0_67, %c0_68] : memref<1x8x16x4xf32, #tpu.memory_space<vmem>>, vector<1x8x16x4xf32>
    %87 = vector.shape_cast %86 : vector<1x8x16x4xf32> to vector<8x16x4xf32>
    %88 = vector.shape_cast %85 : vector<8x16x4xf32> to vector<1x8x16x4xf32>
    tpu.vector_store %arg16[%c0_65, %c0_66, %c0_67, %c0_68], %88 {strides = array<i32>} : memref<1x8x16x4xf32, #tpu.memory_space<vmem>>, vector<1x8x16x4xf32>,
    return
  }
  func.func @transform_0(%arg0: i32, %arg1: i32) -> (i32, i32, i32, i32) {
    %c0_i32 = arith.constant 0 : i32
    %c0_i32_0 = arith.constant 0 : i32
    %c0_i32_1 = arith.constant 0 : i32
    return %arg0, %arg1, %c0_i32, %c0_i32_0 : i32, i32, i32, i32
  }
  func.func @transform_1(%arg0: i32, %arg1: i32) -> (i32, i32, i32, i32) {
    %c0_i32 = arith.constant 0 : i32
    %c0_i32_0 = arith.constant 0 : i32
    %c0_i32_1 = arith.constant 0 : i32
    return %arg0, %arg1, %c0_i32, %c0_i32_0 : i32, i32, i32, i32
  }
  func.func @transform_2(%arg0: i32, %arg1: i32) -> (i32, i32, i32) {
    %c0_i32 = arith.constant 0 : i32
    %c0_i32_0 = arith.constant 0 : i32
    %c0_i32_1 = arith.constant 0 : i32
    %c0_i32_2 = arith.constant 0 : i32
    return %c0_i32, %c0_i32_0, %c0_i32_1 : i32, i32, i32
  }
  func.func @transform_3(%arg0: i32, %arg1: i32) -> (i32, i32, i32, i32) {
    %c0_i32 = arith.constant 0 : i32
    %c0_i32_0 = arith.constant 0 : i32
    %c0_i32_1 = arith.constant 0 : i32
    %c0_i32_2 = arith.constant 0 : i32
    %c0_i32_3 = arith.constant 0 : i32
    return %c0_i32, %c0_i32_0, %c0_i32_1, %c0_i32_2 : i32, i32, i32, i32
  }
  func.func @transform_4(%arg0: i32, %arg1: i32) -> (i32, i32) {
    %c0_i32 = arith.constant 0 : i32
    %c0_i32_0 = arith.constant 0 : i32
    %c0_i32_1 = arith.constant 0 : i32
    return %c0_i32, %c0_i32_0 : i32, i32
  }
  func.func @transform_5(%arg0: i32, %arg1: i32) -> (i32, i32) {
    %c0_i32 = arith.constant 0 : i32
    %c0_i32_0 = arith.constant 0 : i32
    %c0_i32_1 = arith.constant 0 : i32
    return %c0_i32, %c0_i32_0 : i32, i32
  }
  func.func @transform_6(%arg0: i32, %arg1: i32) -> (i32, i32) {
    %c0_i32 = arith.constant 0 : i32
    %c0_i32_0 = arith.constant 0 : i32
    %c0_i32_1 = arith.constant 0 : i32
    return %c0_i32, %c0_i32_0 : i32, i32
  }
  func.func @transform_7(%arg0: i32, %arg1: i32) -> (i32, i32) {
    %c0_i32 = arith.constant 0 : i32
    %c0_i32_0 = arith.constant 0 : i32
    %c0_i32_1 = arith.constant 0 : i32
    return %c0_i32, %c0_i32_0 : i32, i32
  }
  func.func @transform_8(%arg0: i32, %arg1: i32) -> (i32, i32) {
    %c0_i32 = arith.constant 0 : i32
    %c0_i32_0 = arith.constant 0 : i32
    %c0_i32_1 = arith.constant 0 : i32
    return %c0_i32, %c0_i32_0 : i32, i32
  }
  func.func @transform_9(%arg0: i32, %arg1: i32) -> (i32, i32) {
    %c0_i32 = arith.constant 0 : i32
    %c0_i32_0 = arith.constant 0 : i32
    %c0_i32_1 = arith.constant 0 : i32
    return %c0_i32, %c0_i32_0 : i32, i32
  }
  func.func @transform_10(%arg0: i32, %arg1: i32) -> (i32, i32) {
    %c0_i32 = arith.constant 0 : i32
    %c0_i32_0 = arith.constant 0 : i32
    %c0_i32_1 = arith.constant 0 : i32
    return %c0_i32, %c0_i32_0 : i32, i32
  }
  func.func @transform_11(%arg0: i32, %arg1: i32) -> (i32, i32) {
    %c0_i32 = arith.constant 0 : i32
    %c0_i32_0 = arith.constant 0 : i32
    %c0_i32_1 = arith.constant 0 : i32
    return %c0_i32, %c0_i32_0 : i32, i32
  }
  func.func @transform_12(%arg0: i32, %arg1: i32) -> (i32, i32) {
    %c0_i32 = arith.constant 0 : i32
    %c0_i32_0 = arith.constant 0 : i32
    %c0_i32_1 = arith.constant 0 : i32
    return %c0_i32, %c0_i32_0 : i32, i32
  }
  func.func @transform_13(%arg0: i32, %arg1: i32) -> (i32, i32) {
    %c0_i32 = arith.constant 0 : i32
    %c0_i32_0 = arith.constant 0 : i32
    %c0_i32_1 = arith.constant 0 : i32
    return %c0_i32, %c0_i32_0 : i32, i32
  }
  func.func @transform_14(%arg0: i32, %arg1: i32) -> (i32, i32, i32, i32) {
    %c0_i32 = arith.constant 0 : i32
    %c0_i32_0 = arith.constant 0 : i32
    %c0_i32_1 = arith.constant 0 : i32
    return %arg0, %arg1, %c0_i32, %c0_i32_0 : i32, i32, i32, i32
  }
}

</mosaic_0001>

<llo_original>
// kernel: _lambda_.2
$region0: #{_lambda_.2}
  #allocation0 [shape = 'u32[]', space=smem, size = 0x4, offset = 0x4, fixed_abs, tag = 'smem constant byte address 0x4 - core index']
  #allocation1 [shape = 'u32[144,128]{1,0:T(1,128)}', space=vmem, size = 0x12000, scoped, tag = 'internal scratch']
  #allocation2 [shape = 'f32[1,1]{1,0:T(1,128)S(1)}', space=vmem, size = 0x200, scoped, tag = 'scoped memory for _lambda_.2']
  %s0 = inlined_call_operand.vmem [shape: f32[2,8,8,8], index: 0, kind: input, shape index: {}]
  %s1 = inlined_call_operand.vmem [shape: f32[2,16,16,4], index: 1, kind: input, shape index: {}]
  %s2 = inlined_call_operand.vmem [shape: f32[2,16,8], index: 2, kind: input, shape index: {}]
  %s3 = inlined_call_operand.vmem [shape: f32[2,2,8,4], index: 3, kind: input, shape index: {}]
  %s4 = inlined_call_operand.vmem [shape: f32[1,4], index: 4, kind: input, shape index: {}]
  %s5 = inlined_call_operand.vmem [shape: f32[4,2], index: 5, kind: input, shape index: {}]
  %s6 = inlined_call_operand.vmem [shape: f32[1,2], index: 6, kind: input, shape index: {}]
  %s7 = inlined_call_operand.vmem [shape: f32[4,2], index: 7, kind: input, shape index: {}]
  %s8 = inlined_call_operand.vmem [shape: f32[1,2], index: 8, kind: input, shape index: {}]
  %s9 = inlined_call_operand.vmem [shape: f32[2,1], index: 9, kind: input, shape index: {}]
  %s10 = inlined_call_operand.<no memory space> [shape: f32[1,1], index: 10, kind: input, shape index: {}]
  %s11 = inlined_call_operand.vmem [shape: f32[4,4], index: 11, kind: input, shape index: {}]
  %s12 = inlined_call_operand.vmem [shape: f32[4,4], index: 12, kind: input, shape index: {}]
  %s13 = inlined_call_operand.vmem [shape: f32[1,4], index: 13, kind: input, shape index: {}]
  %s14 = inlined_call_operand.vmem [shape: f32[2,16,16,4], index: 14, kind: output, shape index: {}]
  %s15 = sld [smem:[#allocation0]]
  $region89: #{_lambda_.2} parent=0
    _
  %s17 = ssub.s32 1, %s15
  %s18 = scalar_select 0, %s17, %s15
  %v19 = vstv %s10
  %20 = vst [vmem:[#allocation2] sm:$0x1] %v19
  loop: start=0, step=1, limit=6
  $region2: #{_lambda_.2} parent=0 // loop_pre_header
    _
  $region3: #{_lambda_.2} parent=0 // loop_header
    %s22 = sphi 0, %s26
    %p23 = scmp.ge.s32.totalorder %s22, 6
    %s29 = sphi 0, %s41
    %s30 = sphi 0, %s37
    %s31 = sphi 0, %s29
    %s32 = sphi 0, %s30
    %s33 = sphi 0, %s31
    %s34 = sphi 0, %s32
    %s46 = sphi 0, %s48
    %s49 = sphi 0, %s46
    %s50 = sphi 0, %s49
    %s66 = sphi 0, %s50
    %s74 = sphi 0, %s76
    %s77 = sphi 0, %s74
    %s78 = sphi 0, %s77
    %s94 = sphi 0, %s78
    %s98 = sphi 0, %s98
    %s100 = sphi 0, %s98
    %s101 = sphi 0, %s100
    %s115 = sphi 0, %s101
    %s119 = sphi 0, %s119
    %s121 = sphi 0, %s119
    %s122 = sphi 0, %s121
    %s136 = sphi 0, %s122
    %s140 = sphi 0, %s140
    %s142 = sphi 0, %s140
    %s143 = sphi 0, %s142
    %s157 = sphi 0, %s143
    %s161 = sphi 0, %s161
    %s163 = sphi 0, %s161
    %s164 = sphi 0, %s163
    %s178 = sphi 0, %s164
    %s182 = sphi 0, %s182
    %s184 = sphi 0, %s182
    %s185 = sphi 0, %s184
    %s199 = sphi 0, %s185
    %s203 = sphi 0, %s203
    %s205 = sphi 0, %s203
    %s206 = sphi 0, %s205
    %s220 = sphi 0, %s206
    %s224 = sphi 0, %s224
    %s226 = sphi 0, %s224
    %s227 = sphi 0, %s226
    %s241 = sphi 0, %s227
    %s245 = sphi 0, %s245
    %s247 = sphi 0, %s245
    %s248 = sphi 0, %s247
    %s262 = sphi 0, %s248
    %s266 = sphi 0, %s266
    %s268 = sphi 0, %s266
    %s269 = sphi 0, %s268
    %s283 = sphi 0, %s269
    %s287 = sphi 0, %s287
    %s289 = sphi 0, %s287
    %s290 = sphi 0, %s289
    %s304 = sphi 0, %s290
    %s308 = sphi 0, %s308
    %s310 = sphi 0, %s308
    %s311 = sphi 0, %s310
    %s325 = sphi 0, %s311
    %s329 = sphi 0, %s329
    %s331 = sphi 0, %s329
    %s332 = sphi 0, %s331
    %s346 = sphi 0, %s332
    %s354 = sphi 0, %s356
    %s357 = sphi 0, %s354
    %s358 = sphi 0, %s357
    %s374 = sphi 0, %s358
  $region4: #{_lambda_.2} parent=0 // loop_header_branch
    %25 = sbr.rel (%p23) target = $region8
  $region5: #{_lambda_.2} parent=0 // loop_body
    %s27 = ssub.s32 %s22, 1
    %s28 = ssub.s32 %s22, 2
    %s35 = sadd.s32 1, %s30
    %p36 = scmp.ge.s32.totalorder %s35, 2
    %s37 = scalar_select %p36, 0, %s35
    %s38 = sadd.s32 1, %s29
    %s39 = scalar_select %p36, %s38, %s29
    %p40 = scmp.ge.s32.totalorder %s39, 2
    %s41 = scalar_select %p40, 0, %s39
    %s42 = ssub.s32 %s29, %s41
    %s43 = ssub.s32 %s30, %s37
    %s44 = sor.u32 %s42, %s43
    %p45 = scmp.eq.s32.totalorder %s44, 0
    %s47 = sadd.s32 %s46, 1
    %s48 = scalar_select %p45, %s46, %s47
    %p51 = pneg %p45
    %p52 = scmp.eq.s32.totalorder %s22, 3
    %p53 = por %p51, %p52
    %p54 = scmp.ne.s32.totalorder %s46, %s49
    %p55 = scmp.eq.s32.totalorder %s22, 0
    %p56 = por %p54, %p55
    %p57 = scmp.ne.s32.totalorder %s46, %s49
    %p58 = scmp.eq.s32.totalorder %s27, 3
    %p59 = por %p57, %p58
    %p60 = scmp.ne.s32.totalorder %s49, %s50
    %p61 = scmp.eq.s32.totalorder %s27, 0
    %p62 = por %p60, %p61
    %p63 = scmp.ne.s32.totalorder %s49, %s50
    %p64 = scmp.eq.s32.totalorder %s28, 3
    %p65 = por %p63, %p64
    %p67 = scmp.ne.s32.totalorder %s50, %s66
    %p68 = scmp.eq.s32.totalorder %s28, 0
    %p69 = por %p67, %p68
    %s70 = ssub.s32 %s29, %s41
    %s71 = ssub.s32 %s30, %s37
    %s72 = sor.u32 %s70, %s71
    %p73 = scmp.eq.s32.totalorder %s72, 0
    %s75 = sadd.s32 %s74, 1
    %s76 = scalar_select %p73, %s74, %s75
    %p79 = pneg %p73
    %p80 = scmp.eq.s32.totalorder %s22, 3
    %p81 = por %p79, %p80
    %p82 = scmp.ne.s32.totalorder %s74, %s77
    %p83 = scmp.eq.s32.totalorder %s22, 0
    %p84 = por %p82, %p83
    %p85 = scmp.ne.s32.totalorder %s74, %s77
    %p86 = scmp.eq.s32.totalorder %s27, 3
    %p87 = por %p85, %p86
    %p88 = scmp.ne.s32.totalorder %s77, %s78
    %p89 = scmp.eq.s32.totalorder %s27, 0
    %p90 = por %p88, %p89
    %p91 = scmp.ne.s32.totalorder %s77, %s78
    %p92 = scmp.eq.s32.totalorder %s28, 3
    %p93 = por %p91, %p92
    %p95 = scmp.ne.s32.totalorder %s78, %s94
    %p96 = scmp.eq.s32.totalorder %s28, 0
    %p97 = por %p95, %p96
    %s99 = sadd.s32 %s98, 1
    %p102 = scmp.eq.s32.totalorder %s22, 3
    %p103 = scmp.ne.s32.totalorder %s98, %s100
    %p104 = scmp.eq.s32.totalorder %s22, 0
    %p105 = por %p103, %p104
    %p106 = scmp.ne.s32.totalorder %s98, %s100
    %p107 = scmp.eq.s32.totalorder %s27, 3
    %p108 = por %p106, %p107
    %p109 = scmp.ne.s32.totalorder %s100, %s101
    %p110 = scmp.eq.s32.totalorder %s27, 0
    %p111 = por %p109, %p110
    %p112 = scmp.ne.s32.totalorder %s100, %s101
    %p113 = scmp.eq.s32.totalorder %s28, 3
    %p114 = por %p112, %p113
    %p116 = scmp.ne.s32.totalorder %s101, %s115
    %p117 = scmp.eq.s32.totalorder %s28, 0
    %p118 = por %p116, %p117
    %s120 = sadd.s32 %s119, 1
    %p123 = scmp.eq.s32.totalorder %s22, 3
    %p124 = scmp.ne.s32.totalorder %s119, %s121
    %p125 = scmp.eq.s32.totalorder %s22, 0
    %p126 = por %p124, %p125
    %p127 = scmp.ne.s32.totalorder %s119, %s121
    %p128 = scmp.eq.s32.totalorder %s27, 3
    %p129 = por %p127, %p128
    %p130 = scmp.ne.s32.totalorder %s121, %s122
    %p131 = scmp.eq.s32.totalorder %s27, 0
    %p132 = por %p130, %p131
    %p133 = scmp.ne.s32.totalorder %s121, %s122
    %p134 = scmp.eq.s32.totalorder %s28, 3
    %p135 = por %p133, %p134
    %p137 = scmp.ne.s32.totalorder %s122, %s136
    %p138 = scmp.eq.s32.totalorder %s28, 0
    %p139 = por %p137, %p138
    %s141 = sadd.s32 %s140, 1
    %p144 = scmp.eq.s32.totalorder %s22, 3
    %p145 = scmp.ne.s32.totalorder %s140, %s142
    %p146 = scmp.eq.s32.totalorder %s22, 0
    %p147 = por %p145, %p146
    %p148 = scmp.ne.s32.totalorder %s140, %s142
    %p149 = scmp.eq.s32.totalorder %s27, 3
    %p150 = por %p148, %p149
    %p151 = scmp.ne.s32.totalorder %s142, %s143
    %p152 = scmp.eq.s32.totalorder %s27, 0
    %p153 = por %p151, %p152
    %p154 = scmp.ne.s32.totalorder %s142, %s143
    %p155 = scmp.eq.s32.totalorder %s28, 3
    %p156 = por %p154, %p155
    %p158 = scmp.ne.s32.totalorder %s143, %s157
    %p159 = scmp.eq.s32.totalorder %s28, 0
    %p160 = por %p158, %p159
    %s162 = sadd.s32 %s161, 1
    %p165 = scmp.eq.s32.totalorder %s22, 3
    %p166 = scmp.ne.s32.totalorder %s161, %s163
    %p167 = scmp.eq.s32.totalorder %s22, 0
    %p168 = por %p166, %p167
    %p169 = scmp.ne.s32.totalorder %s161, %s163
    %p170 = scmp.eq.s32.totalorder %s27, 3
    %p171 = por %p169, %p170
    %p172 = scmp.ne.s32.totalorder %s163, %s164
    %p173 = scmp.eq.s32.totalorder %s27, 0
    %p174 = por %p172, %p173
    %p175 = scmp.ne.s32.totalorder %s163, %s164
    %p176 = scmp.eq.s32.totalorder %s28, 3
    %p177 = por %p175, %p176
    %p179 = scmp.ne.s32.totalorder %s164, %s178
    %p180 = scmp.eq.s32.totalorder %s28, 0
    %p181 = por %p179, %p180
    %s183 = sadd.s32 %s182, 1
    %p186 = scmp.eq.s32.totalorder %s22, 3
    %p187 = scmp.ne.s32.totalorder %s182, %s184
    %p188 = scmp.eq.s32.totalorder %s22, 0
    %p189 = por %p187, %p188
    %p190 = scmp.ne.s32.totalorder %s182, %s184
    %p191 = scmp.eq.s32.totalorder %s27, 3
    %p192 = por %p190, %p191
    %p193 = scmp.ne.s32.totalorder %s184, %s185
    %p194 = scmp.eq.s32.totalorder %s27, 0
    %p195 = por %p193, %p194
    %p196 = scmp.ne.s32.totalorder %s184, %s185
    %p197 = scmp.eq.s32.totalorder %s28, 3
    %p198 = por %p196, %p197
    %p200 = scmp.ne.s32.totalorder %s185, %s199
    %p201 = scmp.eq.s32.totalorder %s28, 0
    %p202 = por %p200, %p201
    %s204 = sadd.s32 %s203, 1
    %p207 = scmp.eq.s32.totalorder %s22, 3
    %p208 = scmp.ne.s32.totalorder %s203, %s205
    %p209 = scmp.eq.s32.totalorder %s22, 0
    %p210 = por %p208, %p209
    %p211 = scmp.ne.s32.totalorder %s203, %s205
    %p212 = scmp.eq.s32.totalorder %s27, 3
    %p213 = por %p211, %p212
    %p214 = scmp.ne.s32.totalorder %s205, %s206
    %p215 = scmp.eq.s32.totalorder %s27, 0
    %p216 = por %p214, %p215
    %p217 = scmp.ne.s32.totalorder %s205, %s206
    %p218 = scmp.eq.s32.totalorder %s28, 3
    %p219 = por %p217, %p218
    %p221 = scmp.ne.s32.totalorder %s206, %s220
    %p222 = scmp.eq.s32.totalorder %s28, 0
    %p223 = por %p221, %p222
    %s225 = sadd.s32 %s224, 1
    %p228 = scmp.eq.s32.totalorder %s22, 3
    %p229 = scmp.ne.s32.totalorder %s224, %s226
    %p230 = scmp.eq.s32.totalorder %s22, 0
    %p231 = por %p229, %p230
    %p232 = scmp.ne.s32.totalorder %s224, %s226
    %p233 = scmp.eq.s32.totalorder %s27, 3
    %p234 = por %p232, %p233
    %p235 = scmp.ne.s32.totalorder %s226, %s227
    %p236 = scmp.eq.s32.totalorder %s27, 0
    %p237 = por %p235, %p236
    %p238 = scmp.ne.s32.totalorder %s226, %s227
    %p239 = scmp.eq.s32.totalorder %s28, 3
    %p240 = por %p238, %p239
    %p242 = scmp.ne.s32.totalorder %s227, %s241
    %p243 = scmp.eq.s32.totalorder %s28, 0
    %p244 = por %p242, %p243
    %s246 = sadd.s32 %s245, 1
    %p249 = scmp.eq.s32.totalorder %s22, 3
    %p250 = scmp.ne.s32.totalorder %s245, %s247
    %p251 = scmp.eq.s32.totalorder %s22, 0
    %p252 = por %p250, %p251
    %p253 = scmp.ne.s32.totalorder %s245, %s247
    %p254 = scmp.eq.s32.totalorder %s27, 3
    %p255 = por %p253, %p254
    %p256 = scmp.ne.s32.totalorder %s247, %s248
    %p257 = scmp.eq.s32.totalorder %s27, 0
    %p258 = por %p256, %p257
    %p259 = scmp.ne.s32.totalorder %s247, %s248
    %p260 = scmp.eq.s32.totalorder %s28, 3
    %p261 = por %p259, %p260
    %p263 = scmp.ne.s32.totalorder %s248, %s262
    %p264 = scmp.eq.s32.totalorder %s28, 0
    %p265 = por %p263, %p264
    %s267 = sadd.s32 %s266, 1
    %p270 = scmp.eq.s32.totalorder %s22, 3
    %p271 = scmp.ne.s32.totalorder %s266, %s268
    %p272 = scmp.eq.s32.totalorder %s22, 0
    %p273 = por %p271, %p272
    %p274 = scmp.ne.s32.totalorder %s266, %s268
    %p275 = scmp.eq.s32.totalorder %s27, 3
    %p276 = por %p274, %p275
    %p277 = scmp.ne.s32.totalorder %s268, %s269
    %p278 = scmp.eq.s32.totalorder %s27, 0
    %p279 = por %p277, %p278
    %p280 = scmp.ne.s32.totalorder %s268, %s269
    %p281 = scmp.eq.s32.totalorder %s28, 3
    %p282 = por %p280, %p281
    %p284 = scmp.ne.s32.totalorder %s269, %s283
    %p285 = scmp.eq.s32.totalorder %s28, 0
    %p286 = por %p284, %p285
    %s288 = sadd.s32 %s287, 1
    %p291 = scmp.eq.s32.totalorder %s22, 3
    %p292 = scmp.ne.s32.totalorder %s287, %s289
    %p293 = scmp.eq.s32.totalorder %s22, 0
    %p294 = por %p292, %p293
    %p295 = scmp.ne.s32.totalorder %s287, %s289
    %p296 = scmp.eq.s32.totalorder %s27, 3
    %p297 = por %p295, %p296
    %p298 = scmp.ne.s32.totalorder %s289, %s290
    %p299 = scmp.eq.s32.totalorder %s27, 0
    %p300 = por %p298, %p299
    %p301 = scmp.ne.s32.totalorder %s289, %s290
    %p302 = scmp.eq.s32.totalorder %s28, 3
    %p303 = por %p301, %p302
    %p305 = scmp.ne.s32.totalorder %s290, %s304
    %p306 = scmp.eq.s32.totalorder %s28, 0
    %p307 = por %p305, %p306
    %s309 = sadd.s32 %s308, 1
    %p312 = scmp.eq.s32.totalorder %s22, 3
    %p313 = scmp.ne.s32.totalorder %s308, %s310
    %p314 = scmp.eq.s32.totalorder %s22, 0
    %p315 = por %p313, %p314
    %p316 = scmp.ne.s32.totalorder %s308, %s310
    %p317 = scmp.eq.s32.totalorder %s27, 3
    %p318 = por %p316, %p317
    %p319 = scmp.ne.s32.totalorder %s310, %s311
    %p320 = scmp.eq.s32.totalorder %s27, 0
    %p321 = por %p319, %p320
    %p322 = scmp.ne.s32.totalorder %s310, %s311
    %p323 = scmp.eq.s32.totalorder %s28, 3
    %p324 = por %p322, %p323
    %p326 = scmp.ne.s32.totalorder %s311, %s325
    %p327 = scmp.eq.s32.totalorder %s28, 0
    %p328 = por %p326, %p327
    %s330 = sadd.s32 %s329, 1
    %p333 = scmp.eq.s32.totalorder %s22, 3
    %p334 = scmp.ne.s32.totalorder %s329, %s331
    %p335 = scmp.eq.s32.totalorder %s22, 0
    %p336 = por %p334, %p335
    %p337 = scmp.ne.s32.totalorder %s329, %s331
    %p338 = scmp.eq.s32.totalorder %s27, 3
    %p339 = por %p337, %p338
    %p340 = scmp.ne.s32.totalorder %s331, %s332
    %p341 = scmp.eq.s32.totalorder %s27, 0
    %p342 = por %p340, %p341
    %p343 = scmp.ne.s32.totalorder %s331, %s332
    %p344 = scmp.eq.s32.totalorder %s28, 3
    %p345 = por %p343, %p344
    %p347 = scmp.ne.s32.totalorder %s332, %s346
    %p348 = scmp.eq.s32.totalorder %s28, 0
    %p349 = por %p347, %p348
    %s350 = ssub.s32 %s29, %s41
    %s351 = ssub.s32 %s30, %s37
    %s352 = sor.u32 %s350, %s351
    %p353 = scmp.eq.s32.totalorder %s352, 0
    %s355 = sadd.s32 %s354, 1
    %s356 = scalar_select %p353, %s354, %s355
    %p359 = pneg %p353
    %p360 = scmp.eq.s32.totalorder %s22, 3
    %p361 = por %p359, %p360
    %p362 = scmp.ne.s32.totalorder %s354, %s357
    %p363 = scmp.eq.s32.totalorder %s22, 0
    %p364 = por %p362, %p363
    %p365 = scmp.ne.s32.totalorder %s354, %s357
    %p366 = scmp.eq.s32.totalorder %s27, 3
    %p367 = por %p365, %p366
    %p368 = scmp.ne.s32.totalorder %s357, %s358
    %p369 = scmp.eq.s32.totalorder %s27, 0
    %p370 = por %p368, %p369
    %p371 = scmp.ne.s32.totalorder %s357, %s358
    %p372 = scmp.eq.s32.totalorder %s28, 3
    %p373 = por %p371, %p372
    %p375 = scmp.ne.s32.totalorder %s358, %s374
    %p376 = scmp.eq.s32.totalorder %s28, 0
    %p377 = por %p375, %p376
    %p378 = scmp.le.s32.totalorder 1, %s22
    %p379 = scmp.lt.s32.totalorder %s22, 5
    %p380 = pnand %p378, %p379
    %p381 = pneg %p380
    // Predicated region
    $region9: #{_lambda_.2} parent=5 // pred_check
      _
    $region10: #{_lambda_.2} parent=5 // pred_check_branch
      %383 = sbr.rel (%p380) target = $region12
    $region11: #{_lambda_.2} parent=5 // pred_region
      %s384 = ssub.s32 %s22, 1
      // Predicated region
      $region13: #{_lambda_.2} parent=11 // pred_check
        %p385 = pneg %p111
      $region14: #{_lambda_.2} parent=11 // pred_check_branch
        %387 = sbr.rel (%p385) target = $region16
      $region15: #{_lambda_.2} parent=11 // pred_region
        _
      $region16: #{_lambda_.2} parent=11 // pred_fallthru
        _
      // Predicated region
      $region17: #{_lambda_.2} parent=11 // pred_check
        %p388 = pneg %p132
      $region18: #{_lambda_.2} parent=11 // pred_check_branch
        %390 = sbr.rel (%p388) target = $region20
      $region19: #{_lambda_.2} parent=11 // pred_region
        _
      $region20: #{_lambda_.2} parent=11 // pred_fallthru
        _
      // Predicated region
      $region21: #{_lambda_.2} parent=11 // pred_check
        %p391 = pneg %p153
      $region22: #{_lambda_.2} parent=11 // pred_check_branch
        %393 = sbr.rel (%p391) target = $region24
      $region23: #{_lambda_.2} parent=11 // pred_region
        _
      $region24: #{_lambda_.2} parent=11 // pred_fallthru
        _
      // Predicated region
      $region25: #{_lambda_.2} parent=11 // pred_check
        %p394 = pneg %p174
      $region26: #{_lambda_.2} parent=11 // pred_check_branch
        %396 = sbr.rel (%p394) target = $region28
      $region27: #{_lambda_.2} parent=11 // pred_region
        _
      $region28: #{_lambda_.2} parent=11 // pred_fallthru
        _
      // Predicated region
      $region29: #{_lambda_.2} parent=11 // pred_check
        %p397 = pneg %p195
      $region30: #{_lambda_.2} parent=11 // pred_check_branch
        %399 = sbr.rel (%p397) target = $region32
      $region31: #{_lambda_.2} parent=11 // pred_region
        _
      $region32: #{_lambda_.2} parent=11 // pred_fallthru
        _
      // Predicated region
      $region33: #{_lambda_.2} parent=11 // pred_check
        %p400 = pneg %p216
      $region34: #{_lambda_.2} parent=11 // pred_check_branch
        %402 = sbr.rel (%p400) target = $region36
      $region35: #{_lambda_.2} parent=11 // pred_region
        _
      $region36: #{_lambda_.2} parent=11 // pred_fallthru
        _
      // Predicated region
      $region37: #{_lambda_.2} parent=11 // pred_check
        %p403 = pneg %p237
      $region38: #{_lambda_.2} parent=11 // pred_check_branch
        %405 = sbr.rel (%p403) target = $region40
      $region39: #{_lambda_.2} parent=11 // pred_region
        _
      $region40: #{_lambda_.2} parent=11 // pred_fallthru
        _
      // Predicated region
      $region41: #{_lambda_.2} parent=11 // pred_check
        %p406 = pneg %p258
      $region42: #{_lambda_.2} parent=11 // pred_check_branch
        %408 = sbr.rel (%p406) target = $region44
      $region43: #{_lambda_.2} parent=11 // pred_region
        _
      $region44: #{_lambda_.2} parent=11 // pred_fallthru
        _
      // Predicated region
      $region45: #{_lambda_.2} parent=11 // pred_check
        %p409 = pneg %p279
      $region46: #{_lambda_.2} parent=11 // pred_check_branch
        %411 = sbr.rel (%p409) target = $region48
      $region47: #{_lambda_.2} parent=11 // pred_region
        _
      $region48: #{_lambda_.2} parent=11 // pred_fallthru
        _
      // Predicated region
      $region49: #{_lambda_.2} parent=11 // pred_check
        %p412 = pneg %p300
      $region50: #{_lambda_.2} parent=11 // pred_check_branch
        %414 = sbr.rel (%p412) target = $region52
      $region51: #{_lambda_.2} parent=11 // pred_region
        _
      $region52: #{_lambda_.2} parent=11 // pred_fallthru
        _
      // Predicated region
      $region53: #{_lambda_.2} parent=11 // pred_check
        %p415 = pneg %p321
      $region54: #{_lambda_.2} parent=11 // pred_check_branch
        %417 = sbr.rel (%p415) target = $region56
      $region55: #{_lambda_.2} parent=11 // pred_region
        _
      $region56: #{_lambda_.2} parent=11 // pred_fallthru
        _
      // Predicated region
      $region57: #{_lambda_.2} parent=11 // pred_check
        %p418 = pneg %p342
      $region58: #{_lambda_.2} parent=11 // pred_check_branch
        %420 = sbr.rel (%p418) target = $region60
      $region59: #{_lambda_.2} parent=11 // pred_region
        _
      $region60: #{_lambda_.2} parent=11 // pred_fallthru
        _
    $region12: #{_lambda_.2} parent=5 // pred_fallthru
      _
    %p421 = scmp.lt.s32.totalorder %s22, 4
    // Predicated region
    $region61: #{_lambda_.2} parent=5 // pred_check
      %p422 = pneg %p421
    $region62: #{_lambda_.2} parent=5 // pred_check_branch
      %424 = sbr.rel (%p422) target = $region64
    $region63: #{_lambda_.2} parent=5 // pred_region
      // Predicated region
      $region65: #{_lambda_.2} parent=63 // pred_check
        %p425 = pneg %p56
      $region66: #{_lambda_.2} parent=63 // pred_check_branch
        %427 = sbr.rel (%p425) target = $region68
      $region67: #{_lambda_.2} parent=63 // pred_region
        %s428 = smul.u32 4, %s30
        %p429 = scmp.lt.s32.totalorder %s29, 1
        %s430 = scalar_select %p429, %s29, 1
        %p431 = scmp.lt.s32.totalorder %s428, 7
        %s432 = scalar_select %p431, %s428, 7
        %s433 = smul.addr %s430, 8
        %s434 = sadd.s32 %s432, %s433
        %s435 = smul.addr %s434, 8
        %s436 = scalar_lea.vmem %s0, %s435
        %s437 = smul.u32 4, %s30
      $region68: #{_lambda_.2} parent=63 // pred_fallthru
        _
      // Predicated region
      $region69: #{_lambda_.2} parent=63 // pred_check
        %p438 = pneg %p84
      $region70: #{_lambda_.2} parent=63 // pred_check_branch
        %440 = sbr.rel (%p438) target = $region72
      $region71: #{_lambda_.2} parent=63 // pred_region
        %s441 = smul.u32 8, %s30
        %p442 = scmp.lt.s32.totalorder %s29, 1
        %s443 = scalar_select %p442, %s29, 1
        %p444 = scmp.lt.s32.totalorder %s441, 15
        %s445 = scalar_select %p444, %s441, 15
        %s446 = smul.addr %s445, 2
        %s447 = smul.addr %s443, 32
        %s448 = sadd.s32 %s446, %s447
        %s449 = smul.addr %s448, 8
        %s450 = scalar_lea.vmem %s1, %s449
        %s451 = smul.u32 8, %s30
      $region72: #{_lambda_.2} parent=63 // pred_fallthru
        _
    $region64: #{_lambda_.2} parent=5 // pred_fallthru
      _
    %p452 = scmp.le.s32.totalorder 1, %s22
    %p453 = scmp.lt.s32.totalorder %s22, 5
    %p454 = pnand %p452, %p453
    %p455 = pneg %p454
    // Predicated region
    $region73: #{_lambda_.2} parent=5 // pred_check
      _
    $region74: #{_lambda_.2} parent=5 // pred_check_branch
      %457 = sbr.rel (%p454) target = $region76
    $region75: #{_lambda_.2} parent=5 // pred_region
      %s458 = ssub.s32 %s22, 1
      %s459 = smul.u32 4, %s32
      %p460 = scmp.lt.s32.totalorder %s31, 1
      %s461 = scalar_select %p460, %s31, 1
      %p462 = scmp.lt.s32.totalorder %s459, 7
      %s463 = scalar_select %p462, %s459, 7
      %s464 = smul.addr %s461, 8
      %s465 = sadd.s32 %s463, %s464
      %s466 = smul.addr %s465, 8
      %s467 = scalar_lea.vmem %s0, %s466
      %p468 = pneg %p62
      %p469 = pneg %p59
      %s470 = smul.u32 8, %s32
      %p471 = scmp.lt.s32.totalorder %s31, 1
      %s472 = scalar_select %p471, %s31, 1
      %p473 = scmp.lt.s32.totalorder %s470, 15
      %s474 = scalar_select %p473, %s470, 15
      %s475 = smul.addr %s474, 2
      %s476 = smul.addr %s472, 32
      %s477 = sadd.s32 %s475, %s476
      %s478 = smul.addr %s477, 8
      %s479 = scalar_lea.vmem %s1, %s478
      %p480 = pneg %p90
      %p481 = pneg %p87
      %p482 = pneg %p111
      %p483 = pneg %p108
      %p484 = pneg %p132
      %p485 = pneg %p129
      %p486 = pneg %p153
      %p487 = pneg %p150
      %p488 = pneg %p174
      %p489 = pneg %p171
      %p490 = pneg %p195
      %p491 = pneg %p192
      %p492 = pneg %p216
      %p493 = pneg %p213
      %p494 = pneg %p237
      %p495 = pneg %p234
      %p496 = pneg %p258
      %p497 = pneg %p255
      %p498 = pneg %p279
      %p499 = pneg %p276
      %p500 = pneg %p300
      %p501 = pneg %p297
      %p502 = pneg %p321
      %p503 = pneg %p318
      %p504 = pneg %p342
      %p505 = pneg %p339
      %p506 = pneg %p370
      %p507 = pneg %p367
      %s508 = smul.u32 8, %s32
      %p509 = scmp.lt.s32.totalorder %s31, 1
      %s510 = scalar_select %p509, %s31, 1
      %p511 = scmp.lt.s32.totalorder %s508, 15
      %s512 = scalar_select %p511, %s508, 15
      %s513 = smul.addr %s512, 2
      %s514 = smul.addr %s510, 32
      %s515 = sadd.s32 %s513, %s514
      %s516 = smul.addr %s515, 8
      %s517 = scalar_lea.vmem %s14, %s516
      %s518 = smul.u32 4, %s32
      %p519 = scmp.lt.s32.totalorder %s31, 1
      %s520 = scalar_select %p519, %s31, 1
      %p521 = scmp.lt.s32.totalorder %s518, 7
      %s522 = scalar_select %p521, %s518, 7
      %s523 = smul.addr %s520, 8
      %s524 = sadd.s32 %s522, %s523
      %s525 = smul.addr %s524, 8
      %s526 = scalar_lea.vmem %s0, %s525
      %s527 = smul.u32 4, %s32
      %s528 = smul.u32 8, %s32
      %p529 = scmp.lt.s32.totalorder %s31, 1
      %s530 = scalar_select %p529, %s31, 1
      %p531 = scmp.lt.s32.totalorder %s528, 15
      %s532 = scalar_select %p531, %s528, 15
      %s533 = smul.addr %s532, 2
      %s534 = smul.addr %s530, 32
      %s535 = sadd.s32 %s533, %s534
      %s536 = smul.addr %s535, 8
      %s537 = scalar_lea.vmem %s1, %s536
      %s538 = smul.u32 8, %s32
      %s539 = smul.u32 8, %s32
      %p540 = scmp.lt.s32.totalorder %s31, 1
      %s541 = scalar_select %p540, %s31, 1
      %p542 = scmp.lt.s32.totalorder %s539, 15
      %s543 = scalar_select %p542, %s539, 15
      %s544 = smul.addr %s543, 2
      %s545 = smul.addr %s541, 32
      %s546 = sadd.s32 %s544, %s545
      %s547 = smul.addr %s546, 8
      %s548 = scalar_lea.vmem %s14, %s547
      %s549 = smul.u32 8, %s32
      %v550 = vld [vmem:[%s526] sm:$0xff]
      %v551 = vld [vmem:[%s526 + $0x8] sm:$0xff]
      %v552 = vld [vmem:[%s526 + $0x10] sm:$0xff]
      %v553 = vld [vmem:[%s526 + $0x18] sm:$0xff]
      %v554 = vld [vmem:[%s2] sm:$0xff]
      %v555 = vld [vmem:[%s2 + $0x8] sm:$0xff]
      %s556 = scalar_lea.vmem %s2, 16
      %v557 = vld [vmem:[%s556] sm:$0xff]
      %v558 = vld [vmem:[%s556 + $0x8] sm:$0xff]
      %v559 = vld [vmem:[%s3] sm:$0xff]
      %vm560 = vcmask 64512
      %v562 = vsel %vm560, %v550, 0
      %v565 = vsel %vm560, %v551, 0
      %v568 = vsel %vm560, %v552, 0
      %v571 = vsel %vm560, %v553, 0
      %573 = vmatprep.subr.mxu0 0.0
      %574 = vmatpush1.msra.mxu0 %v559
      %575 = vmatprep.subr.mxu0 0.0
      %576 = vmatpush1.msra.mxu0 0.0
      %577 = vmatprep.subr.mxu0 0.0
      %578 = vmatpush1.msra.mxu0 0.0
      %579 = vmatprep.subr.mxu0 0.0
      %580 = vmatpush1.msra.mxu0 0.0
      %581 = vmatprep.subr.mxu0 0.0
      %582 = vmatpush1.msra.mxu0 0.0
      %583 = vmatprep.subr.mxu0 0.0
      %584 = vmatpush1.msra.mxu0 0.0
      %585 = vmatprep.subr.mxu0 0.0
      %586 = vmatpush1.msra.mxu0 0.0
      %587 = vmatprep.subr.mxu0 0.0
      %588 = vmatpush1.msra.mxu0 0.0
      %589 = vmatprep.subr.mxu0 0.0
      %590 = vmatpush1.msra.mxu0 0.0
      %591 = vmatprep.subr.mxu0 0.0
      %592 = vmatpush1.msra.mxu0 0.0
      %593 = vmatprep.subr.mxu0 0.0
      %594 = vmatpush1.msra.mxu0 0.0
      %595 = vmatprep.subr.mxu0 0.0
      %596 = vmatpush1.msra.mxu0 0.0
      %597 = vmatprep.subr.mxu0 0.0
      %598 = vmatpush1.msra.mxu0 0.0
      %599 = vmatprep.subr.mxu0 0.0
      %600 = vmatpush1.msra.mxu0 0.0
      %601 = vmatprep.subr.mxu0 0.0
      %602 = vmatpush1.msra.mxu0 0.0
      %603 = vmatprep.subr.mxu0 0.0
      %604 = vmatpush1.msra.mxu0 0.0
      %605 = vmatprep.subr.mxu0 0.0
      %606 = vmatpush1.msra.mxu0 0.0
      %607 = vmatprep.subr.mxu0 0.0
      %608 = vmatpush1.msra.mxu0 0.0
      %609 = vmatprep.subr.mxu0 0.0
      %610 = vmatpush1.msra.mxu0 0.0
      %611 = vmatprep.subr.mxu0 0.0
      %612 = vmatpush1.msra.mxu0 0.0
      %613 = vmatprep.subr.mxu0 0.0
      %614 = vmatpush1.msra.mxu0 0.0
      %615 = vmatprep.subr.mxu0 0.0
      %616 = vmatpush1.msra.mxu0 0.0
      %617 = vmatprep.subr.mxu0 0.0
      %618 = vmatpush1.msra.mxu0 0.0
      %619 = vmatprep.subr.mxu0 0.0
      %620 = vmatpush1.msra.mxu0 0.0
      %621 = vmatprep.subr.mxu0 0.0
      %622 = vmatpush1.msra.mxu0 0.0
      %623 = vmatprep.subr.mxu0 0.0
      %624 = vmatpush1.msra.mxu0 0.0
      %625 = vmatprep.subr.mxu0 0.0
      %626 = vmatpush1.msra.mxu0 0.0
      %627 = vmatprep.subr.mxu0 0.0
      %628 = vmatpush1.msra.mxu0 0.0
      %629 = vmatprep.subr.mxu0 0.0
      %630 = vmatpush1.msra.mxu0 0.0
      %631 = vmatprep.subr.mxu0 0.0
      %632 = vmatpush1.msra.mxu0 0.0
      %633 = vmatprep.subr.mxu0 0.0
      %634 = vmatpush1.msra.mxu0 0.0
      %635 = vmatprep.subr.mxu0 0.0
      %636 = vmatpush1.msra.mxu0 0.0
      %637 = vmatprep.mubr.f32.mxu0 0.0
      %638 = vmatmul.mubr.f32.gmra.mrb[0].mxu0 %v562
      %v639 = vpop.f32.mrb[0].mxu0
      %v640 = vadd.f32 0.0, %v639
      %v641 = vpop.f32.mrb[0].mxu0
      %642 = vmatprep.mubr.f32.mxu0 0.0
      %643 = vmatmul.mubr.f32.gmra.mrb[0].mxu0 %v565
      %v644 = vpop.f32.mrb[0].mxu0
      %v645 = vadd.f32 0.0, %v644
      %v646 = vpop.f32.mrb[0].mxu0
      %647 = vmatprep.mubr.f32.mxu0 0.0
      %648 = vmatmul.mubr.f32.gmra.mrb[0].mxu0 %v568
      %v649 = vpop.f32.mrb[0].mxu0
      %v650 = vadd.f32 0.0, %v649
      %v651 = vpop.f32.mrb[0].mxu0
      %652 = vmatprep.mubr.f32.mxu0 0.0
      %653 = vmatmul.mubr.f32.gmra.mrb[0].mxu0 %v571
      %v654 = vpop.f32.mrb[0].mxu0
      %v655 = vadd.f32 0.0, %v654
      %v656 = vpop.f32.mrb[0].mxu0
      %657 = vdwg.mxu0
      %s658 = scalar_lea.vmem %s3, 8
      %v659 = vld [vmem:[%s658] sm:$0xff]
      %660 = vmatprep.subr.mxu0 0.0
      %661 = vmatpush1.msra.mxu0 %v659
      %662 = vmatprep.subr.mxu0 0.0
      %663 = vmatpush1.msra.mxu0 0.0
      %664 = vmatprep.subr.mxu0 0.0
      %665 = vmatpush1.msra.mxu0 0.0
      %666 = vmatprep.subr.mxu0 0.0
      %667 = vmatpush1.msra.mxu0 0.0
      %668 = vmatprep.subr.mxu0 0.0
      %669 = vmatpush1.msra.mxu0 0.0
      %670 = vmatprep.subr.mxu0 0.0
      %671 = vmatpush1.msra.mxu0 0.0
      %672 = vmatprep.subr.mxu0 0.0
      %673 = vmatpush1.msra.mxu0 0.0
      %674 = vmatprep.subr.mxu0 0.0
      %675 = vmatpush1.msra.mxu0 0.0
      %676 = vmatprep.subr.mxu0 0.0
      %677 = vmatpush1.msra.mxu0 0.0
      %678 = vmatprep.subr.mxu0 0.0
      %679 = vmatpush1.msra.mxu0 0.0
      %680 = vmatprep.subr.mxu0 0.0
      %681 = vmatpush1.msra.mxu0 0.0
      %682 = vmatprep.subr.mxu0 0.0
      %683 = vmatpush1.msra.mxu0 0.0
      %684 = vmatprep.subr.mxu0 0.0
      %685 = vmatpush1.msra.mxu0 0.0
      %686 = vmatprep.subr.mxu0 0.0
      %687 = vmatpush1.msra.mxu0 0.0
      %688 = vmatprep.subr.mxu0 0.0
      %689 = vmatpush1.msra.mxu0 0.0
      %690 = vmatprep.subr.mxu0 0.0
      %691 = vmatpush1.msra.mxu0 0.0
      %692 = vmatprep.subr.mxu0 0.0
      %693 = vmatpush1.msra.mxu0 0.0
      %694 = vmatprep.subr.mxu0 0.0
      %695 = vmatpush1.msra.mxu0 0.0
      %696 = vmatprep.subr.mxu0 0.0
      %697 = vmatpush1.msra.mxu0 0.0
      %698 = vmatprep.subr.mxu0 0.0
      %699 = vmatpush1.msra.mxu0 0.0
      %700 = vmatprep.subr.mxu0 0.0
      %701 = vmatpush1.msra.mxu0 0.0
      %702 = vmatprep.subr.mxu0 0.0
      %703 = vmatpush1.msra.mxu0 0.0
      %704 = vmatprep.subr.mxu0 0.0
      %705 = vmatpush1.msra.mxu0 0.0
      %706 = vmatprep.subr.mxu0 0.0
      %707 = vmatpush1.msra.mxu0 0.0
      %708 = vmatprep.subr.mxu0 0.0
      %709 = vmatpush1.msra.mxu0 0.0
      %710 = vmatprep.subr.mxu0 0.0
      %711 = vmatpush1.msra.mxu0 0.0
      %712 = vmatprep.subr.mxu0 0.0
      %713 = vmatpush1.msra.mxu0 0.0
      %714 = vmatprep.subr.mxu0 0.0
      %715 = vmatpush1.msra.mxu0 0.0
      %716 = vmatprep.subr.mxu0 0.0
      %717 = vmatpush1.msra.mxu0 0.0
      %718 = vmatprep.subr.mxu0 0.0
      %719 = vmatpush1.msra.mxu0 0.0
      %720 = vmatprep.subr.mxu0 0.0
      %721 = vmatpush1.msra.mxu0 0.0
      %722 = vmatprep.subr.mxu0 0.0
      %723 = vmatpush1.msra.mxu0 0.0
      %724 = vmatprep.mubr.f32.mxu0 0.0
      %725 = vmatmul.mubr.f32.gmra.mrb[0].mxu0 %v562
      %v726 = vpop.f32.mrb[0].mxu0
      %v727 = vadd.f32 0.0, %v726
      %v728 = vpop.f32.mrb[0].mxu0
      %729 = vmatprep.mubr.f32.mxu0 0.0
      %730 = vmatmul.mubr.f32.gmra.mrb[0].mxu0 %v565
      %v731 = vpop.f32.mrb[0].mxu0
      %v732 = vadd.f32 0.0, %v731
      %v733 = vpop.f32.mrb[0].mxu0
      %734 = vmatprep.mubr.f32.mxu0 0.0
      %735 = vmatmul.mubr.f32.gmra.mrb[0].mxu0 %v568
      %v736 = vpop.f32.mrb[0].mxu0
      %v737 = vadd.f32 0.0, %v736
      %v738 = vpop.f32.mrb[0].mxu0
      %739 = vmatprep.mubr.f32.mxu0 0.0
      %740 = vmatmul.mubr.f32.gmra.mrb[0].mxu0 %v571
      %v741 = vpop.f32.mrb[0].mxu0
      %v742 = vadd.f32 0.0, %v741
      %v743 = vpop.f32.mrb[0].mxu0
      %744 = vdwg.mxu0
      %v746 = vsel %vm560, %v557, 0
      %v749 = vsel %vm560, %v558, 0
      %751 = vmatprep.subr.mxu0 0.0
      %752 = vmatpush1.msra.mxu0 %v727
      %753 = vmatprep.subr.mxu0 0.0
      %754 = vmatpush1.msra.mxu0 0.0
      %755 = vmatprep.subr.mxu0 0.0
      %756 = vmatpush1.msra.mxu0 0.0
      %757 = vmatprep.subr.mxu0 0.0
      %758 = vmatpush1.msra.mxu0 0.0
      %759 = vmatprep.subr.mxu0 0.0
      %760 = vmatpush1.msra.mxu0 0.0
      %761 = vmatprep.subr.mxu0 0.0
      %762 = vmatpush1.msra.mxu0 0.0
      %763 = vmatprep.subr.mxu0 0.0
      %764 = vmatpush1.msra.mxu0 0.0
      %765 = vmatprep.subr.mxu0 0.0
      %766 = vmatpush1.msra.mxu0 0.0
      %767 = vmatprep.subr.mxu0 0.0
      %768 = vmatpush1.msra.mxu0 0.0
      %769 = vmatprep.subr.mxu0 0.0
      %770 = vmatpush1.msra.mxu0 0.0
      %771 = vmatprep.subr.mxu0 0.0
      %772 = vmatpush1.msra.mxu0 0.0
      %773 = vmatprep.subr.mxu0 0.0
      %774 = vmatpush1.msra.mxu0 0.0
      %775 = vmatprep.subr.mxu0 0.0
      %776 = vmatpush1.msra.mxu0 0.0
      %777 = vmatprep.subr.mxu0 0.0
      %778 = vmatpush1.msra.mxu0 0.0
      %779 = vmatprep.subr.mxu0 0.0
      %780 = vmatpush1.msra.mxu0 0.0
      %781 = vmatprep.subr.mxu0 0.0
      %782 = vmatpush1.msra.mxu0 0.0
      %783 = vmatprep.subr.mxu0 0.0
      %784 = vmatpush1.msra.mxu0 0.0
      %785 = vmatprep.subr.mxu0 0.0
      %786 = vmatpush1.msra.mxu0 0.0
      %787 = vmatprep.subr.mxu0 0.0
      %788 = vmatpush1.msra.mxu0 0.0
      %789 = vmatprep.subr.mxu0 0.0
      %790 = vmatpush1.msra.mxu0 0.0
      %791 = vmatprep.subr.mxu0 0.0
      %792 = vmatpush1.msra.mxu0 0.0
      %793 = vmatprep.subr.mxu0 0.0
      %794 = vmatpush1.msra.mxu0 0.0
      %795 = vmatprep.subr.mxu0 0.0
      %796 = vmatpush1.msra.mxu0 0.0
      %797 = vmatprep.subr.mxu0 0.0
      %798 = vmatpush1.msra.mxu0 0.0
      %799 = vmatprep.subr.mxu0 0.0
      %800 = vmatpush1.msra.mxu0 0.0
      %801 = vmatprep.subr.mxu0 0.0
      %802 = vmatpush1.msra.mxu0 0.0
      %803 = vmatprep.subr.mxu0 0.0
      %804 = vmatpush1.msra.mxu0 0.0
      %805 = vmatprep.subr.mxu0 0.0
      %806 = vmatpush1.msra.mxu0 0.0
      %807 = vmatprep.subr.mxu0 0.0
      %808 = vmatpush1.msra.mxu0 0.0
      %809 = vmatprep.subr.mxu0 0.0
      %810 = vmatpush1.msra.mxu0 0.0
      %811 = vmatprep.subr.mxu0 0.0
      %812 = vmatpush1.msra.mxu0 0.0
      %813 = vmatprep.subr.mxu0 0.0
      %814 = vmatpush1.msra.mxu0 0.0
      %815 = vmatprep.mubr.f32.mxu0 0.0
      %816 = vmatmul.mubr.f32.gmra.mrb[0].mxu0 %v746
      %v817 = vpop.f32.mrb[0].mxu0
      %v818 = vadd.f32 0.0, %v817
      %v819 = vpop.f32.mrb[0].mxu0
      %820 = vmatprep.mubr.f32.mxu0 0.0
      %821 = vmatmul.mubr.f32.gmra.mrb[0].mxu0 %v749
      %v822 = vpop.f32.mrb[0].mxu0
      %v823 = vadd.f32 0.0, %v822
      %v824 = vpop.f32.mrb[0].mxu0
      %825 = vdwg.mxu0
      %826 = vmatprep.subr.mxu0 0.0
      %827 = vmatpush1.msra.mxu0 %v732
      %828 = vmatprep.subr.mxu0 0.0
      %829 = vmatpush1.msra.mxu0 0.0
      %830 = vmatprep.subr.mxu0 0.0
      %831 = vmatpush1.msra.mxu0 0.0
      %832 = vmatprep.subr.mxu0 0.0
      %833 = vmatpush1.msra.mxu0 0.0
      %834 = vmatprep.subr.mxu0 0.0
      %835 = vmatpush1.msra.mxu0 0.0
      %836 = vmatprep.subr.mxu0 0.0
      %837 = vmatpush1.msra.mxu0 0.0
      %838 = vmatprep.subr.mxu0 0.0
      %839 = vmatpush1.msra.mxu0 0.0
      %840 = vmatprep.subr.mxu0 0.0
      %841 = vmatpush1.msra.mxu0 0.0
      %842 = vmatprep.subr.mxu0 0.0
      %843 = vmatpush1.msra.mxu0 0.0
      %844 = vmatprep.subr.mxu0 0.0
      %845 = vmatpush1.msra.mxu0 0.0
      %846 = vmatprep.subr.mxu0 0.0
      %847 = vmatpush1.msra.mxu0 0.0
      %848 = vmatprep.subr.mxu0 0.0
      %849 = vmatpush1.msra.mxu0 0.0
      %850 = vmatprep.subr.mxu0 0.0
      %851 = vmatpush1.msra.mxu0 0.0
      %852 = vmatprep.subr.mxu0 0.0
      %853 = vmatpush1.msra.mxu0 0.0
      %854 = vmatprep.subr.mxu0 0.0
      %855 = vmatpush1.msra.mxu0 0.0
      %856 = vmatprep.subr.mxu0 0.0
      %857 = vmatpush1.msra.mxu0 0.0
      %858 = vmatprep.subr.mxu0 0.0
      %859 = vmatpush1.msra.mxu0 0.0
      %860 = vmatprep.subr.mxu0 0.0
      %861 = vmatpush1.msra.mxu0 0.0
      %862 = vmatprep.subr.mxu0 0.0
      %863 = vmatpush1.msra.mxu0 0.0
      %864 = vmatprep.subr.mxu0 0.0
      %865 = vmatpush1.msra.mxu0 0.0
      %866 = vmatprep.subr.mxu0 0.0
      %867 = vmatpush1.msra.mxu0 0.0
      %868 = vmatprep.subr.mxu0 0.0
      %869 = vmatpush1.msra.mxu0 0.0
      %870 = vmatprep.subr.mxu0 0.0
      %871 = vmatpush1.msra.mxu0 0.0
      %872 = vmatprep.subr.mxu0 0.0
      %873 = vmatpush1.msra.mxu0 0.0
      %874 = vmatprep.subr.mxu0 0.0
      %875 = vmatpush1.msra.mxu0 0.0
      %876 = vmatprep.subr.mxu0 0.0
      %877 = vmatpush1.msra.mxu0 0.0
      %878 = vmatprep.subr.mxu0 0.0
      %879 = vmatpush1.msra.mxu0 0.0
      %880 = vmatprep.subr.mxu0 0.0
      %881 = vmatpush1.msra.mxu0 0.0
      %882 = vmatprep.subr.mxu0 0.0
      %883 = vmatpush1.msra.mxu0 0.0
      %884 = vmatprep.subr.mxu0 0.0
      %885 = vmatpush1.msra.mxu0 0.0
      %886 = vmatprep.subr.mxu0 0.0
      %887 = vmatpush1.msra.mxu0 0.0
      %888 = vmatprep.subr.mxu0 0.0
      %889 = vmatpush1.msra.mxu0 0.0
      %890 = vmatprep.mubr.f32.mxu0 0.0
      %891 = vmatmul.mubr.f32.gmra.mrb[0].mxu0 %v746
      %v892 = vpop.f32.mrb[0].mxu0
      %v893 = vadd.f32 0.0, %v892
      %v894 = vpop.f32.mrb[0].mxu0
      %895 = vmatprep.mubr.f32.mxu0 0.0
      %896 = vmatmul.mubr.f32.gmra.mrb[0].mxu0 %v749
      %v897 = vpop.f32.mrb[0].mxu0
      %v898 = vadd.f32 0.0, %v897
      %v899 = vpop.f32.mrb[0].mxu0
      %900 = vdwg.mxu0
      %901 = vmatprep.subr.mxu0 0.0
      %902 = vmatpush1.msra.mxu0 %v737
      %903 = vmatprep.subr.mxu0 0.0
      %904 = vmatpush1.msra.mxu0 0.0
      %905 = vmatprep.subr.mxu0 0.0
      %906 = vmatpush1.msra.mxu0 0.0
      %907 = vmatprep.subr.mxu0 0.0
      %908 = vmatpush1.msra.mxu0 0.0
      %909 = vmatprep.subr.mxu0 0.0
      %910 = vmatpush1.msra.mxu0 0.0
      %911 = vmatprep.subr.mxu0 0.0
      %912 = vmatpush1.msra.mxu0 0.0
      %913 = vmatprep.subr.mxu0 0.0
      %914 = vmatpush1.msra.mxu0 0.0
      %915 = vmatprep.subr.mxu0 0.0
      %916 = vmatpush1.msra.mxu0 0.0
      %917 = vmatprep.subr.mxu0 0.0
      %918 = vmatpush1.msra.mxu0 0.0
      %919 = vmatprep.subr.mxu0 0.0
      %920 = vmatpush1.msra.mxu0 0.0
      %921 = vmatprep.subr.mxu0 0.0
      %922 = vmatpush1.msra.mxu0 0.0
      %923 = vmatprep.subr.mxu0 0.0
      %924 = vmatpush1.msra.mxu0 0.0
      %925 = vmatprep.subr.mxu0 0.0
      %926 = vmatpush1.msra.mxu0 0.0
      %927 = vmatprep.subr.mxu0 0.0
      %928 = vmatpush1.msra.mxu0 0.0
      %929 = vmatprep.subr.mxu0 0.0
      %930 = vmatpush1.msra.mxu0 0.0
      %931 = vmatprep.subr.mxu0 0.0
      %932 = vmatpush1.msra.mxu0 0.0
      %933 = vmatprep.subr.mxu0 0.0
      %934 = vmatpush1.msra.mxu0 0.0
      %935 = vmatprep.subr.mxu0 0.0
      %936 = vmatpush1.msra.mxu0 0.0
      %937 = vmatprep.subr.mxu0 0.0
      %938 = vmatpush1.msra.mxu0 0.0
      %939 = vmatprep.subr.mxu0 0.0
      %940 = vmatpush1.msra.mxu0 0.0
      %941 = vmatprep.subr.mxu0 0.0
      %942 = vmatpush1.msra.mxu0 0.0
      %943 = vmatprep.subr.mxu0 0.0
      %944 = vmatpush1.msra.mxu0 0.0
      %945 = vmatprep.subr.mxu0 0.0
      %946 = vmatpush1.msra.mxu0 0.0
      %947 = vmatprep.subr.mxu0 0.0
      %948 = vmatpush1.msra.mxu0 0.0
      %949 = vmatprep.subr.mxu0 0.0
      %950 = vmatpush1.msra.mxu0 0.0
      %951 = vmatprep.subr.mxu0 0.0
      %952 = vmatpush1.msra.mxu0 0.0
      %953 = vmatprep.subr.mxu0 0.0
      %954 = vmatpush1.msra.mxu0 0.0
      %955 = vmatprep.subr.mxu0 0.0
      %956 = vmatpush1.msra.mxu0 0.0
      %957 = vmatprep.subr.mxu0 0.0
      %958 = vmatpush1.msra.mxu0 0.0
      %959 = vmatprep.subr.mxu0 0.0
      %960 = vmatpush1.msra.mxu0 0.0
      %961 = vmatprep.subr.mxu0 0.0
      %962 = vmatpush1.msra.mxu0 0.0
      %963 = vmatprep.subr.mxu0 0.0
      %964 = vmatpush1.msra.mxu0 0.0
      %965 = vmatprep.mubr.f32.mxu0 0.0
      %966 = vmatmul.mubr.f32.gmra.mrb[0].mxu0 %v746
      %v967 = vpop.f32.mrb[0].mxu0
      %v968 = vadd.f32 0.0, %v967
      %v969 = vpop.f32.mrb[0].mxu0
      %970 = vmatprep.mubr.f32.mxu0 0.0
      %971 = vmatmul.mubr.f32.gmra.mrb[0].mxu0 %v749
      %v972 = vpop.f32.mrb[0].mxu0
      %v973 = vadd.f32 0.0, %v972
      %v974 = vpop.f32.mrb[0].mxu0
      %975 = vdwg.mxu0
      %976 = vmatprep.subr.mxu0 0.0
      %977 = vmatpush1.msra.mxu0 %v742
      %978 = vmatprep.subr.mxu0 0.0
      %979 = vmatpush1.msra.mxu0 0.0
      %980 = vmatprep.subr.mxu0 0.0
      %981 = vmatpush1.msra.mxu0 0.0
      %982 = vmatprep.subr.mxu0 0.0
      %983 = vmatpush1.msra.mxu0 0.0
      %984 = vmatprep.subr.mxu0 0.0
      %985 = vmatpush1.msra.mxu0 0.0
      %986 = vmatprep.subr.mxu0 0.0
      %987 = vmatpush1.msra.mxu0 0.0
      %988 = vmatprep.subr.mxu0 0.0
      %989 = vmatpush1.msra.mxu0 0.0
      %990 = vmatprep.subr.mxu0 0.0
      %991 = vmatpush1.msra.mxu0 0.0
      %992 = vmatprep.subr.mxu0 0.0
      %993 = vmatpush1.msra.mxu0 0.0
      %994 = vmatprep.subr.mxu0 0.0
      %995 = vmatpush1.msra.mxu0 0.0
      %996 = vmatprep.subr.mxu0 0.0
      %997 = vmatpush1.msra.mxu0 0.0
      %998 = vmatprep.subr.mxu0 0.0
      %999 = vmatpush1.msra.mxu0 0.0
      %1000 = vmatprep.subr.mxu0 0.0
      %1001 = vmatpush1.msra.mxu0 0.0
      %1002 = vmatprep.subr.mxu0 0.0
      %1003 = vmatpush1.msra.mxu0 0.0
      %1004 = vmatprep.subr.mxu0 0.0
      %1005 = vmatpush1.msra.mxu0 0.0
      %1006 = vmatprep.subr.mxu0 0.0
      %1007 = vmatpush1.msra.mxu0 0.0
      %1008 = vmatprep.subr.mxu0 0.0
      %1009 = vmatpush1.msra.mxu0 0.0
      %1010 = vmatprep.subr.mxu0 0.0
      %1011 = vmatpush1.msra.mxu0 0.0
      %1012 = vmatprep.subr.mxu0 0.0
      %1013 = vmatpush1.msra.mxu0 0.0
      %1014 = vmatprep.subr.mxu0 0.0
      %1015 = vmatpush1.msra.mxu0 0.0
      %1016 = vmatprep.subr.mxu0 0.0
      %1017 = vmatpush1.msra.mxu0 0.0
      %1018 = vmatprep.subr.mxu0 0.0
      %1019 = vmatpush1.msra.mxu0 0.0
      %1020 = vmatprep.subr.mxu0 0.0
      %1021 = vmatpush1.msra.mxu0 0.0
      %1022 = vmatprep.subr.mxu0 0.0
      %1023 = vmatpush1.msra.mxu0 0.0
      %1024 = vmatprep.subr.mxu0 0.0
      %1025 = vmatpush1.msra.mxu0 0.0
      %1026 = vmatprep.subr.mxu0 0.0
      %1027 = vmatpush1.msra.mxu0 0.0
      %1028 = vmatprep.subr.mxu0 0.0
      %1029 = vmatpush1.msra.mxu0 0.0
      %1030 = vmatprep.subr.mxu0 0.0
      %1031 = vmatpush1.msra.mxu0 0.0
      %1032 = vmatprep.subr.mxu0 0.0
      %1033 = vmatpush1.msra.mxu0 0.0
      %1034 = vmatprep.subr.mxu0 0.0
      %1035 = vmatpush1.msra.mxu0 0.0
      %1036 = vmatprep.subr.mxu0 0.0
      %1037 = vmatpush1.msra.mxu0 0.0
      %1038 = vmatprep.subr.mxu0 0.0
      %1039 = vmatpush1.msra.mxu0 0.0
      %1040 = vmatprep.mubr.f32.mxu0 0.0
      %1041 = vmatmul.mubr.f32.gmra.mrb[0].mxu0 %v746
      %v1042 = vpop.f32.mrb[0].mxu0
      %v1043 = vadd.f32 0.0, %v1042
      %v1044 = vpop.f32.mrb[0].mxu0
      %1045 = vmatprep.mubr.f32.mxu0 0.0
      %1046 = vmatmul.mubr.f32.gmra.mrb[0].mxu0 %v749
      %v1047 = vpop.f32.mrb[0].mxu0
      %v1048 = vadd.f32 0.0, %v1047
      %v1049 = vpop.f32.mrb[0].mxu0
      %1050 = vdwg.mxu0
      %v1052 = vsel %vm560, %v554, 0
      %v1055 = vsel %vm560, %v555, 0
      %1057 = vmatprep.subr.mxu0 0.0
      %1058 = vmatpush1.msra.mxu0 %v640
      %1059 = vmatprep.subr.mxu0 0.0
      %1060 = vmatpush1.msra.mxu0 0.0
      %1061 = vmatprep.subr.mxu0 0.0
      %1062 = vmatpush1.msra.mxu0 0.0
      %1063 = vmatprep.subr.mxu0 0.0
      %1064 = vmatpush1.msra.mxu0 0.0
      %1065 = vmatprep.subr.mxu0 0.0
      %1066 = vmatpush1.msra.mxu0 0.0
      %1067 = vmatprep.subr.mxu0 0.0
      %1068 = vmatpush1.msra.mxu0 0.0
      %1069 = vmatprep.subr.mxu0 0.0
      %1070 = vmatpush1.msra.mxu0 0.0
      %1071 = vmatprep.subr.mxu0 0.0
      %1072 = vmatpush1.msra.mxu0 0.0
      %1073 = vmatprep.subr.mxu0 0.0
      %1074 = vmatpush1.msra.mxu0 0.0
      %1075 = vmatprep.subr.mxu0 0.0
      %1076 = vmatpush1.msra.mxu0 0.0
      %1077 = vmatprep.subr.mxu0 0.0
      %1078 = vmatpush1.msra.mxu0 0.0
      %1079 = vmatprep.subr.mxu0 0.0
      %1080 = vmatpush1.msra.mxu0 0.0
      %1081 = vmatprep.subr.mxu0 0.0
      %1082 = vmatpush1.msra.mxu0 0.0
      %1083 = vmatprep.subr.mxu0 0.0
      %1084 = vmatpush1.msra.mxu0 0.0
      %1085 = vmatprep.subr.mxu0 0.0
      %1086 = vmatpush1.msra.mxu0 0.0
      %1087 = vmatprep.subr.mxu0 0.0
      %1088 = vmatpush1.msra.mxu0 0.0
      %1089 = vmatprep.subr.mxu0 0.0
      %1090 = vmatpush1.msra.mxu0 0.0
      %1091 = vmatprep.subr.mxu0 0.0
      %1092 = vmatpush1.msra.mxu0 0.0
      %1093 = vmatprep.subr.mxu0 0.0
      %1094 = vmatpush1.msra.mxu0 0.0
      %1095 = vmatprep.subr.mxu0 0.0
      %1096 = vmatpush1.msra.mxu0 0.0
      %1097 = vmatprep.subr.mxu0 0.0
      %1098 = vmatpush1.msra.mxu0 0.0
      %1099 = vmatprep.subr.mxu0 0.0
      %1100 = vmatpush1.msra.mxu0 0.0
      %1101 = vmatprep.subr.mxu0 0.0
      %1102 = vmatpush1.msra.mxu0 0.0
      %1103 = vmatprep.subr.mxu0 0.0
      %1104 = vmatpush1.msra.mxu0 0.0
      %1105 = vmatprep.subr.mxu0 0.0
      %1106 = vmatpush1.msra.mxu0 0.0
      %1107 = vmatprep.subr.mxu0 0.0
      %1108 = vmatpush1.msra.mxu0 0.0
      %1109 = vmatprep.subr.mxu0 0.0
      %1110 = vmatpush1.msra.mxu0 0.0
      %1111 = vmatprep.subr.mxu0 0.0
      %1112 = vmatpush1.msra.mxu0 0.0
      %1113 = vmatprep.subr.mxu0 0.0
      %1114 = vmatpush1.msra.mxu0 0.0
      %1115 = vmatprep.subr.mxu0 0.0
      %1116 = vmatpush1.msra.mxu0 0.0
      %1117 = vmatprep.subr.mxu0 0.0
      %1118 = vmatpush1.msra.mxu0 0.0
      %1119 = vmatprep.subr.mxu0 0.0
      %1120 = vmatpush1.msra.mxu0 0.0
      %1121 = vmatprep.mubr.f32.mxu0 0.0
      %1122 = vmatmul.mubr.f32.gmra.mrb[0].mxu0 %v1052
      %v1123 = vpop.f32.mrb[0].mxu0
      %v1124 = vadd.f32 %v818, %v1123
      %v1125 = vpop.f32.mrb[0].mxu0
      %1126 = vmatprep.mubr.f32.mxu0 0.0
      %1127 = vmatmul.mubr.f32.gmra.mrb[0].mxu0 %v1055
      %v1128 = vpop.f32.mrb[0].mxu0
      %v1129 = vadd.f32 %v823, %v1128
      %v1130 = vpop.f32.mrb[0].mxu0
      %1131 = vdwg.mxu0
      %1132 = vmatprep.subr.mxu0 0.0
      %1133 = vmatpush1.msra.mxu0 %v645
      %1134 = vmatprep.subr.mxu0 0.0
      %1135 = vmatpush1.msra.mxu0 0.0
      %1136 = vmatprep.subr.mxu0 0.0
      %1137 = vmatpush1.msra.mxu0 0.0
      %1138 = vmatprep.subr.mxu0 0.0
      %1139 = vmatpush1.msra.mxu0 0.0
      %1140 = vmatprep.subr.mxu0 0.0
      %1141 = vmatpush1.msra.mxu0 0.0
      %1142 = vmatprep.subr.mxu0 0.0
      %1143 = vmatpush1.msra.mxu0 0.0
      %1144 = vmatprep.subr.mxu0 0.0
      %1145 = vmatpush1.msra.mxu0 0.0
      %1146 = vmatprep.subr.mxu0 0.0
      %1147 = vmatpush1.msra.mxu0 0.0
      %1148 = vmatprep.subr.mxu0 0.0
      %1149 = vmatpush1.msra.mxu0 0.0
      %1150 = vmatprep.subr.mxu0 0.0
      %1151 = vmatpush1.msra.mxu0 0.0
      %1152 = vmatprep.subr.mxu0 0.0
      %1153 = vmatpush1.msra.mxu0 0.0
      %1154 = vmatprep.subr.mxu0 0.0
      %1155 = vmatpush1.msra.mxu0 0.0
      %1156 = vmatprep.subr.mxu0 0.0
      %1157 = vmatpush1.msra.mxu0 0.0
      %1158 = vmatprep.subr.mxu0 0.0
      %1159 = vmatpush1.msra.mxu0 0.0
      %1160 = vmatprep.subr.mxu0 0.0
      %1161 = vmatpush1.msra.mxu0 0.0
      %1162 = vmatprep.subr.mxu0 0.0
      %1163 = vmatpush1.msra.mxu0 0.0
      %1164 = vmatprep.subr.mxu0 0.0
      %1165 = vmatpush1.msra.mxu0 0.0
      %1166 = vmatprep.subr.mxu0 0.0
      %1167 = vmatpush1.msra.mxu0 0.0
      %1168 = vmatprep.subr.mxu0 0.0
      %1169 = vmatpush1.msra.mxu0 0.0
      %1170 = vmatprep.subr.mxu0 0.0
      %1171 = vmatpush1.msra.mxu0 0.0
      %1172 = vmatprep.subr.mxu0 0.0
      %1173 = vmatpush1.msra.mxu0 0.0
      %1174 = vmatprep.subr.mxu0 0.0
      %1175 = vmatpush1.msra.mxu0 0.0
      %1176 = vmatprep.subr.mxu0 0.0
      %1177 = vmatpush1.msra.mxu0 0.0
      %1178 = vmatprep.subr.mxu0 0.0
      %1179 = vmatpush1.msra.mxu0 0.0
      %1180 = vmatprep.subr.mxu0 0.0
      %1181 = vmatpush1.msra.mxu0 0.0
      %1182 = vmatprep.subr.mxu0 0.0
      %1183 = vmatpush1.msra.mxu0 0.0
      %1184 = vmatprep.subr.mxu0 0.0
      %1185 = vmatpush1.msra.mxu0 0.0
      %1186 = vmatprep.subr.mxu0 0.0
      %1187 = vmatpush1.msra.mxu0 0.0
      %1188 = vmatprep.subr.mxu0 0.0
      %1189 = vmatpush1.msra.mxu0 0.0
      %1190 = vmatprep.subr.mxu0 0.0
      %1191 = vmatpush1.msra.mxu0 0.0
      %1192 = vmatprep.subr.mxu0 0.0
      %1193 = vmatpush1.msra.mxu0 0.0
      %1194 = vmatprep.subr.mxu0 0.0
      %1195 = vmatpush1.msra.mxu0 0.0
      %1196 = vmatprep.mubr.f32.mxu0 0.0
      %1197 = vmatmul.mubr.f32.gmra.mrb[0].mxu0 %v1052
      %v1198 = vpop.f32.mrb[0].mxu0
      %v1199 = vadd.f32 %v893, %v1198
      %v1200 = vpop.f32.mrb[0].mxu0
      %1201 = vmatprep.mubr.f32.mxu0 0.0
      %1202 = vmatmul.mubr.f32.gmra.mrb[0].mxu0 %v1055
      %v1203 = vpop.f32.mrb[0].mxu0
      %v1204 = vadd.f32 %v898, %v1203
      %v1205 = vpop.f32.mrb[0].mxu0
      %1206 = vdwg.mxu0
      %1207 = vmatprep.subr.mxu0 0.0
      %1208 = vmatpush1.msra.mxu0 %v650
      %1209 = vmatprep.subr.mxu0 0.0
      %1210 = vmatpush1.msra.mxu0 0.0
      %1211 = vmatprep.subr.mxu0 0.0
      %1212 = vmatpush1.msra.mxu0 0.0
      %1213 = vmatprep.subr.mxu0 0.0
      %1214 = vmatpush1.msra.mxu0 0.0
      %1215 = vmatprep.subr.mxu0 0.0
      %1216 = vmatpush1.msra.mxu0 0.0
      %1217 = vmatprep.subr.mxu0 0.0
      %1218 = vmatpush1.msra.mxu0 0.0
      %1219 = vmatprep.subr.mxu0 0.0
      %1220 = vmatpush1.msra.mxu0 0.0
      %1221 = vmatprep.subr.mxu0 0.0
      %1222 = vmatpush1.msra.mxu0 0.0
      %1223 = vmatprep.subr.mxu0 0.0
      %1224 = vmatpush1.msra.mxu0 0.0
      %1225 = vmatprep.subr.mxu0 0.0
      %1226 = vmatpush1.msra.mxu0 0.0
      %1227 = vmatprep.subr.mxu0 0.0
      %1228 = vmatpush1.msra.mxu0 0.0
      %1229 = vmatprep.subr.mxu0 0.0
      %1230 = vmatpush1.msra.mxu0 0.0
      %1231 = vmatprep.subr.mxu0 0.0
      %1232 = vmatpush1.msra.mxu0 0.0
      %1233 = vmatprep.subr.mxu0 0.0
      %1234 = vmatpush1.msra.mxu0 0.0
      %1235 = vmatprep.subr.mxu0 0.0
      %1236 = vmatpush1.msra.mxu0 0.0
      %1237 = vmatprep.subr.mxu0 0.0
      %1238 = vmatpush1.msra.mxu0 0.0
      %1239 = vmatprep.subr.mxu0 0.0
      %1240 = vmatpush1.msra.mxu0 0.0
      %1241 = vmatprep.subr.mxu0 0.0
      %1242 = vmatpush1.msra.mxu0 0.0
      %1243 = vmatprep.subr.mxu0 0.0
      %1244 = vmatpush1.msra.mxu0 0.0
      %1245 = vmatprep.subr.mxu0 0.0
      %1246 = vmatpush1.msra.mxu0 0.0
      %1247 = vmatprep.subr.mxu0 0.0
      %1248 = vmatpush1.msra.mxu0 0.0
      %1249 = vmatprep.subr.mxu0 0.0
      %1250 = vmatpush1.msra.mxu0 0.0
      %1251 = vmatprep.subr.mxu0 0.0
      %1252 = vmatpush1.msra.mxu0 0.0
      %1253 = vmatprep.subr.mxu0 0.0
      %1254 = vmatpush1.msra.mxu0 0.0
      %1255 = vmatprep.subr.mxu0 0.0
      %1256 = vmatpush1.msra.mxu0 0.0
      %1257 = vmatprep.subr.mxu0 0.0
      %1258 = vmatpush1.msra.mxu0 0.0
      %1259 = vmatprep.subr.mxu0 0.0
      %1260 = vmatpush1.msra.mxu0 0.0
      %1261 = vmatprep.subr.mxu0 0.0
      %1262 = vmatpush1.msra.mxu0 0.0
      %1263 = vmatprep.subr.mxu0 0.0
      %1264 = vmatpush1.msra.mxu0 0.0
      %1265 = vmatprep.subr.mxu0 0.0
      %1266 = vmatpush1.msra.mxu0 0.0
      %1267 = vmatprep.subr.mxu0 0.0
      %1268 = vmatpush1.msra.mxu0 0.0
      %1269 = vmatprep.subr.mxu0 0.0
      %1270 = vmatpush1.msra.mxu0 0.0
      %1271 = vmatprep.mubr.f32.mxu0 0.0
      %1272 = vmatmul.mubr.f32.gmra.mrb[0].mxu0 %v1052
      %v1273 = vpop.f32.mrb[0].mxu0
      %v1274 = vadd.f32 %v968, %v1273
      %v1275 = vpop.f32.mrb[0].mxu0
      %1276 = vmatprep.mubr.f32.mxu0 0.0
      %1277 = vmatmul.mubr.f32.gmra.mrb[0].mxu0 %v1055
      %v1278 = vpop.f32.mrb[0].mxu0
      %v1279 = vadd.f32 %v973, %v1278
      %v1280 = vpop.f32.mrb[0].mxu0
      %1281 = vdwg.mxu0
      %1282 = vmatprep.subr.mxu0 0.0
      %1283 = vmatpush1.msra.mxu0 %v655
      %1284 = vmatprep.subr.mxu0 0.0
      %1285 = vmatpush1.msra.mxu0 0.0
      %1286 = vmatprep.subr.mxu0 0.0
      %1287 = vmatpush1.msra.mxu0 0.0
      %1288 = vmatprep.subr.mxu0 0.0
      %1289 = vmatpush1.msra.mxu0 0.0
      %1290 = vmatprep.subr.mxu0 0.0
      %1291 = vmatpush1.msra.mxu0 0.0
      %1292 = vmatprep.subr.mxu0 0.0
      %1293 = vmatpush1.msra.mxu0 0.0
      %1294 = vmatprep.subr.mxu0 0.0
      %1295 = vmatpush1.msra.mxu0 0.0
      %1296 = vmatprep.subr.mxu0 0.0
      %1297 = vmatpush1.msra.mxu0 0.0
      %1298 = vmatprep.subr.mxu0 0.0
      %1299 = vmatpush1.msra.mxu0 0.0
      %1300 = vmatprep.subr.mxu0 0.0
      %1301 = vmatpush1.msra.mxu0 0.0
      %1302 = vmatprep.subr.mxu0 0.0
      %1303 = vmatpush1.msra.mxu0 0.0
      %1304 = vmatprep.subr.mxu0 0.0
      %1305 = vmatpush1.msra.mxu0 0.0
      %1306 = vmatprep.subr.mxu0 0.0
      %1307 = vmatpush1.msra.mxu0 0.0
      %1308 = vmatprep.subr.mxu0 0.0
      %1309 = vmatpush1.msra.mxu0 0.0
      %1310 = vmatprep.subr.mxu0 0.0
      %1311 = vmatpush1.msra.mxu0 0.0
      %1312 = vmatprep.subr.mxu0 0.0
      %1313 = vmatpush1.msra.mxu0 0.0
      %1314 = vmatprep.subr.mxu0 0.0
      %1315 = vmatpush1.msra.mxu0 0.0
      %1316 = vmatprep.subr.mxu0 0.0
      %1317 = vmatpush1.msra.mxu0 0.0
      %1318 = vmatprep.subr.mxu0 0.0
      %1319 = vmatpush1.msra.mxu0 0.0
      %1320 = vmatprep.subr.mxu0 0.0
      %1321 = vmatpush1.msra.mxu0 0.0
      %1322 = vmatprep.subr.mxu0 0.0
      %1323 = vmatpush1.msra.mxu0 0.0
      %1324 = vmatprep.subr.mxu0 0.0
      %1325 = vmatpush1.msra.mxu0 0.0
      %1326 = vmatprep.subr.mxu0 0.0
      %1327 = vmatpush1.msra.mxu0 0.0
      %1328 = vmatprep.subr.mxu0 0.0
      %1329 = vmatpush1.msra.mxu0 0.0
      %1330 = vmatprep.subr.mxu0 0.0
      %1331 = vmatpush1.msra.mxu0 0.0
      %1332 = vmatprep.subr.mxu0 0.0
      %1333 = vmatpush1.msra.mxu0 0.0
      %1334 = vmatprep.subr.mxu0 0.0
      %1335 = vmatpush1.msra.mxu0 0.0
      %1336 = vmatprep.subr.mxu0 0.0
      %1337 = vmatpush1.msra.mxu0 0.0
      %1338 = vmatprep.subr.mxu0 0.0
      %1339 = vmatpush1.msra.mxu0 0.0
      %1340 = vmatprep.subr.mxu0 0.0
      %1341 = vmatpush1.msra.mxu0 0.0
      %1342 = vmatprep.subr.mxu0 0.0
      %1343 = vmatpush1.msra.mxu0 0.0
      %1344 = vmatprep.subr.mxu0 0.0
      %1345 = vmatpush1.msra.mxu0 0.0
      %1346 = vmatprep.mubr.f32.mxu0 0.0
      %1347 = vmatmul.mubr.f32.gmra.mrb[0].mxu0 %v1052
      %v1348 = vpop.f32.mrb[0].mxu0
      %v1349 = vadd.f32 %v1043, %v1348
      %v1350 = vpop.f32.mrb[0].mxu0
      %1351 = vmatprep.mubr.f32.mxu0 0.0
      %1352 = vmatmul.mubr.f32.gmra.mrb[0].mxu0 %v1055
      %v1353 = vpop.f32.mrb[0].mxu0
      %v1354 = vadd.f32 %v1048, %v1353
      %v1355 = vpop.f32.mrb[0].mxu0
      %1356 = vdwg.mxu0
      %v1357 = vld [vmem:[%s4] sm:$0x1]
      %v1359 = vlaneseq
      %v1360 = vshrl.u32 %v1359, 7
      %v1361 = vsub.s32 0, %v1360
      %v1362 = vrot.slane %v1357, %v1361
      %v1364 = vadd.f32 %v1124, %v1362
      %v1365 = vadd.f32 %v1129, %v1362
      %v1366 = vadd.f32 %v1199, %v1362
      %v1367 = vadd.f32 %v1204, %v1362
      %v1368 = vadd.f32 %v1274, %v1362
      %v1369 = vadd.f32 %v1279, %v1362
      %v1370 = vadd.f32 %v1349, %v1362
      %v1371 = vadd.f32 %v1354, %v1362
      %s1372 = scalar_lea.vmem %s3, 16
      %v1373 = vld [vmem:[%s1372] sm:$0xff]
      %1374 = vmatprep.subr.mxu0 0.0
      %1375 = vmatpush1.msra.mxu0 %v1373
      %1376 = vmatprep.subr.mxu0 0.0
      %1377 = vmatpush1.msra.mxu0 0.0
      %1378 = vmatprep.subr.mxu0 0.0
      %1379 = vmatpush1.msra.mxu0 0.0
      %1380 = vmatprep.subr.mxu0 0.0
      %1381 = vmatpush1.msra.mxu0 0.0
      %1382 = vmatprep.subr.mxu0 0.0
      %1383 = vmatpush1.msra.mxu0 0.0
      %1384 = vmatprep.subr.mxu0 0.0
      %1385 = vmatpush1.msra.mxu0 0.0
      %1386 = vmatprep.subr.mxu0 0.0
      %1387 = vmatpush1.msra.mxu0 0.0
      %1388 = vmatprep.subr.mxu0 0.0
      %1389 = vmatpush1.msra.mxu0 0.0
      %1390 = vmatprep.subr.mxu0 0.0
      %1391 = vmatpush1.msra.mxu0 0.0
      %1392 = vmatprep.subr.mxu0 0.0
      %1393 = vmatpush1.msra.mxu0 0.0
      %1394 = vmatprep.subr.mxu0 0.0
      %1395 = vmatpush1.msra.mxu0 0.0
      %1396 = vmatprep.subr.mxu0 0.0
      %1397 = vmatpush1.msra.mxu0 0.0
      %1398 = vmatprep.subr.mxu0 0.0
      %1399 = vmatpush1.msra.mxu0 0.0
      %1400 = vmatprep.subr.mxu0 0.0
      %1401 = vmatpush1.msra.mxu0 0.0
      %1402 = vmatprep.subr.mxu0 0.0
      %1403 = vmatpush1.msra.mxu0 0.0
      %1404 = vmatprep.subr.mxu0 0.0
      %1405 = vmatpush1.msra.mxu0 0.0
      %1406 = vmatprep.subr.mxu0 0.0
      %1407 = vmatpush1.msra.mxu0 0.0
      %1408 = vmatprep.subr.mxu0 0.0
      %1409 = vmatpush1.msra.mxu0 0.0
      %1410 = vmatprep.subr.mxu0 0.0
      %1411 = vmatpush1.msra.mxu0 0.0
      %1412 = vmatprep.subr.mxu0 0.0
      %1413 = vmatpush1.msra.mxu0 0.0
      %1414 = vmatprep.subr.mxu0 0.0
      %1415 = vmatpush1.msra.mxu0 0.0
      %1416 = vmatprep.subr.mxu0 0.0
      %1417 = vmatpush1.msra.mxu0 0.0
      %1418 = vmatprep.subr.mxu0 0.0
      %1419 = vmatpush1.msra.mxu0 0.0
      %1420 = vmatprep.subr.mxu0 0.0
      %1421 = vmatpush1.msra.mxu0 0.0
      %1422 = vmatprep.subr.mxu0 0.0
      %1423 = vmatpush1.msra.mxu0 0.0
      %1424 = vmatprep.subr.mxu0 0.0
      %1425 = vmatpush1.msra.mxu0 0.0
      %1426 = vmatprep.subr.mxu0 0.0
      %1427 = vmatpush1.msra.mxu0 0.0
      %1428 = vmatprep.subr.mxu0 0.0
      %1429 = vmatpush1.msra.mxu0 0.0
      %1430 = vmatprep.subr.mxu0 0.0
      %1431 = vmatpush1.msra.mxu0 0.0
      %1432 = vmatprep.subr.mxu0 0.0
      %1433 = vmatpush1.msra.mxu0 0.0
      %1434 = vmatprep.subr.mxu0 0.0
      %1435 = vmatpush1.msra.mxu0 0.0
      %1436 = vmatprep.subr.mxu0 0.0
      %1437 = vmatpush1.msra.mxu0 0.0
      %1438 = vmatprep.mubr.f32.mxu0 0.0
      %1439 = vmatmul.mubr.f32.gmra.mrb[0].mxu0 %v562
      %v1440 = vpop.f32.mrb[0].mxu0
      %v1441 = vadd.f32 0.0, %v1440
      %v1442 = vpop.f32.mrb[0].mxu0
      %1443 = vmatprep.mubr.f32.mxu0 0.0
      %1444 = vmatmul.mubr.f32.gmra.mrb[0].mxu0 %v565
      %v1445 = vpop.f32.mrb[0].mxu0
      %v1446 = vadd.f32 0.0, %v1445
      %v1447 = vpop.f32.mrb[0].mxu0
      %1448 = vmatprep.mubr.f32.mxu0 0.0
      %1449 = vmatmul.mubr.f32.gmra.mrb[0].mxu0 %v568
      %v1450 = vpop.f32.mrb[0].mxu0
      %v1451 = vadd.f32 0.0, %v1450
      %v1452 = vpop.f32.mrb[0].mxu0
      %1453 = vmatprep.mubr.f32.mxu0 0.0
      %1454 = vmatmul.mubr.f32.gmra.mrb[0].mxu0 %v571
      %v1455 = vpop.f32.mrb[0].mxu0
      %v1456 = vadd.f32 0.0, %v1455
      %v1457 = vpop.f32.mrb[0].mxu0
      %1458 = vdwg.mxu0
      %s1459 = scalar_lea.vmem %s3, 24
      %v1460 = vld [vmem:[%s1459] sm:$0xff]
      %1461 = vmatprep.subr.mxu0 0.0
      %1462 = vmatpush1.msra.mxu0 %v1460
      %1463 = vmatprep.subr.mxu0 0.0
      %1464 = vmatpush1.msra.mxu0 0.0
      %1465 = vmatprep.subr.mxu0 0.0
      %1466 = vmatpush1.msra.mxu0 0.0
      %1467 = vmatprep.subr.mxu0 0.0
      %1468 = vmatpush1.msra.mxu0 0.0
      %1469 = vmatprep.subr.mxu0 0.0
      %1470 = vmatpush1.msra.mxu0 0.0
      %1471 = vmatprep.subr.mxu0 0.0
      %1472 = vmatpush1.msra.mxu0 0.0
      %1473 = vmatprep.subr.mxu0 0.0
      %1474 = vmatpush1.msra.mxu0 0.0
      %1475 = vmatprep.subr.mxu0 0.0
      %1476 = vmatpush1.msra.mxu0 0.0
      %1477 = vmatprep.subr.mxu0 0.0
      %1478 = vmatpush1.msra.mxu0 0.0
      %1479 = vmatprep.subr.mxu0 0.0
      %1480 = vmatpush1.msra.mxu0 0.0
      %1481 = vmatprep.subr.mxu0 0.0
      %1482 = vmatpush1.msra.mxu0 0.0
      %1483 = vmatprep.subr.mxu0 0.0
      %1484 = vmatpush1.msra.mxu0 0.0
      %1485 = vmatprep.subr.mxu0 0.0
      %1486 = vmatpush1.msra.mxu0 0.0
      %1487 = vmatprep.subr.mxu0 0.0
      %1488 = vmatpush1.msra.mxu0 0.0
      %1489 = vmatprep.subr.mxu0 0.0
      %1490 = vmatpush1.msra.mxu0 0.0
      %1491 = vmatprep.subr.mxu0 0.0
      %1492 = vmatpush1.msra.mxu0 0.0
      %1493 = vmatprep.subr.mxu0 0.0
      %1494 = vmatpush1.msra.mxu0 0.0
      %1495 = vmatprep.subr.mxu0 0.0
      %1496 = vmatpush1.msra.mxu0 0.0
      %1497 = vmatprep.subr.mxu0 0.0
      %1498 = vmatpush1.msra.mxu0 0.0
      %1499 = vmatprep.subr.mxu0 0.0
      %1500 = vmatpush1.msra.mxu0 0.0
      %1501 = vmatprep.subr.mxu0 0.0
      %1502 = vmatpush1.msra.mxu0 0.0
      %1503 = vmatprep.subr.mxu0 0.0
      %1504 = vmatpush1.msra.mxu0 0.0
      %1505 = vmatprep.subr.mxu0 0.0
      %1506 = vmatpush1.msra.mxu0 0.0
      %1507 = vmatprep.subr.mxu0 0.0
      %1508 = vmatpush1.msra.mxu0 0.0
      %1509 = vmatprep.subr.mxu0 0.0
      %1510 = vmatpush1.msra.mxu0 0.0
      %1511 = vmatprep.subr.mxu0 0.0
      %1512 = vmatpush1.msra.mxu0 0.0
      %1513 = vmatprep.subr.mxu0 0.0
      %1514 = vmatpush1.msra.mxu0 0.0
      %1515 = vmatprep.subr.mxu0 0.0
      %1516 = vmatpush1.msra.mxu0 0.0
      %1517 = vmatprep.subr.mxu0 0.0
      %1518 = vmatpush1.msra.mxu0 0.0
      %1519 = vmatprep.subr.mxu0 0.0
      %1520 = vmatpush1.msra.mxu0 0.0
      %1521 = vmatprep.subr.mxu0 0.0
      %1522 = vmatpush1.msra.mxu0 0.0
      %1523 = vmatprep.subr.mxu0 0.0
      %1524 = vmatpush1.msra.mxu0 0.0
      %1525 = vmatprep.mubr.f32.mxu0 0.0
      %1526 = vmatmul.mubr.f32.gmra.mrb[0].mxu0 %v562
      %v1527 = vpop.f32.mrb[0].mxu0
      %v1528 = vadd.f32 0.0, %v1527
      %v1529 = vpop.f32.mrb[0].mxu0
      %1530 = vmatprep.mubr.f32.mxu0 0.0
      %1531 = vmatmul.mubr.f32.gmra.mrb[0].mxu0 %v565
      %v1532 = vpop.f32.mrb[0].mxu0
      %v1533 = vadd.f32 0.0, %v1532
      %v1534 = vpop.f32.mrb[0].mxu0
      %1535 = vmatprep.mubr.f32.mxu0 0.0
      %1536 = vmatmul.mubr.f32.gmra.mrb[0].mxu0 %v568
      %v1537 = vpop.f32.mrb[0].mxu0
      %v1538 = vadd.f32 0.0, %v1537
      %v1539 = vpop.f32.mrb[0].mxu0
      %1540 = vmatprep.mubr.f32.mxu0 0.0
      %1541 = vmatmul.mubr.f32.gmra.mrb[0].mxu0 %v571
      %v1542 = vpop.f32.mrb[0].mxu0
      %v1543 = vadd.f32 0.0, %v1542
      %v1544 = vpop.f32.mrb[0].mxu0
      %1545 = vdwg.mxu0
      %1546 = vmatprep.subr.mxu0 0.0
      %1547 = vmatpush1.msra.mxu0 %v1528
      %1548 = vmatprep.subr.mxu0 0.0
      %1549 = vmatpush1.msra.mxu0 0.0
      %1550 = vmatprep.subr.mxu0 0.0
      %1551 = vmatpush1.msra.mxu0 0.0
      %1552 = vmatprep.subr.mxu0 0.0
      %1553 = vmatpush1.msra.mxu0 0.0
      %1554 = vmatprep.subr.mxu0 0.0
      %1555 = vmatpush1.msra.mxu0 0.0
      %1556 = vmatprep.subr.mxu0 0.0
      %1557 = vmatpush1.msra.mxu0 0.0
      %1558 = vmatprep.subr.mxu0 0.0
      %1559 = vmatpush1.msra.mxu0 0.0
      %1560 = vmatprep.subr.mxu0 0.0
      %1561 = vmatpush1.msra.mxu0 0.0
      %1562 = vmatprep.subr.mxu0 0.0
      %1563 = vmatpush1.msra.mxu0 0.0
      %1564 = vmatprep.subr.mxu0 0.0
      %1565 = vmatpush1.msra.mxu0 0.0
      %1566 = vmatprep.subr.mxu0 0.0
      %1567 = vmatpush1.msra.mxu0 0.0
      %1568 = vmatprep.subr.mxu0 0.0
      %1569 = vmatpush1.msra.mxu0 0.0
      %1570 = vmatprep.subr.mxu0 0.0
      %1571 = vmatpush1.msra.mxu0 0.0
      %1572 = vmatprep.subr.mxu0 0.0
      %1573 = vmatpush1.msra.mxu0 0.0
      %1574 = vmatprep.subr.mxu0 0.0
      %1575 = vmatpush1.msra.mxu0 0.0
      %1576 = vmatprep.subr.mxu0 0.0
      %1577 = vmatpush1.msra.mxu0 0.0
      %1578 = vmatprep.subr.mxu0 0.0
      %1579 = vmatpush1.msra.mxu0 0.0
      %1580 = vmatprep.subr.mxu0 0.0
      %1581 = vmatpush1.msra.mxu0 0.0
      %1582 = vmatprep.subr.mxu0 0.0
      %1583 = vmatpush1.msra.mxu0 0.0
      %1584 = vmatprep.subr.mxu0 0.0
      %1585 = vmatpush1.msra.mxu0 0.0
      %1586 = vmatprep.subr.mxu0 0.0
      %1587 = vmatpush1.msra.mxu0 0.0
      %1588 = vmatprep.subr.mxu0 0.0
      %1589 = vmatpush1.msra.mxu0 0.0
      %1590 = vmatprep.subr.mxu0 0.0
      %1591 = vmatpush1.msra.mxu0 0.0
      %1592 = vmatprep.subr.mxu0 0.0
      %1593 = vmatpush1.msra.mxu0 0.0
      %1594 = vmatprep.subr.mxu0 0.0
      %1595 = vmatpush1.msra.mxu0 0.0
      %1596 = vmatprep.subr.mxu0 0.0
      %1597 = vmatpush1.msra.mxu0 0.0
      %1598 = vmatprep.subr.mxu0 0.0
      %1599 = vmatpush1.msra.mxu0 0.0
      %1600 = vmatprep.subr.mxu0 0.0
      %1601 = vmatpush1.msra.mxu0 0.0
      %1602 = vmatprep.subr.mxu0 0.0
      %1603 = vmatpush1.msra.mxu0 0.0
      %1604 = vmatprep.subr.mxu0 0.0
      %1605 = vmatpush1.msra.mxu0 0.0
      %1606 = vmatprep.subr.mxu0 0.0
      %1607 = vmatpush1.msra.mxu0 0.0
      %1608 = vmatprep.subr.mxu0 0.0
      %1609 = vmatpush1.msra.mxu0 0.0
      %1610 = vmatprep.mubr.f32.mxu0 0.0
      %1611 = vmatmul.mubr.f32.gmra.mrb[0].mxu0 %v746
      %v1612 = vpop.f32.mrb[0].mxu0
      %v1613 = vadd.f32 0.0, %v1612
      %v1614 = vpop.f32.mrb[0].mxu0
      %1615 = vmatprep.mubr.f32.mxu0 0.0
      %1616 = vmatmul.mubr.f32.gmra.mrb[0].mxu0 %v749
      %v1617 = vpop.f32.mrb[0].mxu0
      %v1618 = vadd.f32 0.0, %v1617
      %v1619 = vpop.f32.mrb[0].mxu0
      %1620 = vdwg.mxu0
      %1621 = vmatprep.subr.mxu0 0.0
      %1622 = vmatpush1.msra.mxu0 %v1533
      %1623 = vmatprep.subr.mxu0 0.0
      %1624 = vmatpush1.msra.mxu0 0.0
      %1625 = vmatprep.subr.mxu0 0.0
      %1626 = vmatpush1.msra.mxu0 0.0
      %1627 = vmatprep.subr.mxu0 0.0
      %1628 = vmatpush1.msra.mxu0 0.0
      %1629 = vmatprep.subr.mxu0 0.0
      %1630 = vmatpush1.msra.mxu0 0.0
      %1631 = vmatprep.subr.mxu0 0.0
      %1632 = vmatpush1.msra.mxu0 0.0
      %1633 = vmatprep.subr.mxu0 0.0
      %1634 = vmatpush1.msra.mxu0 0.0
      %1635 = vmatprep.subr.mxu0 0.0
      %1636 = vmatpush1.msra.mxu0 0.0
      %1637 = vmatprep.subr.mxu0 0.0
      %1638 = vmatpush1.msra.mxu0 0.0
      %1639 = vmatprep.subr.mxu0 0.0
      %1640 = vmatpush1.msra.mxu0 0.0
      %1641 = vmatprep.subr.mxu0 0.0
      %1642 = vmatpush1.msra.mxu0 0.0
      %1643 = vmatprep.subr.mxu0 0.0
      %1644 = vmatpush1.msra.mxu0 0.0
      %1645 = vmatprep.subr.mxu0 0.0
      %1646 = vmatpush1.msra.mxu0 0.0
      %1647 = vmatprep.subr.mxu0 0.0
      %1648 = vmatpush1.msra.mxu0 0.0
      %1649 = vmatprep.subr.mxu0 0.0
      %1650 = vmatpush1.msra.mxu0 0.0
      %1651 = vmatprep.subr.mxu0 0.0
      %1652 = vmatpush1.msra.mxu0 0.0
      %1653 = vmatprep.subr.mxu0 0.0
      %1654 = vmatpush1.msra.mxu0 0.0
      %1655 = vmatprep.subr.mxu0 0.0
      %1656 = vmatpush1.msra.mxu0 0.0
      %1657 = vmatprep.subr.mxu0 0.0
      %1658 = vmatpush1.msra.mxu0 0.0
      %1659 = vmatprep.subr.mxu0 0.0
      %1660 = vmatpush1.msra.mxu0 0.0
      %1661 = vmatprep.subr.mxu0 0.0
      %1662 = vmatpush1.msra.mxu0 0.0
      %1663 = vmatprep.subr.mxu0 0.0
      %1664 = vmatpush1.msra.mxu0 0.0
      %1665 = vmatprep.subr.mxu0 0.0
      %1666 = vmatpush1.msra.mxu0 0.0
      %1667 = vmatprep.subr.mxu0 0.0
      %1668 = vmatpush1.msra.mxu0 0.0
      %1669 = vmatprep.subr.mxu0 0.0
      %1670 = vmatpush1.msra.mxu0 0.0
      %1671 = vmatprep.subr.mxu0 0.0
      %1672 = vmatpush1.msra.mxu0 0.0
      %1673 = vmatprep.subr.mxu0 0.0
      %1674 = vmatpush1.msra.mxu0 0.0
      %1675 = vmatprep.subr.mxu0 0.0
      %1676 = vmatpush1.msra.mxu0 0.0
      %1677 = vmatprep.subr.mxu0 0.0
      %1678 = vmatpush1.msra.mxu0 0.0
      %1679 = vmatprep.subr.mxu0 0.0
      %1680 = vmatpush1.msra.mxu0 0.0
      %1681 = vmatprep.subr.mxu0 0.0
      %1682 = vmatpush1.msra.mxu0 0.0
      %1683 = vmatprep.subr.mxu0 0.0
      %1684 = vmatpush1.msra.mxu0 0.0
      %1685 = vmatprep.mubr.f32.mxu0 0.0
      %1686 = vmatmul.mubr.f32.gmra.mrb[0].mxu0 %v746
      %v1687 = vpop.f32.mrb[0].mxu0
      %v1688 = vadd.f32 0.0, %v1687
      %v1689 = vpop.f32.mrb[0].mxu0
      %1690 = vmatprep.mubr.f32.mxu0 0.0
      %1691 = vmatmul.mubr.f32.gmra.mrb[0].mxu0 %v749
      %v1692 = vpop.f32.mrb[0].mxu0
      %v1693 = vadd.f32 0.0, %v1692
      %v1694 = vpop.f32.mrb[0].mxu0
      %1695 = vdwg.mxu0
      %1696 = vmatprep.subr.mxu0 0.0
      %1697 = vmatpush1.msra.mxu0 %v1538
      %1698 = vmatprep.subr.mxu0 0.0
      %1699 = vmatpush1.msra.mxu0 0.0
      %1700 = vmatprep.subr.mxu0 0.0
      %1701 = vmatpush1.msra.mxu0 0.0
      %1702 = vmatprep.subr.mxu0 0.0
      %1703 = vmatpush1.msra.mxu0 0.0
      %1704 = vmatprep.subr.mxu0 0.0
      %1705 = vmatpush1.msra.mxu0 0.0
      %1706 = vmatprep.subr.mxu0 0.0
      %1707 = vmatpush1.msra.mxu0 0.0
      %1708 = vmatprep.subr.mxu0 0.0
      %1709 = vmatpush1.msra.mxu0 0.0
      %1710 = vmatprep.subr.mxu0 0.0
      %1711 = vmatpush1.msra.mxu0 0.0
      %1712 = vmatprep.subr.mxu0 0.0
      %1713 = vmatpush1.msra.mxu0 0.0
      %1714 = vmatprep.subr.mxu0 0.0
      %1715 = vmatpush1.msra.mxu0 0.0
      %1716 = vmatprep.subr.mxu0 0.0
      %1717 = vmatpush1.msra.mxu0 0.0
      %1718 = vmatprep.subr.mxu0 0.0
      %1719 = vmatpush1.msra.mxu0 0.0
      %1720 = vmatprep.subr.mxu0 0.0
      %1721 = vmatpush1.msra.mxu0 0.0
      %1722 = vmatprep.subr.mxu0 0.0
      %1723 = vmatpush1.msra.mxu0 0.0
      %1724 = vmatprep.subr.mxu0 0.0
      %1725 = vmatpush1.msra.mxu0 0.0
      %1726 = vmatprep.subr.mxu0 0.0
      %1727 = vmatpush1.msra.mxu0 0.0
      %1728 = vmatprep.subr.mxu0 0.0
      %1729 = vmatpush1.msra.mxu0 0.0
      %1730 = vmatprep.subr.mxu0 0.0
      %1731 = vmatpush1.msra.mxu0 0.0
      %1732 = vmatprep.subr.mxu0 0.0
      %1733 = vmatpush1.msra.mxu0 0.0
      %1734 = vmatprep.subr.mxu0 0.0
      %1735 = vmatpush1.msra.mxu0 0.0
      %1736 = vmatprep.subr.mxu0 0.0
      %1737 = vmatpush1.msra.mxu0 0.0
      %1738 = vmatprep.subr.mxu0 0.0
      %1739 = vmatpush1.msra.mxu0 0.0
      %1740 = vmatprep.subr.mxu0 0.0
      %1741 = vmatpush1.msra.mxu0 0.0
      %1742 = vmatprep.subr.mxu0 0.0
      %1743 = vmatpush1.msra.mxu0 0.0
      %1744 = vmatprep.subr.mxu0 0.0
      %1745 = vmatpush1.msra.mxu0 0.0
      %1746 = vmatprep.subr.mxu0 0.0
      %1747 = vmatpush1.msra.mxu0 0.0
      %1748 = vmatprep.subr.mxu0 0.0
      %1749 = vmatpush1.msra.mxu0 0.0
      %1750 = vmatprep.subr.mxu0 0.0
      %1751 = vmatpush1.msra.mxu0 0.0
      %1752 = vmatprep.subr.mxu0 0.0
      %1753 = vmatpush1.msra.mxu0 0.0
      %1754 = vmatprep.subr.mxu0 0.0
      %1755 = vmatpush1.msra.mxu0 0.0
      %1756 = vmatprep.subr.mxu0 0.0
      %1757 = vmatpush1.msra.mxu0 0.0
      %1758 = vmatprep.subr.mxu0 0.0
      %1759 = vmatpush1.msra.mxu0 0.0
      %1760 = vmatprep.mubr.f32.mxu0 0.0
      %1761 = vmatmul.mubr.f32.gmra.mrb[0].mxu0 %v746
      %v1762 = vpop.f32.mrb[0].mxu0
      %v1763 = vadd.f32 0.0, %v1762
      %v1764 = vpop.f32.mrb[0].mxu0
      %1765 = vmatprep.mubr.f32.mxu0 0.0
      %1766 = vmatmul.mubr.f32.gmra.mrb[0].mxu0 %v749
      %v1767 = vpop.f32.mrb[0].mxu0
      %v1768 = vadd.f32 0.0, %v1767
      %v1769 = vpop.f32.mrb[0].mxu0
      %1770 = vdwg.mxu0
      %1771 = vmatprep.subr.mxu0 0.0
      %1772 = vmatpush1.msra.mxu0 %v1543
      %1773 = vmatprep.subr.mxu0 0.0
      %1774 = vmatpush1.msra.mxu0 0.0
      %1775 = vmatprep.subr.mxu0 0.0
      %1776 = vmatpush1.msra.mxu0 0.0
      %1777 = vmatprep.subr.mxu0 0.0
      %1778 = vmatpush1.msra.mxu0 0.0
      %1779 = vmatprep.subr.mxu0 0.0
      %1780 = vmatpush1.msra.mxu0 0.0
      %1781 = vmatprep.subr.mxu0 0.0
      %1782 = vmatpush1.msra.mxu0 0.0
      %1783 = vmatprep.subr.mxu0 0.0
      %1784 = vmatpush1.msra.mxu0 0.0
      %1785 = vmatprep.subr.mxu0 0.0
      %1786 = vmatpush1.msra.mxu0 0.0
      %1787 = vmatprep.subr.mxu0 0.0
      %1788 = vmatpush1.msra.mxu0 0.0
      %1789 = vmatprep.subr.mxu0 0.0
      %1790 = vmatpush1.msra.mxu0 0.0
      %1791 = vmatprep.subr.mxu0 0.0
      %1792 = vmatpush1.msra.mxu0 0.0
      %1793 = vmatprep.subr.mxu0 0.0
      %1794 = vmatpush1.msra.mxu0 0.0
      %1795 = vmatprep.subr.mxu0 0.0
      %1796 = vmatpush1.msra.mxu0 0.0
      %1797 = vmatprep.subr.mxu0 0.0
      %1798 = vmatpush1.msra.mxu0 0.0
      %1799 = vmatprep.subr.mxu0 0.0
      %1800 = vmatpush1.msra.mxu0 0.0
      %1801 = vmatprep.subr.mxu0 0.0
      %1802 = vmatpush1.msra.mxu0 0.0
      %1803 = vmatprep.subr.mxu0 0.0
      %1804 = vmatpush1.msra.mxu0 0.0
      %1805 = vmatprep.subr.mxu0 0.0
      %1806 = vmatpush1.msra.mxu0 0.0
      %1807 = vmatprep.subr.mxu0 0.0
      %1808 = vmatpush1.msra.mxu0 0.0
      %1809 = vmatprep.subr.mxu0 0.0
      %1810 = vmatpush1.msra.mxu0 0.0
      %1811 = vmatprep.subr.mxu0 0.0
      %1812 = vmatpush1.msra.mxu0 0.0
      %1813 = vmatprep.subr.mxu0 0.0
      %1814 = vmatpush1.msra.mxu0 0.0
      %1815 = vmatprep.subr.mxu0 0.0
      %1816 = vmatpush1.msra.mxu0 0.0
      %1817 = vmatprep.subr.mxu0 0.0
      %1818 = vmatpush1.msra.mxu0 0.0
      %1819 = vmatprep.subr.mxu0 0.0
      %1820 = vmatpush1.msra.mxu0 0.0
      %1821 = vmatprep.subr.mxu0 0.0
      %1822 = vmatpush1.msra.mxu0 0.0
      %1823 = vmatprep.subr.mxu0 0.0
      %1824 = vmatpush1.msra.mxu0 0.0
      %1825 = vmatprep.subr.mxu0 0.0
      %1826 = vmatpush1.msra.mxu0 0.0
      %1827 = vmatprep.subr.mxu0 0.0
      %1828 = vmatpush1.msra.mxu0 0.0
      %1829 = vmatprep.subr.mxu0 0.0
      %1830 = vmatpush1.msra.mxu0 0.0
      %1831 = vmatprep.subr.mxu0 0.0
      %1832 = vmatpush1.msra.mxu0 0.0
      %1833 = vmatprep.subr.mxu0 0.0
      %1834 = vmatpush1.msra.mxu0 0.0
      %1835 = vmatprep.mubr.f32.mxu0 0.0
      %1836 = vmatmul.mubr.f32.gmra.mrb[0].mxu0 %v746
      %v1837 = vpop.f32.mrb[0].mxu0
      %v1838 = vadd.f32 0.0, %v1837
      %v1839 = vpop.f32.mrb[0].mxu0
      %1840 = vmatprep.mubr.f32.mxu0 0.0
      %1841 = vmatmul.mubr.f32.gmra.mrb[0].mxu0 %v749
      %v1842 = vpop.f32.mrb[0].mxu0
      %v1843 = vadd.f32 0.0, %v1842
      %v1844 = vpop.f32.mrb[0].mxu0
      %1845 = vdwg.mxu0
      %1846 = vmatprep.subr.mxu0 0.0
      %1847 = vmatpush1.msra.mxu0 %v1441
      %1848 = vmatprep.subr.mxu0 0.0
      %1849 = vmatpush1.msra.mxu0 0.0
      %1850 = vmatprep.subr.mxu0 0.0
      %1851 = vmatpush1.msra.mxu0 0.0
      %1852 = vmatprep.subr.mxu0 0.0
      %1853 = vmatpush1.msra.mxu0 0.0
      %1854 = vmatprep.subr.mxu0 0.0
      %1855 = vmatpush1.msra.mxu0 0.0
      %1856 = vmatprep.subr.mxu0 0.0
      %1857 = vmatpush1.msra.mxu0 0.0
      %1858 = vmatprep.subr.mxu0 0.0
      %1859 = vmatpush1.msra.mxu0 0.0
      %1860 = vmatprep.subr.mxu0 0.0
      %1861 = vmatpush1.msra.mxu0 0.0
      %1862 = vmatprep.subr.mxu0 0.0
      %1863 = vmatpush1.msra.mxu0 0.0
      %1864 = vmatprep.subr.mxu0 0.0
      %1865 = vmatpush1.msra.mxu0 0.0
      %1866 = vmatprep.subr.mxu0 0.0
      %1867 = vmatpush1.msra.mxu0 0.0
      %1868 = vmatprep.subr.mxu0 0.0
      %1869 = vmatpush1.msra.mxu0 0.0
      %1870 = vmatprep.subr.mxu0 0.0
      %1871 = vmatpush1.msra.mxu0 0.0
      %1872 = vmatprep.subr.mxu0 0.0
      %1873 = vmatpush1.msra.mxu0 0.0
      %1874 = vmatprep.subr.mxu0 0.0
      %1875 = vmatpush1.msra.mxu0 0.0
      %1876 = vmatprep.subr.mxu0 0.0
      %1877 = vmatpush1.msra.mxu0 0.0
      %1878 = vmatprep.subr.mxu0 0.0
      %1879 = vmatpush1.msra.mxu0 0.0
      %1880 = vmatprep.subr.mxu0 0.0
      %1881 = vmatpush1.msra.mxu0 0.0
      %1882 = vmatprep.subr.mxu0 0.0
      %1883 = vmatpush1.msra.mxu0 0.0
      %1884 = vmatprep.subr.mxu0 0.0
      %1885 = vmatpush1.msra.mxu0 0.0
      %1886 = vmatprep.subr.mxu0 0.0
      %1887 = vmatpush1.msra.mxu0 0.0
      %1888 = vmatprep.subr.mxu0 0.0
      %1889 = vmatpush1.msra.mxu0 0.0
      %1890 = vmatprep.subr.mxu0 0.0
      %1891 = vmatpush1.msra.mxu0 0.0
      %1892 = vmatprep.subr.mxu0 0.0
      %1893 = vmatpush1.msra.mxu0 0.0
      %1894 = vmatprep.subr.mxu0 0.0
      %1895 = vmatpush1.msra.mxu0 0.0
      %1896 = vmatprep.subr.mxu0 0.0
      %1897 = vmatpush1.msra.mxu0 0.0
      %1898 = vmatprep.subr.mxu0 0.0
      %1899 = vmatpush1.msra.mxu0 0.0
      %1900 = vmatprep.subr.mxu0 0.0
      %1901 = vmatpush1.msra.mxu0 0.0
      %1902 = vmatprep.subr.mxu0 0.0
      %1903 = vmatpush1.msra.mxu0 0.0
      %1904 = vmatprep.subr.mxu0 0.0
      %1905 = vmatpush1.msra.mxu0 0.0
      %1906 = vmatprep.subr.mxu0 0.0
      %1907 = vmatpush1.msra.mxu0 0.0
      %1908 = vmatprep.subr.mxu0 0.0
      %1909 = vmatpush1.msra.mxu0 0.0
      %1910 = vmatprep.mubr.f32.mxu0 0.0
      %1911 = vmatmul.mubr.f32.gmra.mrb[0].mxu0 %v1052
      %v1912 = vpop.f32.mrb[0].mxu0
      %v1913 = vadd.f32 %v1613, %v1912
      %v1914 = vpop.f32.mrb[0].mxu0
      %1915 = vmatprep.mubr.f32.mxu0 0.0
      %1916 = vmatmul.mubr.f32.gmra.mrb[0].mxu0 %v1055
      %v1917 = vpop.f32.mrb[0].mxu0
      %v1918 = vadd.f32 %v1618, %v1917
      %v1919 = vpop.f32.mrb[0].mxu0
      %1920 = vdwg.mxu0
      %1921 = vmatprep.subr.mxu0 0.0
      %1922 = vmatpush1.msra.mxu0 %v1446
      %1923 = vmatprep.subr.mxu0 0.0
      %1924 = vmatpush1.msra.mxu0 0.0
      %1925 = vmatprep.subr.mxu0 0.0
      %1926 = vmatpush1.msra.mxu0 0.0
      %1927 = vmatprep.subr.mxu0 0.0
      %1928 = vmatpush1.msra.mxu0 0.0
      %1929 = vmatprep.subr.mxu0 0.0
      %1930 = vmatpush1.msra.mxu0 0.0
      %1931 = vmatprep.subr.mxu0 0.0
      %1932 = vmatpush1.msra.mxu0 0.0
      %1933 = vmatprep.subr.mxu0 0.0
      %1934 = vmatpush1.msra.mxu0 0.0
      %1935 = vmatprep.subr.mxu0 0.0
      %1936 = vmatpush1.msra.mxu0 0.0
      %1937 = vmatprep.subr.mxu0 0.0
      %1938 = vmatpush1.msra.mxu0 0.0
      %1939 = vmatprep.subr.mxu0 0.0
      %1940 = vmatpush1.msra.mxu0 0.0
      %1941 = vmatprep.subr.mxu0 0.0
      %1942 = vmatpush1.msra.mxu0 0.0
      %1943 = vmatprep.subr.mxu0 0.0
      %1944 = vmatpush1.msra.mxu0 0.0
      %1945 = vmatprep.subr.mxu0 0.0
      %1946 = vmatpush1.msra.mxu0 0.0
      %1947 = vmatprep.subr.mxu0 0.0
      %1948 = vmatpush1.msra.mxu0 0.0
      %1949 = vmatprep.subr.mxu0 0.0
      %1950 = vmatpush1.msra.mxu0 0.0
      %1951 = vmatprep.subr.mxu0 0.0
      %1952 = vmatpush1.msra.mxu0 0.0
      %1953 = vmatprep.subr.mxu0 0.0
      %1954 = vmatpush1.msra.mxu0 0.0
      %1955 = vmatprep.subr.mxu0 0.0
      %1956 = vmatpush1.msra.mxu0 0.0
      %1957 = vmatprep.subr.mxu0 0.0
      %1958 = vmatpush1.msra.mxu0 0.0
      %1959 = vmatprep.subr.mxu0 0.0
      %1960 = vmatpush1.msra.mxu0 0.0
      %1961 = vmatprep.subr.mxu0 0.0
      %1962 = vmatpush1.msra.mxu0 0.0
      %1963 = vmatprep.subr.mxu0 0.0
      %1964 = vmatpush1.msra.mxu0 0.0
      %1965 = vmatprep.subr.mxu0 0.0
      %1966 = vmatpush1.msra.mxu0 0.0
      %1967 = vmatprep.subr.mxu0 0.0
      %1968 = vmatpush1.msra.mxu0 0.0
      %1969 = vmatprep.subr.mxu0 0.0
      %1970 = vmatpush1.msra.mxu0 0.0
      %1971 = vmatprep.subr.mxu0 0.0
      %1972 = vmatpush1.msra.mxu0 0.0
      %1973 = vmatprep.subr.mxu0 0.0
      %1974 = vmatpush1.msra.mxu0 0.0
      %1975 = vmatprep.subr.mxu0 0.0
      %1976 = vmatpush1.msra.mxu0 0.0
      %1977 = vmatprep.subr.mxu0 0.0
      %1978 = vmatpush1.msra.mxu0 0.0
      %1979 = vmatprep.subr.mxu0 0.0
      %1980 = vmatpush1.msra.mxu0 0.0
      %1981 = vmatprep.subr.mxu0 0.0
      %1982 = vmatpush1.msra.mxu0 0.0
      %1983 = vmatprep.subr.mxu0 0.0
      %1984 = vmatpush1.msra.mxu0 0.0
      %1985 = vmatprep.mubr.f32.mxu0 0.0
      %1986 = vmatmul.mubr.f32.gmra.mrb[0].mxu0 %v1052
      %v1987 = vpop.f32.mrb[0].mxu0
      %v1988 = vadd.f32 %v1688, %v1987
      %v1989 = vpop.f32.mrb[0].mxu0
      %1990 = vmatprep.mubr.f32.mxu0 0.0
      %1991 = vmatmul.mubr.f32.gmra.mrb[0].mxu0 %v1055
      %v1992 = vpop.f32.mrb[0].mxu0
      %v1993 = vadd.f32 %v1693, %v1992
      %v1994 = vpop.f32.mrb[0].mxu0
      %1995 = vdwg.mxu0
      %1996 = vmatprep.subr.mxu0 0.0
      %1997 = vmatpush1.msra.mxu0 %v1451
      %1998 = vmatprep.subr.mxu0 0.0
      %1999 = vmatpush1.msra.mxu0 0.0
      %2000 = vmatprep.subr.mxu0 0.0
      %2001 = vmatpush1.msra.mxu0 0.0
      %2002 = vmatprep.subr.mxu0 0.0
      %2003 = vmatpush1.msra.mxu0 0.0
      %2004 = vmatprep.subr.mxu0 0.0
      %2005 = vmatpush1.msra.mxu0 0.0
      %2006 = vmatprep.subr.mxu0 0.0
      %2007 = vmatpush1.msra.mxu0 0.0
      %2008 = vmatprep.subr.mxu0 0.0
      %2009 = vmatpush1.msra.mxu0 0.0
      %2010 = vmatprep.subr.mxu0 0.0
      %2011 = vmatpush1.msra.mxu0 0.0
      %2012 = vmatprep.subr.mxu0 0.0
      %2013 = vmatpush1.msra.mxu0 0.0
      %2014 = vmatprep.subr.mxu0 0.0
      %2015 = vmatpush1.msra.mxu0 0.0
      %2016 = vmatprep.subr.mxu0 0.0
      %2017 = vmatpush1.msra.mxu0 0.0
      %2018 = vmatprep.subr.mxu0 0.0
      %2019 = vmatpush1.msra.mxu0 0.0
      %2020 = vmatprep.subr.mxu0 0.0
      %2021 = vmatpush1.msra.mxu0 0.0
      %2022 = vmatprep.subr.mxu0 0.0
      %2023 = vmatpush1.msra.mxu0 0.0
      %2024 = vmatprep.subr.mxu0 0.0
      %2025 = vmatpush1.msra.mxu0 0.0
      %2026 = vmatprep.subr.mxu0 0.0
      %2027 = vmatpush1.msra.mxu0 0.0
      %2028 = vmatprep.subr.mxu0 0.0
      %2029 = vmatpush1.msra.mxu0 0.0
      %2030 = vmatprep.subr.mxu0 0.0
      %2031 = vmatpush1.msra.mxu0 0.0
      %2032 = vmatprep.subr.mxu0 0.0
      %2033 = vmatpush1.msra.mxu0 0.0
      %2034 = vmatprep.subr.mxu0 0.0
      %2035 = vmatpush1.msra.mxu0 0.0
      %2036 = vmatprep.subr.mxu0 0.0
      %2037 = vmatpush1.msra.mxu0 0.0
      %2038 = vmatprep.subr.mxu0 0.0
      %2039 = vmatpush1.msra.mxu0 0.0
      %2040 = vmatprep.subr.mxu0 0.0
      %2041 = vmatpush1.msra.mxu0 0.0
      %2042 = vmatprep.subr.mxu0 0.0
      %2043 = vmatpush1.msra.mxu0 0.0
      %2044 = vmatprep.subr.mxu0 0.0
      %2045 = vmatpush1.msra.mxu0 0.0
      %2046 = vmatprep.subr.mxu0 0.0
      %2047 = vmatpush1.msra.mxu0 0.0
      %2048 = vmatprep.subr.mxu0 0.0
      %2049 = vmatpush1.msra.mxu0 0.0
      %2050 = vmatprep.subr.mxu0 0.0
      %2051 = vmatpush1.msra.mxu0 0.0
      %2052 = vmatprep.subr.mxu0 0.0
      %2053 = vmatpush1.msra.mxu0 0.0
      %2054 = vmatprep.subr.mxu0 0.0
      %2055 = vmatpush1.msra.mxu0 0.0
      %2056 = vmatprep.subr.mxu0 0.0
      %2057 = vmatpush1.msra.mxu0 0.0
      %2058 = vmatprep.subr.mxu0 0.0
      %2059 = vmatpush1.msra.mxu0 0.0
      %2060 = vmatprep.mubr.f32.mxu0 0.0
      %2061 = vmatmul.mubr.f32.gmra.mrb[0].mxu0 %v1052
      %v2062 = vpop.f32.mrb[0].mxu0
      %v2063 = vadd.f32 %v1763, %v2062
      %v2064 = vpop.f32.mrb[0].mxu0
      %2065 = vmatprep.mubr.f32.mxu0 0.0
      %2066 = vmatmul.mubr.f32.gmra.mrb[0].mxu0 %v1055
      %v2067 = vpop.f32.mrb[0].mxu0
      %v2068 = vadd.f32 %v1768, %v2067
      %v2069 = vpop.f32.mrb[0].mxu0
      %2070 = vdwg.mxu0
      %2071 = vmatprep.subr.mxu0 0.0
      %2072 = vmatpush1.msra.mxu0 %v1456
      %2073 = vmatprep.subr.mxu0 0.0
      %2074 = vmatpush1.msra.mxu0 0.0
      %2075 = vmatprep.subr.mxu0 0.0
      %2076 = vmatpush1.msra.mxu0 0.0
      %2077 = vmatprep.subr.mxu0 0.0
      %2078 = vmatpush1.msra.mxu0 0.0
      %2079 = vmatprep.subr.mxu0 0.0
      %2080 = vmatpush1.msra.mxu0 0.0
      %2081 = vmatprep.subr.mxu0 0.0
      %2082 = vmatpush1.msra.mxu0 0.0
      %2083 = vmatprep.subr.mxu0 0.0
      %2084 = vmatpush1.msra.mxu0 0.0
      %2085 = vmatprep.subr.mxu0 0.0
      %2086 = vmatpush1.msra.mxu0 0.0
      %2087 = vmatprep.subr.mxu0 0.0
      %2088 = vmatpush1.msra.mxu0 0.0
      %2089 = vmatprep.subr.mxu0 0.0
      %2090 = vmatpush1.msra.mxu0 0.0
      %2091 = vmatprep.subr.mxu0 0.0
      %2092 = vmatpush1.msra.mxu0 0.0
      %2093 = vmatprep.subr.mxu0 0.0
      %2094 = vmatpush1.msra.mxu0 0.0
      %2095 = vmatprep.subr.mxu0 0.0
      %2096 = vmatpush1.msra.mxu0 0.0
      %2097 = vmatprep.subr.mxu0 0.0
      %2098 = vmatpush1.msra.mxu0 0.0
      %2099 = vmatprep.subr.mxu0 0.0
      %2100 = vmatpush1.msra.mxu0 0.0
      %2101 = vmatprep.subr.mxu0 0.0
      %2102 = vmatpush1.msra.mxu0 0.0
      %2103 = vmatprep.subr.mxu0 0.0
      %2104 = vmatpush1.msra.mxu0 0.0
      %2105 = vmatprep.subr.mxu0 0.0
      %2106 = vmatpush1.msra.mxu0 0.0
      %2107 = vmatprep.subr.mxu0 0.0
      %2108 = vmatpush1.msra.mxu0 0.0
      %2109 = vmatprep.subr.mxu0 0.0
      %2110 = vmatpush1.msra.mxu0 0.0
      %2111 = vmatprep.subr.mxu0 0.0
      %2112 = vmatpush1.msra.mxu0 0.0
      %2113 = vmatprep.subr.mxu0 0.0
      %2114 = vmatpush1.msra.mxu0 0.0
      %2115 = vmatprep.subr.mxu0 0.0
      %2116 = vmatpush1.msra.mxu0 0.0
      %2117 = vmatprep.subr.mxu0 0.0
      %2118 = vmatpush1.msra.mxu0 0.0
      %2119 = vmatprep.subr.mxu0 0.0
      %2120 = vmatpush1.msra.mxu0 0.0
      %2121 = vmatprep.subr.mxu0 0.0
      %2122 = vmatpush1.msra.mxu0 0.0
      %2123 = vmatprep.subr.mxu0 0.0
      %2124 = vmatpush1.msra.mxu0 0.0
      %2125 = vmatprep.subr.mxu0 0.0
      %2126 = vmatpush1.msra.mxu0 0.0
      %2127 = vmatprep.subr.mxu0 0.0
      %2128 = vmatpush1.msra.mxu0 0.0
      %2129 = vmatprep.subr.mxu0 0.0
      %2130 = vmatpush1.msra.mxu0 0.0
      %2131 = vmatprep.subr.mxu0 0.0
      %2132 = vmatpush1.msra.mxu0 0.0
      %2133 = vmatprep.subr.mxu0 0.0
      %2134 = vmatpush1.msra.mxu0 0.0
      %2135 = vmatprep.mubr.f32.mxu0 0.0
      %2136 = vmatmul.mubr.f32.gmra.mrb[0].mxu0 %v1052
      %v2137 = vpop.f32.mrb[0].mxu0
      %v2138 = vadd.f32 %v1838, %v2137
      %v2139 = vpop.f32.mrb[0].mxu0
      %2140 = vmatprep.mubr.f32.mxu0 0.0
      %2141 = vmatmul.mubr.f32.gmra.mrb[0].mxu0 %v1055
      %v2142 = vpop.f32.mrb[0].mxu0
      %v2143 = vadd.f32 %v1843, %v2142
      %v2144 = vpop.f32.mrb[0].mxu0
      %2145 = vdwg.mxu0
      %v2146 = vld [vmem:[%s4] sm:$0x1]
      %v2148 = vlaneseq
      %v2149 = vshrl.u32 %v2148, 7
      %v2150 = vsub.s32 0, %v2149
      %v2151 = vrot.slane %v2146, %v2150
      %v2153 = vadd.f32 %v1913, %v2151
      %v2154 = vadd.f32 %v1918, %v2151
      %v2155 = vadd.f32 %v1988, %v2151
      %v2156 = vadd.f32 %v1993, %v2151
      %v2157 = vadd.f32 %v2063, %v2151
      %v2158 = vadd.f32 %v2068, %v2151
      %v2159 = vadd.f32 %v2138, %v2151
      %v2160 = vadd.f32 %v2143, %v2151
      %v2161 = vld [vmem:[%s537] sm:$0xff]
      %v2162 = vld [vmem:[%s537 + $0x8] sm:$0xff]
      %v2163 = vld [vmem:[%s537 + $0x10] sm:$0xff]
      %v2164 = vld [vmem:[%s537 + $0x18] sm:$0xff]
      %v2165 = vld [vmem:[%s537 + $0x20] sm:$0xff]
      %v2166 = vld [vmem:[%s537 + $0x28] sm:$0xff]
      %v2167 = vld [vmem:[%s537 + $0x30] sm:$0xff]
      %v2168 = vld [vmem:[%s537 + $0x38] sm:$0xff]
      %v2169 = vld [vmem:[%s537 + $0x40] sm:$0xff]
      %v2170 = vld [vmem:[%s537 + $0x48] sm:$0xff]
      %v2171 = vld [vmem:[%s537 + $0x50] sm:$0xff]
      %v2172 = vld [vmem:[%s537 + $0x58] sm:$0xff]
      %v2173 = vld [vmem:[%s537 + $0x60] sm:$0xff]
      %v2174 = vld [vmem:[%s537 + $0x68] sm:$0xff]
      %v2175 = vld [vmem:[%s537 + $0x70] sm:$0xff]
      %v2176 = vld [vmem:[%s537 + $0x78] sm:$0xff]
      %v2177 = vld [vmem:[%s5] sm:$0xf]
      %v2178 = vld [vmem:[%s6] sm:$0x1]
      %v2180 = vlaneseq
      %v2181 = vshrl.u32 %v2180, 7
      %v2182 = vsub.s32 0, %v2181
      %v2183 = vrot.slane %v2178, %v2182
      %vm2185 = vcmask 31744
      %v2187 = vsel %vm2185, %v1364, 0
      %v2190 = vsel %vm2185, %v1365, 0
      %v2193 = vsel %vm2185, %v2153, 0
      %v2196 = vsel %vm2185, %v2154, 0
      %v2199 = vsel %vm2185, %v1366, 0
      %v2202 = vsel %vm2185, %v1367, 0
      %v2205 = vsel %vm2185, %v2155, 0
      %v2208 = vsel %vm2185, %v2156, 0
      %v2211 = vsel %vm2185, %v1368, 0
      %v2214 = vsel %vm2185, %v1369, 0
      %v2217 = vsel %vm2185, %v2157, 0
      %v2220 = vsel %vm2185, %v2158, 0
      %v2223 = vsel %vm2185, %v1370, 0
      %v2226 = vsel %vm2185, %v1371, 0
      %v2229 = vsel %vm2185, %v2159, 0
      %v2232 = vsel %vm2185, %v2160, 0
      %vm2234 = vcmask 1043456
      %v2236 = vsel %vm2234, %v2177, 0
      %2238 = vmatprep.subr.mxu0 0.0
      %2239 = vmatpush1.msra.mxu0 %v2236
      %2240 = vmatprep.subr.mxu0 0.0
      %2241 = vmatpush1.msra.mxu0 0.0
      %2242 = vmatprep.subr.mxu0 0.0
      %2243 = vmatpush1.msra.mxu0 0.0
      %2244 = vmatprep.subr.mxu0 0.0
      %2245 = vmatpush1.msra.mxu0 0.0
      %2246 = vmatprep.subr.mxu0 0.0
      %2247 = vmatpush1.msra.mxu0 0.0
      %2248 = vmatprep.subr.mxu0 0.0
      %2249 = vmatpush1.msra.mxu0 0.0
      %2250 = vmatprep.subr.mxu0 0.0
      %2251 = vmatpush1.msra.mxu0 0.0
      %2252 = vmatprep.subr.mxu0 0.0
      %2253 = vmatpush1.msra.mxu0 0.0
      %2254 = vmatprep.subr.mxu0 0.0
      %2255 = vmatpush1.msra.mxu0 0.0
      %2256 = vmatprep.subr.mxu0 0.0
      %2257 = vmatpush1.msra.mxu0 0.0
      %2258 = vmatprep.subr.mxu0 0.0
      %2259 = vmatpush1.msra.mxu0 0.0
      %2260 = vmatprep.subr.mxu0 0.0
      %2261 = vmatpush1.msra.mxu0 0.0
      %2262 = vmatprep.subr.mxu0 0.0
      %2263 = vmatpush1.msra.mxu0 0.0
      %2264 = vmatprep.subr.mxu0 0.0
      %2265 = vmatpush1.msra.mxu0 0.0
      %2266 = vmatprep.subr.mxu0 0.0
      %2267 = vmatpush1.msra.mxu0 0.0
      %2268 = vmatprep.subr.mxu0 0.0
      %2269 = vmatpush1.msra.mxu0 0.0
      %2270 = vmatprep.subr.mxu0 0.0
      %2271 = vmatpush1.msra.mxu0 0.0
      %2272 = vmatprep.subr.mxu0 0.0
      %2273 = vmatpush1.msra.mxu0 0.0
      %2274 = vmatprep.subr.mxu0 0.0
      %2275 = vmatpush1.msra.mxu0 0.0
      %2276 = vmatprep.subr.mxu0 0.0
      %2277 = vmatpush1.msra.mxu0 0.0
      %2278 = vmatprep.subr.mxu0 0.0
      %2279 = vmatpush1.msra.mxu0 0.0
      %2280 = vmatprep.subr.mxu0 0.0
      %2281 = vmatpush1.msra.mxu0 0.0
      %2282 = vmatprep.subr.mxu0 0.0
      %2283 = vmatpush1.msra.mxu0 0.0
      %2284 = vmatprep.subr.mxu0 0.0
      %2285 = vmatpush1.msra.mxu0 0.0
      %2286 = vmatprep.subr.mxu0 0.0
      %2287 = vmatpush1.msra.mxu0 0.0
      %2288 = vmatprep.subr.mxu0 0.0
      %2289 = vmatpush1.msra.mxu0 0.0
      %2290 = vmatprep.subr.mxu0 0.0
      %2291 = vmatpush1.msra.mxu0 0.0
      %2292 = vmatprep.subr.mxu0 0.0
      %2293 = vmatpush1.msra.mxu0 0.0
      %2294 = vmatprep.subr.mxu0 0.0
      %2295 = vmatpush1.msra.mxu0 0.0
      %2296 = vmatprep.subr.mxu0 0.0
      %2297 = vmatpush1.msra.mxu0 0.0
      %2298 = vmatprep.subr.mxu0 0.0
      %2299 = vmatpush1.msra.mxu0 0.0
      %2300 = vmatprep.subr.mxu0 0.0
      %2301 = vmatpush1.msra.mxu0 0.0
      %2302 = vmatprep.mubr.f32.mxu0 0.0
      %2303 = vmatmul.mubr.f32.gmra.mrb[0].mxu0 %v2187
      %v2304 = vpop.f32.mrb[0].mxu0
      %v2305 = vadd.f32 %v2183, %v2304
      %v2306 = vpop.f32.mrb[0].mxu0
      %2307 = vmatprep.mubr.f32.mxu0 0.0
      %2308 = vmatmul.mubr.f32.gmra.mrb[0].mxu0 %v2190
      %v2309 = vpop.f32.mrb[0].mxu0
      %v2310 = vadd.f32 %v2183, %v2309
      %v2311 = vpop.f32.mrb[0].mxu0
      %2312 = vmatprep.mubr.f32.mxu0 0.0
      %2313 = vmatmul.mubr.f32.gmra.mrb[0].mxu0 %v2193
      %v2314 = vpop.f32.mrb[0].mxu0
      %v2315 = vadd.f32 %v2183, %v2314
      %v2316 = vpop.f32.mrb[0].mxu0
      %2317 = vmatprep.mubr.f32.mxu0 0.0
      %2318 = vmatmul.mubr.f32.gmra.mrb[0].mxu0 %v2196
      %v2319 = vpop.f32.mrb[0].mxu0
      %v2320 = vadd.f32 %v2183, %v2319
      %v2321 = vpop.f32.mrb[0].mxu0
      %2322 = vmatprep.mubr.f32.mxu0 0.0
      %2323 = vmatmul.mubr.f32.gmra.mrb[0].mxu0 %v2199
      %v2324 = vpop.f32.mrb[0].mxu0
      %v2325 = vadd.f32 %v2183, %v2324
      %v2326 = vpop.f32.mrb[0].mxu0
      %2327 = vmatprep.mubr.f32.mxu0 0.0
      %2328 = vmatmul.mubr.f32.gmra.mrb[0].mxu0 %v2202
      %v2329 = vpop.f32.mrb[0].mxu0
      %v2330 = vadd.f32 %v2183, %v2329
      %v2331 = vpop.f32.mrb[0].mxu0
      %2332 = vmatprep.mubr.f32.mxu0 0.0
      %2333 = vmatmul.mubr.f32.gmra.mrb[0].mxu0 %v2205
      %v2334 = vpop.f32.mrb[0].mxu0
      %v2335 = vadd.f32 %v2183, %v2334
      %v2336 = vpop.f32.mrb[0].mxu0
      %2337 = vmatprep.mubr.f32.mxu0 0.0
      %2338 = vmatmul.mubr.f32.gmra.mrb[0].mxu0 %v2208
      %v2339 = vpop.f32.mrb[0].mxu0
      %v2340 = vadd.f32 %v2183, %v2339
      %v2341 = vpop.f32.mrb[0].mxu0
      %2342 = vmatprep.mubr.f32.mxu0 0.0
      %2343 = vmatmul.mubr.f32.gmra.mrb[0].mxu0 %v2211
      %v2344 = vpop.f32.mrb[0].mxu0
      %v2345 = vadd.f32 %v2183, %v2344
      %v2346 = vpop.f32.mrb[0].mxu0
      %2347 = vmatprep.mubr.f32.mxu0 0.0
      %2348 = vmatmul.mubr.f32.gmra.mrb[0].mxu0 %v2214
      %v2349 = vpop.f32.mrb[0].mxu0
      %v2350 = vadd.f32 %v2183, %v2349
      %v2351 = vpop.f32.mrb[0].mxu0
      %2352 = vmatprep.mubr.f32.mxu0 0.0
      %2353 = vmatmul.mubr.f32.gmra.mrb[0].mxu0 %v2217
      %v2354 = vpop.f32.mrb[0].mxu0
      %v2355 = vadd.f32 %v2183, %v2354
      %v2356 = vpop.f32.mrb[0].mxu0
      %2357 = vmatprep.mubr.f32.mxu0 0.0
      %2358 = vmatmul.mubr.f32.gmra.mrb[0].mxu0 %v2220
      %v2359 = vpop.f32.mrb[0].mxu0
      %v2360 = vadd.f32 %v2183, %v2359
      %v2361 = vpop.f32.mrb[0].mxu0
      %2362 = vmatprep.mubr.f32.mxu0 0.0
      %2363 = vmatmul.mubr.f32.gmra.mrb[0].mxu0 %v2223
      %v2364 = vpop.f32.mrb[0].mxu0
      %v2365 = vadd.f32 %v2183, %v2364
      %v2366 = vpop.f32.mrb[0].mxu0
      %2367 = vmatprep.mubr.f32.mxu0 0.0
      %2368 = vmatmul.mubr.f32.gmra.mrb[0].mxu0 %v2226
      %v2369 = vpop.f32.mrb[0].mxu0
      %v2370 = vadd.f32 %v2183, %v2369
      %v2371 = vpop.f32.mrb[0].mxu0
      %2372 = vmatprep.mubr.f32.mxu0 0.0
      %2373 = vmatmul.mubr.f32.gmra.mrb[0].mxu0 %v2229
      %v2374 = vpop.f32.mrb[0].mxu0
      %v2375 = vadd.f32 %v2183, %v2374
      %v2376 = vpop.f32.mrb[0].mxu0
      %2377 = vmatprep.mubr.f32.mxu0 0.0
      %2378 = vmatmul.mubr.f32.gmra.mrb[0].mxu0 %v2232
      %v2379 = vpop.f32.mrb[0].mxu0
      %v2380 = vadd.f32 %v2183, %v2379
      %v2381 = vpop.f32.mrb[0].mxu0
      %2382 = vdwg.mxu0
      %v2383 = vld [vmem:[%s7] sm:$0xf]
      %v2384 = vld [vmem:[%s8] sm:$0x1]
      %v2386 = vlaneseq
      %v2387 = vshrl.u32 %v2386, 7
      %v2388 = vsub.s32 0, %v2387
      %v2389 = vrot.slane %v2384, %v2388
      %v2392 = vsel %vm2185, %v2161, 0
      %v2395 = vsel %vm2185, %v2162, 0
      %v2398 = vsel %vm2185, %v2163, 0
      %v2401 = vsel %vm2185, %v2164, 0
      %v2404 = vsel %vm2185, %v2165, 0
      %v2407 = vsel %vm2185, %v2166, 0
      %v2410 = vsel %vm2185, %v2167, 0
      %v2413 = vsel %vm2185, %v2168, 0
      %v2416 = vsel %vm2185, %v2169, 0
      %v2419 = vsel %vm2185, %v2170, 0
      %v2422 = vsel %vm2185, %v2171, 0
      %v2425 = vsel %vm2185, %v2172, 0
      %v2428 = vsel %vm2185, %v2173, 0
      %v2431 = vsel %vm2185, %v2174, 0
      %v2434 = vsel %vm2185, %v2175, 0
      %v2437 = vsel %vm2185, %v2176, 0
      %v2440 = vsel %vm2234, %v2383, 0
      %2442 = vmatprep.subr.mxu0 0.0
      %2443 = vmatpush1.msra.mxu0 %v2440
      %2444 = vmatprep.subr.mxu0 0.0
      %2445 = vmatpush1.msra.mxu0 0.0
      %2446 = vmatprep.subr.mxu0 0.0
      %2447 = vmatpush1.msra.mxu0 0.0
      %2448 = vmatprep.subr.mxu0 0.0
      %2449 = vmatpush1.msra.mxu0 0.0
      %2450 = vmatprep.subr.mxu0 0.0
      %2451 = vmatpush1.msra.mxu0 0.0
      %2452 = vmatprep.subr.mxu0 0.0
      %2453 = vmatpush1.msra.mxu0 0.0
      %2454 = vmatprep.subr.mxu0 0.0
      %2455 = vmatpush1.msra.mxu0 0.0
      %2456 = vmatprep.subr.mxu0 0.0
      %2457 = vmatpush1.msra.mxu0 0.0
      %2458 = vmatprep.subr.mxu0 0.0
      %2459 = vmatpush1.msra.mxu0 0.0
      %2460 = vmatprep.subr.mxu0 0.0
      %2461 = vmatpush1.msra.mxu0 0.0
      %2462 = vmatprep.subr.mxu0 0.0
      %2463 = vmatpush1.msra.mxu0 0.0
      %2464 = vmatprep.subr.mxu0 0.0
      %2465 = vmatpush1.msra.mxu0 0.0
      %2466 = vmatprep.subr.mxu0 0.0
      %2467 = vmatpush1.msra.mxu0 0.0
      %2468 = vmatprep.subr.mxu0 0.0
      %2469 = vmatpush1.msra.mxu0 0.0
      %2470 = vmatprep.subr.mxu0 0.0
      %2471 = vmatpush1.msra.mxu0 0.0
      %2472 = vmatprep.subr.mxu0 0.0
      %2473 = vmatpush1.msra.mxu0 0.0
      %2474 = vmatprep.subr.mxu0 0.0
      %2475 = vmatpush1.msra.mxu0 0.0
      %2476 = vmatprep.subr.mxu0 0.0
      %2477 = vmatpush1.msra.mxu0 0.0
      %2478 = vmatprep.subr.mxu0 0.0
      %2479 = vmatpush1.msra.mxu0 0.0
      %2480 = vmatprep.subr.mxu0 0.0
      %2481 = vmatpush1.msra.mxu0 0.0
      %2482 = vmatprep.subr.mxu0 0.0
      %2483 = vmatpush1.msra.mxu0 0.0
      %2484 = vmatprep.subr.mxu0 0.0
      %2485 = vmatpush1.msra.mxu0 0.0
      %2486 = vmatprep.subr.mxu0 0.0
      %2487 = vmatpush1.msra.mxu0 0.0
      %2488 = vmatprep.subr.mxu0 0.0
      %2489 = vmatpush1.msra.mxu0 0.0
      %2490 = vmatprep.subr.mxu0 0.0
      %2491 = vmatpush1.msra.mxu0 0.0
      %2492 = vmatprep.subr.mxu0 0.0
      %2493 = vmatpush1.msra.mxu0 0.0
      %2494 = vmatprep.subr.mxu0 0.0
      %2495 = vmatpush1.msra.mxu0 0.0
      %2496 = vmatprep.subr.mxu0 0.0
      %2497 = vmatpush1.msra.mxu0 0.0
      %2498 = vmatprep.subr.mxu0 0.0
      %2499 = vmatpush1.msra.mxu0 0.0
      %2500 = vmatprep.subr.mxu0 0.0
      %2501 = vmatpush1.msra.mxu0 0.0
      %2502 = vmatprep.subr.mxu0 0.0
      %2503 = vmatpush1.msra.mxu0 0.0
      %2504 = vmatprep.subr.mxu0 0.0
      %2505 = vmatpush1.msra.mxu0 0.0
      %2506 = vmatprep.mubr.f32.mxu0 0.0
      %2507 = vmatmul.mubr.f32.gmra.mrb[0].mxu0 %v2392
      %v2508 = vpop.f32.mrb[0].mxu0
      %v2509 = vadd.f32 %v2389, %v2508
      %v2510 = vpop.f32.mrb[0].mxu0
      %2511 = vmatprep.mubr.f32.mxu0 0.0
      %2512 = vmatmul.mubr.f32.gmra.mrb[0].mxu0 %v2395
      %v2513 = vpop.f32.mrb[0].mxu0
      %v2514 = vadd.f32 %v2389, %v2513
      %v2515 = vpop.f32.mrb[0].mxu0
      %2516 = vmatprep.mubr.f32.mxu0 0.0
      %2517 = vmatmul.mubr.f32.gmra.mrb[0].mxu0 %v2398
      %v2518 = vpop.f32.mrb[0].mxu0
      %v2519 = vadd.f32 %v2389, %v2518
      %v2520 = vpop.f32.mrb[0].mxu0
      %2521 = vmatprep.mubr.f32.mxu0 0.0
      %2522 = vmatmul.mubr.f32.gmra.mrb[0].mxu0 %v2401
      %v2523 = vpop.f32.mrb[0].mxu0
      %v2524 = vadd.f32 %v2389, %v2523
      %v2525 = vpop.f32.mrb[0].mxu0
      %2526 = vmatprep.mubr.f32.mxu0 0.0
      %2527 = vmatmul.mubr.f32.gmra.mrb[0].mxu0 %v2404
      %v2528 = vpop.f32.mrb[0].mxu0
      %v2529 = vadd.f32 %v2389, %v2528
      %v2530 = vpop.f32.mrb[0].mxu0
      %2531 = vmatprep.mubr.f32.mxu0 0.0
      %2532 = vmatmul.mubr.f32.gmra.mrb[0].mxu0 %v2407
      %v2533 = vpop.f32.mrb[0].mxu0
      %v2534 = vadd.f32 %v2389, %v2533
      %v2535 = vpop.f32.mrb[0].mxu0
      %2536 = vmatprep.mubr.f32.mxu0 0.0
      %2537 = vmatmul.mubr.f32.gmra.mrb[0].mxu0 %v2410
      %v2538 = vpop.f32.mrb[0].mxu0
      %v2539 = vadd.f32 %v2389, %v2538
      %v2540 = vpop.f32.mrb[0].mxu0
      %2541 = vmatprep.mubr.f32.mxu0 0.0
      %2542 = vmatmul.mubr.f32.gmra.mrb[0].mxu0 %v2413
      %v2543 = vpop.f32.mrb[0].mxu0
      %v2544 = vadd.f32 %v2389, %v2543
      %v2545 = vpop.f32.mrb[0].mxu0
      %2546 = vmatprep.mubr.f32.mxu0 0.0
      %2547 = vmatmul.mubr.f32.gmra.mrb[0].mxu0 %v2416
      %v2548 = vpop.f32.mrb[0].mxu0
      %v2549 = vadd.f32 %v2389, %v2548
      %v2550 = vpop.f32.mrb[0].mxu0
      %2551 = vmatprep.mubr.f32.mxu0 0.0
      %2552 = vmatmul.mubr.f32.gmra.mrb[0].mxu0 %v2419
      %v2553 = vpop.f32.mrb[0].mxu0
      %v2554 = vadd.f32 %v2389, %v2553
      %v2555 = vpop.f32.mrb[0].mxu0
      %2556 = vmatprep.mubr.f32.mxu0 0.0
      %2557 = vmatmul.mubr.f32.gmra.mrb[0].mxu0 %v2422
      %v2558 = vpop.f32.mrb[0].mxu0
      %v2559 = vadd.f32 %v2389, %v2558
      %v2560 = vpop.f32.mrb[0].mxu0
      %2561 = vmatprep.mubr.f32.mxu0 0.0
      %2562 = vmatmul.mubr.f32.gmra.mrb[0].mxu0 %v2425
      %v2563 = vpop.f32.mrb[0].mxu0
      %v2564 = vadd.f32 %v2389, %v2563
      %v2565 = vpop.f32.mrb[0].mxu0
      %2566 = vmatprep.mubr.f32.mxu0 0.0
      %2567 = vmatmul.mubr.f32.gmra.mrb[0].mxu0 %v2428
      %v2568 = vpop.f32.mrb[0].mxu0
      %v2569 = vadd.f32 %v2389, %v2568
      %v2570 = vpop.f32.mrb[0].mxu0
      %2571 = vmatprep.mubr.f32.mxu0 0.0
      %2572 = vmatmul.mubr.f32.gmra.mrb[0].mxu0 %v2431
      %v2573 = vpop.f32.mrb[0].mxu0
      %v2574 = vadd.f32 %v2389, %v2573
      %v2575 = vpop.f32.mrb[0].mxu0
      %2576 = vmatprep.mubr.f32.mxu0 0.0
      %2577 = vmatmul.mubr.f32.gmra.mrb[0].mxu0 %v2434
      %v2578 = vpop.f32.mrb[0].mxu0
      %v2579 = vadd.f32 %v2389, %v2578
      %v2580 = vpop.f32.mrb[0].mxu0
      %2581 = vmatprep.mubr.f32.mxu0 0.0
      %2582 = vmatmul.mubr.f32.gmra.mrb[0].mxu0 %v2437
      %v2583 = vpop.f32.mrb[0].mxu0
      %v2584 = vadd.f32 %v2389, %v2583
      %v2585 = vpop.f32.mrb[0].mxu0
      %2586 = vdwg.mxu0
      %v2587 = vadd.f32 %v2305, %v2509
      %v2588 = vadd.f32 %v2310, %v2514
      %v2589 = vadd.f32 %v2315, %v2519
      %v2590 = vadd.f32 %v2320, %v2524
      %v2591 = vadd.f32 %v2325, %v2529
      %v2592 = vadd.f32 %v2330, %v2534
      %v2593 = vadd.f32 %v2335, %v2539
      %v2594 = vadd.f32 %v2340, %v2544
      %v2595 = vadd.f32 %v2345, %v2549
      %v2596 = vadd.f32 %v2350, %v2554
      %v2597 = vadd.f32 %v2355, %v2559
      %v2598 = vadd.f32 %v2360, %v2564
      %v2599 = vadd.f32 %v2365, %v2569
      %v2600 = vadd.f32 %v2370, %v2574
      %v2601 = vadd.f32 %v2375, %v2579
      %v2602 = vadd.f32 %v2380, %v2584
      %v2603 = vmax.f32 %v2587, 0.0
      %v2604 = vmax.f32 %v2588, 0.0
      %v2605 = vmax.f32 %v2589, 0.0
      %v2606 = vmax.f32 %v2590, 0.0
      %v2607 = vmax.f32 %v2591, 0.0
      %v2608 = vmax.f32 %v2592, 0.0
      %v2609 = vmax.f32 %v2593, 0.0
      %v2610 = vmax.f32 %v2594, 0.0
      %v2611 = vmax.f32 %v2595, 0.0
      %v2612 = vmax.f32 %v2596, 0.0
      %v2613 = vmax.f32 %v2597, 0.0
      %v2614 = vmax.f32 %v2598, 0.0
      %v2615 = vmax.f32 %v2599, 0.0
      %v2616 = vmax.f32 %v2600, 0.0
      %v2617 = vmax.f32 %v2601, 0.0
      %v2618 = vmax.f32 %v2602, 0.0
      %v2619 = vld [vmem:[%s9] sm:$0x3]
      %v2620 = vld [vmem:[#allocation2] sm:$0x1]
      %v2622 = vlaneseq
      %v2623 = vshrl.u32 %v2622, 7
      %v2624 = vsub.s32 0, %v2623
      %v2625 = vrot.slane %v2620, %v2624
      %vm2627 = vcmask 15360
      %v2629 = vsel %vm2627, %v2603, 0
      %v2632 = vsel %vm2627, %v2604, 0
      %v2635 = vsel %vm2627, %v2605, 0
      %v2638 = vsel %vm2627, %v2606, 0
      %v2641 = vsel %vm2627, %v2607, 0
      %v2644 = vsel %vm2627, %v2608, 0
      %v2647 = vsel %vm2627, %v2609, 0
      %v2650 = vsel %vm2627, %v2610, 0
      %v2653 = vsel %vm2627, %v2611, 0
      %v2656 = vsel %vm2627, %v2612, 0
      %v2659 = vsel %vm2627, %v2613, 0
      %v2662 = vsel %vm2627, %v2614, 0
      %v2665 = vsel %vm2627, %v2615, 0
      %v2668 = vsel %vm2627, %v2616, 0
      %v2671 = vsel %vm2627, %v2617, 0
      %v2674 = vsel %vm2627, %v2618, 0
      %vm2676 = vcmask 1041408
      %v2678 = vsel %vm2676, %v2619, 0
      %2680 = vmatprep.subr.mxu0 0.0
      %2681 = vmatpush1.msra.mxu0 %v2678
      %2682 = vmatprep.subr.mxu0 0.0
      %2683 = vmatpush1.msra.mxu0 0.0
      %2684 = vmatprep.subr.mxu0 0.0
      %2685 = vmatpush1.msra.mxu0 0.0
      %2686 = vmatprep.subr.mxu0 0.0
      %2687 = vmatpush1.msra.mxu0 0.0
      %2688 = vmatprep.subr.mxu0 0.0
      %2689 = vmatpush1.msra.mxu0 0.0
      %2690 = vmatprep.subr.mxu0 0.0
      %2691 = vmatpush1.msra.mxu0 0.0
      %2692 = vmatprep.subr.mxu0 0.0
      %2693 = vmatpush1.msra.mxu0 0.0
      %2694 = vmatprep.subr.mxu0 0.0
      %2695 = vmatpush1.msra.mxu0 0.0
      %2696 = vmatprep.subr.mxu0 0.0
      %2697 = vmatpush1.msra.mxu0 0.0
      %2698 = vmatprep.subr.mxu0 0.0
      %2699 = vmatpush1.msra.mxu0 0.0
      %2700 = vmatprep.subr.mxu0 0.0
      %2701 = vmatpush1.msra.mxu0 0.0
      %2702 = vmatprep.subr.mxu0 0.0
      %2703 = vmatpush1.msra.mxu0 0.0
      %2704 = vmatprep.subr.mxu0 0.0
      %2705 = vmatpush1.msra.mxu0 0.0
      %2706 = vmatprep.subr.mxu0 0.0
      %2707 = vmatpush1.msra.mxu0 0.0
      %2708 = vmatprep.subr.mxu0 0.0
      %2709 = vmatpush1.msra.mxu0 0.0
      %2710 = vmatprep.subr.mxu0 0.0
      %2711 = vmatpush1.msra.mxu0 0.0
      %2712 = vmatprep.subr.mxu0 0.0
      %2713 = vmatpush1.msra.mxu0 0.0
      %2714 = vmatprep.subr.mxu0 0.0
      %2715 = vmatpush1.msra.mxu0 0.0
      %2716 = vmatprep.subr.mxu0 0.0
      %2717 = vmatpush1.msra.mxu0 0.0
      %2718 = vmatprep.subr.mxu0 0.0
      %2719 = vmatpush1.msra.mxu0 0.0
      %2720 = vmatprep.subr.mxu0 0.0
      %2721 = vmatpush1.msra.mxu0 0.0
      %2722 = vmatprep.subr.mxu0 0.0
      %2723 = vmatpush1.msra.mxu0 0.0
      %2724 = vmatprep.subr.mxu0 0.0
      %2725 = vmatpush1.msra.mxu0 0.0
      %2726 = vmatprep.subr.mxu0 0.0
      %2727 = vmatpush1.msra.mxu0 0.0
      %2728 = vmatprep.subr.mxu0 0.0
      %2729 = vmatpush1.msra.mxu0 0.0
      %2730 = vmatprep.subr.mxu0 0.0
      %2731 = vmatpush1.msra.mxu0 0.0
      %2732 = vmatprep.subr.mxu0 0.0
      %2733 = vmatpush1.msra.mxu0 0.0
      %2734 = vmatprep.subr.mxu0 0.0
      %2735 = vmatpush1.msra.mxu0 0.0
      %2736 = vmatprep.subr.mxu0 0.0
      %2737 = vmatpush1.msra.mxu0 0.0
      %2738 = vmatprep.subr.mxu0 0.0
      %2739 = vmatpush1.msra.mxu0 0.0
      %2740 = vmatprep.subr.mxu0 0.0
      %2741 = vmatpush1.msra.mxu0 0.0
      %2742 = vmatprep.subr.mxu0 0.0
      %2743 = vmatpush1.msra.mxu0 0.0
      %2744 = vmatprep.mubr.f32.mxu0 0.0
      %2745 = vmatmul.mubr.f32.gmra.mrb[0].mxu0 %v2629
      %v2746 = vpop.f32.mrb[0].mxu0
      %v2747 = vadd.f32 %v2625, %v2746
      %v2748 = vpop.f32.mrb[0].mxu0
      %2749 = vmatprep.mubr.f32.mxu0 0.0
      %2750 = vmatmul.mubr.f32.gmra.mrb[0].mxu0 %v2632
      %v2751 = vpop.f32.mrb[0].mxu0
      %v2752 = vadd.f32 %v2625, %v2751
      %v2753 = vpop.f32.mrb[0].mxu0
      %2754 = vmatprep.mubr.f32.mxu0 0.0
      %2755 = vmatmul.mubr.f32.gmra.mrb[0].mxu0 %v2635
      %v2756 = vpop.f32.mrb[0].mxu0
      %v2757 = vadd.f32 %v2625, %v2756
      %v2758 = vpop.f32.mrb[0].mxu0
      %2759 = vmatprep.mubr.f32.mxu0 0.0
      %2760 = vmatmul.mubr.f32.gmra.mrb[0].mxu0 %v2638
      %v2761 = vpop.f32.mrb[0].mxu0
      %v2762 = vadd.f32 %v2625, %v2761
      %v2763 = vpop.f32.mrb[0].mxu0
      %2764 = vmatprep.mubr.f32.mxu0 0.0
      %2765 = vmatmul.mubr.f32.gmra.mrb[0].mxu0 %v2641
      %v2766 = vpop.f32.mrb[0].mxu0
      %v2767 = vadd.f32 %v2625, %v2766
      %v2768 = vpop.f32.mrb[0].mxu0
      %2769 = vmatprep.mubr.f32.mxu0 0.0
      %2770 = vmatmul.mubr.f32.gmra.mrb[0].mxu0 %v2644
      %v2771 = vpop.f32.mrb[0].mxu0
      %v2772 = vadd.f32 %v2625, %v2771
      %v2773 = vpop.f32.mrb[0].mxu0
      %2774 = vmatprep.mubr.f32.mxu0 0.0
      %2775 = vmatmul.mubr.f32.gmra.mrb[0].mxu0 %v2647
      %v2776 = vpop.f32.mrb[0].mxu0
      %v2777 = vadd.f32 %v2625, %v2776
      %v2778 = vpop.f32.mrb[0].mxu0
      %2779 = vmatprep.mubr.f32.mxu0 0.0
      %2780 = vmatmul.mubr.f32.gmra.mrb[0].mxu0 %v2650
      %v2781 = vpop.f32.mrb[0].mxu0
      %v2782 = vadd.f32 %v2625, %v2781
      %v2783 = vpop.f32.mrb[0].mxu0
      %2784 = vmatprep.mubr.f32.mxu0 0.0
      %2785 = vmatmul.mubr.f32.gmra.mrb[0].mxu0 %v2653
      %v2786 = vpop.f32.mrb[0].mxu0
      %v2787 = vadd.f32 %v2625, %v2786
      %v2788 = vpop.f32.mrb[0].mxu0
      %2789 = vmatprep.mubr.f32.mxu0 0.0
      %2790 = vmatmul.mubr.f32.gmra.mrb[0].mxu0 %v2656
      %v2791 = vpop.f32.mrb[0].mxu0
      %v2792 = vadd.f32 %v2625, %v2791
      %v2793 = vpop.f32.mrb[0].mxu0
      %2794 = vmatprep.mubr.f32.mxu0 0.0
      %2795 = vmatmul.mubr.f32.gmra.mrb[0].mxu0 %v2659
      %v2796 = vpop.f32.mrb[0].mxu0
      %v2797 = vadd.f32 %v2625, %v2796
      %v2798 = vpop.f32.mrb[0].mxu0
      %2799 = vmatprep.mubr.f32.mxu0 0.0
      %2800 = vmatmul.mubr.f32.gmra.mrb[0].mxu0 %v2662
      %v2801 = vpop.f32.mrb[0].mxu0
      %v2802 = vadd.f32 %v2625, %v2801
      %v2803 = vpop.f32.mrb[0].mxu0
      %2804 = vmatprep.mubr.f32.mxu0 0.0
      %2805 = vmatmul.mubr.f32.gmra.mrb[0].mxu0 %v2665
      %v2806 = vpop.f32.mrb[0].mxu0
      %v2807 = vadd.f32 %v2625, %v2806
      %v2808 = vpop.f32.mrb[0].mxu0
      %2809 = vmatprep.mubr.f32.mxu0 0.0
      %2810 = vmatmul.mubr.f32.gmra.mrb[0].mxu0 %v2668
      %v2811 = vpop.f32.mrb[0].mxu0
      %v2812 = vadd.f32 %v2625, %v2811
      %v2813 = vpop.f32.mrb[0].mxu0
      %2814 = vmatprep.mubr.f32.mxu0 0.0
      %2815 = vmatmul.mubr.f32.gmra.mrb[0].mxu0 %v2671
      %v2816 = vpop.f32.mrb[0].mxu0
      %v2817 = vadd.f32 %v2625, %v2816
      %v2818 = vpop.f32.mrb[0].mxu0
      %2819 = vmatprep.mubr.f32.mxu0 0.0
      %2820 = vmatmul.mubr.f32.gmra.mrb[0].mxu0 %v2674
      %v2821 = vpop.f32.mrb[0].mxu0
      %v2822 = vadd.f32 %v2625, %v2821
      %v2823 = vpop.f32.mrb[0].mxu0
      %2824 = vdwg.mxu0
      %v2825 = vsub.f32 0.0, %v2747
      %v2826 = vsub.f32 0.0, %v2752
      %v2827 = vsub.f32 0.0, %v2757
      %v2828 = vsub.f32 0.0, %v2762
      %v2829 = vsub.f32 0.0, %v2767
      %v2830 = vsub.f32 0.0, %v2772
      %v2831 = vsub.f32 0.0, %v2777
      %v2832 = vsub.f32 0.0, %v2782
      %v2833 = vsub.f32 0.0, %v2787
      %v2834 = vsub.f32 0.0, %v2792
      %v2835 = vsub.f32 0.0, %v2797
      %v2836 = vsub.f32 0.0, %v2802
      %v2837 = vsub.f32 0.0, %v2807
      %v2838 = vsub.f32 0.0, %v2812
      %v2839 = vsub.f32 0.0, %v2817
      %v2840 = vsub.f32 0.0, %v2822
      %v2841 = vmul.f32 %v2825, 1.442695
      %v2842 = vpow.pop %v2841
      %v2843 = vmul.f32 %v2826, 1.442695
      %v2844 = vpow.pop %v2843
      %v2845 = vmul.f32 %v2827, 1.442695
      %v2846 = vpow.pop %v2845
      %v2847 = vmul.f32 %v2828, 1.442695
      %v2848 = vpow.pop %v2847
      %v2849 = vmul.f32 %v2829, 1.442695
      %v2850 = vpow.pop %v2849
      %v2851 = vmul.f32 %v2830, 1.442695
      %v2852 = vpow.pop %v2851
      %v2853 = vmul.f32 %v2831, 1.442695
      %v2854 = vpow.pop %v2853
      %v2855 = vmul.f32 %v2832, 1.442695
      %v2856 = vpow.pop %v2855
      %v2857 = vmul.f32 %v2833, 1.442695
      %v2858 = vpow.pop %v2857
      %v2859 = vmul.f32 %v2834, 1.442695
      %v2860 = vpow.pop %v2859
      %v2861 = vmul.f32 %v2835, 1.442695
      %v2862 = vpow.pop %v2861
      %v2863 = vmul.f32 %v2836, 1.442695
      %v2864 = vpow.pop %v2863
      %v2865 = vmul.f32 %v2837, 1.442695
      %v2866 = vpow.pop %v2865
      %v2867 = vmul.f32 %v2838, 1.442695
      %v2868 = vpow.pop %v2867
      %v2869 = vmul.f32 %v2839, 1.442695
      %v2870 = vpow.pop %v2869
      %v2871 = vmul.f32 %v2840, 1.442695
      %v2872 = vpow.pop %v2871
      %v2873 = vadd.f32 %v2842, 1.0
      %v2874 = vadd.f32 %v2844, 1.0
      %v2875 = vadd.f32 %v2846, 1.0
      %v2876 = vadd.f32 %v2848, 1.0
      %v2877 = vadd.f32 %v2850, 1.0
      %v2878 = vadd.f32 %v2852, 1.0
      %v2879 = vadd.f32 %v2854, 1.0
      %v2880 = vadd.f32 %v2856, 1.0
      %v2881 = vadd.f32 %v2858, 1.0
      %v2882 = vadd.f32 %v2860, 1.0
      %v2883 = vadd.f32 %v2862, 1.0
      %v2884 = vadd.f32 %v2864, 1.0
      %v2885 = vadd.f32 %v2866, 1.0
      %v2886 = vadd.f32 %v2868, 1.0
      %v2887 = vadd.f32 %v2870, 1.0
      %v2888 = vadd.f32 %v2872, 1.0
      %v2889 = vrcp.pop %v2873
      %v2890 = vrcp.pop %v2874
      %v2891 = vrcp.pop %v2875
      %v2892 = vrcp.pop %v2876
      %v2893 = vrcp.pop %v2877
      %v2894 = vrcp.pop %v2878
      %v2895 = vrcp.pop %v2879
      %v2896 = vrcp.pop %v2880
      %v2897 = vrcp.pop %v2881
      %v2898 = vrcp.pop %v2882
      %v2899 = vrcp.pop %v2883
      %v2900 = vrcp.pop %v2884
      %v2901 = vrcp.pop %v2885
      %v2902 = vrcp.pop %v2886
      %v2903 = vrcp.pop %v2887
      %v2904 = vrcp.pop %v2888
      %2906 = vset.pattern.permute.xlu0 0
      %2907 = vperm.xlu0 %2906, %v2889
      %v2908 = vpop.permute.xlu0 %2907
      %2911 = vset.pattern.permute.xlu0 0
      %2912 = vperm.xlu0 %2911, %v2890
      %v2913 = vpop.permute.xlu0 %2912
      %2916 = vset.pattern.permute.xlu0 0
      %2917 = vperm.xlu0 %2916, %v2891
      %v2918 = vpop.permute.xlu0 %2917
      %2921 = vset.pattern.permute.xlu0 0
      %2922 = vperm.xlu0 %2921, %v2892
      %v2923 = vpop.permute.xlu0 %2922
      %2926 = vset.pattern.permute.xlu0 0
      %2927 = vperm.xlu0 %2926, %v2893
      %v2928 = vpop.permute.xlu0 %2927
      %2931 = vset.pattern.permute.xlu0 0
      %2932 = vperm.xlu0 %2931, %v2894
      %v2933 = vpop.permute.xlu0 %2932
      %2936 = vset.pattern.permute.xlu0 0
      %2937 = vperm.xlu0 %2936, %v2895
      %v2938 = vpop.permute.xlu0 %2937
      %2941 = vset.pattern.permute.xlu0 0
      %2942 = vperm.xlu0 %2941, %v2896
      %v2943 = vpop.permute.xlu0 %2942
      %2946 = vset.pattern.permute.xlu0 0
      %2947 = vperm.xlu0 %2946, %v2897
      %v2948 = vpop.permute.xlu0 %2947
      %2951 = vset.pattern.permute.xlu0 0
      %2952 = vperm.xlu0 %2951, %v2898
      %v2953 = vpop.permute.xlu0 %2952
      %2956 = vset.pattern.permute.xlu0 0
      %2957 = vperm.xlu0 %2956, %v2899
      %v2958 = vpop.permute.xlu0 %2957
      %2961 = vset.pattern.permute.xlu0 0
      %2962 = vperm.xlu0 %2961, %v2900
      %v2963 = vpop.permute.xlu0 %2962
      %2966 = vset.pattern.permute.xlu0 0
      %2967 = vperm.xlu0 %2966, %v2901
      %v2968 = vpop.permute.xlu0 %2967
      %2971 = vset.pattern.permute.xlu0 0
      %2972 = vperm.xlu0 %2971, %v2902
      %v2973 = vpop.permute.xlu0 %2972
      %2976 = vset.pattern.permute.xlu0 0
      %2977 = vperm.xlu0 %2976, %v2903
      %v2978 = vpop.permute.xlu0 %2977
      %2981 = vset.pattern.permute.xlu0 0
      %2982 = vperm.xlu0 %2981, %v2904
      %v2983 = vpop.permute.xlu0 %2982
      %v2985 = vmul.f32 %v2161, %v2908
      %v2986 = vmul.f32 %v2162, %v2913
      %v2987 = vmul.f32 %v2163, %v2918
      %v2988 = vmul.f32 %v2164, %v2923
      %v2989 = vmul.f32 %v2165, %v2928
      %v2990 = vmul.f32 %v2166, %v2933
      %v2991 = vmul.f32 %v2167, %v2938
      %v2992 = vmul.f32 %v2168, %v2943
      %v2993 = vmul.f32 %v2169, %v2948
      %v2994 = vmul.f32 %v2170, %v2953
      %v2995 = vmul.f32 %v2171, %v2958
      %v2996 = vmul.f32 %v2172, %v2963
      %v2997 = vmul.f32 %v2173, %v2968
      %v2998 = vmul.f32 %v2174, %v2973
      %v2999 = vmul.f32 %v2175, %v2978
      %v3000 = vmul.f32 %v2176, %v2983
      %v3001 = vld [vmem:[%s11] sm:$0xf]
      %v3002 = vld [vmem:[%s12] sm:$0xf]
      %v3004 = vsel %vm2234, %v3002, 0
      %3006 = vmatprep.subr.mxu0 0.0
      %3007 = vmatpush1.msra.mxu0 %v3004
      %3008 = vmatprep.subr.mxu0 0.0
      %3009 = vmatpush1.msra.mxu0 0.0
      %3010 = vmatprep.subr.mxu0 0.0
      %3011 = vmatpush1.msra.mxu0 0.0
      %3012 = vmatprep.subr.mxu0 0.0
      %3013 = vmatpush1.msra.mxu0 0.0
      %3014 = vmatprep.subr.mxu0 0.0
      %3015 = vmatpush1.msra.mxu0 0.0
      %3016 = vmatprep.subr.mxu0 0.0
      %3017 = vmatpush1.msra.mxu0 0.0
      %3018 = vmatprep.subr.mxu0 0.0
      %3019 = vmatpush1.msra.mxu0 0.0
      %3020 = vmatprep.subr.mxu0 0.0
      %3021 = vmatpush1.msra.mxu0 0.0
      %3022 = vmatprep.subr.mxu0 0.0
      %3023 = vmatpush1.msra.mxu0 0.0
      %3024 = vmatprep.subr.mxu0 0.0
      %3025 = vmatpush1.msra.mxu0 0.0
      %3026 = vmatprep.subr.mxu0 0.0
      %3027 = vmatpush1.msra.mxu0 0.0
      %3028 = vmatprep.subr.mxu0 0.0
      %3029 = vmatpush1.msra.mxu0 0.0
      %3030 = vmatprep.subr.mxu0 0.0
      %3031 = vmatpush1.msra.mxu0 0.0
      %3032 = vmatprep.subr.mxu0 0.0
      %3033 = vmatpush1.msra.mxu0 0.0
      %3034 = vmatprep.subr.mxu0 0.0
      %3035 = vmatpush1.msra.mxu0 0.0
      %3036 = vmatprep.subr.mxu0 0.0
      %3037 = vmatpush1.msra.mxu0 0.0
      %3038 = vmatprep.subr.mxu0 0.0
      %3039 = vmatpush1.msra.mxu0 0.0
      %3040 = vmatprep.subr.mxu0 0.0
      %3041 = vmatpush1.msra.mxu0 0.0
      %3042 = vmatprep.subr.mxu0 0.0
      %3043 = vmatpush1.msra.mxu0 0.0
      %3044 = vmatprep.subr.mxu0 0.0
      %3045 = vmatpush1.msra.mxu0 0.0
      %3046 = vmatprep.subr.mxu0 0.0
      %3047 = vmatpush1.msra.mxu0 0.0
      %3048 = vmatprep.subr.mxu0 0.0
      %3049 = vmatpush1.msra.mxu0 0.0
      %3050 = vmatprep.subr.mxu0 0.0
      %3051 = vmatpush1.msra.mxu0 0.0
      %3052 = vmatprep.subr.mxu0 0.0
      %3053 = vmatpush1.msra.mxu0 0.0
      %3054 = vmatprep.subr.mxu0 0.0
      %3055 = vmatpush1.msra.mxu0 0.0
      %3056 = vmatprep.subr.mxu0 0.0
      %3057 = vmatpush1.msra.mxu0 0.0
      %3058 = vmatprep.subr.mxu0 0.0
      %3059 = vmatpush1.msra.mxu0 0.0
      %3060 = vmatprep.subr.mxu0 0.0
      %3061 = vmatpush1.msra.mxu0 0.0
      %3062 = vmatprep.subr.mxu0 0.0
      %3063 = vmatpush1.msra.mxu0 0.0
      %3064 = vmatprep.subr.mxu0 0.0
      %3065 = vmatpush1.msra.mxu0 0.0
      %3066 = vmatprep.subr.mxu0 0.0
      %3067 = vmatpush1.msra.mxu0 0.0
      %3068 = vmatprep.subr.mxu0 0.0
      %3069 = vmatpush1.msra.mxu0 0.0
      %3070 = vmatprep.mubr.f32.mxu0 0.0
      %3071 = vmatmul.mubr.f32.gmra.mrb[0].mxu0 %v2187
      %v3072 = vpop.f32.mrb[0].mxu0
      %v3073 = vadd.f32 0.0, %v3072
      %v3074 = vpop.f32.mrb[0].mxu0
      %3075 = vmatprep.mubr.f32.mxu0 0.0
      %3076 = vmatmul.mubr.f32.gmra.mrb[0].mxu0 %v2190
      %v3077 = vpop.f32.mrb[0].mxu0
      %v3078 = vadd.f32 0.0, %v3077
      %v3079 = vpop.f32.mrb[0].mxu0
      %3080 = vmatprep.mubr.f32.mxu0 0.0
      %3081 = vmatmul.mubr.f32.gmra.mrb[0].mxu0 %v2193
      %v3082 = vpop.f32.mrb[0].mxu0
      %v3083 = vadd.f32 0.0, %v3082
      %v3084 = vpop.f32.mrb[0].mxu0
      %3085 = vmatprep.mubr.f32.mxu0 0.0
      %3086 = vmatmul.mubr.f32.gmra.mrb[0].mxu0 %v2196
      %v3087 = vpop.f32.mrb[0].mxu0
      %v3088 = vadd.f32 0.0, %v3087
      %v3089 = vpop.f32.mrb[0].mxu0
      %3090 = vmatprep.mubr.f32.mxu0 0.0
      %3091 = vmatmul.mubr.f32.gmra.mrb[0].mxu0 %v2199
      %v3092 = vpop.f32.mrb[0].mxu0
      %v3093 = vadd.f32 0.0, %v3092
      %v3094 = vpop.f32.mrb[0].mxu0
      %3095 = vmatprep.mubr.f32.mxu0 0.0
      %3096 = vmatmul.mubr.f32.gmra.mrb[0].mxu0 %v2202
      %v3097 = vpop.f32.mrb[0].mxu0
      %v3098 = vadd.f32 0.0, %v3097
      %v3099 = vpop.f32.mrb[0].mxu0
      %3100 = vmatprep.mubr.f32.mxu0 0.0
      %3101 = vmatmul.mubr.f32.gmra.mrb[0].mxu0 %v2205
      %v3102 = vpop.f32.mrb[0].mxu0
      %v3103 = vadd.f32 0.0, %v3102
      %v3104 = vpop.f32.mrb[0].mxu0
      %3105 = vmatprep.mubr.f32.mxu0 0.0
      %3106 = vmatmul.mubr.f32.gmra.mrb[0].mxu0 %v2208
      %v3107 = vpop.f32.mrb[0].mxu0
      %v3108 = vadd.f32 0.0, %v3107
      %v3109 = vpop.f32.mrb[0].mxu0
      %3110 = vmatprep.mubr.f32.mxu0 0.0
      %3111 = vmatmul.mubr.f32.gmra.mrb[0].mxu0 %v2211
      %v3112 = vpop.f32.mrb[0].mxu0
      %v3113 = vadd.f32 0.0, %v3112
      %v3114 = vpop.f32.mrb[0].mxu0
      %3115 = vmatprep.mubr.f32.mxu0 0.0
      %3116 = vmatmul.mubr.f32.gmra.mrb[0].mxu0 %v2214
      %v3117 = vpop.f32.mrb[0].mxu0
      %v3118 = vadd.f32 0.0, %v3117
      %v3119 = vpop.f32.mrb[0].mxu0
      %3120 = vmatprep.mubr.f32.mxu0 0.0
      %3121 = vmatmul.mubr.f32.gmra.mrb[0].mxu0 %v2217
      %v3122 = vpop.f32.mrb[0].mxu0
      %v3123 = vadd.f32 0.0, %v3122
      %v3124 = vpop.f32.mrb[0].mxu0
      %3125 = vmatprep.mubr.f32.mxu0 0.0
      %3126 = vmatmul.mubr.f32.gmra.mrb[0].mxu0 %v2220
      %v3127 = vpop.f32.mrb[0].mxu0
      %v3128 = vadd.f32 0.0, %v3127
      %v3129 = vpop.f32.mrb[0].mxu0
      %3130 = vmatprep.mubr.f32.mxu0 0.0
      %3131 = vmatmul.mubr.f32.gmra.mrb[0].mxu0 %v2223
      %v3132 = vpop.f32.mrb[0].mxu0
      %v3133 = vadd.f32 0.0, %v3132
      %v3134 = vpop.f32.mrb[0].mxu0
      %3135 = vmatprep.mubr.f32.mxu0 0.0
      %3136 = vmatmul.mubr.f32.gmra.mrb[0].mxu0 %v2226
      %v3137 = vpop.f32.mrb[0].mxu0
      %v3138 = vadd.f32 0.0, %v3137
      %v3139 = vpop.f32.mrb[0].mxu0
      %3140 = vmatprep.mubr.f32.mxu0 0.0
      %3141 = vmatmul.mubr.f32.gmra.mrb[0].mxu0 %v2229
      %v3142 = vpop.f32.mrb[0].mxu0
      %v3143 = vadd.f32 0.0, %v3142
      %v3144 = vpop.f32.mrb[0].mxu0
      %3145 = vmatprep.mubr.f32.mxu0 0.0
      %3146 = vmatmul.mubr.f32.gmra.mrb[0].mxu0 %v2232
      %v3147 = vpop.f32.mrb[0].mxu0
      %v3148 = vadd.f32 0.0, %v3147
      %v3149 = vpop.f32.mrb[0].mxu0
      %3150 = vdwg.mxu0
      %v3152 = vsel %vm2185, %v2985, 0
      %v3155 = vsel %vm2185, %v2986, 0
      %v3158 = vsel %vm2185, %v2987, 0
      %v3161 = vsel %vm2185, %v2988, 0
      %v3164 = vsel %vm2185, %v2989, 0
      %v3167 = vsel %vm2185, %v2990, 0
      %v3170 = vsel %vm2185, %v2991, 0
      %v3173 = vsel %vm2185, %v2992, 0
      %v3176 = vsel %vm2185, %v2993, 0
      %v3179 = vsel %vm2185, %v2994, 0
      %v3182 = vsel %vm2185, %v2995, 0
      %v3185 = vsel %vm2185, %v2996, 0
      %v3188 = vsel %vm2185, %v2997, 0
      %v3191 = vsel %vm2185, %v2998, 0
      %v3194 = vsel %vm2185, %v2999, 0
      %v3197 = vsel %vm2185, %v3000, 0
      %v3200 = vsel %vm2234, %v3001, 0
      %3202 = vmatprep.subr.mxu0 0.0
      %3203 = vmatpush1.msra.mxu0 %v3200
      %3204 = vmatprep.subr.mxu0 0.0
      %3205 = vmatpush1.msra.mxu0 0.0
      %3206 = vmatprep.subr.mxu0 0.0
      %3207 = vmatpush1.msra.mxu0 0.0
      %3208 = vmatprep.subr.mxu0 0.0
      %3209 = vmatpush1.msra.mxu0 0.0
      %3210 = vmatprep.subr.mxu0 0.0
      %3211 = vmatpush1.msra.mxu0 0.0
      %3212 = vmatprep.subr.mxu0 0.0
      %3213 = vmatpush1.msra.mxu0 0.0
      %3214 = vmatprep.subr.mxu0 0.0
      %3215 = vmatpush1.msra.mxu0 0.0
      %3216 = vmatprep.subr.mxu0 0.0
      %3217 = vmatpush1.msra.mxu0 0.0
      %3218 = vmatprep.subr.mxu0 0.0
      %3219 = vmatpush1.msra.mxu0 0.0
      %3220 = vmatprep.subr.mxu0 0.0
      %3221 = vmatpush1.msra.mxu0 0.0
      %3222 = vmatprep.subr.mxu0 0.0
      %3223 = vmatpush1.msra.mxu0 0.0
      %3224 = vmatprep.subr.mxu0 0.0
      %3225 = vmatpush1.msra.mxu0 0.0
      %3226 = vmatprep.subr.mxu0 0.0
      %3227 = vmatpush1.msra.mxu0 0.0
      %3228 = vmatprep.subr.mxu0 0.0
      %3229 = vmatpush1.msra.mxu0 0.0
      %3230 = vmatprep.subr.mxu0 0.0
      %3231 = vmatpush1.msra.mxu0 0.0
      %3232 = vmatprep.subr.mxu0 0.0
      %3233 = vmatpush1.msra.mxu0 0.0
      %3234 = vmatprep.subr.mxu0 0.0
      %3235 = vmatpush1.msra.mxu0 0.0
      %3236 = vmatprep.subr.mxu0 0.0
      %3237 = vmatpush1.msra.mxu0 0.0
      %3238 = vmatprep.subr.mxu0 0.0
      %3239 = vmatpush1.msra.mxu0 0.0
      %3240 = vmatprep.subr.mxu0 0.0
      %3241 = vmatpush1.msra.mxu0 0.0
      %3242 = vmatprep.subr.mxu0 0.0
      %3243 = vmatpush1.msra.mxu0 0.0
      %3244 = vmatprep.subr.mxu0 0.0
      %3245 = vmatpush1.msra.mxu0 0.0
      %3246 = vmatprep.subr.mxu0 0.0
      %3247 = vmatpush1.msra.mxu0 0.0
      %3248 = vmatprep.subr.mxu0 0.0
      %3249 = vmatpush1.msra.mxu0 0.0
      %3250 = vmatprep.subr.mxu0 0.0
      %3251 = vmatpush1.msra.mxu0 0.0
      %3252 = vmatprep.subr.mxu0 0.0
      %3253 = vmatpush1.msra.mxu0 0.0
      %3254 = vmatprep.subr.mxu0 0.0
      %3255 = vmatpush1.msra.mxu0 0.0
      %3256 = vmatprep.subr.mxu0 0.0
      %3257 = vmatpush1.msra.mxu0 0.0
      %3258 = vmatprep.subr.mxu0 0.0
      %3259 = vmatpush1.msra.mxu0 0.0
      %3260 = vmatprep.subr.mxu0 0.0
      %3261 = vmatpush1.msra.mxu0 0.0
      %3262 = vmatprep.subr.mxu0 0.0
      %3263 = vmatpush1.msra.mxu0 0.0
      %3264 = vmatprep.subr.mxu0 0.0
      %3265 = vmatpush1.msra.mxu0 0.0
      %3266 = vmatprep.mubr.f32.mxu0 0.0
      %3267 = vmatmul.mubr.f32.gmra.mrb[0].mxu0 %v3152
      %v3268 = vpop.f32.mrb[0].mxu0
      %v3269 = vadd.f32 %v3073, %v3268
      %v3270 = vpop.f32.mrb[0].mxu0
      %3271 = vmatprep.mubr.f32.mxu0 0.0
      %3272 = vmatmul.mubr.f32.gmra.mrb[0].mxu0 %v3155
      %v3273 = vpop.f32.mrb[0].mxu0
      %v3274 = vadd.f32 %v3078, %v3273
      %v3275 = vpop.f32.mrb[0].mxu0
      %3276 = vmatprep.mubr.f32.mxu0 0.0
      %3277 = vmatmul.mubr.f32.gmra.mrb[0].mxu0 %v3158
      %v3278 = vpop.f32.mrb[0].mxu0
      %v3279 = vadd.f32 %v3083, %v3278
      %v3280 = vpop.f32.mrb[0].mxu0
      %3281 = vmatprep.mubr.f32.mxu0 0.0
      %3282 = vmatmul.mubr.f32.gmra.mrb[0].mxu0 %v3161
      %v3283 = vpop.f32.mrb[0].mxu0
      %v3284 = vadd.f32 %v3088, %v3283
      %v3285 = vpop.f32.mrb[0].mxu0
      %3286 = vmatprep.mubr.f32.mxu0 0.0
      %3287 = vmatmul.mubr.f32.gmra.mrb[0].mxu0 %v3164
      %v3288 = vpop.f32.mrb[0].mxu0
      %v3289 = vadd.f32 %v3093, %v3288
      %v3290 = vpop.f32.mrb[0].mxu0
      %3291 = vmatprep.mubr.f32.mxu0 0.0
      %3292 = vmatmul.mubr.f32.gmra.mrb[0].mxu0 %v3167
      %v3293 = vpop.f32.mrb[0].mxu0
      %v3294 = vadd.f32 %v3098, %v3293
      %v3295 = vpop.f32.mrb[0].mxu0
      %3296 = vmatprep.mubr.f32.mxu0 0.0
      %3297 = vmatmul.mubr.f32.gmra.mrb[0].mxu0 %v3170
      %v3298 = vpop.f32.mrb[0].mxu0
      %v3299 = vadd.f32 %v3103, %v3298
      %v3300 = vpop.f32.mrb[0].mxu0
      %3301 = vmatprep.mubr.f32.mxu0 0.0
      %3302 = vmatmul.mubr.f32.gmra.mrb[0].mxu0 %v3173
      %v3303 = vpop.f32.mrb[0].mxu0
      %v3304 = vadd.f32 %v3108, %v3303
      %v3305 = vpop.f32.mrb[0].mxu0
      %3306 = vmatprep.mubr.f32.mxu0 0.0
      %3307 = vmatmul.mubr.f32.gmra.mrb[0].mxu0 %v3176
      %v3308 = vpop.f32.mrb[0].mxu0
      %v3309 = vadd.f32 %v3113, %v3308
      %v3310 = vpop.f32.mrb[0].mxu0
      %3311 = vmatprep.mubr.f32.mxu0 0.0
      %3312 = vmatmul.mubr.f32.gmra.mrb[0].mxu0 %v3179
      %v3313 = vpop.f32.mrb[0].mxu0
      %v3314 = vadd.f32 %v3118, %v3313
      %v3315 = vpop.f32.mrb[0].mxu0
      %3316 = vmatprep.mubr.f32.mxu0 0.0
      %3317 = vmatmul.mubr.f32.gmra.mrb[0].mxu0 %v3182
      %v3318 = vpop.f32.mrb[0].mxu0
      %v3319 = vadd.f32 %v3123, %v3318
      %v3320 = vpop.f32.mrb[0].mxu0
      %3321 = vmatprep.mubr.f32.mxu0 0.0
      %3322 = vmatmul.mubr.f32.gmra.mrb[0].mxu0 %v3185
      %v3323 = vpop.f32.mrb[0].mxu0
      %v3324 = vadd.f32 %v3128, %v3323
      %v3325 = vpop.f32.mrb[0].mxu0
      %3326 = vmatprep.mubr.f32.mxu0 0.0
      %3327 = vmatmul.mubr.f32.gmra.mrb[0].mxu0 %v3188
      %v3328 = vpop.f32.mrb[0].mxu0
      %v3329 = vadd.f32 %v3133, %v3328
      %v3330 = vpop.f32.mrb[0].mxu0
      %3331 = vmatprep.mubr.f32.mxu0 0.0
      %3332 = vmatmul.mubr.f32.gmra.mrb[0].mxu0 %v3191
      %v3333 = vpop.f32.mrb[0].mxu0
      %v3334 = vadd.f32 %v3138, %v3333
      %v3335 = vpop.f32.mrb[0].mxu0
      %3336 = vmatprep.mubr.f32.mxu0 0.0
      %3337 = vmatmul.mubr.f32.gmra.mrb[0].mxu0 %v3194
      %v3338 = vpop.f32.mrb[0].mxu0
      %v3339 = vadd.f32 %v3143, %v3338
      %v3340 = vpop.f32.mrb[0].mxu0
      %3341 = vmatprep.mubr.f32.mxu0 0.0
      %3342 = vmatmul.mubr.f32.gmra.mrb[0].mxu0 %v3197
      %v3343 = vpop.f32.mrb[0].mxu0
      %v3344 = vadd.f32 %v3148, %v3343
      %v3345 = vpop.f32.mrb[0].mxu0
      %3346 = vdwg.mxu0
      %v3347 = vld [vmem:[%s13] sm:$0x1]
      %v3349 = vlaneseq
      %v3350 = vshrl.u32 %v3349, 7
      %v3351 = vsub.s32 0, %v3350
      %v3352 = vrot.slane %v3347, %v3351
      %v3354 = vadd.f32 %v3269, %v3352
      %v3355 = vadd.f32 %v3274, %v3352
      %v3356 = vadd.f32 %v3279, %v3352
      %v3357 = vadd.f32 %v3284, %v3352
      %v3358 = vadd.f32 %v3289, %v3352
      %v3359 = vadd.f32 %v3294, %v3352
      %v3360 = vadd.f32 %v3299, %v3352
      %v3361 = vadd.f32 %v3304, %v3352
      %v3362 = vadd.f32 %v3309, %v3352
      %v3363 = vadd.f32 %v3314, %v3352
      %v3364 = vadd.f32 %v3319, %v3352
      %v3365 = vadd.f32 %v3324, %v3352
      %v3366 = vadd.f32 %v3329, %v3352
      %v3367 = vadd.f32 %v3334, %v3352
      %v3368 = vadd.f32 %v3339, %v3352
      %v3369 = vadd.f32 %v3344, %v3352
      %3370 = vst.msk [vmem:[%s548] sm:$0xff] %vm2185, %v3354
      %3371 = vst.msk [vmem:[%s548 + $0x8] sm:$0xff] %vm2185, %v3355
      %3372 = vst.msk [vmem:[%s548 + $0x10] sm:$0xff] %vm2185, %v3356
      %3373 = vst.msk [vmem:[%s548 + $0x18] sm:$0xff] %vm2185, %v3357
      %3374 = vst.msk [vmem:[%s548 + $0x20] sm:$0xff] %vm2185, %v3358
      %3375 = vst.msk [vmem:[%s548 + $0x28] sm:$0xff] %vm2185, %v3359
      %3376 = vst.msk [vmem:[%s548 + $0x30] sm:$0xff] %vm2185, %v3360
      %3377 = vst.msk [vmem:[%s548 + $0x38] sm:$0xff] %vm2185, %v3361
      %3378 = vst.msk [vmem:[%s548 + $0x40] sm:$0xff] %vm2185, %v3362
      %3379 = vst.msk [vmem:[%s548 + $0x48] sm:$0xff] %vm2185, %v3363
      %3380 = vst.msk [vmem:[%s548 + $0x50] sm:$0xff] %vm2185, %v3364
      %3381 = vst.msk [vmem:[%s548 + $0x58] sm:$0xff] %vm2185, %v3365
      %3382 = vst.msk [vmem:[%s548 + $0x60] sm:$0xff] %vm2185, %v3366
      %3383 = vst.msk [vmem:[%s548 + $0x68] sm:$0xff] %vm2185, %v3367
      %3384 = vst.msk [vmem:[%s548 + $0x70] sm:$0xff] %vm2185, %v3368
      %3385 = vst.msk [vmem:[%s548 + $0x78] sm:$0xff] %vm2185, %v3369
      %s3386 = smul.u32 8, %s32
      %p3387 = scmp.lt.s32.totalorder %s31, 1
      %s3388 = scalar_select %p3387, %s31, 1
      %p3389 = scmp.lt.s32.totalorder %s3386, 15
      %s3390 = scalar_select %p3389, %s3386, 15
      %s3391 = smul.addr %s3390, 2
      %s3392 = smul.addr %s3388, 32
      %s3393 = sadd.s32 %s3391, %s3392
      %s3394 = smul.addr %s3393, 8
      %s3395 = scalar_lea.vmem %s14, %s3394
      // Predicated region
      $region77: #{_lambda_.2} parent=75 // pred_check
        %p3396 = pneg %p367
      $region78: #{_lambda_.2} parent=75 // pred_check_branch
        %3398 = sbr.rel (%p3396) target = $region80
      $region79: #{_lambda_.2} parent=75 // pred_region
        %s3399 = smul.u32 8, %s32
      $region80: #{_lambda_.2} parent=75 // pred_fallthru
        _
    $region76: #{_lambda_.2} parent=5 // pred_fallthru
      _
    %p3400 = scmp.le.s32.totalorder 2, %s22
    // Predicated region
    $region81: #{_lambda_.2} parent=5 // pred_check
      %p3401 = pneg %p3400
    $region82: #{_lambda_.2} parent=5 // pred_check_branch
      %3403 = sbr.rel (%p3401) target = $region84
    $region83: #{_lambda_.2} parent=5 // pred_region
      %s3404 = ssub.s32 %s22, 2
      // Predicated region
      $region85: #{_lambda_.2} parent=83 // pred_check
        %p3405 = pneg %p373
      $region86: #{_lambda_.2} parent=83 // pred_check_branch
        %3407 = sbr.rel (%p3405) target = $region88
      $region87: #{_lambda_.2} parent=83 // pred_region
        %s3408 = smul.u32 8, %s34
        %p3409 = scmp.lt.s32.totalorder %s33, 1
        %s3410 = scalar_select %p3409, %s33, 1
        %p3411 = scmp.lt.s32.totalorder %s3408, 15
        %s3412 = scalar_select %p3411, %s3408, 15
        %s3413 = smul.addr %s3412, 2
        %s3414 = smul.addr %s3410, 32
        %s3415 = sadd.s32 %s3413, %s3414
        %s3416 = smul.addr %s3415, 8
        %s3417 = scalar_lea.vmem %s14, %s3416
      $region88: #{_lambda_.2} parent=83 // pred_fallthru
        _
    $region84: #{_lambda_.2} parent=5 // pred_fallthru
      _
  $region6: #{_lambda_.2} parent=0 // loop_footer
    %s26 = sadd.s32 1, %s22
  $region7: #{_lambda_.2} parent=0 // loop_footer_branch
    %21 = sbr.rel target = $region3
  $region8: #{_lambda_.2} parent=0 // loop_exit
    _

// kernel: _lambda_.3
$region0: #{_lambda_.3}
  #allocation0 [shape = 'u32[]', space=smem, size = 0x4, offset = 0x4, fixed_abs, tag = 'smem constant byte address 0x4 - core index']
  #allocation1 [shape = 'u32[144,128]{1,0:T(1,128)}', space=vmem, size = 0x12000, scoped, tag = 'internal scratch']
  #allocation2 [shape = 'f32[16,18,12]{2,1,0:T(8,128)}', space=vmem, size = 0x30000, scoped, tag = 'scratch operand']
  %s0 = inlined_call_operand.vmem [shape: f32[2,16,16,4], index: 0, kind: input, shape index: {}]
  %s1 = inlined_call_operand.vmem [shape: f32[2,3,12,4], index: 1, kind: input, shape index: {}]
  %s2 = inlined_call_operand.vmem [shape: f32[2,1,4], index: 2, kind: input, shape index: {}]
  %s3 = inlined_call_operand.vmem [shape: f32[2,16,16,4], index: 3, kind: output, shape index: {}]
  %s4 = sld [smem:[#allocation0]]
  $region45: #{_lambda_.3} parent=0
    _
  %s6 = ssub.s32 1, %s4
  %s7 = scalar_select 0, %s6, %s4
  loop: start=0, step=1, limit=4
  $region2: #{_lambda_.3} parent=0 // loop_pre_header
    _
  $region3: #{_lambda_.3} parent=0 // loop_header
    %s9 = sphi 0, %s13
    %p10 = scmp.ge.s32.totalorder %s9, 4
    %s19 = sphi 0, %s21
    %s22 = sphi 0, %s19
    %s23 = sphi 0, %s22
    %s39 = sphi 0, %s23
    %s43 = sphi 0, %s43
    %s45 = sphi 0, %s43
    %s46 = sphi 0, %s45
    %s60 = sphi 0, %s46
    %s64 = sphi 0, %s64
    %s66 = sphi 0, %s64
    %s67 = sphi 0, %s66
    %s81 = sphi 0, %s67
    %s87 = sphi 0, %s89
    %s90 = sphi 0, %s87
    %s91 = sphi 0, %s90
    %s107 = sphi 0, %s91
  $region4: #{_lambda_.3} parent=0 // loop_header_branch
    %12 = sbr.rel (%p10) target = $region8
  $region5: #{_lambda_.3} parent=0 // loop_body
    %s14 = ssub.s32 %s9, 1
    %s15 = ssub.s32 %s9, 2
    %s16 = sadd.s32 %s9, 1
    %s17 = ssub.s32 %s9, %s16
    %p18 = scmp.eq.s32.totalorder %s17, 0
    %s20 = sadd.s32 %s19, 1
    %s21 = scalar_select %p18, %s19, %s20
    %p24 = pneg %p18
    %p25 = scmp.eq.s32.totalorder %s9, 1
    %p26 = por %p24, %p25
    %p27 = scmp.ne.s32.totalorder %s19, %s22
    %p28 = scmp.eq.s32.totalorder %s9, 0
    %p29 = por %p27, %p28
    %p30 = scmp.ne.s32.totalorder %s19, %s22
    %p31 = scmp.eq.s32.totalorder %s14, 1
    %p32 = por %p30, %p31
    %p33 = scmp.ne.s32.totalorder %s22, %s23
    %p34 = scmp.eq.s32.totalorder %s14, 0
    %p35 = por %p33, %p34
    %p36 = scmp.ne.s32.totalorder %s22, %s23
    %p37 = scmp.eq.s32.totalorder %s15, 1
    %p38 = por %p36, %p37
    %p40 = scmp.ne.s32.totalorder %s23, %s39
    %p41 = scmp.eq.s32.totalorder %s15, 0
    %p42 = por %p40, %p41
    %s44 = sadd.s32 %s43, 1
    %p47 = scmp.eq.s32.totalorder %s9, 1
    %p48 = scmp.ne.s32.totalorder %s43, %s45
    %p49 = scmp.eq.s32.totalorder %s9, 0
    %p50 = por %p48, %p49
    %p51 = scmp.ne.s32.totalorder %s43, %s45
    %p52 = scmp.eq.s32.totalorder %s14, 1
    %p53 = por %p51, %p52
    %p54 = scmp.ne.s32.totalorder %s45, %s46
    %p55 = scmp.eq.s32.totalorder %s14, 0
    %p56 = por %p54, %p55
    %p57 = scmp.ne.s32.totalorder %s45, %s46
    %p58 = scmp.eq.s32.totalorder %s15, 1
    %p59 = por %p57, %p58
    %p61 = scmp.ne.s32.totalorder %s46, %s60
    %p62 = scmp.eq.s32.totalorder %s15, 0
    %p63 = por %p61, %p62
    %s65 = sadd.s32 %s64, 1
    %p68 = scmp.eq.s32.totalorder %s9, 1
    %p69 = scmp.ne.s32.totalorder %s64, %s66
    %p70 = scmp.eq.s32.totalorder %s9, 0
    %p71 = por %p69, %p70
    %p72 = scmp.ne.s32.totalorder %s64, %s66
    %p73 = scmp.eq.s32.totalorder %s14, 1
    %p74 = por %p72, %p73
    %p75 = scmp.ne.s32.totalorder %s66, %s67
    %p76 = scmp.eq.s32.totalorder %s14, 0
    %p77 = por %p75, %p76
    %p78 = scmp.ne.s32.totalorder %s66, %s67
    %p79 = scmp.eq.s32.totalorder %s15, 1
    %p80 = por %p78, %p79
    %p82 = scmp.ne.s32.totalorder %s67, %s81
    %p83 = scmp.eq.s32.totalorder %s15, 0
    %p84 = por %p82, %p83
    %s85 = ssub.s32 %s9, %s16
    %p86 = scmp.eq.s32.totalorder %s85, 0
    %s88 = sadd.s32 %s87, 1
    %s89 = scalar_select %p86, %s87, %s88
    %p92 = pneg %p86
    %p93 = scmp.eq.s32.totalorder %s9, 1
    %p94 = por %p92, %p93
    %p95 = scmp.ne.s32.totalorder %s87, %s90
    %p96 = scmp.eq.s32.totalorder %s9, 0
    %p97 = por %p95, %p96
    %p98 = scmp.ne.s32.totalorder %s87, %s90
    %p99 = scmp.eq.s32.totalorder %s14, 1
    %p100 = por %p98, %p99
    %p101 = scmp.ne.s32.totalorder %s90, %s91
    %p102 = scmp.eq.s32.totalorder %s14, 0
    %p103 = por %p101, %p102
    %p104 = scmp.ne.s32.totalorder %s90, %s91
    %p105 = scmp.eq.s32.totalorder %s15, 1
    %p106 = por %p104, %p105
    %p108 = scmp.ne.s32.totalorder %s91, %s107
    %p109 = scmp.eq.s32.totalorder %s15, 0
    %p110 = por %p108, %p109
    %p111 = scmp.le.s32.totalorder 1, %s9
    %p112 = scmp.lt.s32.totalorder %s9, 3
    %p113 = pnand %p111, %p112
    %p114 = pneg %p113
    // Predicated region
    $region9: #{_lambda_.3} parent=5 // pred_check
      _
    $region10: #{_lambda_.3} parent=5 // pred_check_branch
      %116 = sbr.rel (%p113) target = $region12
    $region11: #{_lambda_.3} parent=5 // pred_region
      %s117 = ssub.s32 %s9, 1
      // Predicated region
      $region13: #{_lambda_.3} parent=11 // pred_check
        %p118 = pneg %p56
      $region14: #{_lambda_.3} parent=11 // pred_check_branch
        %120 = sbr.rel (%p118) target = $region16
      $region15: #{_lambda_.3} parent=11 // pred_region
        _
      $region16: #{_lambda_.3} parent=11 // pred_fallthru
        _
      // Predicated region
      $region17: #{_lambda_.3} parent=11 // pred_check
        %p121 = pneg %p77
      $region18: #{_lambda_.3} parent=11 // pred_check_branch
        %123 = sbr.rel (%p121) target = $region20
      $region19: #{_lambda_.3} parent=11 // pred_region
        _
      $region20: #{_lambda_.3} parent=11 // pred_fallthru
        _
    $region12: #{_lambda_.3} parent=5 // pred_fallthru
      _
    %p124 = scmp.lt.s32.totalorder %s9, 2
    // Predicated region
    $region21: #{_lambda_.3} parent=5 // pred_check
      %p125 = pneg %p124
    $region22: #{_lambda_.3} parent=5 // pred_check_branch
      %127 = sbr.rel (%p125) target = $region24
    $region23: #{_lambda_.3} parent=5 // pred_region
      // Predicated region
      $region25: #{_lambda_.3} parent=23 // pred_check
        %p128 = pneg %p29
      $region26: #{_lambda_.3} parent=23 // pred_check_branch
        %130 = sbr.rel (%p128) target = $region28
      $region27: #{_lambda_.3} parent=23 // pred_region
        %p131 = scmp.lt.s32.totalorder %s9, 1
        %s132 = scalar_select %p131, %s9, 1
        %s133 = smul.addr %s132, 32
        %s134 = smul.addr %s133, 8
        %s135 = scalar_lea.vmem %s0, %s134
      $region28: #{_lambda_.3} parent=23 // pred_fallthru
        _
    $region24: #{_lambda_.3} parent=5 // pred_fallthru
      _
    %p136 = scmp.le.s32.totalorder 1, %s9
    %p137 = scmp.lt.s32.totalorder %s9, 3
    %p138 = pnand %p136, %p137
    %p139 = pneg %p138
    // Predicated region
    $region29: #{_lambda_.3} parent=5 // pred_check
      _
    $region30: #{_lambda_.3} parent=5 // pred_check_branch
      %141 = sbr.rel (%p138) target = $region32
    $region31: #{_lambda_.3} parent=5 // pred_region
      %s142 = ssub.s32 %s9, 1
      %p143 = scmp.lt.s32.totalorder %s14, 1
      %s144 = scalar_select %p143, %s14, 1
      %s145 = smul.addr %s144, 32
      %s146 = smul.addr %s145, 8
      %s147 = scalar_lea.vmem %s0, %s146
      %p148 = pneg %p35
      %p149 = pneg %p32
      %p150 = pneg %p56
      %p151 = pneg %p53
      %p152 = pneg %p77
      %p153 = pneg %p74
      %p154 = pneg %p103
      %p155 = pneg %p100
      %p156 = scmp.lt.s32.totalorder %s14, 1
      %s157 = scalar_select %p156, %s14, 1
      %s158 = smul.addr %s157, 32
      %s159 = smul.addr %s158, 8
      %s160 = scalar_lea.vmem %s3, %s159
      %p161 = scmp.lt.s32.totalorder %s14, 1
      %s162 = scalar_select %p161, %s14, 1
      %s163 = smul.addr %s162, 32
      %s164 = smul.addr %s163, 8
      %s165 = scalar_lea.vmem %s0, %s164
      %p166 = scmp.lt.s32.totalorder %s14, 1
      %s167 = scalar_select %p166, %s14, 1
      %s168 = smul.addr %s167, 32
      %s169 = smul.addr %s168, 8
      %s170 = scalar_lea.vmem %s3, %s169
      %v171 = vld [vmem:[%s165] sm:$0xff]
      %v172 = vld [vmem:[%s165 + $0x8] sm:$0xff]
      %v173 = vld [vmem:[%s165 + $0x10] sm:$0xff]
      %v174 = vld [vmem:[%s165 + $0x18] sm:$0xff]
      %v175 = vld [vmem:[%s165 + $0x20] sm:$0xff]
      %v176 = vld [vmem:[%s165 + $0x28] sm:$0xff]
      %v177 = vld [vmem:[%s165 + $0x30] sm:$0xff]
      %v178 = vld [vmem:[%s165 + $0x38] sm:$0xff]
      %v179 = vld [vmem:[%s165 + $0x40] sm:$0xff]
      %v180 = vld [vmem:[%s165 + $0x48] sm:$0xff]
      %v181 = vld [vmem:[%s165 + $0x50] sm:$0xff]
      %v182 = vld [vmem:[%s165 + $0x58] sm:$0xff]
      %v183 = vld [vmem:[%s165 + $0x60] sm:$0xff]
      %v184 = vld [vmem:[%s165 + $0x68] sm:$0xff]
      %v185 = vld [vmem:[%s165 + $0x70] sm:$0xff]
      %v186 = vld [vmem:[%s165 + $0x78] sm:$0xff]
      %v187 = vld [vmem:[%s165 + $0x80] sm:$0xff]
      %v188 = vld [vmem:[%s165 + $0x88] sm:$0xff]
      %v189 = vld [vmem:[%s165 + $0x90] sm:$0xff]
      %v190 = vld [vmem:[%s165 + $0x98] sm:$0xff]
      %v191 = vld [vmem:[%s165 + $0xa0] sm:$0xff]
      %v192 = vld [vmem:[%s165 + $0xa8] sm:$0xff]
      %v193 = vld [vmem:[%s165 + $0xb0] sm:$0xff]
      %v194 = vld [vmem:[%s165 + $0xb8] sm:$0xff]
      %v195 = vld [vmem:[%s165 + $0xc0] sm:$0xff]
      %v196 = vld [vmem:[%s165 + $0xc8] sm:$0xff]
      %v197 = vld [vmem:[%s165 + $0xd0] sm:$0xff]
      %v198 = vld [vmem:[%s165 + $0xd8] sm:$0xff]
      %v199 = vld [vmem:[%s165 + $0xe0] sm:$0xff]
      %v200 = vld [vmem:[%s165 + $0xe8] sm:$0xff]
      %v201 = vld [vmem:[%s165 + $0xf0] sm:$0xff]
      %v202 = vld [vmem:[%s165 + $0xf8] sm:$0xff]
      %vm203 = vcmask 97280
      %204 = vst.msk [vmem:[#allocation2] sm:$0xff] %vm203, 0.0
      %205 = vst.msk [vmem:[#allocation2 + $0x8] sm:$0xff] %vm203, 0.0
      %vm206 = vcmask 91136
      %207 = vst.msk [vmem:[#allocation2 + $0x10] sm:$0x3] %vm206, 0.0
      %208 = vst.msk [vmem:[#allocation2 + $0x18] sm:$0xff] %vm203, 0.0
      %209 = vst.msk [vmem:[#allocation2 + $0x20] sm:$0xff] %vm203, 0.0
      %210 = vst.msk [vmem:[#allocation2 + $0x28] sm:$0x3] %vm206, 0.0
      %211 = vst.msk [vmem:[#allocation2 + $0x30] sm:$0xff] %vm203, 0.0
      %212 = vst.msk [vmem:[#allocation2 + $0x38] sm:$0xff] %vm203, 0.0
      %213 = vst.msk [vmem:[#allocation2 + $0x40] sm:$0x3] %vm206, 0.0
      %214 = vst.msk [vmem:[#allocation2 + $0x48] sm:$0xff] %vm203, 0.0
      %215 = vst.msk [vmem:[#allocation2 + $0x50] sm:$0xff] %vm203, 0.0
      %216 = vst.msk [vmem:[#allocation2 + $0x58] sm:$0x3] %vm206, 0.0
      %217 = vst.msk [vmem:[#allocation2 + $0x60] sm:$0xff] %vm203, 0.0
      %218 = vst.msk [vmem:[#allocation2 + $0x68] sm:$0xff] %vm203, 0.0
      %219 = vst.msk [vmem:[#allocation2 + $0x70] sm:$0x3] %vm206, 0.0
      %220 = vst.msk [vmem:[#allocation2 + $0x78] sm:$0xff] %vm203, 0.0
      %221 = vst.msk [vmem:[#allocation2 + $0x80] sm:$0xff] %vm203, 0.0
      %222 = vst.msk [vmem:[#allocation2 + $0x88] sm:$0x3] %vm206, 0.0
      %223 = vst.msk [vmem:[#allocation2 + $0x90] sm:$0xff] %vm203, 0.0
      %224 = vst.msk [vmem:[#allocation2 + $0x98] sm:$0xff] %vm203, 0.0
      %225 = vst.msk [vmem:[#allocation2 + $0xa0] sm:$0x3] %vm206, 0.0
      %226 = vst.msk [vmem:[#allocation2 + $0xa8] sm:$0xff] %vm203, 0.0
      %227 = vst.msk [vmem:[#allocation2 + $0xb0] sm:$0xff] %vm203, 0.0
      %228 = vst.msk [vmem:[#allocation2 + $0xb8] sm:$0x3] %vm206, 0.0
      %229 = vst.msk [vmem:[#allocation2 + $0xc0] sm:$0xff] %vm203, 0.0
      %230 = vst.msk [vmem:[#allocation2 + $0xc8] sm:$0xff] %vm203, 0.0
      %231 = vst.msk [vmem:[#allocation2 + $0xd0] sm:$0x3] %vm206, 0.0
      %232 = vst.msk [vmem:[#allocation2 + $0xd8] sm:$0xff] %vm203, 0.0
      %233 = vst.msk [vmem:[#allocation2 + $0xe0] sm:$0xff] %vm203, 0.0
      %234 = vst.msk [vmem:[#allocation2 + $0xe8] sm:$0x3] %vm206, 0.0
      %235 = vst.msk [vmem:[#allocation2 + $0xf0] sm:$0xff] %vm203, 0.0
      %236 = vst.msk [vmem:[#allocation2 + $0xf8] sm:$0xff] %vm203, 0.0
      %237 = vst.msk [vmem:[#allocation2 + $0x100] sm:$0x3] %vm206, 0.0
      %238 = vst.msk [vmem:[#allocation2 + $0x108] sm:$0xff] %vm203, 0.0
      %239 = vst.msk [vmem:[#allocation2 + $0x110] sm:$0xff] %vm203, 0.0
      %240 = vst.msk [vmem:[#allocation2 + $0x118] sm:$0x3] %vm206, 0.0
      %241 = vst.msk [vmem:[#allocation2 + $0x120] sm:$0xff] %vm203, 0.0
      %242 = vst.msk [vmem:[#allocation2 + $0x128] sm:$0xff] %vm203, 0.0
      %243 = vst.msk [vmem:[#allocation2 + $0x130] sm:$0x3] %vm206, 0.0
      %244 = vst.msk [vmem:[#allocation2 + $0x138] sm:$0xff] %vm203, 0.0
      %245 = vst.msk [vmem:[#allocation2 + $0x140] sm:$0xff] %vm203, 0.0
      %246 = vst.msk [vmem:[#allocation2 + $0x148] sm:$0x3] %vm206, 0.0
      %247 = vst.msk [vmem:[#allocation2 + $0x150] sm:$0xff] %vm203, 0.0
      %248 = vst.msk [vmem:[#allocation2 + $0x158] sm:$0xff] %vm203, 0.0
      %249 = vst.msk [vmem:[#allocation2 + $0x160] sm:$0x3] %vm206, 0.0
      %250 = vst.msk [vmem:[#allocation2 + $0x168] sm:$0xff] %vm203, 0.0
      %251 = vst.msk [vmem:[#allocation2 + $0x170] sm:$0xff] %vm203, 0.0
      %252 = vst.msk [vmem:[#allocation2 + $0x178] sm:$0x3] %vm206, 0.0
      %v253 = vld [vmem:[%s1] sm:$0xff]
      %v254 = vld [vmem:[%s1 + $0x8] sm:$0xf]
      %v255 = vld [vmem:[%s1 + $0x10] sm:$0xff]
      %v256 = vld [vmem:[%s1 + $0x18] sm:$0xf]
      %v257 = vld [vmem:[%s1 + $0x20] sm:$0xff]
      %v258 = vld [vmem:[%s1 + $0x28] sm:$0xf]
      %v259 = vld [vmem:[%s2] sm:$0x1]
      %292 = vrot.lane.b32.xlu0 %v171, 4
      %v293 = vpop.permute.xlu0 %292
      %294 = vrot.lane.b32.xlu0 %v172, 4
      %v295 = vpop.permute.xlu0 %294
      %296 = vrot.lane.b32.xlu0 %v173, 4
      %v297 = vpop.permute.xlu0 %296
      %298 = vrot.lane.b32.xlu0 %v174, 4
      %v299 = vpop.permute.xlu0 %298
      %300 = vrot.lane.b32.xlu0 %v175, 4
      %v301 = vpop.permute.xlu0 %300
      %302 = vrot.lane.b32.xlu0 %v176, 4
      %v303 = vpop.permute.xlu0 %302
      %304 = vrot.lane.b32.xlu0 %v177, 4
      %v305 = vpop.permute.xlu0 %304
      %306 = vrot.lane.b32.xlu0 %v178, 4
      %v307 = vpop.permute.xlu0 %306
      %308 = vrot.lane.b32.xlu0 %v179, 4
      %v309 = vpop.permute.xlu0 %308
      %310 = vrot.lane.b32.xlu0 %v180, 4
      %v311 = vpop.permute.xlu0 %310
      %312 = vrot.lane.b32.xlu0 %v181, 4
      %v313 = vpop.permute.xlu0 %312
      %314 = vrot.lane.b32.xlu0 %v182, 4
      %v315 = vpop.permute.xlu0 %314
      %316 = vrot.lane.b32.xlu0 %v183, 4
      %v317 = vpop.permute.xlu0 %316
      %318 = vrot.lane.b32.xlu0 %v184, 4
      %v319 = vpop.permute.xlu0 %318
      %320 = vrot.lane.b32.xlu0 %v185, 4
      %v321 = vpop.permute.xlu0 %320
      %322 = vrot.lane.b32.xlu0 %v186, 4
      %v323 = vpop.permute.xlu0 %322
      %324 = vrot.lane.b32.xlu0 %v187, 4
      %v325 = vpop.permute.xlu0 %324
      %326 = vrot.lane.b32.xlu0 %v188, 4
      %v327 = vpop.permute.xlu0 %326
      %328 = vrot.lane.b32.xlu0 %v189, 4
      %v329 = vpop.permute.xlu0 %328
      %330 = vrot.lane.b32.xlu0 %v190, 4
      %v331 = vpop.permute.xlu0 %330
      %332 = vrot.lane.b32.xlu0 %v191, 4
      %v333 = vpop.permute.xlu0 %332
      %334 = vrot.lane.b32.xlu0 %v192, 4
      %v335 = vpop.permute.xlu0 %334
      %336 = vrot.lane.b32.xlu0 %v193, 4
      %v337 = vpop.permute.xlu0 %336
      %338 = vrot.lane.b32.xlu0 %v194, 4
      %v339 = vpop.permute.xlu0 %338
      %340 = vrot.lane.b32.xlu0 %v195, 4
      %v341 = vpop.permute.xlu0 %340
      %342 = vrot.lane.b32.xlu0 %v196, 4
      %v343 = vpop.permute.xlu0 %342
      %344 = vrot.lane.b32.xlu0 %v197, 4
      %v345 = vpop.permute.xlu0 %344
      %346 = vrot.lane.b32.xlu0 %v198, 4
      %v347 = vpop.permute.xlu0 %346
      %348 = vrot.lane.b32.xlu0 %v199, 4
      %v349 = vpop.permute.xlu0 %348
      %350 = vrot.lane.b32.xlu0 %v200, 4
      %v351 = vpop.permute.xlu0 %350
      %352 = vrot.lane.b32.xlu0 %v201, 4
      %v353 = vpop.permute.xlu0 %352
      %354 = vrot.lane.b32.xlu0 %v202, 4
      %v355 = vpop.permute.xlu0 %354
      %389 = vrot.lane.b32.xlu0 %v173, 8
      %v390 = vpop.permute.xlu0 %389
      %391 = vrot.lane.b32.xlu0 %v174, 8
      %v392 = vpop.permute.xlu0 %391
      %393 = vrot.lane.b32.xlu0 %v175, 8
      %v394 = vpop.permute.xlu0 %393
      %395 = vrot.lane.b32.xlu0 %v176, 8
      %v396 = vpop.permute.xlu0 %395
      %397 = vrot.lane.b32.xlu0 %v177, 8
      %v398 = vpop.permute.xlu0 %397
      %399 = vrot.lane.b32.xlu0 %v178, 8
      %v400 = vpop.permute.xlu0 %399
      %401 = vrot.lane.b32.xlu0 %v179, 8
      %v402 = vpop.permute.xlu0 %401
      %403 = vrot.lane.b32.xlu0 %v180, 8
      %v404 = vpop.permute.xlu0 %403
      %405 = vrot.lane.b32.xlu0 %v181, 8
      %v406 = vpop.permute.xlu0 %405
      %407 = vrot.lane.b32.xlu0 %v182, 8
      %v408 = vpop.permute.xlu0 %407
      %409 = vrot.lane.b32.xlu0 %v183, 8
      %v410 = vpop.permute.xlu0 %409
      %411 = vrot.lane.b32.xlu0 %v184, 8
      %v412 = vpop.permute.xlu0 %411
      %413 = vrot.lane.b32.xlu0 %v185, 8
      %v414 = vpop.permute.xlu0 %413
      %415 = vrot.lane.b32.xlu0 %v186, 8
      %v416 = vpop.permute.xlu0 %415
      %417 = vrot.lane.b32.xlu0 %v187, 8
      %v418 = vpop.permute.xlu0 %417
      %419 = vrot.lane.b32.xlu0 %v188, 8
      %v420 = vpop.permute.xlu0 %419
      %421 = vrot.lane.b32.xlu0 %v189, 8
      %v422 = vpop.permute.xlu0 %421
      %423 = vrot.lane.b32.xlu0 %v190, 8
      %v424 = vpop.permute.xlu0 %423
      %425 = vrot.lane.b32.xlu0 %v191, 8
      %v426 = vpop.permute.xlu0 %425
      %427 = vrot.lane.b32.xlu0 %v192, 8
      %v428 = vpop.permute.xlu0 %427
      %429 = vrot.lane.b32.xlu0 %v193, 8
      %v430 = vpop.permute.xlu0 %429
      %431 = vrot.lane.b32.xlu0 %v194, 8
      %v432 = vpop.permute.xlu0 %431
      %433 = vrot.lane.b32.xlu0 %v195, 8
      %v434 = vpop.permute.xlu0 %433
      %435 = vrot.lane.b32.xlu0 %v196, 8
      %v436 = vpop.permute.xlu0 %435
      %437 = vrot.lane.b32.xlu0 %v197, 8
      %v438 = vpop.permute.xlu0 %437
      %439 = vrot.lane.b32.xlu0 %v198, 8
      %v440 = vpop.permute.xlu0 %439
      %441 = vrot.lane.b32.xlu0 %v199, 8
      %v442 = vpop.permute.xlu0 %441
      %443 = vrot.lane.b32.xlu0 %v200, 8
      %v444 = vpop.permute.xlu0 %443
      %445 = vrot.lane.b32.xlu0 %v201, 8
      %v446 = vpop.permute.xlu0 %445
      %447 = vrot.lane.b32.xlu0 %v202, 8
      %v448 = vpop.permute.xlu0 %447
      %449 = vrot.lane.b32.xlu0 0.0, 8
      %v450 = vpop.permute.xlu0 %449
      %vm482 = vcmask 31744
      %v483 = vsel %vm482, 0.0, %v293
      %v484 = vsel %vm482, 0.0, %v295
      %v485 = vsel %vm482, %v171, %v297
      %v486 = vsel %vm482, %v172, %v299
      %v487 = vsel %vm482, %v173, %v301
      %v488 = vsel %vm482, %v174, %v303
      %v489 = vsel %vm482, %v175, %v305
      %v490 = vsel %vm482, %v176, %v307
      %v491 = vsel %vm482, %v177, %v309
      %v492 = vsel %vm482, %v178, %v311
      %v493 = vsel %vm482, %v179, %v313
      %v494 = vsel %vm482, %v180, %v315
      %v495 = vsel %vm482, %v181, %v317
      %v496 = vsel %vm482, %v182, %v319
      %v497 = vsel %vm482, %v183, %v321
      %v498 = vsel %vm482, %v184, %v323
      %v499 = vsel %vm482, %v185, %v325
      %v500 = vsel %vm482, %v186, %v327
      %v501 = vsel %vm482, %v187, %v329
      %v502 = vsel %vm482, %v188, %v331
      %v503 = vsel %vm482, %v189, %v333
      %v504 = vsel %vm482, %v190, %v335
      %v505 = vsel %vm482, %v191, %v337
      %v506 = vsel %vm482, %v192, %v339
      %v507 = vsel %vm482, %v193, %v341
      %v508 = vsel %vm482, %v194, %v343
      %v509 = vsel %vm482, %v195, %v345
      %v510 = vsel %vm482, %v196, %v347
      %v511 = vsel %vm482, %v197, %v349
      %v512 = vsel %vm482, %v198, %v351
      %v513 = vsel %vm482, %v199, %v353
      %v514 = vsel %vm482, %v200, %v355
      %vm515 = vcmask 64512
      %v516 = vsel %vm515, %v483, %v390
      %v517 = vsel %vm515, %v484, %v392
      %v518 = vsel %vm515, %v485, %v394
      %v519 = vsel %vm515, %v486, %v396
      %v520 = vsel %vm515, %v487, %v398
      %v521 = vsel %vm515, %v488, %v400
      %v522 = vsel %vm515, %v489, %v402
      %v523 = vsel %vm515, %v490, %v404
      %v524 = vsel %vm515, %v491, %v406
      %v525 = vsel %vm515, %v492, %v408
      %v526 = vsel %vm515, %v493, %v410
      %v527 = vsel %vm515, %v494, %v412
      %v528 = vsel %vm515, %v495, %v414
      %v529 = vsel %vm515, %v496, %v416
      %v530 = vsel %vm515, %v497, %v418
      %v531 = vsel %vm515, %v498, %v420
      %v532 = vsel %vm515, %v499, %v422
      %v533 = vsel %vm515, %v500, %v424
      %v534 = vsel %vm515, %v501, %v426
      %v535 = vsel %vm515, %v502, %v428
      %v536 = vsel %vm515, %v503, %v430
      %v537 = vsel %vm515, %v504, %v432
      %v538 = vsel %vm515, %v505, %v434
      %v539 = vsel %vm515, %v506, %v436
      %v540 = vsel %vm515, %v507, %v438
      %v541 = vsel %vm515, %v508, %v440
      %v542 = vsel %vm515, %v509, %v442
      %v543 = vsel %vm515, %v510, %v444
      %v544 = vsel %vm515, %v511, %v446
      %v545 = vsel %vm515, %v512, %v448
      %v546 = vsel %vm515, %v513, %v450
      %v547 = vsel %vm515, %v514, %v450
      %548 = vst.msk [vmem:[#allocation2 + $0x1] sm:$0xff] %vm203, %v516
      %549 = vst.msk [vmem:[#allocation2 + $0x9] sm:$0xff] %vm203, %v517
      %550 = vst.msk [vmem:[#allocation2 + $0x19] sm:$0xff] %vm203, %v518
      %551 = vst.msk [vmem:[#allocation2 + $0x21] sm:$0xff] %vm203, %v519
      %552 = vst.msk [vmem:[#allocation2 + $0x31] sm:$0xff] %vm203, %v520
      %553 = vst.msk [vmem:[#allocation2 + $0x39] sm:$0xff] %vm203, %v521
      %554 = vst.msk [vmem:[#allocation2 + $0x49] sm:$0xff] %vm203, %v522
      %555 = vst.msk [vmem:[#allocation2 + $0x51] sm:$0xff] %vm203, %v523
      %556 = vst.msk [vmem:[#allocation2 + $0x61] sm:$0xff] %vm203, %v524
      %557 = vst.msk [vmem:[#allocation2 + $0x69] sm:$0xff] %vm203, %v525
      %558 = vst.msk [vmem:[#allocation2 + $0x79] sm:$0xff] %vm203, %v526
      %559 = vst.msk [vmem:[#allocation2 + $0x81] sm:$0xff] %vm203, %v527
      %560 = vst.msk [vmem:[#allocation2 + $0x91] sm:$0xff] %vm203, %v528
      %561 = vst.msk [vmem:[#allocation2 + $0x99] sm:$0xff] %vm203, %v529
      %562 = vst.msk [vmem:[#allocation2 + $0xa9] sm:$0xff] %vm203, %v530
      %563 = vst.msk [vmem:[#allocation2 + $0xb1] sm:$0xff] %vm203, %v531
      %564 = vst.msk [vmem:[#allocation2 + $0xc1] sm:$0xff] %vm203, %v532
      %565 = vst.msk [vmem:[#allocation2 + $0xc9] sm:$0xff] %vm203, %v533
      %566 = vst.msk [vmem:[#allocation2 + $0xd9] sm:$0xff] %vm203, %v534
      %567 = vst.msk [vmem:[#allocation2 + $0xe1] sm:$0xff] %vm203, %v535
      %568 = vst.msk [vmem:[#allocation2 + $0xf1] sm:$0xff] %vm203, %v536
      %569 = vst.msk [vmem:[#allocation2 + $0xf9] sm:$0xff] %vm203, %v537
      %570 = vst.msk [vmem:[#allocation2 + $0x109] sm:$0xff] %vm203, %v538
      %571 = vst.msk [vmem:[#allocation2 + $0x111] sm:$0xff] %vm203, %v539
      %572 = vst.msk [vmem:[#allocation2 + $0x121] sm:$0xff] %vm203, %v540
      %573 = vst.msk [vmem:[#allocation2 + $0x129] sm:$0xff] %vm203, %v541
      %574 = vst.msk [vmem:[#allocation2 + $0x139] sm:$0xff] %vm203, %v542
      %575 = vst.msk [vmem:[#allocation2 + $0x141] sm:$0xff] %vm203, %v543
      %576 = vst.msk [vmem:[#allocation2 + $0x151] sm:$0xff] %vm203, %v544
      %577 = vst.msk [vmem:[#allocation2 + $0x159] sm:$0xff] %vm203, %v545
      %578 = vst.msk [vmem:[#allocation2 + $0x169] sm:$0xff] %vm203, %v546
      %579 = vst.msk [vmem:[#allocation2 + $0x171] sm:$0xff] %vm203, %v547
      %v580 = vld [vmem:[#allocation2] sm:$0xff]
      %v581 = vld [vmem:[#allocation2 + $0x8] sm:$0xff]
      %v582 = vld [vmem:[#allocation2 + $0x18] sm:$0xff]
      %v583 = vld [vmem:[#allocation2 + $0x20] sm:$0xff]
      %v584 = vld [vmem:[#allocation2 + $0x30] sm:$0xff]
      %v585 = vld [vmem:[#allocation2 + $0x38] sm:$0xff]
      %v586 = vld [vmem:[#allocation2 + $0x48] sm:$0xff]
      %v587 = vld [vmem:[#allocation2 + $0x50] sm:$0xff]
      %v588 = vld [vmem:[#allocation2 + $0x60] sm:$0xff]
      %v589 = vld [vmem:[#allocation2 + $0x68] sm:$0xff]
      %v590 = vld [vmem:[#allocation2 + $0x78] sm:$0xff]
      %v591 = vld [vmem:[#allocation2 + $0x80] sm:$0xff]
      %v592 = vld [vmem:[#allocation2 + $0x90] sm:$0xff]
      %v593 = vld [vmem:[#allocation2 + $0x98] sm:$0xff]
      %v594 = vld [vmem:[#allocation2 + $0xa8] sm:$0xff]
      %v595 = vld [vmem:[#allocation2 + $0xb0] sm:$0xff]
      %v596 = vld [vmem:[#allocation2 + $0xc0] sm:$0xff]
      %v597 = vld [vmem:[#allocation2 + $0xc8] sm:$0xff]
      %v598 = vld [vmem:[#allocation2 + $0xd8] sm:$0xff]
      %v599 = vld [vmem:[#allocation2 + $0xe0] sm:$0xff]
      %v600 = vld [vmem:[#allocation2 + $0xf0] sm:$0xff]
      %v601 = vld [vmem:[#allocation2 + $0xf8] sm:$0xff]
      %v602 = vld [vmem:[#allocation2 + $0x108] sm:$0xff]
      %v603 = vld [vmem:[#allocation2 + $0x110] sm:$0xff]
      %v604 = vld [vmem:[#allocation2 + $0x120] sm:$0xff]
      %v605 = vld [vmem:[#allocation2 + $0x128] sm:$0xff]
      %v606 = vld [vmem:[#allocation2 + $0x138] sm:$0xff]
      %v607 = vld [vmem:[#allocation2 + $0x140] sm:$0xff]
      %v608 = vld [vmem:[#allocation2 + $0x150] sm:$0xff]
      %v609 = vld [vmem:[#allocation2 + $0x158] sm:$0xff]
      %v610 = vld [vmem:[#allocation2 + $0x168] sm:$0xff]
      %v611 = vld [vmem:[#allocation2 + $0x170] sm:$0xff]
      %v612 = vld [vmem:[#allocation2 + $0x1] sm:$0xff]
      %v613 = vld [vmem:[#allocation2 + $0x9] sm:$0xff]
      %v614 = vld [vmem:[#allocation2 + $0x19] sm:$0xff]
      %v615 = vld [vmem:[#allocation2 + $0x21] sm:$0xff]
      %v616 = vld [vmem:[#allocation2 + $0x31] sm:$0xff]
      %v617 = vld [vmem:[#allocation2 + $0x39] sm:$0xff]
      %v618 = vld [vmem:[#allocation2 + $0x49] sm:$0xff]
      %v619 = vld [vmem:[#allocation2 + $0x51] sm:$0xff]
      %v620 = vld [vmem:[#allocation2 + $0x61] sm:$0xff]
      %v621 = vld [vmem:[#allocation2 + $0x69] sm:$0xff]
      %v622 = vld [vmem:[#allocation2 + $0x79] sm:$0xff]
      %v623 = vld [vmem:[#allocation2 + $0x81] sm:$0xff]
      %v624 = vld [vmem:[#allocation2 + $0x91] sm:$0xff]
      %v625 = vld [vmem:[#allocation2 + $0x99] sm:$0xff]
      %v626 = vld [vmem:[#allocation2 + $0xa9] sm:$0xff]
      %v627 = vld [vmem:[#allocation2 + $0xb1] sm:$0xff]
      %v628 = vld [vmem:[#allocation2 + $0xc1] sm:$0xff]
      %v629 = vld [vmem:[#allocation2 + $0xc9] sm:$0xff]
      %v630 = vld [vmem:[#allocation2 + $0xd9] sm:$0xff]
      %v631 = vld [vmem:[#allocation2 + $0xe1] sm:$0xff]
      %v632 = vld [vmem:[#allocation2 + $0xf1] sm:$0xff]
      %v633 = vld [vmem:[#allocation2 + $0xf9] sm:$0xff]
      %v634 = vld [vmem:[#allocation2 + $0x109] sm:$0xff]
      %v635 = vld [vmem:[#allocation2 + $0x111] sm:$0xff]
      %v636 = vld [vmem:[#allocation2 + $0x121] sm:$0xff]
      %v637 = vld [vmem:[#allocation2 + $0x129] sm:$0xff]
      %v638 = vld [vmem:[#allocation2 + $0x139] sm:$0xff]
      %v639 = vld [vmem:[#allocation2 + $0x141] sm:$0xff]
      %v640 = vld [vmem:[#allocation2 + $0x151] sm:$0xff]
      %v641 = vld [vmem:[#allocation2 + $0x159] sm:$0xff]
      %v642 = vld [vmem:[#allocation2 + $0x169] sm:$0xff]
      %v643 = vld [vmem:[#allocation2 + $0x171] sm:$0xff]
      %v645 = vsel %vm203, %v612, 0
      %v648 = vsel %vm203, %v613, 0
      %v651 = vsel %vm203, %v614, 0
      %v654 = vsel %vm203, %v615, 0
      %v657 = vsel %vm203, %v616, 0
      %v660 = vsel %vm203, %v617, 0
      %v663 = vsel %vm203, %v618, 0
      %v666 = vsel %vm203, %v619, 0
      %v669 = vsel %vm203, %v620, 0
      %v672 = vsel %vm203, %v621, 0
      %v675 = vsel %vm203, %v622, 0
      %v678 = vsel %vm203, %v623, 0
      %v681 = vsel %vm203, %v624, 0
      %v684 = vsel %vm203, %v625, 0
      %v687 = vsel %vm203, %v626, 0
      %v690 = vsel %vm203, %v627, 0
      %v693 = vsel %vm203, %v628, 0
      %v696 = vsel %vm203, %v629, 0
      %v699 = vsel %vm203, %v630, 0
      %v702 = vsel %vm203, %v631, 0
      %v705 = vsel %vm203, %v632, 0
      %v708 = vsel %vm203, %v633, 0
      %v711 = vsel %vm203, %v634, 0
      %v714 = vsel %vm203, %v635, 0
      %v717 = vsel %vm203, %v636, 0
      %v720 = vsel %vm203, %v637, 0
      %v723 = vsel %vm203, %v638, 0
      %v726 = vsel %vm203, %v639, 0
      %v729 = vsel %vm203, %v640, 0
      %v732 = vsel %vm203, %v641, 0
      %v735 = vsel %vm203, %v642, 0
      %v738 = vsel %vm203, %v643, 0
      %vm740 = vcmask 1043456
      %v742 = vsel %vm740, %v256, 0
      %744 = vmatprep.subr.mxu0 0.0
      %745 = vmatpush1.msra.mxu0 %v255
      %746 = vmatprep.subr.mxu0 0.0
      %747 = vmatpush1.msra.mxu0 %v742
      %748 = vmatprep.subr.mxu0 0.0
      %749 = vmatpush1.msra.mxu0 0.0
      %750 = vmatprep.subr.mxu0 0.0
      %751 = vmatpush1.msra.mxu0 0.0
      %752 = vmatprep.subr.mxu0 0.0
      %753 = vmatpush1.msra.mxu0 0.0
      %754 = vmatprep.subr.mxu0 0.0
      %755 = vmatpush1.msra.mxu0 0.0
      %756 = vmatprep.subr.mxu0 0.0
      %757 = vmatpush1.msra.mxu0 0.0
      %758 = vmatprep.subr.mxu0 0.0
      %759 = vmatpush1.msra.mxu0 0.0
      %760 = vmatprep.subr.mxu0 0.0
      %761 = vmatpush1.msra.mxu0 0.0
      %762 = vmatprep.subr.mxu0 0.0
      %763 = vmatpush1.msra.mxu0 0.0
      %764 = vmatprep.subr.mxu0 0.0
      %765 = vmatpush1.msra.mxu0 0.0
      %766 = vmatprep.subr.mxu0 0.0
      %767 = vmatpush1.msra.mxu0 0.0
      %768 = vmatprep.subr.mxu0 0.0
      %769 = vmatpush1.msra.mxu0 0.0
      %770 = vmatprep.subr.mxu0 0.0
      %771 = vmatpush1.msra.mxu0 0.0
      %772 = vmatprep.subr.mxu0 0.0
      %773 = vmatpush1.msra.mxu0 0.0
      %774 = vmatprep.subr.mxu0 0.0
      %775 = vmatpush1.msra.mxu0 0.0
      %776 = vmatprep.subr.mxu0 0.0
      %777 = vmatpush1.msra.mxu0 0.0
      %778 = vmatprep.subr.mxu0 0.0
      %779 = vmatpush1.msra.mxu0 0.0
      %780 = vmatprep.subr.mxu0 0.0
      %781 = vmatpush1.msra.mxu0 0.0
      %782 = vmatprep.subr.mxu0 0.0
      %783 = vmatpush1.msra.mxu0 0.0
      %784 = vmatprep.subr.mxu0 0.0
      %785 = vmatpush1.msra.mxu0 0.0
      %786 = vmatprep.subr.mxu0 0.0
      %787 = vmatpush1.msra.mxu0 0.0
      %788 = vmatprep.subr.mxu0 0.0
      %789 = vmatpush1.msra.mxu0 0.0
      %790 = vmatprep.subr.mxu0 0.0
      %791 = vmatpush1.msra.mxu0 0.0
      %792 = vmatprep.subr.mxu0 0.0
      %793 = vmatpush1.msra.mxu0 0.0
      %794 = vmatprep.subr.mxu0 0.0
      %795 = vmatpush1.msra.mxu0 0.0
      %796 = vmatprep.subr.mxu0 0.0
      %797 = vmatpush1.msra.mxu0 0.0
      %798 = vmatprep.subr.mxu0 0.0
      %799 = vmatpush1.msra.mxu0 0.0
      %800 = vmatprep.subr.mxu0 0.0
      %801 = vmatpush1.msra.mxu0 0.0
      %802 = vmatprep.subr.mxu0 0.0
      %803 = vmatpush1.msra.mxu0 0.0
      %804 = vmatprep.subr.mxu0 0.0
      %805 = vmatpush1.msra.mxu0 0.0
      %806 = vmatprep.subr.mxu0 0.0
      %807 = vmatpush1.msra.mxu0 0.0
      %808 = vmatprep.mubr.f32.mxu0 0.0
      %809 = vmatmul.mubr.f32.gmra.mrb[0].mxu0 %v645
      %v810 = vpop.f32.mrb[0].mxu0
      %v811 = vadd.f32 0.0, %v810
      %v812 = vpop.f32.mrb[0].mxu0
      %813 = vmatprep.mubr.f32.mxu0 0.0
      %814 = vmatmul.mubr.f32.gmra.mrb[0].mxu0 %v648
      %v815 = vpop.f32.mrb[0].mxu0
      %v816 = vadd.f32 0.0, %v815
      %v817 = vpop.f32.mrb[0].mxu0
      %818 = vmatprep.mubr.f32.mxu0 0.0
      %819 = vmatmul.mubr.f32.gmra.mrb[0].mxu0 %v651
      %v820 = vpop.f32.mrb[0].mxu0
      %v821 = vadd.f32 0.0, %v820
      %v822 = vpop.f32.mrb[0].mxu0
      %823 = vmatprep.mubr.f32.mxu0 0.0
      %824 = vmatmul.mubr.f32.gmra.mrb[0].mxu0 %v654
      %v825 = vpop.f32.mrb[0].mxu0
      %v826 = vadd.f32 0.0, %v825
      %v827 = vpop.f32.mrb[0].mxu0
      %828 = vmatprep.mubr.f32.mxu0 0.0
      %829 = vmatmul.mubr.f32.gmra.mrb[0].mxu0 %v657
      %v830 = vpop.f32.mrb[0].mxu0
      %v831 = vadd.f32 0.0, %v830
      %v832 = vpop.f32.mrb[0].mxu0
      %833 = vmatprep.mubr.f32.mxu0 0.0
      %834 = vmatmul.mubr.f32.gmra.mrb[0].mxu0 %v660
      %v835 = vpop.f32.mrb[0].mxu0
      %v836 = vadd.f32 0.0, %v835
      %v837 = vpop.f32.mrb[0].mxu0
      %838 = vmatprep.mubr.f32.mxu0 0.0
      %839 = vmatmul.mubr.f32.gmra.mrb[0].mxu0 %v663
      %v840 = vpop.f32.mrb[0].mxu0
      %v841 = vadd.f32 0.0, %v840
      %v842 = vpop.f32.mrb[0].mxu0
      %843 = vmatprep.mubr.f32.mxu0 0.0
      %844 = vmatmul.mubr.f32.gmra.mrb[0].mxu0 %v666
      %v845 = vpop.f32.mrb[0].mxu0
      %v846 = vadd.f32 0.0, %v845
      %v847 = vpop.f32.mrb[0].mxu0
      %848 = vmatprep.mubr.f32.mxu0 0.0
      %849 = vmatmul.mubr.f32.gmra.mrb[0].mxu0 %v669
      %v850 = vpop.f32.mrb[0].mxu0
      %v851 = vadd.f32 0.0, %v850
      %v852 = vpop.f32.mrb[0].mxu0
      %853 = vmatprep.mubr.f32.mxu0 0.0
      %854 = vmatmul.mubr.f32.gmra.mrb[0].mxu0 %v672
      %v855 = vpop.f32.mrb[0].mxu0
      %v856 = vadd.f32 0.0, %v855
      %v857 = vpop.f32.mrb[0].mxu0
      %858 = vmatprep.mubr.f32.mxu0 0.0
      %859 = vmatmul.mubr.f32.gmra.mrb[0].mxu0 %v675
      %v860 = vpop.f32.mrb[0].mxu0
      %v861 = vadd.f32 0.0, %v860
      %v862 = vpop.f32.mrb[0].mxu0
      %863 = vmatprep.mubr.f32.mxu0 0.0
      %864 = vmatmul.mubr.f32.gmra.mrb[0].mxu0 %v678
      %v865 = vpop.f32.mrb[0].mxu0
      %v866 = vadd.f32 0.0, %v865
      %v867 = vpop.f32.mrb[0].mxu0
      %868 = vmatprep.mubr.f32.mxu0 0.0
      %869 = vmatmul.mubr.f32.gmra.mrb[0].mxu0 %v681
      %v870 = vpop.f32.mrb[0].mxu0
      %v871 = vadd.f32 0.0, %v870
      %v872 = vpop.f32.mrb[0].mxu0
      %873 = vmatprep.mubr.f32.mxu0 0.0
      %874 = vmatmul.mubr.f32.gmra.mrb[0].mxu0 %v684
      %v875 = vpop.f32.mrb[0].mxu0
      %v876 = vadd.f32 0.0, %v875
      %v877 = vpop.f32.mrb[0].mxu0
      %878 = vmatprep.mubr.f32.mxu0 0.0
      %879 = vmatmul.mubr.f32.gmra.mrb[0].mxu0 %v687
      %v880 = vpop.f32.mrb[0].mxu0
      %v881 = vadd.f32 0.0, %v880
      %v882 = vpop.f32.mrb[0].mxu0
      %883 = vmatprep.mubr.f32.mxu0 0.0
      %884 = vmatmul.mubr.f32.gmra.mrb[0].mxu0 %v690
      %v885 = vpop.f32.mrb[0].mxu0
      %v886 = vadd.f32 0.0, %v885
      %v887 = vpop.f32.mrb[0].mxu0
      %888 = vmatprep.mubr.f32.mxu0 0.0
      %889 = vmatmul.mubr.f32.gmra.mrb[0].mxu0 %v693
      %v890 = vpop.f32.mrb[0].mxu0
      %v891 = vadd.f32 0.0, %v890
      %v892 = vpop.f32.mrb[0].mxu0
      %893 = vmatprep.mubr.f32.mxu0 0.0
      %894 = vmatmul.mubr.f32.gmra.mrb[0].mxu0 %v696
      %v895 = vpop.f32.mrb[0].mxu0
      %v896 = vadd.f32 0.0, %v895
      %v897 = vpop.f32.mrb[0].mxu0
      %898 = vmatprep.mubr.f32.mxu0 0.0
      %899 = vmatmul.mubr.f32.gmra.mrb[0].mxu0 %v699
      %v900 = vpop.f32.mrb[0].mxu0
      %v901 = vadd.f32 0.0, %v900
      %v902 = vpop.f32.mrb[0].mxu0
      %903 = vmatprep.mubr.f32.mxu0 0.0
      %904 = vmatmul.mubr.f32.gmra.mrb[0].mxu0 %v702
      %v905 = vpop.f32.mrb[0].mxu0
      %v906 = vadd.f32 0.0, %v905
      %v907 = vpop.f32.mrb[0].mxu0
      %908 = vmatprep.mubr.f32.mxu0 0.0
      %909 = vmatmul.mubr.f32.gmra.mrb[0].mxu0 %v705
      %v910 = vpop.f32.mrb[0].mxu0
      %v911 = vadd.f32 0.0, %v910
      %v912 = vpop.f32.mrb[0].mxu0
      %913 = vmatprep.mubr.f32.mxu0 0.0
      %914 = vmatmul.mubr.f32.gmra.mrb[0].mxu0 %v708
      %v915 = vpop.f32.mrb[0].mxu0
      %v916 = vadd.f32 0.0, %v915
      %v917 = vpop.f32.mrb[0].mxu0
      %918 = vmatprep.mubr.f32.mxu0 0.0
      %919 = vmatmul.mubr.f32.gmra.mrb[0].mxu0 %v711
      %v920 = vpop.f32.mrb[0].mxu0
      %v921 = vadd.f32 0.0, %v920
      %v922 = vpop.f32.mrb[0].mxu0
      %923 = vmatprep.mubr.f32.mxu0 0.0
      %924 = vmatmul.mubr.f32.gmra.mrb[0].mxu0 %v714
      %v925 = vpop.f32.mrb[0].mxu0
      %v926 = vadd.f32 0.0, %v925
      %v927 = vpop.f32.mrb[0].mxu0
      %928 = vmatprep.mubr.f32.mxu0 0.0
      %929 = vmatmul.mubr.f32.gmra.mrb[0].mxu0 %v717
      %v930 = vpop.f32.mrb[0].mxu0
      %v931 = vadd.f32 0.0, %v930
      %v932 = vpop.f32.mrb[0].mxu0
      %933 = vmatprep.mubr.f32.mxu0 0.0
      %934 = vmatmul.mubr.f32.gmra.mrb[0].mxu0 %v720
      %v935 = vpop.f32.mrb[0].mxu0
      %v936 = vadd.f32 0.0, %v935
      %v937 = vpop.f32.mrb[0].mxu0
      %938 = vmatprep.mubr.f32.mxu0 0.0
      %939 = vmatmul.mubr.f32.gmra.mrb[0].mxu0 %v723
      %v940 = vpop.f32.mrb[0].mxu0
      %v941 = vadd.f32 0.0, %v940
      %v942 = vpop.f32.mrb[0].mxu0
      %943 = vmatprep.mubr.f32.mxu0 0.0
      %944 = vmatmul.mubr.f32.gmra.mrb[0].mxu0 %v726
      %v945 = vpop.f32.mrb[0].mxu0
      %v946 = vadd.f32 0.0, %v945
      %v947 = vpop.f32.mrb[0].mxu0
      %948 = vmatprep.mubr.f32.mxu0 0.0
      %949 = vmatmul.mubr.f32.gmra.mrb[0].mxu0 %v729
      %v950 = vpop.f32.mrb[0].mxu0
      %v951 = vadd.f32 0.0, %v950
      %v952 = vpop.f32.mrb[0].mxu0
      %953 = vmatprep.mubr.f32.mxu0 0.0
      %954 = vmatmul.mubr.f32.gmra.mrb[0].mxu0 %v732
      %v955 = vpop.f32.mrb[0].mxu0
      %v956 = vadd.f32 0.0, %v955
      %v957 = vpop.f32.mrb[0].mxu0
      %958 = vmatprep.mubr.f32.mxu0 0.0
      %959 = vmatmul.mubr.f32.gmra.mrb[0].mxu0 %v735
      %v960 = vpop.f32.mrb[0].mxu0
      %v961 = vadd.f32 0.0, %v960
      %v962 = vpop.f32.mrb[0].mxu0
      %963 = vmatprep.mubr.f32.mxu0 0.0
      %964 = vmatmul.mubr.f32.gmra.mrb[0].mxu0 %v738
      %v965 = vpop.f32.mrb[0].mxu0
      %v966 = vadd.f32 0.0, %v965
      %v967 = vpop.f32.mrb[0].mxu0
      %968 = vdwg.mxu0
      %v970 = vsel %vm203, %v580, 0
      %v973 = vsel %vm203, %v581, 0
      %v976 = vsel %vm203, %v582, 0
      %v979 = vsel %vm203, %v583, 0
      %v982 = vsel %vm203, %v584, 0
      %v985 = vsel %vm203, %v585, 0
      %v988 = vsel %vm203, %v586, 0
      %v991 = vsel %vm203, %v587, 0
      %v994 = vsel %vm203, %v588, 0
      %v997 = vsel %vm203, %v589, 0
      %v1000 = vsel %vm203, %v590, 0
      %v1003 = vsel %vm203, %v591, 0
      %v1006 = vsel %vm203, %v592, 0
      %v1009 = vsel %vm203, %v593, 0
      %v1012 = vsel %vm203, %v594, 0
      %v1015 = vsel %vm203, %v595, 0
      %v1018 = vsel %vm203, %v596, 0
      %v1021 = vsel %vm203, %v597, 0
      %v1024 = vsel %vm203, %v598, 0
      %v1027 = vsel %vm203, %v599, 0
      %v1030 = vsel %vm203, %v600, 0
      %v1033 = vsel %vm203, %v601, 0
      %v1036 = vsel %vm203, %v602, 0
      %v1039 = vsel %vm203, %v603, 0
      %v1042 = vsel %vm203, %v604, 0
      %v1045 = vsel %vm203, %v605, 0
      %v1048 = vsel %vm203, %v606, 0
      %v1051 = vsel %vm203, %v607, 0
      %v1054 = vsel %vm203, %v608, 0
      %v1057 = vsel %vm203, %v609, 0
      %v1060 = vsel %vm203, %v610, 0
      %v1063 = vsel %vm203, %v611, 0
      %v1066 = vsel %vm740, %v254, 0
      %1068 = vmatprep.subr.mxu0 0.0
      %1069 = vmatpush1.msra.mxu0 %v253
      %1070 = vmatprep.subr.mxu0 0.0
      %1071 = vmatpush1.msra.mxu0 %v1066
      %1072 = vmatprep.subr.mxu0 0.0
      %1073 = vmatpush1.msra.mxu0 0.0
      %1074 = vmatprep.subr.mxu0 0.0
      %1075 = vmatpush1.msra.mxu0 0.0
      %1076 = vmatprep.subr.mxu0 0.0
      %1077 = vmatpush1.msra.mxu0 0.0
      %1078 = vmatprep.subr.mxu0 0.0
      %1079 = vmatpush1.msra.mxu0 0.0
      %1080 = vmatprep.subr.mxu0 0.0
      %1081 = vmatpush1.msra.mxu0 0.0
      %1082 = vmatprep.subr.mxu0 0.0
      %1083 = vmatpush1.msra.mxu0 0.0
      %1084 = vmatprep.subr.mxu0 0.0
      %1085 = vmatpush1.msra.mxu0 0.0
      %1086 = vmatprep.subr.mxu0 0.0
      %1087 = vmatpush1.msra.mxu0 0.0
      %1088 = vmatprep.subr.mxu0 0.0
      %1089 = vmatpush1.msra.mxu0 0.0
      %1090 = vmatprep.subr.mxu0 0.0
      %1091 = vmatpush1.msra.mxu0 0.0
      %1092 = vmatprep.subr.mxu0 0.0
      %1093 = vmatpush1.msra.mxu0 0.0
      %1094 = vmatprep.subr.mxu0 0.0
      %1095 = vmatpush1.msra.mxu0 0.0
      %1096 = vmatprep.subr.mxu0 0.0
      %1097 = vmatpush1.msra.mxu0 0.0
      %1098 = vmatprep.subr.mxu0 0.0
      %1099 = vmatpush1.msra.mxu0 0.0
      %1100 = vmatprep.subr.mxu0 0.0
      %1101 = vmatpush1.msra.mxu0 0.0
      %1102 = vmatprep.subr.mxu0 0.0
      %1103 = vmatpush1.msra.mxu0 0.0
      %1104 = vmatprep.subr.mxu0 0.0
      %1105 = vmatpush1.msra.mxu0 0.0
      %1106 = vmatprep.subr.mxu0 0.0
      %1107 = vmatpush1.msra.mxu0 0.0
      %1108 = vmatprep.subr.mxu0 0.0
      %1109 = vmatpush1.msra.mxu0 0.0
      %1110 = vmatprep.subr.mxu0 0.0
      %1111 = vmatpush1.msra.mxu0 0.0
      %1112 = vmatprep.subr.mxu0 0.0
      %1113 = vmatpush1.msra.mxu0 0.0
      %1114 = vmatprep.subr.mxu0 0.0
      %1115 = vmatpush1.msra.mxu0 0.0
      %1116 = vmatprep.subr.mxu0 0.0
      %1117 = vmatpush1.msra.mxu0 0.0
      %1118 = vmatprep.subr.mxu0 0.0
      %1119 = vmatpush1.msra.mxu0 0.0
      %1120 = vmatprep.subr.mxu0 0.0
      %1121 = vmatpush1.msra.mxu0 0.0
      %1122 = vmatprep.subr.mxu0 0.0
      %1123 = vmatpush1.msra.mxu0 0.0
      %1124 = vmatprep.subr.mxu0 0.0
      %1125 = vmatpush1.msra.mxu0 0.0
      %1126 = vmatprep.subr.mxu0 0.0
      %1127 = vmatpush1.msra.mxu0 0.0
      %1128 = vmatprep.subr.mxu0 0.0
      %1129 = vmatpush1.msra.mxu0 0.0
      %1130 = vmatprep.subr.mxu0 0.0
      %1131 = vmatpush1.msra.mxu0 0.0
      %1132 = vmatprep.mubr.f32.mxu0 0.0
      %1133 = vmatmul.mubr.f32.gmra.mrb[0].mxu0 %v970
      %v1134 = vpop.f32.mrb[0].mxu0
      %v1135 = vadd.f32 %v811, %v1134
      %v1136 = vpop.f32.mrb[0].mxu0
      %1137 = vmatprep.mubr.f32.mxu0 0.0
      %1138 = vmatmul.mubr.f32.gmra.mrb[0].mxu0 %v973
      %v1139 = vpop.f32.mrb[0].mxu0
      %v1140 = vadd.f32 %v816, %v1139
      %v1141 = vpop.f32.mrb[0].mxu0
      %1142 = vmatprep.mubr.f32.mxu0 0.0
      %1143 = vmatmul.mubr.f32.gmra.mrb[0].mxu0 %v976
      %v1144 = vpop.f32.mrb[0].mxu0
      %v1145 = vadd.f32 %v821, %v1144
      %v1146 = vpop.f32.mrb[0].mxu0
      %1147 = vmatprep.mubr.f32.mxu0 0.0
      %1148 = vmatmul.mubr.f32.gmra.mrb[0].mxu0 %v979
      %v1149 = vpop.f32.mrb[0].mxu0
      %v1150 = vadd.f32 %v826, %v1149
      %v1151 = vpop.f32.mrb[0].mxu0
      %1152 = vmatprep.mubr.f32.mxu0 0.0
      %1153 = vmatmul.mubr.f32.gmra.mrb[0].mxu0 %v982
      %v1154 = vpop.f32.mrb[0].mxu0
      %v1155 = vadd.f32 %v831, %v1154
      %v1156 = vpop.f32.mrb[0].mxu0
      %1157 = vmatprep.mubr.f32.mxu0 0.0
      %1158 = vmatmul.mubr.f32.gmra.mrb[0].mxu0 %v985
      %v1159 = vpop.f32.mrb[0].mxu0
      %v1160 = vadd.f32 %v836, %v1159
      %v1161 = vpop.f32.mrb[0].mxu0
      %1162 = vmatprep.mubr.f32.mxu0 0.0
      %1163 = vmatmul.mubr.f32.gmra.mrb[0].mxu0 %v988
      %v1164 = vpop.f32.mrb[0].mxu0
      %v1165 = vadd.f32 %v841, %v1164
      %v1166 = vpop.f32.mrb[0].mxu0
      %1167 = vmatprep.mubr.f32.mxu0 0.0
      %1168 = vmatmul.mubr.f32.gmra.mrb[0].mxu0 %v991
      %v1169 = vpop.f32.mrb[0].mxu0
      %v1170 = vadd.f32 %v846, %v1169
      %v1171 = vpop.f32.mrb[0].mxu0
      %1172 = vmatprep.mubr.f32.mxu0 0.0
      %1173 = vmatmul.mubr.f32.gmra.mrb[0].mxu0 %v994
      %v1174 = vpop.f32.mrb[0].mxu0
      %v1175 = vadd.f32 %v851, %v1174
      %v1176 = vpop.f32.mrb[0].mxu0
      %1177 = vmatprep.mubr.f32.mxu0 0.0
      %1178 = vmatmul.mubr.f32.gmra.mrb[0].mxu0 %v997
      %v1179 = vpop.f32.mrb[0].mxu0
      %v1180 = vadd.f32 %v856, %v1179
      %v1181 = vpop.f32.mrb[0].mxu0
      %1182 = vmatprep.mubr.f32.mxu0 0.0
      %1183 = vmatmul.mubr.f32.gmra.mrb[0].mxu0 %v1000
      %v1184 = vpop.f32.mrb[0].mxu0
      %v1185 = vadd.f32 %v861, %v1184
      %v1186 = vpop.f32.mrb[0].mxu0
      %1187 = vmatprep.mubr.f32.mxu0 0.0
      %1188 = vmatmul.mubr.f32.gmra.mrb[0].mxu0 %v1003
      %v1189 = vpop.f32.mrb[0].mxu0
      %v1190 = vadd.f32 %v866, %v1189
      %v1191 = vpop.f32.mrb[0].mxu0
      %1192 = vmatprep.mubr.f32.mxu0 0.0
      %1193 = vmatmul.mubr.f32.gmra.mrb[0].mxu0 %v1006
      %v1194 = vpop.f32.mrb[0].mxu0
      %v1195 = vadd.f32 %v871, %v1194
      %v1196 = vpop.f32.mrb[0].mxu0
      %1197 = vmatprep.mubr.f32.mxu0 0.0
      %1198 = vmatmul.mubr.f32.gmra.mrb[0].mxu0 %v1009
      %v1199 = vpop.f32.mrb[0].mxu0
      %v1200 = vadd.f32 %v876, %v1199
      %v1201 = vpop.f32.mrb[0].mxu0
      %1202 = vmatprep.mubr.f32.mxu0 0.0
      %1203 = vmatmul.mubr.f32.gmra.mrb[0].mxu0 %v1012
      %v1204 = vpop.f32.mrb[0].mxu0
      %v1205 = vadd.f32 %v881, %v1204
      %v1206 = vpop.f32.mrb[0].mxu0
      %1207 = vmatprep.mubr.f32.mxu0 0.0
      %1208 = vmatmul.mubr.f32.gmra.mrb[0].mxu0 %v1015
      %v1209 = vpop.f32.mrb[0].mxu0
      %v1210 = vadd.f32 %v886, %v1209
      %v1211 = vpop.f32.mrb[0].mxu0
      %1212 = vmatprep.mubr.f32.mxu0 0.0
      %1213 = vmatmul.mubr.f32.gmra.mrb[0].mxu0 %v1018
      %v1214 = vpop.f32.mrb[0].mxu0
      %v1215 = vadd.f32 %v891, %v1214
      %v1216 = vpop.f32.mrb[0].mxu0
      %1217 = vmatprep.mubr.f32.mxu0 0.0
      %1218 = vmatmul.mubr.f32.gmra.mrb[0].mxu0 %v1021
      %v1219 = vpop.f32.mrb[0].mxu0
      %v1220 = vadd.f32 %v896, %v1219
      %v1221 = vpop.f32.mrb[0].mxu0
      %1222 = vmatprep.mubr.f32.mxu0 0.0
      %1223 = vmatmul.mubr.f32.gmra.mrb[0].mxu0 %v1024
      %v1224 = vpop.f32.mrb[0].mxu0
      %v1225 = vadd.f32 %v901, %v1224
      %v1226 = vpop.f32.mrb[0].mxu0
      %1227 = vmatprep.mubr.f32.mxu0 0.0
      %1228 = vmatmul.mubr.f32.gmra.mrb[0].mxu0 %v1027
      %v1229 = vpop.f32.mrb[0].mxu0
      %v1230 = vadd.f32 %v906, %v1229
      %v1231 = vpop.f32.mrb[0].mxu0
      %1232 = vmatprep.mubr.f32.mxu0 0.0
      %1233 = vmatmul.mubr.f32.gmra.mrb[0].mxu0 %v1030
      %v1234 = vpop.f32.mrb[0].mxu0
      %v1235 = vadd.f32 %v911, %v1234
      %v1236 = vpop.f32.mrb[0].mxu0
      %1237 = vmatprep.mubr.f32.mxu0 0.0
      %1238 = vmatmul.mubr.f32.gmra.mrb[0].mxu0 %v1033
      %v1239 = vpop.f32.mrb[0].mxu0
      %v1240 = vadd.f32 %v916, %v1239
      %v1241 = vpop.f32.mrb[0].mxu0
      %1242 = vmatprep.mubr.f32.mxu0 0.0
      %1243 = vmatmul.mubr.f32.gmra.mrb[0].mxu0 %v1036
      %v1244 = vpop.f32.mrb[0].mxu0
      %v1245 = vadd.f32 %v921, %v1244
      %v1246 = vpop.f32.mrb[0].mxu0
      %1247 = vmatprep.mubr.f32.mxu0 0.0
      %1248 = vmatmul.mubr.f32.gmra.mrb[0].mxu0 %v1039
      %v1249 = vpop.f32.mrb[0].mxu0
      %v1250 = vadd.f32 %v926, %v1249
      %v1251 = vpop.f32.mrb[0].mxu0
      %1252 = vmatprep.mubr.f32.mxu0 0.0
      %1253 = vmatmul.mubr.f32.gmra.mrb[0].mxu0 %v1042
      %v1254 = vpop.f32.mrb[0].mxu0
      %v1255 = vadd.f32 %v931, %v1254
      %v1256 = vpop.f32.mrb[0].mxu0
      %1257 = vmatprep.mubr.f32.mxu0 0.0
      %1258 = vmatmul.mubr.f32.gmra.mrb[0].mxu0 %v1045
      %v1259 = vpop.f32.mrb[0].mxu0
      %v1260 = vadd.f32 %v936, %v1259
      %v1261 = vpop.f32.mrb[0].mxu0
      %1262 = vmatprep.mubr.f32.mxu0 0.0
      %1263 = vmatmul.mubr.f32.gmra.mrb[0].mxu0 %v1048
      %v1264 = vpop.f32.mrb[0].mxu0
      %v1265 = vadd.f32 %v941, %v1264
      %v1266 = vpop.f32.mrb[0].mxu0
      %1267 = vmatprep.mubr.f32.mxu0 0.0
      %1268 = vmatmul.mubr.f32.gmra.mrb[0].mxu0 %v1051
      %v1269 = vpop.f32.mrb[0].mxu0
      %v1270 = vadd.f32 %v946, %v1269
      %v1271 = vpop.f32.mrb[0].mxu0
      %1272 = vmatprep.mubr.f32.mxu0 0.0
      %1273 = vmatmul.mubr.f32.gmra.mrb[0].mxu0 %v1054
      %v1274 = vpop.f32.mrb[0].mxu0
      %v1275 = vadd.f32 %v951, %v1274
      %v1276 = vpop.f32.mrb[0].mxu0
      %1277 = vmatprep.mubr.f32.mxu0 0.0
      %1278 = vmatmul.mubr.f32.gmra.mrb[0].mxu0 %v1057
      %v1279 = vpop.f32.mrb[0].mxu0
      %v1280 = vadd.f32 %v956, %v1279
      %v1281 = vpop.f32.mrb[0].mxu0
      %1282 = vmatprep.mubr.f32.mxu0 0.0
      %1283 = vmatmul.mubr.f32.gmra.mrb[0].mxu0 %v1060
      %v1284 = vpop.f32.mrb[0].mxu0
      %v1285 = vadd.f32 %v961, %v1284
      %v1286 = vpop.f32.mrb[0].mxu0
      %1287 = vmatprep.mubr.f32.mxu0 0.0
      %1288 = vmatmul.mubr.f32.gmra.mrb[0].mxu0 %v1063
      %v1289 = vpop.f32.mrb[0].mxu0
      %v1290 = vadd.f32 %v966, %v1289
      %v1291 = vpop.f32.mrb[0].mxu0
      %1292 = vdwg.mxu0
      %v1293 = vld [vmem:[#allocation2 + $0x2] sm:$0xff]
      %v1294 = vld [vmem:[#allocation2 + $0xa] sm:$0xff]
      %v1295 = vld [vmem:[#allocation2 + $0x1a] sm:$0xff]
      %v1296 = vld [vmem:[#allocation2 + $0x22] sm:$0xff]
      %v1297 = vld [vmem:[#allocation2 + $0x32] sm:$0xff]
      %v1298 = vld [vmem:[#allocation2 + $0x3a] sm:$0xff]
      %v1299 = vld [vmem:[#allocation2 + $0x4a] sm:$0xff]
      %v1300 = vld [vmem:[#allocation2 + $0x52] sm:$0xff]
      %v1301 = vld [vmem:[#allocation2 + $0x62] sm:$0xff]
      %v1302 = vld [vmem:[#allocation2 + $0x6a] sm:$0xff]
      %v1303 = vld [vmem:[#allocation2 + $0x7a] sm:$0xff]
      %v1304 = vld [vmem:[#allocation2 + $0x82] sm:$0xff]
      %v1305 = vld [vmem:[#allocation2 + $0x92] sm:$0xff]
      %v1306 = vld [vmem:[#allocation2 + $0x9a] sm:$0xff]
      %v1307 = vld [vmem:[#allocation2 + $0xaa] sm:$0xff]
      %v1308 = vld [vmem:[#allocation2 + $0xb2] sm:$0xff]
      %v1309 = vld [vmem:[#allocation2 + $0xc2] sm:$0xff]
      %v1310 = vld [vmem:[#allocation2 + $0xca] sm:$0xff]
      %v1311 = vld [vmem:[#allocation2 + $0xda] sm:$0xff]
      %v1312 = vld [vmem:[#allocation2 + $0xe2] sm:$0xff]
      %v1313 = vld [vmem:[#allocation2 + $0xf2] sm:$0xff]
      %v1314 = vld [vmem:[#allocation2 + $0xfa] sm:$0xff]
      %v1315 = vld [vmem:[#allocation2 + $0x10a] sm:$0xff]
      %v1316 = vld [vmem:[#allocation2 + $0x112] sm:$0xff]
      %v1317 = vld [vmem:[#allocation2 + $0x122] sm:$0xff]
      %v1318 = vld [vmem:[#allocation2 + $0x12a] sm:$0xff]
      %v1319 = vld [vmem:[#allocation2 + $0x13a] sm:$0xff]
      %v1320 = vld [vmem:[#allocation2 + $0x142] sm:$0xff]
      %v1321 = vld [vmem:[#allocation2 + $0x152] sm:$0xff]
      %v1322 = vld [vmem:[#allocation2 + $0x15a] sm:$0xff]
      %v1323 = vld [vmem:[#allocation2 + $0x16a] sm:$0xff]
      %v1324 = vld [vmem:[#allocation2 + $0x172] sm:$0xff]
      %v1326 = vsel %vm203, %v1293, 0
      %v1329 = vsel %vm203, %v1294, 0
      %v1332 = vsel %vm203, %v1295, 0
      %v1335 = vsel %vm203, %v1296, 0
      %v1338 = vsel %vm203, %v1297, 0
      %v1341 = vsel %vm203, %v1298, 0
      %v1344 = vsel %vm203, %v1299, 0
      %v1347 = vsel %vm203, %v1300, 0
      %v1350 = vsel %vm203, %v1301, 0
      %v1353 = vsel %vm203, %v1302, 0
      %v1356 = vsel %vm203, %v1303, 0
      %v1359 = vsel %vm203, %v1304, 0
      %v1362 = vsel %vm203, %v1305, 0
      %v1365 = vsel %vm203, %v1306, 0
      %v1368 = vsel %vm203, %v1307, 0
      %v1371 = vsel %vm203, %v1308, 0
      %v1374 = vsel %vm203, %v1309, 0
      %v1377 = vsel %vm203, %v1310, 0
      %v1380 = vsel %vm203, %v1311, 0
      %v1383 = vsel %vm203, %v1312, 0
      %v1386 = vsel %vm203, %v1313, 0
      %v1389 = vsel %vm203, %v1314, 0
      %v1392 = vsel %vm203, %v1315, 0
      %v1395 = vsel %vm203, %v1316, 0
      %v1398 = vsel %vm203, %v1317, 0
      %v1401 = vsel %vm203, %v1318, 0
      %v1404 = vsel %vm203, %v1319, 0
      %v1407 = vsel %vm203, %v1320, 0
      %v1410 = vsel %vm203, %v1321, 0
      %v1413 = vsel %vm203, %v1322, 0
      %v1416 = vsel %vm203, %v1323, 0
      %v1419 = vsel %vm203, %v1324, 0
      %v1422 = vsel %vm740, %v258, 0
      %1424 = vmatprep.subr.mxu0 0.0
      %1425 = vmatpush1.msra.mxu0 %v257
      %1426 = vmatprep.subr.mxu0 0.0
      %1427 = vmatpush1.msra.mxu0 %v1422
      %1428 = vmatprep.subr.mxu0 0.0
      %1429 = vmatpush1.msra.mxu0 0.0
      %1430 = vmatprep.subr.mxu0 0.0
      %1431 = vmatpush1.msra.mxu0 0.0
      %1432 = vmatprep.subr.mxu0 0.0
      %1433 = vmatpush1.msra.mxu0 0.0
      %1434 = vmatprep.subr.mxu0 0.0
      %1435 = vmatpush1.msra.mxu0 0.0
      %1436 = vmatprep.subr.mxu0 0.0
      %1437 = vmatpush1.msra.mxu0 0.0
      %1438 = vmatprep.subr.mxu0 0.0
      %1439 = vmatpush1.msra.mxu0 0.0
      %1440 = vmatprep.subr.mxu0 0.0
      %1441 = vmatpush1.msra.mxu0 0.0
      %1442 = vmatprep.subr.mxu0 0.0
      %1443 = vmatpush1.msra.mxu0 0.0
      %1444 = vmatprep.subr.mxu0 0.0
      %1445 = vmatpush1.msra.mxu0 0.0
      %1446 = vmatprep.subr.mxu0 0.0
      %1447 = vmatpush1.msra.mxu0 0.0
      %1448 = vmatprep.subr.mxu0 0.0
      %1449 = vmatpush1.msra.mxu0 0.0
      %1450 = vmatprep.subr.mxu0 0.0
      %1451 = vmatpush1.msra.mxu0 0.0
      %1452 = vmatprep.subr.mxu0 0.0
      %1453 = vmatpush1.msra.mxu0 0.0
      %1454 = vmatprep.subr.mxu0 0.0
      %1455 = vmatpush1.msra.mxu0 0.0
      %1456 = vmatprep.subr.mxu0 0.0
      %1457 = vmatpush1.msra.mxu0 0.0
      %1458 = vmatprep.subr.mxu0 0.0
      %1459 = vmatpush1.msra.mxu0 0.0
      %1460 = vmatprep.subr.mxu0 0.0
      %1461 = vmatpush1.msra.mxu0 0.0
      %1462 = vmatprep.subr.mxu0 0.0
      %1463 = vmatpush1.msra.mxu0 0.0
      %1464 = vmatprep.subr.mxu0 0.0
      %1465 = vmatpush1.msra.mxu0 0.0
      %1466 = vmatprep.subr.mxu0 0.0
      %1467 = vmatpush1.msra.mxu0 0.0
      %1468 = vmatprep.subr.mxu0 0.0
      %1469 = vmatpush1.msra.mxu0 0.0
      %1470 = vmatprep.subr.mxu0 0.0
      %1471 = vmatpush1.msra.mxu0 0.0
      %1472 = vmatprep.subr.mxu0 0.0
      %1473 = vmatpush1.msra.mxu0 0.0
      %1474 = vmatprep.subr.mxu0 0.0
      %1475 = vmatpush1.msra.mxu0 0.0
      %1476 = vmatprep.subr.mxu0 0.0
      %1477 = vmatpush1.msra.mxu0 0.0
      %1478 = vmatprep.subr.mxu0 0.0
      %1479 = vmatpush1.msra.mxu0 0.0
      %1480 = vmatprep.subr.mxu0 0.0
      %1481 = vmatpush1.msra.mxu0 0.0
      %1482 = vmatprep.subr.mxu0 0.0
      %1483 = vmatpush1.msra.mxu0 0.0
      %1484 = vmatprep.subr.mxu0 0.0
      %1485 = vmatpush1.msra.mxu0 0.0
      %1486 = vmatprep.subr.mxu0 0.0
      %1487 = vmatpush1.msra.mxu0 0.0
      %1488 = vmatprep.mubr.f32.mxu0 0.0
      %1489 = vmatmul.mubr.f32.gmra.mrb[0].mxu0 %v1326
      %v1490 = vpop.f32.mrb[0].mxu0
      %v1491 = vadd.f32 0.0, %v1490
      %v1492 = vpop.f32.mrb[0].mxu0
      %1493 = vmatprep.mubr.f32.mxu0 0.0
      %1494 = vmatmul.mubr.f32.gmra.mrb[0].mxu0 %v1329
      %v1495 = vpop.f32.mrb[0].mxu0
      %v1496 = vadd.f32 0.0, %v1495
      %v1497 = vpop.f32.mrb[0].mxu0
      %1498 = vmatprep.mubr.f32.mxu0 0.0
      %1499 = vmatmul.mubr.f32.gmra.mrb[0].mxu0 %v1332
      %v1500 = vpop.f32.mrb[0].mxu0
      %v1501 = vadd.f32 0.0, %v1500
      %v1502 = vpop.f32.mrb[0].mxu0
      %1503 = vmatprep.mubr.f32.mxu0 0.0
      %1504 = vmatmul.mubr.f32.gmra.mrb[0].mxu0 %v1335
      %v1505 = vpop.f32.mrb[0].mxu0
      %v1506 = vadd.f32 0.0, %v1505
      %v1507 = vpop.f32.mrb[0].mxu0
      %1508 = vmatprep.mubr.f32.mxu0 0.0
      %1509 = vmatmul.mubr.f32.gmra.mrb[0].mxu0 %v1338
      %v1510 = vpop.f32.mrb[0].mxu0
      %v1511 = vadd.f32 0.0, %v1510
      %v1512 = vpop.f32.mrb[0].mxu0
      %1513 = vmatprep.mubr.f32.mxu0 0.0
      %1514 = vmatmul.mubr.f32.gmra.mrb[0].mxu0 %v1341
      %v1515 = vpop.f32.mrb[0].mxu0
      %v1516 = vadd.f32 0.0, %v1515
      %v1517 = vpop.f32.mrb[0].mxu0
      %1518 = vmatprep.mubr.f32.mxu0 0.0
      %1519 = vmatmul.mubr.f32.gmra.mrb[0].mxu0 %v1344
      %v1520 = vpop.f32.mrb[0].mxu0
      %v1521 = vadd.f32 0.0, %v1520
      %v1522 = vpop.f32.mrb[0].mxu0
      %1523 = vmatprep.mubr.f32.mxu0 0.0
      %1524 = vmatmul.mubr.f32.gmra.mrb[0].mxu0 %v1347
      %v1525 = vpop.f32.mrb[0].mxu0
      %v1526 = vadd.f32 0.0, %v1525
      %v1527 = vpop.f32.mrb[0].mxu0
      %1528 = vmatprep.mubr.f32.mxu0 0.0
      %1529 = vmatmul.mubr.f32.gmra.mrb[0].mxu0 %v1350
      %v1530 = vpop.f32.mrb[0].mxu0
      %v1531 = vadd.f32 0.0, %v1530
      %v1532 = vpop.f32.mrb[0].mxu0
      %1533 = vmatprep.mubr.f32.mxu0 0.0
      %1534 = vmatmul.mubr.f32.gmra.mrb[0].mxu0 %v1353
      %v1535 = vpop.f32.mrb[0].mxu0
      %v1536 = vadd.f32 0.0, %v1535
      %v1537 = vpop.f32.mrb[0].mxu0
      %1538 = vmatprep.mubr.f32.mxu0 0.0
      %1539 = vmatmul.mubr.f32.gmra.mrb[0].mxu0 %v1356
      %v1540 = vpop.f32.mrb[0].mxu0
      %v1541 = vadd.f32 0.0, %v1540
      %v1542 = vpop.f32.mrb[0].mxu0
      %1543 = vmatprep.mubr.f32.mxu0 0.0
      %1544 = vmatmul.mubr.f32.gmra.mrb[0].mxu0 %v1359
      %v1545 = vpop.f32.mrb[0].mxu0
      %v1546 = vadd.f32 0.0, %v1545
      %v1547 = vpop.f32.mrb[0].mxu0
      %1548 = vmatprep.mubr.f32.mxu0 0.0
      %1549 = vmatmul.mubr.f32.gmra.mrb[0].mxu0 %v1362
      %v1550 = vpop.f32.mrb[0].mxu0
      %v1551 = vadd.f32 0.0, %v1550
      %v1552 = vpop.f32.mrb[0].mxu0
      %1553 = vmatprep.mubr.f32.mxu0 0.0
      %1554 = vmatmul.mubr.f32.gmra.mrb[0].mxu0 %v1365
      %v1555 = vpop.f32.mrb[0].mxu0
      %v1556 = vadd.f32 0.0, %v1555
      %v1557 = vpop.f32.mrb[0].mxu0
      %1558 = vmatprep.mubr.f32.mxu0 0.0
      %1559 = vmatmul.mubr.f32.gmra.mrb[0].mxu0 %v1368
      %v1560 = vpop.f32.mrb[0].mxu0
      %v1561 = vadd.f32 0.0, %v1560
      %v1562 = vpop.f32.mrb[0].mxu0
      %1563 = vmatprep.mubr.f32.mxu0 0.0
      %1564 = vmatmul.mubr.f32.gmra.mrb[0].mxu0 %v1371
      %v1565 = vpop.f32.mrb[0].mxu0
      %v1566 = vadd.f32 0.0, %v1565
      %v1567 = vpop.f32.mrb[0].mxu0
      %1568 = vmatprep.mubr.f32.mxu0 0.0
      %1569 = vmatmul.mubr.f32.gmra.mrb[0].mxu0 %v1374
      %v1570 = vpop.f32.mrb[0].mxu0
      %v1571 = vadd.f32 0.0, %v1570
      %v1572 = vpop.f32.mrb[0].mxu0
      %1573 = vmatprep.mubr.f32.mxu0 0.0
      %1574 = vmatmul.mubr.f32.gmra.mrb[0].mxu0 %v1377
      %v1575 = vpop.f32.mrb[0].mxu0
      %v1576 = vadd.f32 0.0, %v1575
      %v1577 = vpop.f32.mrb[0].mxu0
      %1578 = vmatprep.mubr.f32.mxu0 0.0
      %1579 = vmatmul.mubr.f32.gmra.mrb[0].mxu0 %v1380
      %v1580 = vpop.f32.mrb[0].mxu0
      %v1581 = vadd.f32 0.0, %v1580
      %v1582 = vpop.f32.mrb[0].mxu0
      %1583 = vmatprep.mubr.f32.mxu0 0.0
      %1584 = vmatmul.mubr.f32.gmra.mrb[0].mxu0 %v1383
      %v1585 = vpop.f32.mrb[0].mxu0
      %v1586 = vadd.f32 0.0, %v1585
      %v1587 = vpop.f32.mrb[0].mxu0
      %1588 = vmatprep.mubr.f32.mxu0 0.0
      %1589 = vmatmul.mubr.f32.gmra.mrb[0].mxu0 %v1386
      %v1590 = vpop.f32.mrb[0].mxu0
      %v1591 = vadd.f32 0.0, %v1590
      %v1592 = vpop.f32.mrb[0].mxu0
      %1593 = vmatprep.mubr.f32.mxu0 0.0
      %1594 = vmatmul.mubr.f32.gmra.mrb[0].mxu0 %v1389
      %v1595 = vpop.f32.mrb[0].mxu0
      %v1596 = vadd.f32 0.0, %v1595
      %v1597 = vpop.f32.mrb[0].mxu0
      %1598 = vmatprep.mubr.f32.mxu0 0.0
      %1599 = vmatmul.mubr.f32.gmra.mrb[0].mxu0 %v1392
      %v1600 = vpop.f32.mrb[0].mxu0
      %v1601 = vadd.f32 0.0, %v1600
      %v1602 = vpop.f32.mrb[0].mxu0
      %1603 = vmatprep.mubr.f32.mxu0 0.0
      %1604 = vmatmul.mubr.f32.gmra.mrb[0].mxu0 %v1395
      %v1605 = vpop.f32.mrb[0].mxu0
      %v1606 = vadd.f32 0.0, %v1605
      %v1607 = vpop.f32.mrb[0].mxu0
      %1608 = vmatprep.mubr.f32.mxu0 0.0
      %1609 = vmatmul.mubr.f32.gmra.mrb[0].mxu0 %v1398
      %v1610 = vpop.f32.mrb[0].mxu0
      %v1611 = vadd.f32 0.0, %v1610
      %v1612 = vpop.f32.mrb[0].mxu0
      %1613 = vmatprep.mubr.f32.mxu0 0.0
      %1614 = vmatmul.mubr.f32.gmra.mrb[0].mxu0 %v1401
      %v1615 = vpop.f32.mrb[0].mxu0
      %v1616 = vadd.f32 0.0, %v1615
      %v1617 = vpop.f32.mrb[0].mxu0
      %1618 = vmatprep.mubr.f32.mxu0 0.0
      %1619 = vmatmul.mubr.f32.gmra.mrb[0].mxu0 %v1404
      %v1620 = vpop.f32.mrb[0].mxu0
      %v1621 = vadd.f32 0.0, %v1620
      %v1622 = vpop.f32.mrb[0].mxu0
      %1623 = vmatprep.mubr.f32.mxu0 0.0
      %1624 = vmatmul.mubr.f32.gmra.mrb[0].mxu0 %v1407
      %v1625 = vpop.f32.mrb[0].mxu0
      %v1626 = vadd.f32 0.0, %v1625
      %v1627 = vpop.f32.mrb[0].mxu0
      %1628 = vmatprep.mubr.f32.mxu0 0.0
      %1629 = vmatmul.mubr.f32.gmra.mrb[0].mxu0 %v1410
      %v1630 = vpop.f32.mrb[0].mxu0
      %v1631 = vadd.f32 0.0, %v1630
      %v1632 = vpop.f32.mrb[0].mxu0
      %1633 = vmatprep.mubr.f32.mxu0 0.0
      %1634 = vmatmul.mubr.f32.gmra.mrb[0].mxu0 %v1413
      %v1635 = vpop.f32.mrb[0].mxu0
      %v1636 = vadd.f32 0.0, %v1635
      %v1637 = vpop.f32.mrb[0].mxu0
      %1638 = vmatprep.mubr.f32.mxu0 0.0
      %1639 = vmatmul.mubr.f32.gmra.mrb[0].mxu0 %v1416
      %v1640 = vpop.f32.mrb[0].mxu0
      %v1641 = vadd.f32 0.0, %v1640
      %v1642 = vpop.f32.mrb[0].mxu0
      %1643 = vmatprep.mubr.f32.mxu0 0.0
      %1644 = vmatmul.mubr.f32.gmra.mrb[0].mxu0 %v1419
      %v1645 = vpop.f32.mrb[0].mxu0
      %v1646 = vadd.f32 0.0, %v1645
      %v1647 = vpop.f32.mrb[0].mxu0
      %1648 = vdwg.mxu0
      %v1649 = vadd.f32 %v1135, %v1491
      %v1650 = vadd.f32 %v1140, %v1496
      %v1651 = vadd.f32 %v1145, %v1501
      %v1652 = vadd.f32 %v1150, %v1506
      %v1653 = vadd.f32 %v1155, %v1511
      %v1654 = vadd.f32 %v1160, %v1516
      %v1655 = vadd.f32 %v1165, %v1521
      %v1656 = vadd.f32 %v1170, %v1526
      %v1657 = vadd.f32 %v1175, %v1531
      %v1658 = vadd.f32 %v1180, %v1536
      %v1659 = vadd.f32 %v1185, %v1541
      %v1660 = vadd.f32 %v1190, %v1546
      %v1661 = vadd.f32 %v1195, %v1551
      %v1662 = vadd.f32 %v1200, %v1556
      %v1663 = vadd.f32 %v1205, %v1561
      %v1664 = vadd.f32 %v1210, %v1566
      %v1665 = vadd.f32 %v1215, %v1571
      %v1666 = vadd.f32 %v1220, %v1576
      %v1667 = vadd.f32 %v1225, %v1581
      %v1668 = vadd.f32 %v1230, %v1586
      %v1669 = vadd.f32 %v1235, %v1591
      %v1670 = vadd.f32 %v1240, %v1596
      %v1671 = vadd.f32 %v1245, %v1601
      %v1672 = vadd.f32 %v1250, %v1606
      %v1673 = vadd.f32 %v1255, %v1611
      %v1674 = vadd.f32 %v1260, %v1616
      %v1675 = vadd.f32 %v1265, %v1621
      %v1676 = vadd.f32 %v1270, %v1626
      %v1677 = vadd.f32 %v1275, %v1631
      %v1678 = vadd.f32 %v1280, %v1636
      %v1679 = vadd.f32 %v1285, %v1641
      %v1680 = vadd.f32 %v1290, %v1646
      %v1682 = vlaneseq
      %v1683 = vshrl.u32 %v1682, 7
      %v1684 = vsub.s32 0, %v1683
      %v1685 = vrot.slane %v259, %v1684
      %v1687 = vadd.f32 %v1649, %v1685
      %v1688 = vadd.f32 %v1650, %v1685
      %v1689 = vadd.f32 %v1651, %v1685
      %v1690 = vadd.f32 %v1652, %v1685
      %v1691 = vadd.f32 %v1653, %v1685
      %v1692 = vadd.f32 %v1654, %v1685
      %v1693 = vadd.f32 %v1655, %v1685
      %v1694 = vadd.f32 %v1656, %v1685
      %v1695 = vadd.f32 %v1657, %v1685
      %v1696 = vadd.f32 %v1658, %v1685
      %v1697 = vadd.f32 %v1659, %v1685
      %v1698 = vadd.f32 %v1660, %v1685
      %v1699 = vadd.f32 %v1661, %v1685
      %v1700 = vadd.f32 %v1662, %v1685
      %v1701 = vadd.f32 %v1663, %v1685
      %v1702 = vadd.f32 %v1664, %v1685
      %v1703 = vadd.f32 %v1665, %v1685
      %v1704 = vadd.f32 %v1666, %v1685
      %v1705 = vadd.f32 %v1667, %v1685
      %v1706 = vadd.f32 %v1668, %v1685
      %v1707 = vadd.f32 %v1669, %v1685
      %v1708 = vadd.f32 %v1670, %v1685
      %v1709 = vadd.f32 %v1671, %v1685
      %v1710 = vadd.f32 %v1672, %v1685
      %v1711 = vadd.f32 %v1673, %v1685
      %v1712 = vadd.f32 %v1674, %v1685
      %v1713 = vadd.f32 %v1675, %v1685
      %v1714 = vadd.f32 %v1676, %v1685
      %v1715 = vadd.f32 %v1677, %v1685
      %v1716 = vadd.f32 %v1678, %v1685
      %v1717 = vadd.f32 %v1679, %v1685
      %v1718 = vadd.f32 %v1680, %v1685
      %v1719 = vmax.f32 %v1687, 0.0
      %v1720 = vmax.f32 %v1688, 0.0
      %v1721 = vmax.f32 %v1689, 0.0
      %v1722 = vmax.f32 %v1690, 0.0
      %v1723 = vmax.f32 %v1691, 0.0
      %v1724 = vmax.f32 %v1692, 0.0
      %v1725 = vmax.f32 %v1693, 0.0
      %v1726 = vmax.f32 %v1694, 0.0
      %v1727 = vmax.f32 %v1695, 0.0
      %v1728 = vmax.f32 %v1696, 0.0
      %v1729 = vmax.f32 %v1697, 0.0
      %v1730 = vmax.f32 %v1698, 0.0
      %v1731 = vmax.f32 %v1699, 0.0
      %v1732 = vmax.f32 %v1700, 0.0
      %v1733 = vmax.f32 %v1701, 0.0
      %v1734 = vmax.f32 %v1702, 0.0
      %v1735 = vmax.f32 %v1703, 0.0
      %v1736 = vmax.f32 %v1704, 0.0
      %v1737 = vmax.f32 %v1705, 0.0
      %v1738 = vmax.f32 %v1706, 0.0
      %v1739 = vmax.f32 %v1707, 0.0
      %v1740 = vmax.f32 %v1708, 0.0
      %v1741 = vmax.f32 %v1709, 0.0
      %v1742 = vmax.f32 %v1710, 0.0
      %v1743 = vmax.f32 %v1711, 0.0
      %v1744 = vmax.f32 %v1712, 0.0
      %v1745 = vmax.f32 %v1713, 0.0
      %v1746 = vmax.f32 %v1714, 0.0
      %v1747 = vmax.f32 %v1715, 0.0
      %v1748 = vmax.f32 %v1716, 0.0
      %v1749 = vmax.f32 %v1717, 0.0
      %v1750 = vmax.f32 %v1718, 0.0
      %v1751 = vadd.f32 %v171, %v1719
      %v1752 = vadd.f32 %v172, %v1720
      %v1753 = vadd.f32 %v173, %v1721
      %v1754 = vadd.f32 %v174, %v1722
      %v1755 = vadd.f32 %v175, %v1723
      %v1756 = vadd.f32 %v176, %v1724
      %v1757 = vadd.f32 %v177, %v1725
      %v1758 = vadd.f32 %v178, %v1726
      %v1759 = vadd.f32 %v179, %v1727
      %v1760 = vadd.f32 %v180, %v1728
      %v1761 = vadd.f32 %v181, %v1729
      %v1762 = vadd.f32 %v182, %v1730
      %v1763 = vadd.f32 %v183, %v1731
      %v1764 = vadd.f32 %v184, %v1732
      %v1765 = vadd.f32 %v185, %v1733
      %v1766 = vadd.f32 %v186, %v1734
      %v1767 = vadd.f32 %v187, %v1735
      %v1768 = vadd.f32 %v188, %v1736
      %v1769 = vadd.f32 %v189, %v1737
      %v1770 = vadd.f32 %v190, %v1738
      %v1771 = vadd.f32 %v191, %v1739
      %v1772 = vadd.f32 %v192, %v1740
      %v1773 = vadd.f32 %v193, %v1741
      %v1774 = vadd.f32 %v194, %v1742
      %v1775 = vadd.f32 %v195, %v1743
      %v1776 = vadd.f32 %v196, %v1744
      %v1777 = vadd.f32 %v197, %v1745
      %v1778 = vadd.f32 %v198, %v1746
      %v1779 = vadd.f32 %v199, %v1747
      %v1780 = vadd.f32 %v200, %v1748
      %v1781 = vadd.f32 %v201, %v1749
      %v1782 = vadd.f32 %v202, %v1750
      %1815 = vrot.lane.b32.xlu0 %v1751, 4
      %v1816 = vpop.permute.xlu0 %1815
      %1817 = vrot.lane.b32.xlu0 %v1752, 4
      %v1818 = vpop.permute.xlu0 %1817
      %1819 = vrot.lane.b32.xlu0 %v1753, 4
      %v1820 = vpop.permute.xlu0 %1819
      %1821 = vrot.lane.b32.xlu0 %v1754, 4
      %v1822 = vpop.permute.xlu0 %1821
      %1823 = vrot.lane.b32.xlu0 %v1755, 4
      %v1824 = vpop.permute.xlu0 %1823
      %1825 = vrot.lane.b32.xlu0 %v1756, 4
      %v1826 = vpop.permute.xlu0 %1825
      %1827 = vrot.lane.b32.xlu0 %v1757, 4
      %v1828 = vpop.permute.xlu0 %1827
      %1829 = vrot.lane.b32.xlu0 %v1758, 4
      %v1830 = vpop.permute.xlu0 %1829
      %1831 = vrot.lane.b32.xlu0 %v1759, 4
      %v1832 = vpop.permute.xlu0 %1831
      %1833 = vrot.lane.b32.xlu0 %v1760, 4
      %v1834 = vpop.permute.xlu0 %1833
      %1835 = vrot.lane.b32.xlu0 %v1761, 4
      %v1836 = vpop.permute.xlu0 %1835
      %1837 = vrot.lane.b32.xlu0 %v1762, 4
      %v1838 = vpop.permute.xlu0 %1837
      %1839 = vrot.lane.b32.xlu0 %v1763, 4
      %v1840 = vpop.permute.xlu0 %1839
      %1841 = vrot.lane.b32.xlu0 %v1764, 4
      %v1842 = vpop.permute.xlu0 %1841
      %1843 = vrot.lane.b32.xlu0 %v1765, 4
      %v1844 = vpop.permute.xlu0 %1843
      %1845 = vrot.lane.b32.xlu0 %v1766, 4
      %v1846 = vpop.permute.xlu0 %1845
      %1847 = vrot.lane.b32.xlu0 %v1767, 4
      %v1848 = vpop.permute.xlu0 %1847
      %1849 = vrot.lane.b32.xlu0 %v1768, 4
      %v1850 = vpop.permute.xlu0 %1849
      %1851 = vrot.lane.b32.xlu0 %v1769, 4
      %v1852 = vpop.permute.xlu0 %1851
      %1853 = vrot.lane.b32.xlu0 %v1770, 4
      %v1854 = vpop.permute.xlu0 %1853
      %1855 = vrot.lane.b32.xlu0 %v1771, 4
      %v1856 = vpop.permute.xlu0 %1855
      %1857 = vrot.lane.b32.xlu0 %v1772, 4
      %v1858 = vpop.permute.xlu0 %1857
      %1859 = vrot.lane.b32.xlu0 %v1773, 4
      %v1860 = vpop.permute.xlu0 %1859
      %1861 = vrot.lane.b32.xlu0 %v1774, 4
      %v1862 = vpop.permute.xlu0 %1861
      %1863 = vrot.lane.b32.xlu0 %v1775, 4
      %v1864 = vpop.permute.xlu0 %1863
      %1865 = vrot.lane.b32.xlu0 %v1776, 4
      %v1866 = vpop.permute.xlu0 %1865
      %1867 = vrot.lane.b32.xlu0 %v1777, 4
      %v1868 = vpop.permute.xlu0 %1867
      %1869 = vrot.lane.b32.xlu0 %v1778, 4
      %v1870 = vpop.permute.xlu0 %1869
      %1871 = vrot.lane.b32.xlu0 %v1779, 4
      %v1872 = vpop.permute.xlu0 %1871
      %1873 = vrot.lane.b32.xlu0 %v1780, 4
      %v1874 = vpop.permute.xlu0 %1873
      %1875 = vrot.lane.b32.xlu0 %v1781, 4
      %v1876 = vpop.permute.xlu0 %1875
      %1877 = vrot.lane.b32.xlu0 %v1782, 4
      %v1878 = vpop.permute.xlu0 %1877
      %1911 = vrot.lane.b32.xlu0 %v1753, 8
      %v1912 = vpop.permute.xlu0 %1911
      %1913 = vrot.lane.b32.xlu0 %v1754, 8
      %v1914 = vpop.permute.xlu0 %1913
      %1915 = vrot.lane.b32.xlu0 %v1755, 8
      %v1916 = vpop.permute.xlu0 %1915
      %1917 = vrot.lane.b32.xlu0 %v1756, 8
      %v1918 = vpop.permute.xlu0 %1917
      %1919 = vrot.lane.b32.xlu0 %v1757, 8
      %v1920 = vpop.permute.xlu0 %1919
      %1921 = vrot.lane.b32.xlu0 %v1758, 8
      %v1922 = vpop.permute.xlu0 %1921
      %1923 = vrot.lane.b32.xlu0 %v1759, 8
      %v1924 = vpop.permute.xlu0 %1923
      %1925 = vrot.lane.b32.xlu0 %v1760, 8
      %v1926 = vpop.permute.xlu0 %1925
      %1927 = vrot.lane.b32.xlu0 %v1761, 8
      %v1928 = vpop.permute.xlu0 %1927
      %1929 = vrot.lane.b32.xlu0 %v1762, 8
      %v1930 = vpop.permute.xlu0 %1929
      %1931 = vrot.lane.b32.xlu0 %v1763, 8
      %v1932 = vpop.permute.xlu0 %1931
      %1933 = vrot.lane.b32.xlu0 %v1764, 8
      %v1934 = vpop.permute.xlu0 %1933
      %1935 = vrot.lane.b32.xlu0 %v1765, 8
      %v1936 = vpop.permute.xlu0 %1935
      %1937 = vrot.lane.b32.xlu0 %v1766, 8
      %v1938 = vpop.permute.xlu0 %1937
      %1939 = vrot.lane.b32.xlu0 %v1767, 8
      %v1940 = vpop.permute.xlu0 %1939
      %1941 = vrot.lane.b32.xlu0 %v1768, 8
      %v1942 = vpop.permute.xlu0 %1941
      %1943 = vrot.lane.b32.xlu0 %v1769, 8
      %v1944 = vpop.permute.xlu0 %1943
      %1945 = vrot.lane.b32.xlu0 %v1770, 8
      %v1946 = vpop.permute.xlu0 %1945
      %1947 = vrot.lane.b32.xlu0 %v1771, 8
      %v1948 = vpop.permute.xlu0 %1947
      %1949 = vrot.lane.b32.xlu0 %v1772, 8
      %v1950 = vpop.permute.xlu0 %1949
      %1951 = vrot.lane.b32.xlu0 %v1773, 8
      %v1952 = vpop.permute.xlu0 %1951
      %1953 = vrot.lane.b32.xlu0 %v1774, 8
      %v1954 = vpop.permute.xlu0 %1953
      %1955 = vrot.lane.b32.xlu0 %v1775, 8
      %v1956 = vpop.permute.xlu0 %1955
      %1957 = vrot.lane.b32.xlu0 %v1776, 8
      %v1958 = vpop.permute.xlu0 %1957
      %1959 = vrot.lane.b32.xlu0 %v1777, 8
      %v1960 = vpop.permute.xlu0 %1959
      %1961 = vrot.lane.b32.xlu0 %v1778, 8
      %v1962 = vpop.permute.xlu0 %1961
      %1963 = vrot.lane.b32.xlu0 %v1779, 8
      %v1964 = vpop.permute.xlu0 %1963
      %1965 = vrot.lane.b32.xlu0 %v1780, 8
      %v1966 = vpop.permute.xlu0 %1965
      %1967 = vrot.lane.b32.xlu0 %v1781, 8
      %v1968 = vpop.permute.xlu0 %1967
      %1969 = vrot.lane.b32.xlu0 %v1782, 8
      %v1970 = vpop.permute.xlu0 %1969
      %v2001 = vsel %vm482, 0.0, %v1816
      %v2002 = vsel %vm482, 0.0, %v1818
      %v2003 = vsel %vm482, %v1751, %v1820
      %v2004 = vsel %vm482, %v1752, %v1822
      %v2005 = vsel %vm482, %v1753, %v1824
      %v2006 = vsel %vm482, %v1754, %v1826
      %v2007 = vsel %vm482, %v1755, %v1828
      %v2008 = vsel %vm482, %v1756, %v1830
      %v2009 = vsel %vm482, %v1757, %v1832
      %v2010 = vsel %vm482, %v1758, %v1834
      %v2011 = vsel %vm482, %v1759, %v1836
      %v2012 = vsel %vm482, %v1760, %v1838
      %v2013 = vsel %vm482, %v1761, %v1840
      %v2014 = vsel %vm482, %v1762, %v1842
      %v2015 = vsel %vm482, %v1763, %v1844
      %v2016 = vsel %vm482, %v1764, %v1846
      %v2017 = vsel %vm482, %v1765, %v1848
      %v2018 = vsel %vm482, %v1766, %v1850
      %v2019 = vsel %vm482, %v1767, %v1852
      %v2020 = vsel %vm482, %v1768, %v1854
      %v2021 = vsel %vm482, %v1769, %v1856
      %v2022 = vsel %vm482, %v1770, %v1858
      %v2023 = vsel %vm482, %v1771, %v1860
      %v2024 = vsel %vm482, %v1772, %v1862
      %v2025 = vsel %vm482, %v1773, %v1864
      %v2026 = vsel %vm482, %v1774, %v1866
      %v2027 = vsel %vm482, %v1775, %v1868
      %v2028 = vsel %vm482, %v1776, %v1870
      %v2029 = vsel %vm482, %v1777, %v1872
      %v2030 = vsel %vm482, %v1778, %v1874
      %v2031 = vsel %vm482, %v1779, %v1876
      %v2032 = vsel %vm482, %v1780, %v1878
      %v2033 = vsel %vm515, %v2001, %v1912
      %v2034 = vsel %vm515, %v2002, %v1914
      %v2035 = vsel %vm515, %v2003, %v1916
      %v2036 = vsel %vm515, %v2004, %v1918
      %v2037 = vsel %vm515, %v2005, %v1920
      %v2038 = vsel %vm515, %v2006, %v1922
      %v2039 = vsel %vm515, %v2007, %v1924
      %v2040 = vsel %vm515, %v2008, %v1926
      %v2041 = vsel %vm515, %v2009, %v1928
      %v2042 = vsel %vm515, %v2010, %v1930
      %v2043 = vsel %vm515, %v2011, %v1932
      %v2044 = vsel %vm515, %v2012, %v1934
      %v2045 = vsel %vm515, %v2013, %v1936
      %v2046 = vsel %vm515, %v2014, %v1938
      %v2047 = vsel %vm515, %v2015, %v1940
      %v2048 = vsel %vm515, %v2016, %v1942
      %v2049 = vsel %vm515, %v2017, %v1944
      %v2050 = vsel %vm515, %v2018, %v1946
      %v2051 = vsel %vm515, %v2019, %v1948
      %v2052 = vsel %vm515, %v2020, %v1950
      %v2053 = vsel %vm515, %v2021, %v1952
      %v2054 = vsel %vm515, %v2022, %v1954
      %v2055 = vsel %vm515, %v2023, %v1956
      %v2056 = vsel %vm515, %v2024, %v1958
      %v2057 = vsel %vm515, %v2025, %v1960
      %v2058 = vsel %vm515, %v2026, %v1962
      %v2059 = vsel %vm515, %v2027, %v1964
      %v2060 = vsel %vm515, %v2028, %v1966
      %v2061 = vsel %vm515, %v2029, %v1968
      %v2062 = vsel %vm515, %v2030, %v1970
      %v2063 = vsel %vm515, %v2031, %v450
      %v2064 = vsel %vm515, %v2032, %v450
      %2065 = vst.msk [vmem:[#allocation2 + $0x1] sm:$0xff] %vm203, %v2033
      %2066 = vst.msk [vmem:[#allocation2 + $0x9] sm:$0xff] %vm203, %v2034
      %2067 = vst.msk [vmem:[#allocation2 + $0x19] sm:$0xff] %vm203, %v2035
      %2068 = vst.msk [vmem:[#allocation2 + $0x21] sm:$0xff] %vm203, %v2036
      %2069 = vst.msk [vmem:[#allocation2 + $0x31] sm:$0xff] %vm203, %v2037
      %2070 = vst.msk [vmem:[#allocation2 + $0x39] sm:$0xff] %vm203, %v2038
      %2071 = vst.msk [vmem:[#allocation2 + $0x49] sm:$0xff] %vm203, %v2039
      %2072 = vst.msk [vmem:[#allocation2 + $0x51] sm:$0xff] %vm203, %v2040
      %2073 = vst.msk [vmem:[#allocation2 + $0x61] sm:$0xff] %vm203, %v2041
      %2074 = vst.msk [vmem:[#allocation2 + $0x69] sm:$0xff] %vm203, %v2042
      %2075 = vst.msk [vmem:[#allocation2 + $0x79] sm:$0xff] %vm203, %v2043
      %2076 = vst.msk [vmem:[#allocation2 + $0x81] sm:$0xff] %vm203, %v2044
      %2077 = vst.msk [vmem:[#allocation2 + $0x91] sm:$0xff] %vm203, %v2045
      %2078 = vst.msk [vmem:[#allocation2 + $0x99] sm:$0xff] %vm203, %v2046
      %2079 = vst.msk [vmem:[#allocation2 + $0xa9] sm:$0xff] %vm203, %v2047
      %2080 = vst.msk [vmem:[#allocation2 + $0xb1] sm:$0xff] %vm203, %v2048
      %2081 = vst.msk [vmem:[#allocation2 + $0xc1] sm:$0xff] %vm203, %v2049
      %2082 = vst.msk [vmem:[#allocation2 + $0xc9] sm:$0xff] %vm203, %v2050
      %2083 = vst.msk [vmem:[#allocation2 + $0xd9] sm:$0xff] %vm203, %v2051
      %2084 = vst.msk [vmem:[#allocation2 + $0xe1] sm:$0xff] %vm203, %v2052
      %2085 = vst.msk [vmem:[#allocation2 + $0xf1] sm:$0xff] %vm203, %v2053
      %2086 = vst.msk [vmem:[#allocation2 + $0xf9] sm:$0xff] %vm203, %v2054
      %2087 = vst.msk [vmem:[#allocation2 + $0x109] sm:$0xff] %vm203, %v2055
      %2088 = vst.msk [vmem:[#allocation2 + $0x111] sm:$0xff] %vm203, %v2056
      %2089 = vst.msk [vmem:[#allocation2 + $0x121] sm:$0xff] %vm203, %v2057
      %2090 = vst.msk [vmem:[#allocation2 + $0x129] sm:$0xff] %vm203, %v2058
      %2091 = vst.msk [vmem:[#allocation2 + $0x139] sm:$0xff] %vm203, %v2059
      %2092 = vst.msk [vmem:[#allocation2 + $0x141] sm:$0xff] %vm203, %v2060
      %2093 = vst.msk [vmem:[#allocation2 + $0x151] sm:$0xff] %vm203, %v2061
      %2094 = vst.msk [vmem:[#allocation2 + $0x159] sm:$0xff] %vm203, %v2062
      %2095 = vst.msk [vmem:[#allocation2 + $0x169] sm:$0xff] %vm203, %v2063
      %2096 = vst.msk [vmem:[#allocation2 + $0x171] sm:$0xff] %vm203, %v2064
      %v2097 = vld [vmem:[#allocation2] sm:$0xff]
      %v2098 = vld [vmem:[#allocation2 + $0x8] sm:$0xff]
      %v2099 = vld [vmem:[#allocation2 + $0x18] sm:$0xff]
      %v2100 = vld [vmem:[#allocation2 + $0x20] sm:$0xff]
      %v2101 = vld [vmem:[#allocation2 + $0x30] sm:$0xff]
      %v2102 = vld [vmem:[#allocation2 + $0x38] sm:$0xff]
      %v2103 = vld [vmem:[#allocation2 + $0x48] sm:$0xff]
      %v2104 = vld [vmem:[#allocation2 + $0x50] sm:$0xff]
      %v2105 = vld [vmem:[#allocation2 + $0x60] sm:$0xff]
      %v2106 = vld [vmem:[#allocation2 + $0x68] sm:$0xff]
      %v2107 = vld [vmem:[#allocation2 + $0x78] sm:$0xff]
      %v2108 = vld [vmem:[#allocation2 + $0x80] sm:$0xff]
      %v2109 = vld [vmem:[#allocation2 + $0x90] sm:$0xff]
      %v2110 = vld [vmem:[#allocation2 + $0x98] sm:$0xff]
      %v2111 = vld [vmem:[#allocation2 + $0xa8] sm:$0xff]
      %v2112 = vld [vmem:[#allocation2 + $0xb0] sm:$0xff]
      %v2113 = vld [vmem:[#allocation2 + $0xc0] sm:$0xff]
      %v2114 = vld [vmem:[#allocation2 + $0xc8] sm:$0xff]
      %v2115 = vld [vmem:[#allocation2 + $0xd8] sm:$0xff]
      %v2116 = vld [vmem:[#allocation2 + $0xe0] sm:$0xff]
      %v2117 = vld [vmem:[#allocation2 + $0xf0] sm:$0xff]
      %v2118 = vld [vmem:[#allocation2 + $0xf8] sm:$0xff]
      %v2119 = vld [vmem:[#allocation2 + $0x108] sm:$0xff]
      %v2120 = vld [vmem:[#allocation2 + $0x110] sm:$0xff]
      %v2121 = vld [vmem:[#allocation2 + $0x120] sm:$0xff]
      %v2122 = vld [vmem:[#allocation2 + $0x128] sm:$0xff]
      %v2123 = vld [vmem:[#allocation2 + $0x138] sm:$0xff]
      %v2124 = vld [vmem:[#allocation2 + $0x140] sm:$0xff]
      %v2125 = vld [vmem:[#allocation2 + $0x150] sm:$0xff]
      %v2126 = vld [vmem:[#allocation2 + $0x158] sm:$0xff]
      %v2127 = vld [vmem:[#allocation2 + $0x168] sm:$0xff]
      %v2128 = vld [vmem:[#allocation2 + $0x170] sm:$0xff]
      %v2129 = vld [vmem:[#allocation2 + $0x1] sm:$0xff]
      %v2130 = vld [vmem:[#allocation2 + $0x9] sm:$0xff]
      %v2131 = vld [vmem:[#allocation2 + $0x19] sm:$0xff]
      %v2132 = vld [vmem:[#allocation2 + $0x21] sm:$0xff]
      %v2133 = vld [vmem:[#allocation2 + $0x31] sm:$0xff]
      %v2134 = vld [vmem:[#allocation2 + $0x39] sm:$0xff]
      %v2135 = vld [vmem:[#allocation2 + $0x49] sm:$0xff]
      %v2136 = vld [vmem:[#allocation2 + $0x51] sm:$0xff]
      %v2137 = vld [vmem:[#allocation2 + $0x61] sm:$0xff]
      %v2138 = vld [vmem:[#allocation2 + $0x69] sm:$0xff]
      %v2139 = vld [vmem:[#allocation2 + $0x79] sm:$0xff]
      %v2140 = vld [vmem:[#allocation2 + $0x81] sm:$0xff]
      %v2141 = vld [vmem:[#allocation2 + $0x91] sm:$0xff]
      %v2142 = vld [vmem:[#allocation2 + $0x99] sm:$0xff]
      %v2143 = vld [vmem:[#allocation2 + $0xa9] sm:$0xff]
      %v2144 = vld [vmem:[#allocation2 + $0xb1] sm:$0xff]
      %v2145 = vld [vmem:[#allocation2 + $0xc1] sm:$0xff]
      %v2146 = vld [vmem:[#allocation2 + $0xc9] sm:$0xff]
      %v2147 = vld [vmem:[#allocation2 + $0xd9] sm:$0xff]
      %v2148 = vld [vmem:[#allocation2 + $0xe1] sm:$0xff]
      %v2149 = vld [vmem:[#allocation2 + $0xf1] sm:$0xff]
      %v2150 = vld [vmem:[#allocation2 + $0xf9] sm:$0xff]
      %v2151 = vld [vmem:[#allocation2 + $0x109] sm:$0xff]
      %v2152 = vld [vmem:[#allocation2 + $0x111] sm:$0xff]
      %v2153 = vld [vmem:[#allocation2 + $0x121] sm:$0xff]
      %v2154 = vld [vmem:[#allocation2 + $0x129] sm:$0xff]
      %v2155 = vld [vmem:[#allocation2 + $0x139] sm:$0xff]
      %v2156 = vld [vmem:[#allocation2 + $0x141] sm:$0xff]
      %v2157 = vld [vmem:[#allocation2 + $0x151] sm:$0xff]
      %v2158 = vld [vmem:[#allocation2 + $0x159] sm:$0xff]
      %v2159 = vld [vmem:[#allocation2 + $0x169] sm:$0xff]
      %v2160 = vld [vmem:[#allocation2 + $0x171] sm:$0xff]
      %v2162 = vsel %vm203, %v2129, 0
      %v2165 = vsel %vm203, %v2130, 0
      %v2168 = vsel %vm203, %v2131, 0
      %v2171 = vsel %vm203, %v2132, 0
      %v2174 = vsel %vm203, %v2133, 0
      %v2177 = vsel %vm203, %v2134, 0
      %v2180 = vsel %vm203, %v2135, 0
      %v2183 = vsel %vm203, %v2136, 0
      %v2186 = vsel %vm203, %v2137, 0
      %v2189 = vsel %vm203, %v2138, 0
      %v2192 = vsel %vm203, %v2139, 0
      %v2195 = vsel %vm203, %v2140, 0
      %v2198 = vsel %vm203, %v2141, 0
      %v2201 = vsel %vm203, %v2142, 0
      %v2204 = vsel %vm203, %v2143, 0
      %v2207 = vsel %vm203, %v2144, 0
      %v2210 = vsel %vm203, %v2145, 0
      %v2213 = vsel %vm203, %v2146, 0
      %v2216 = vsel %vm203, %v2147, 0
      %v2219 = vsel %vm203, %v2148, 0
      %v2222 = vsel %vm203, %v2149, 0
      %v2225 = vsel %vm203, %v2150, 0
      %v2228 = vsel %vm203, %v2151, 0
      %v2231 = vsel %vm203, %v2152, 0
      %v2234 = vsel %vm203, %v2153, 0
      %v2237 = vsel %vm203, %v2154, 0
      %v2240 = vsel %vm203, %v2155, 0
      %v2243 = vsel %vm203, %v2156, 0
      %v2246 = vsel %vm203, %v2157, 0
      %v2249 = vsel %vm203, %v2158, 0
      %v2252 = vsel %vm203, %v2159, 0
      %v2255 = vsel %vm203, %v2160, 0
      %2257 = vmatprep.subr.mxu0 0.0
      %2258 = vmatpush1.msra.mxu0 %v255
      %2259 = vmatprep.subr.mxu0 0.0
      %2260 = vmatpush1.msra.mxu0 %v742
      %2261 = vmatprep.subr.mxu0 0.0
      %2262 = vmatpush1.msra.mxu0 0.0
      %2263 = vmatprep.subr.mxu0 0.0
      %2264 = vmatpush1.msra.mxu0 0.0
      %2265 = vmatprep.subr.mxu0 0.0
      %2266 = vmatpush1.msra.mxu0 0.0
      %2267 = vmatprep.subr.mxu0 0.0
      %2268 = vmatpush1.msra.mxu0 0.0
      %2269 = vmatprep.subr.mxu0 0.0
      %2270 = vmatpush1.msra.mxu0 0.0
      %2271 = vmatprep.subr.mxu0 0.0
      %2272 = vmatpush1.msra.mxu0 0.0
      %2273 = vmatprep.subr.mxu0 0.0
      %2274 = vmatpush1.msra.mxu0 0.0
      %2275 = vmatprep.subr.mxu0 0.0
      %2276 = vmatpush1.msra.mxu0 0.0
      %2277 = vmatprep.subr.mxu0 0.0
      %2278 = vmatpush1.msra.mxu0 0.0
      %2279 = vmatprep.subr.mxu0 0.0
      %2280 = vmatpush1.msra.mxu0 0.0
      %2281 = vmatprep.subr.mxu0 0.0
      %2282 = vmatpush1.msra.mxu0 0.0
      %2283 = vmatprep.subr.mxu0 0.0
      %2284 = vmatpush1.msra.mxu0 0.0
      %2285 = vmatprep.subr.mxu0 0.0
      %2286 = vmatpush1.msra.mxu0 0.0
      %2287 = vmatprep.subr.mxu0 0.0
      %2288 = vmatpush1.msra.mxu0 0.0
      %2289 = vmatprep.subr.mxu0 0.0
      %2290 = vmatpush1.msra.mxu0 0.0
      %2291 = vmatprep.subr.mxu0 0.0
      %2292 = vmatpush1.msra.mxu0 0.0
      %2293 = vmatprep.subr.mxu0 0.0
      %2294 = vmatpush1.msra.mxu0 0.0
      %2295 = vmatprep.subr.mxu0 0.0
      %2296 = vmatpush1.msra.mxu0 0.0
      %2297 = vmatprep.subr.mxu0 0.0
      %2298 = vmatpush1.msra.mxu0 0.0
      %2299 = vmatprep.subr.mxu0 0.0
      %2300 = vmatpush1.msra.mxu0 0.0
      %2301 = vmatprep.subr.mxu0 0.0
      %2302 = vmatpush1.msra.mxu0 0.0
      %2303 = vmatprep.subr.mxu0 0.0
      %2304 = vmatpush1.msra.mxu0 0.0
      %2305 = vmatprep.subr.mxu0 0.0
      %2306 = vmatpush1.msra.mxu0 0.0
      %2307 = vmatprep.subr.mxu0 0.0
      %2308 = vmatpush1.msra.mxu0 0.0
      %2309 = vmatprep.subr.mxu0 0.0
      %2310 = vmatpush1.msra.mxu0 0.0
      %2311 = vmatprep.subr.mxu0 0.0
      %2312 = vmatpush1.msra.mxu0 0.0
      %2313 = vmatprep.subr.mxu0 0.0
      %2314 = vmatpush1.msra.mxu0 0.0
      %2315 = vmatprep.subr.mxu0 0.0
      %2316 = vmatpush1.msra.mxu0 0.0
      %2317 = vmatprep.subr.mxu0 0.0
      %2318 = vmatpush1.msra.mxu0 0.0
      %2319 = vmatprep.subr.mxu0 0.0
      %2320 = vmatpush1.msra.mxu0 0.0
      %2321 = vmatprep.mubr.f32.mxu0 0.0
      %2322 = vmatmul.mubr.f32.gmra.mrb[0].mxu0 %v2162
      %v2323 = vpop.f32.mrb[0].mxu0
      %v2324 = vadd.f32 0.0, %v2323
      %v2325 = vpop.f32.mrb[0].mxu0
      %2326 = vmatprep.mubr.f32.mxu0 0.0
      %2327 = vmatmul.mubr.f32.gmra.mrb[0].mxu0 %v2165
      %v2328 = vpop.f32.mrb[0].mxu0
      %v2329 = vadd.f32 0.0, %v2328
      %v2330 = vpop.f32.mrb[0].mxu0
      %2331 = vmatprep.mubr.f32.mxu0 0.0
      %2332 = vmatmul.mubr.f32.gmra.mrb[0].mxu0 %v2168
      %v2333 = vpop.f32.mrb[0].mxu0
      %v2334 = vadd.f32 0.0, %v2333
      %v2335 = vpop.f32.mrb[0].mxu0
      %2336 = vmatprep.mubr.f32.mxu0 0.0
      %2337 = vmatmul.mubr.f32.gmra.mrb[0].mxu0 %v2171
      %v2338 = vpop.f32.mrb[0].mxu0
      %v2339 = vadd.f32 0.0, %v2338
      %v2340 = vpop.f32.mrb[0].mxu0
      %2341 = vmatprep.mubr.f32.mxu0 0.0
      %2342 = vmatmul.mubr.f32.gmra.mrb[0].mxu0 %v2174
      %v2343 = vpop.f32.mrb[0].mxu0
      %v2344 = vadd.f32 0.0, %v2343
      %v2345 = vpop.f32.mrb[0].mxu0
      %2346 = vmatprep.mubr.f32.mxu0 0.0
      %2347 = vmatmul.mubr.f32.gmra.mrb[0].mxu0 %v2177
      %v2348 = vpop.f32.mrb[0].mxu0
      %v2349 = vadd.f32 0.0, %v2348
      %v2350 = vpop.f32.mrb[0].mxu0
      %2351 = vmatprep.mubr.f32.mxu0 0.0
      %2352 = vmatmul.mubr.f32.gmra.mrb[0].mxu0 %v2180
      %v2353 = vpop.f32.mrb[0].mxu0
      %v2354 = vadd.f32 0.0, %v2353
      %v2355 = vpop.f32.mrb[0].mxu0
      %2356 = vmatprep.mubr.f32.mxu0 0.0
      %2357 = vmatmul.mubr.f32.gmra.mrb[0].mxu0 %v2183
      %v2358 = vpop.f32.mrb[0].mxu0
      %v2359 = vadd.f32 0.0, %v2358
      %v2360 = vpop.f32.mrb[0].mxu0
      %2361 = vmatprep.mubr.f32.mxu0 0.0
      %2362 = vmatmul.mubr.f32.gmra.mrb[0].mxu0 %v2186
      %v2363 = vpop.f32.mrb[0].mxu0
      %v2364 = vadd.f32 0.0, %v2363
      %v2365 = vpop.f32.mrb[0].mxu0
      %2366 = vmatprep.mubr.f32.mxu0 0.0
      %2367 = vmatmul.mubr.f32.gmra.mrb[0].mxu0 %v2189
      %v2368 = vpop.f32.mrb[0].mxu0
      %v2369 = vadd.f32 0.0, %v2368
      %v2370 = vpop.f32.mrb[0].mxu0
      %2371 = vmatprep.mubr.f32.mxu0 0.0
      %2372 = vmatmul.mubr.f32.gmra.mrb[0].mxu0 %v2192
      %v2373 = vpop.f32.mrb[0].mxu0
      %v2374 = vadd.f32 0.0, %v2373
      %v2375 = vpop.f32.mrb[0].mxu0
      %2376 = vmatprep.mubr.f32.mxu0 0.0
      %2377 = vmatmul.mubr.f32.gmra.mrb[0].mxu0 %v2195
      %v2378 = vpop.f32.mrb[0].mxu0
      %v2379 = vadd.f32 0.0, %v2378
      %v2380 = vpop.f32.mrb[0].mxu0
      %2381 = vmatprep.mubr.f32.mxu0 0.0
      %2382 = vmatmul.mubr.f32.gmra.mrb[0].mxu0 %v2198
      %v2383 = vpop.f32.mrb[0].mxu0
      %v2384 = vadd.f32 0.0, %v2383
      %v2385 = vpop.f32.mrb[0].mxu0
      %2386 = vmatprep.mubr.f32.mxu0 0.0
      %2387 = vmatmul.mubr.f32.gmra.mrb[0].mxu0 %v2201
      %v2388 = vpop.f32.mrb[0].mxu0
      %v2389 = vadd.f32 0.0, %v2388
      %v2390 = vpop.f32.mrb[0].mxu0
      %2391 = vmatprep.mubr.f32.mxu0 0.0
      %2392 = vmatmul.mubr.f32.gmra.mrb[0].mxu0 %v2204
      %v2393 = vpop.f32.mrb[0].mxu0
      %v2394 = vadd.f32 0.0, %v2393
      %v2395 = vpop.f32.mrb[0].mxu0
      %2396 = vmatprep.mubr.f32.mxu0 0.0
      %2397 = vmatmul.mubr.f32.gmra.mrb[0].mxu0 %v2207
      %v2398 = vpop.f32.mrb[0].mxu0
      %v2399 = vadd.f32 0.0, %v2398
      %v2400 = vpop.f32.mrb[0].mxu0
      %2401 = vmatprep.mubr.f32.mxu0 0.0
      %2402 = vmatmul.mubr.f32.gmra.mrb[0].mxu0 %v2210
      %v2403 = vpop.f32.mrb[0].mxu0
      %v2404 = vadd.f32 0.0, %v2403
      %v2405 = vpop.f32.mrb[0].mxu0
      %2406 = vmatprep.mubr.f32.mxu0 0.0
      %2407 = vmatmul.mubr.f32.gmra.mrb[0].mxu0 %v2213
      %v2408 = vpop.f32.mrb[0].mxu0
      %v2409 = vadd.f32 0.0, %v2408
      %v2410 = vpop.f32.mrb[0].mxu0
      %2411 = vmatprep.mubr.f32.mxu0 0.0
      %2412 = vmatmul.mubr.f32.gmra.mrb[0].mxu0 %v2216
      %v2413 = vpop.f32.mrb[0].mxu0
      %v2414 = vadd.f32 0.0, %v2413
      %v2415 = vpop.f32.mrb[0].mxu0
      %2416 = vmatprep.mubr.f32.mxu0 0.0
      %2417 = vmatmul.mubr.f32.gmra.mrb[0].mxu0 %v2219
      %v2418 = vpop.f32.mrb[0].mxu0
      %v2419 = vadd.f32 0.0, %v2418
      %v2420 = vpop.f32.mrb[0].mxu0
      %2421 = vmatprep.mubr.f32.mxu0 0.0
      %2422 = vmatmul.mubr.f32.gmra.mrb[0].mxu0 %v2222
      %v2423 = vpop.f32.mrb[0].mxu0
      %v2424 = vadd.f32 0.0, %v2423
      %v2425 = vpop.f32.mrb[0].mxu0
      %2426 = vmatprep.mubr.f32.mxu0 0.0
      %2427 = vmatmul.mubr.f32.gmra.mrb[0].mxu0 %v2225
      %v2428 = vpop.f32.mrb[0].mxu0
      %v2429 = vadd.f32 0.0, %v2428
      %v2430 = vpop.f32.mrb[0].mxu0
      %2431 = vmatprep.mubr.f32.mxu0 0.0
      %2432 = vmatmul.mubr.f32.gmra.mrb[0].mxu0 %v2228
      %v2433 = vpop.f32.mrb[0].mxu0
      %v2434 = vadd.f32 0.0, %v2433
      %v2435 = vpop.f32.mrb[0].mxu0
      %2436 = vmatprep.mubr.f32.mxu0 0.0
      %2437 = vmatmul.mubr.f32.gmra.mrb[0].mxu0 %v2231
      %v2438 = vpop.f32.mrb[0].mxu0
      %v2439 = vadd.f32 0.0, %v2438
      %v2440 = vpop.f32.mrb[0].mxu0
      %2441 = vmatprep.mubr.f32.mxu0 0.0
      %2442 = vmatmul.mubr.f32.gmra.mrb[0].mxu0 %v2234
      %v2443 = vpop.f32.mrb[0].mxu0
      %v2444 = vadd.f32 0.0, %v2443
      %v2445 = vpop.f32.mrb[0].mxu0
      %2446 = vmatprep.mubr.f32.mxu0 0.0
      %2447 = vmatmul.mubr.f32.gmra.mrb[0].mxu0 %v2237
      %v2448 = vpop.f32.mrb[0].mxu0
      %v2449 = vadd.f32 0.0, %v2448
      %v2450 = vpop.f32.mrb[0].mxu0
      %2451 = vmatprep.mubr.f32.mxu0 0.0
      %2452 = vmatmul.mubr.f32.gmra.mrb[0].mxu0 %v2240
      %v2453 = vpop.f32.mrb[0].mxu0
      %v2454 = vadd.f32 0.0, %v2453
      %v2455 = vpop.f32.mrb[0].mxu0
      %2456 = vmatprep.mubr.f32.mxu0 0.0
      %2457 = vmatmul.mubr.f32.gmra.mrb[0].mxu0 %v2243
      %v2458 = vpop.f32.mrb[0].mxu0
      %v2459 = vadd.f32 0.0, %v2458
      %v2460 = vpop.f32.mrb[0].mxu0
      %2461 = vmatprep.mubr.f32.mxu0 0.0
      %2462 = vmatmul.mubr.f32.gmra.mrb[0].mxu0 %v2246
      %v2463 = vpop.f32.mrb[0].mxu0
      %v2464 = vadd.f32 0.0, %v2463
      %v2465 = vpop.f32.mrb[0].mxu0
      %2466 = vmatprep.mubr.f32.mxu0 0.0
      %2467 = vmatmul.mubr.f32.gmra.mrb[0].mxu0 %v2249
      %v2468 = vpop.f32.mrb[0].mxu0
      %v2469 = vadd.f32 0.0, %v2468
      %v2470 = vpop.f32.mrb[0].mxu0
      %2471 = vmatprep.mubr.f32.mxu0 0.0
      %2472 = vmatmul.mubr.f32.gmra.mrb[0].mxu0 %v2252
      %v2473 = vpop.f32.mrb[0].mxu0
      %v2474 = vadd.f32 0.0, %v2473
      %v2475 = vpop.f32.mrb[0].mxu0
      %2476 = vmatprep.mubr.f32.mxu0 0.0
      %2477 = vmatmul.mubr.f32.gmra.mrb[0].mxu0 %v2255
      %v2478 = vpop.f32.mrb[0].mxu0
      %v2479 = vadd.f32 0.0, %v2478
      %v2480 = vpop.f32.mrb[0].mxu0
      %2481 = vdwg.mxu0
      %v2483 = vsel %vm203, %v2097, 0
      %v2486 = vsel %vm203, %v2098, 0
      %v2489 = vsel %vm203, %v2099, 0
      %v2492 = vsel %vm203, %v2100, 0
      %v2495 = vsel %vm203, %v2101, 0
      %v2498 = vsel %vm203, %v2102, 0
      %v2501 = vsel %vm203, %v2103, 0
      %v2504 = vsel %vm203, %v2104, 0
      %v2507 = vsel %vm203, %v2105, 0
      %v2510 = vsel %vm203, %v2106, 0
      %v2513 = vsel %vm203, %v2107, 0
      %v2516 = vsel %vm203, %v2108, 0
      %v2519 = vsel %vm203, %v2109, 0
      %v2522 = vsel %vm203, %v2110, 0
      %v2525 = vsel %vm203, %v2111, 0
      %v2528 = vsel %vm203, %v2112, 0
      %v2531 = vsel %vm203, %v2113, 0
      %v2534 = vsel %vm203, %v2114, 0
      %v2537 = vsel %vm203, %v2115, 0
      %v2540 = vsel %vm203, %v2116, 0
      %v2543 = vsel %vm203, %v2117, 0
      %v2546 = vsel %vm203, %v2118, 0
      %v2549 = vsel %vm203, %v2119, 0
      %v2552 = vsel %vm203, %v2120, 0
      %v2555 = vsel %vm203, %v2121, 0
      %v2558 = vsel %vm203, %v2122, 0
      %v2561 = vsel %vm203, %v2123, 0
      %v2564 = vsel %vm203, %v2124, 0
      %v2567 = vsel %vm203, %v2125, 0
      %v2570 = vsel %vm203, %v2126, 0
      %v2573 = vsel %vm203, %v2127, 0
      %v2576 = vsel %vm203, %v2128, 0
      %2578 = vmatprep.subr.mxu0 0.0
      %2579 = vmatpush1.msra.mxu0 %v253
      %2580 = vmatprep.subr.mxu0 0.0
      %2581 = vmatpush1.msra.mxu0 %v1066
      %2582 = vmatprep.subr.mxu0 0.0
      %2583 = vmatpush1.msra.mxu0 0.0
      %2584 = vmatprep.subr.mxu0 0.0
      %2585 = vmatpush1.msra.mxu0 0.0
      %2586 = vmatprep.subr.mxu0 0.0
      %2587 = vmatpush1.msra.mxu0 0.0
      %2588 = vmatprep.subr.mxu0 0.0
      %2589 = vmatpush1.msra.mxu0 0.0
      %2590 = vmatprep.subr.mxu0 0.0
      %2591 = vmatpush1.msra.mxu0 0.0
      %2592 = vmatprep.subr.mxu0 0.0
      %2593 = vmatpush1.msra.mxu0 0.0
      %2594 = vmatprep.subr.mxu0 0.0
      %2595 = vmatpush1.msra.mxu0 0.0
      %2596 = vmatprep.subr.mxu0 0.0
      %2597 = vmatpush1.msra.mxu0 0.0
      %2598 = vmatprep.subr.mxu0 0.0
      %2599 = vmatpush1.msra.mxu0 0.0
      %2600 = vmatprep.subr.mxu0 0.0
      %2601 = vmatpush1.msra.mxu0 0.0
      %2602 = vmatprep.subr.mxu0 0.0
      %2603 = vmatpush1.msra.mxu0 0.0
      %2604 = vmatprep.subr.mxu0 0.0
      %2605 = vmatpush1.msra.mxu0 0.0
      %2606 = vmatprep.subr.mxu0 0.0
      %2607 = vmatpush1.msra.mxu0 0.0
      %2608 = vmatprep.subr.mxu0 0.0
      %2609 = vmatpush1.msra.mxu0 0.0
      %2610 = vmatprep.subr.mxu0 0.0
      %2611 = vmatpush1.msra.mxu0 0.0
      %2612 = vmatprep.subr.mxu0 0.0
      %2613 = vmatpush1.msra.mxu0 0.0
      %2614 = vmatprep.subr.mxu0 0.0
      %2615 = vmatpush1.msra.mxu0 0.0
      %2616 = vmatprep.subr.mxu0 0.0
      %2617 = vmatpush1.msra.mxu0 0.0
      %2618 = vmatprep.subr.mxu0 0.0
      %2619 = vmatpush1.msra.mxu0 0.0
      %2620 = vmatprep.subr.mxu0 0.0
      %2621 = vmatpush1.msra.mxu0 0.0
      %2622 = vmatprep.subr.mxu0 0.0
      %2623 = vmatpush1.msra.mxu0 0.0
      %2624 = vmatprep.subr.mxu0 0.0
      %2625 = vmatpush1.msra.mxu0 0.0
      %2626 = vmatprep.subr.mxu0 0.0
      %2627 = vmatpush1.msra.mxu0 0.0
      %2628 = vmatprep.subr.mxu0 0.0
      %2629 = vmatpush1.msra.mxu0 0.0
      %2630 = vmatprep.subr.mxu0 0.0
      %2631 = vmatpush1.msra.mxu0 0.0
      %2632 = vmatprep.subr.mxu0 0.0
      %2633 = vmatpush1.msra.mxu0 0.0
      %2634 = vmatprep.subr.mxu0 0.0
      %2635 = vmatpush1.msra.mxu0 0.0
      %2636 = vmatprep.subr.mxu0 0.0
      %2637 = vmatpush1.msra.mxu0 0.0
      %2638 = vmatprep.subr.mxu0 0.0
      %2639 = vmatpush1.msra.mxu0 0.0
      %2640 = vmatprep.subr.mxu0 0.0
      %2641 = vmatpush1.msra.mxu0 0.0
      %2642 = vmatprep.mubr.f32.mxu0 0.0
      %2643 = vmatmul.mubr.f32.gmra.mrb[0].mxu0 %v2483
      %v2644 = vpop.f32.mrb[0].mxu0
      %v2645 = vadd.f32 %v2324, %v2644
      %v2646 = vpop.f32.mrb[0].mxu0
      %2647 = vmatprep.mubr.f32.mxu0 0.0
      %2648 = vmatmul.mubr.f32.gmra.mrb[0].mxu0 %v2486
      %v2649 = vpop.f32.mrb[0].mxu0
      %v2650 = vadd.f32 %v2329, %v2649
      %v2651 = vpop.f32.mrb[0].mxu0
      %2652 = vmatprep.mubr.f32.mxu0 0.0
      %2653 = vmatmul.mubr.f32.gmra.mrb[0].mxu0 %v2489
      %v2654 = vpop.f32.mrb[0].mxu0
      %v2655 = vadd.f32 %v2334, %v2654
      %v2656 = vpop.f32.mrb[0].mxu0
      %2657 = vmatprep.mubr.f32.mxu0 0.0
      %2658 = vmatmul.mubr.f32.gmra.mrb[0].mxu0 %v2492
      %v2659 = vpop.f32.mrb[0].mxu0
      %v2660 = vadd.f32 %v2339, %v2659
      %v2661 = vpop.f32.mrb[0].mxu0
      %2662 = vmatprep.mubr.f32.mxu0 0.0
      %2663 = vmatmul.mubr.f32.gmra.mrb[0].mxu0 %v2495
      %v2664 = vpop.f32.mrb[0].mxu0
      %v2665 = vadd.f32 %v2344, %v2664
      %v2666 = vpop.f32.mrb[0].mxu0
      %2667 = vmatprep.mubr.f32.mxu0 0.0
      %2668 = vmatmul.mubr.f32.gmra.mrb[0].mxu0 %v2498
      %v2669 = vpop.f32.mrb[0].mxu0
      %v2670 = vadd.f32 %v2349, %v2669
      %v2671 = vpop.f32.mrb[0].mxu0
      %2672 = vmatprep.mubr.f32.mxu0 0.0
      %2673 = vmatmul.mubr.f32.gmra.mrb[0].mxu0 %v2501
      %v2674 = vpop.f32.mrb[0].mxu0
      %v2675 = vadd.f32 %v2354, %v2674
      %v2676 = vpop.f32.mrb[0].mxu0
      %2677 = vmatprep.mubr.f32.mxu0 0.0
      %2678 = vmatmul.mubr.f32.gmra.mrb[0].mxu0 %v2504
      %v2679 = vpop.f32.mrb[0].mxu0
      %v2680 = vadd.f32 %v2359, %v2679
      %v2681 = vpop.f32.mrb[0].mxu0
      %2682 = vmatprep.mubr.f32.mxu0 0.0
      %2683 = vmatmul.mubr.f32.gmra.mrb[0].mxu0 %v2507
      %v2684 = vpop.f32.mrb[0].mxu0
      %v2685 = vadd.f32 %v2364, %v2684
      %v2686 = vpop.f32.mrb[0].mxu0
      %2687 = vmatprep.mubr.f32.mxu0 0.0
      %2688 = vmatmul.mubr.f32.gmra.mrb[0].mxu0 %v2510
      %v2689 = vpop.f32.mrb[0].mxu0
      %v2690 = vadd.f32 %v2369, %v2689
      %v2691 = vpop.f32.mrb[0].mxu0
      %2692 = vmatprep.mubr.f32.mxu0 0.0
      %2693 = vmatmul.mubr.f32.gmra.mrb[0].mxu0 %v2513
      %v2694 = vpop.f32.mrb[0].mxu0
      %v2695 = vadd.f32 %v2374, %v2694
      %v2696 = vpop.f32.mrb[0].mxu0
      %2697 = vmatprep.mubr.f32.mxu0 0.0
      %2698 = vmatmul.mubr.f32.gmra.mrb[0].mxu0 %v2516
      %v2699 = vpop.f32.mrb[0].mxu0
      %v2700 = vadd.f32 %v2379, %v2699
      %v2701 = vpop.f32.mrb[0].mxu0
      %2702 = vmatprep.mubr.f32.mxu0 0.0
      %2703 = vmatmul.mubr.f32.gmra.mrb[0].mxu0 %v2519
      %v2704 = vpop.f32.mrb[0].mxu0
      %v2705 = vadd.f32 %v2384, %v2704
      %v2706 = vpop.f32.mrb[0].mxu0
      %2707 = vmatprep.mubr.f32.mxu0 0.0
      %2708 = vmatmul.mubr.f32.gmra.mrb[0].mxu0 %v2522
      %v2709 = vpop.f32.mrb[0].mxu0
      %v2710 = vadd.f32 %v2389, %v2709
      %v2711 = vpop.f32.mrb[0].mxu0
      %2712 = vmatprep.mubr.f32.mxu0 0.0
      %2713 = vmatmul.mubr.f32.gmra.mrb[0].mxu0 %v2525
      %v2714 = vpop.f32.mrb[0].mxu0
      %v2715 = vadd.f32 %v2394, %v2714
      %v2716 = vpop.f32.mrb[0].mxu0
      %2717 = vmatprep.mubr.f32.mxu0 0.0
      %2718 = vmatmul.mubr.f32.gmra.mrb[0].mxu0 %v2528
      %v2719 = vpop.f32.mrb[0].mxu0
      %v2720 = vadd.f32 %v2399, %v2719
      %v2721 = vpop.f32.mrb[0].mxu0
      %2722 = vmatprep.mubr.f32.mxu0 0.0
      %2723 = vmatmul.mubr.f32.gmra.mrb[0].mxu0 %v2531
      %v2724 = vpop.f32.mrb[0].mxu0
      %v2725 = vadd.f32 %v2404, %v2724
      %v2726 = vpop.f32.mrb[0].mxu0
      %2727 = vmatprep.mubr.f32.mxu0 0.0
      %2728 = vmatmul.mubr.f32.gmra.mrb[0].mxu0 %v2534
      %v2729 = vpop.f32.mrb[0].mxu0
      %v2730 = vadd.f32 %v2409, %v2729
      %v2731 = vpop.f32.mrb[0].mxu0
      %2732 = vmatprep.mubr.f32.mxu0 0.0
      %2733 = vmatmul.mubr.f32.gmra.mrb[0].mxu0 %v2537
      %v2734 = vpop.f32.mrb[0].mxu0
      %v2735 = vadd.f32 %v2414, %v2734
      %v2736 = vpop.f32.mrb[0].mxu0
      %2737 = vmatprep.mubr.f32.mxu0 0.0
      %2738 = vmatmul.mubr.f32.gmra.mrb[0].mxu0 %v2540
      %v2739 = vpop.f32.mrb[0].mxu0
      %v2740 = vadd.f32 %v2419, %v2739
      %v2741 = vpop.f32.mrb[0].mxu0
      %2742 = vmatprep.mubr.f32.mxu0 0.0
      %2743 = vmatmul.mubr.f32.gmra.mrb[0].mxu0 %v2543
      %v2744 = vpop.f32.mrb[0].mxu0
      %v2745 = vadd.f32 %v2424, %v2744
      %v2746 = vpop.f32.mrb[0].mxu0
      %2747 = vmatprep.mubr.f32.mxu0 0.0
      %2748 = vmatmul.mubr.f32.gmra.mrb[0].mxu0 %v2546
      %v2749 = vpop.f32.mrb[0].mxu0
      %v2750 = vadd.f32 %v2429, %v2749
      %v2751 = vpop.f32.mrb[0].mxu0
      %2752 = vmatprep.mubr.f32.mxu0 0.0
      %2753 = vmatmul.mubr.f32.gmra.mrb[0].mxu0 %v2549
      %v2754 = vpop.f32.mrb[0].mxu0
      %v2755 = vadd.f32 %v2434, %v2754
      %v2756 = vpop.f32.mrb[0].mxu0
      %2757 = vmatprep.mubr.f32.mxu0 0.0
      %2758 = vmatmul.mubr.f32.gmra.mrb[0].mxu0 %v2552
      %v2759 = vpop.f32.mrb[0].mxu0
      %v2760 = vadd.f32 %v2439, %v2759
      %v2761 = vpop.f32.mrb[0].mxu0
      %2762 = vmatprep.mubr.f32.mxu0 0.0
      %2763 = vmatmul.mubr.f32.gmra.mrb[0].mxu0 %v2555
      %v2764 = vpop.f32.mrb[0].mxu0
      %v2765 = vadd.f32 %v2444, %v2764
      %v2766 = vpop.f32.mrb[0].mxu0
      %2767 = vmatprep.mubr.f32.mxu0 0.0
      %2768 = vmatmul.mubr.f32.gmra.mrb[0].mxu0 %v2558
      %v2769 = vpop.f32.mrb[0].mxu0
      %v2770 = vadd.f32 %v2449, %v2769
      %v2771 = vpop.f32.mrb[0].mxu0
      %2772 = vmatprep.mubr.f32.mxu0 0.0
      %2773 = vmatmul.mubr.f32.gmra.mrb[0].mxu0 %v2561
      %v2774 = vpop.f32.mrb[0].mxu0
      %v2775 = vadd.f32 %v2454, %v2774
      %v2776 = vpop.f32.mrb[0].mxu0
      %2777 = vmatprep.mubr.f32.mxu0 0.0
      %2778 = vmatmul.mubr.f32.gmra.mrb[0].mxu0 %v2564
      %v2779 = vpop.f32.mrb[0].mxu0
      %v2780 = vadd.f32 %v2459, %v2779
      %v2781 = vpop.f32.mrb[0].mxu0
      %2782 = vmatprep.mubr.f32.mxu0 0.0
      %2783 = vmatmul.mubr.f32.gmra.mrb[0].mxu0 %v2567
      %v2784 = vpop.f32.mrb[0].mxu0
      %v2785 = vadd.f32 %v2464, %v2784
      %v2786 = vpop.f32.mrb[0].mxu0
      %2787 = vmatprep.mubr.f32.mxu0 0.0
      %2788 = vmatmul.mubr.f32.gmra.mrb[0].mxu0 %v2570
      %v2789 = vpop.f32.mrb[0].mxu0
      %v2790 = vadd.f32 %v2469, %v2789
      %v2791 = vpop.f32.mrb[0].mxu0
      %2792 = vmatprep.mubr.f32.mxu0 0.0
      %2793 = vmatmul.mubr.f32.gmra.mrb[0].mxu0 %v2573
      %v2794 = vpop.f32.mrb[0].mxu0
      %v2795 = vadd.f32 %v2474, %v2794
      %v2796 = vpop.f32.mrb[0].mxu0
      %2797 = vmatprep.mubr.f32.mxu0 0.0
      %2798 = vmatmul.mubr.f32.gmra.mrb[0].mxu0 %v2576
      %v2799 = vpop.f32.mrb[0].mxu0
      %v2800 = vadd.f32 %v2479, %v2799
      %v2801 = vpop.f32.mrb[0].mxu0
      %2802 = vdwg.mxu0
      %v2803 = vld [vmem:[#allocation2 + $0x2] sm:$0xff]
      %v2804 = vld [vmem:[#allocation2 + $0xa] sm:$0xff]
      %v2805 = vld [vmem:[#allocation2 + $0x1a] sm:$0xff]
      %v2806 = vld [vmem:[#allocation2 + $0x22] sm:$0xff]
      %v2807 = vld [vmem:[#allocation2 + $0x32] sm:$0xff]
      %v2808 = vld [vmem:[#allocation2 + $0x3a] sm:$0xff]
      %v2809 = vld [vmem:[#allocation2 + $0x4a] sm:$0xff]
      %v2810 = vld [vmem:[#allocation2 + $0x52] sm:$0xff]
      %v2811 = vld [vmem:[#allocation2 + $0x62] sm:$0xff]
      %v2812 = vld [vmem:[#allocation2 + $0x6a] sm:$0xff]
      %v2813 = vld [vmem:[#allocation2 + $0x7a] sm:$0xff]
      %v2814 = vld [vmem:[#allocation2 + $0x82] sm:$0xff]
      %v2815 = vld [vmem:[#allocation2 + $0x92] sm:$0xff]
      %v2816 = vld [vmem:[#allocation2 + $0x9a] sm:$0xff]
      %v2817 = vld [vmem:[#allocation2 + $0xaa] sm:$0xff]
      %v2818 = vld [vmem:[#allocation2 + $0xb2] sm:$0xff]
      %v2819 = vld [vmem:[#allocation2 + $0xc2] sm:$0xff]
      %v2820 = vld [vmem:[#allocation2 + $0xca] sm:$0xff]
      %v2821 = vld [vmem:[#allocation2 + $0xda] sm:$0xff]
      %v2822 = vld [vmem:[#allocation2 + $0xe2] sm:$0xff]
      %v2823 = vld [vmem:[#allocation2 + $0xf2] sm:$0xff]
      %v2824 = vld [vmem:[#allocation2 + $0xfa] sm:$0xff]
      %v2825 = vld [vmem:[#allocation2 + $0x10a] sm:$0xff]
      %v2826 = vld [vmem:[#allocation2 + $0x112] sm:$0xff]
      %v2827 = vld [vmem:[#allocation2 + $0x122] sm:$0xff]
      %v2828 = vld [vmem:[#allocation2 + $0x12a] sm:$0xff]
      %v2829 = vld [vmem:[#allocation2 + $0x13a] sm:$0xff]
      %v2830 = vld [vmem:[#allocation2 + $0x142] sm:$0xff]
      %v2831 = vld [vmem:[#allocation2 + $0x152] sm:$0xff]
      %v2832 = vld [vmem:[#allocation2 + $0x15a] sm:$0xff]
      %v2833 = vld [vmem:[#allocation2 + $0x16a] sm:$0xff]
      %v2834 = vld [vmem:[#allocation2 + $0x172] sm:$0xff]
      %v2836 = vsel %vm203, %v2803, 0
      %v2839 = vsel %vm203, %v2804, 0
      %v2842 = vsel %vm203, %v2805, 0
      %v2845 = vsel %vm203, %v2806, 0
      %v2848 = vsel %vm203, %v2807, 0
      %v2851 = vsel %vm203, %v2808, 0
      %v2854 = vsel %vm203, %v2809, 0
      %v2857 = vsel %vm203, %v2810, 0
      %v2860 = vsel %vm203, %v2811, 0
      %v2863 = vsel %vm203, %v2812, 0
      %v2866 = vsel %vm203, %v2813, 0
      %v2869 = vsel %vm203, %v2814, 0
      %v2872 = vsel %vm203, %v2815, 0
      %v2875 = vsel %vm203, %v2816, 0
      %v2878 = vsel %vm203, %v2817, 0
      %v2881 = vsel %vm203, %v2818, 0
      %v2884 = vsel %vm203, %v2819, 0
      %v2887 = vsel %vm203, %v2820, 0
      %v2890 = vsel %vm203, %v2821, 0
      %v2893 = vsel %vm203, %v2822, 0
      %v2896 = vsel %vm203, %v2823, 0
      %v2899 = vsel %vm203, %v2824, 0
      %v2902 = vsel %vm203, %v2825, 0
      %v2905 = vsel %vm203, %v2826, 0
      %v2908 = vsel %vm203, %v2827, 0
      %v2911 = vsel %vm203, %v2828, 0
      %v2914 = vsel %vm203, %v2829, 0
      %v2917 = vsel %vm203, %v2830, 0
      %v2920 = vsel %vm203, %v2831, 0
      %v2923 = vsel %vm203, %v2832, 0
      %v2926 = vsel %vm203, %v2833, 0
      %v2929 = vsel %vm203, %v2834, 0
      %2931 = vmatprep.subr.mxu0 0.0
      %2932 = vmatpush1.msra.mxu0 %v257
      %2933 = vmatprep.subr.mxu0 0.0
      %2934 = vmatpush1.msra.mxu0 %v1422
      %2935 = vmatprep.subr.mxu0 0.0
      %2936 = vmatpush1.msra.mxu0 0.0
      %2937 = vmatprep.subr.mxu0 0.0
      %2938 = vmatpush1.msra.mxu0 0.0
      %2939 = vmatprep.subr.mxu0 0.0
      %2940 = vmatpush1.msra.mxu0 0.0
      %2941 = vmatprep.subr.mxu0 0.0
      %2942 = vmatpush1.msra.mxu0 0.0
      %2943 = vmatprep.subr.mxu0 0.0
      %2944 = vmatpush1.msra.mxu0 0.0
      %2945 = vmatprep.subr.mxu0 0.0
      %2946 = vmatpush1.msra.mxu0 0.0
      %2947 = vmatprep.subr.mxu0 0.0
      %2948 = vmatpush1.msra.mxu0 0.0
      %2949 = vmatprep.subr.mxu0 0.0
      %2950 = vmatpush1.msra.mxu0 0.0
      %2951 = vmatprep.subr.mxu0 0.0
      %2952 = vmatpush1.msra.mxu0 0.0
      %2953 = vmatprep.subr.mxu0 0.0
      %2954 = vmatpush1.msra.mxu0 0.0
      %2955 = vmatprep.subr.mxu0 0.0
      %2956 = vmatpush1.msra.mxu0 0.0
      %2957 = vmatprep.subr.mxu0 0.0
      %2958 = vmatpush1.msra.mxu0 0.0
      %2959 = vmatprep.subr.mxu0 0.0
      %2960 = vmatpush1.msra.mxu0 0.0
      %2961 = vmatprep.subr.mxu0 0.0
      %2962 = vmatpush1.msra.mxu0 0.0
      %2963 = vmatprep.subr.mxu0 0.0
      %2964 = vmatpush1.msra.mxu0 0.0
      %2965 = vmatprep.subr.mxu0 0.0
      %2966 = vmatpush1.msra.mxu0 0.0
      %2967 = vmatprep.subr.mxu0 0.0
      %2968 = vmatpush1.msra.mxu0 0.0
      %2969 = vmatprep.subr.mxu0 0.0
      %2970 = vmatpush1.msra.mxu0 0.0
      %2971 = vmatprep.subr.mxu0 0.0
      %2972 = vmatpush1.msra.mxu0 0.0
      %2973 = vmatprep.subr.mxu0 0.0
      %2974 = vmatpush1.msra.mxu0 0.0
      %2975 = vmatprep.subr.mxu0 0.0
      %2976 = vmatpush1.msra.mxu0 0.0
      %2977 = vmatprep.subr.mxu0 0.0
      %2978 = vmatpush1.msra.mxu0 0.0
      %2979 = vmatprep.subr.mxu0 0.0
      %2980 = vmatpush1.msra.mxu0 0.0
      %2981 = vmatprep.subr.mxu0 0.0
      %2982 = vmatpush1.msra.mxu0 0.0
      %2983 = vmatprep.subr.mxu0 0.0
      %2984 = vmatpush1.msra.mxu0 0.0
      %2985 = vmatprep.subr.mxu0 0.0
      %2986 = vmatpush1.msra.mxu0 0.0
      %2987 = vmatprep.subr.mxu0 0.0
      %2988 = vmatpush1.msra.mxu0 0.0
      %2989 = vmatprep.subr.mxu0 0.0
      %2990 = vmatpush1.msra.mxu0 0.0
      %2991 = vmatprep.subr.mxu0 0.0
      %2992 = vmatpush1.msra.mxu0 0.0
      %2993 = vmatprep.subr.mxu0 0.0
      %2994 = vmatpush1.msra.mxu0 0.0
      %2995 = vmatprep.mubr.f32.mxu0 0.0
      %2996 = vmatmul.mubr.f32.gmra.mrb[0].mxu0 %v2836
      %v2997 = vpop.f32.mrb[0].mxu0
      %v2998 = vadd.f32 0.0, %v2997
      %v2999 = vpop.f32.mrb[0].mxu0
      %3000 = vmatprep.mubr.f32.mxu0 0.0
      %3001 = vmatmul.mubr.f32.gmra.mrb[0].mxu0 %v2839
      %v3002 = vpop.f32.mrb[0].mxu0
      %v3003 = vadd.f32 0.0, %v3002
      %v3004 = vpop.f32.mrb[0].mxu0
      %3005 = vmatprep.mubr.f32.mxu0 0.0
      %3006 = vmatmul.mubr.f32.gmra.mrb[0].mxu0 %v2842
      %v3007 = vpop.f32.mrb[0].mxu0
      %v3008 = vadd.f32 0.0, %v3007
      %v3009 = vpop.f32.mrb[0].mxu0
      %3010 = vmatprep.mubr.f32.mxu0 0.0
      %3011 = vmatmul.mubr.f32.gmra.mrb[0].mxu0 %v2845
      %v3012 = vpop.f32.mrb[0].mxu0
      %v3013 = vadd.f32 0.0, %v3012
      %v3014 = vpop.f32.mrb[0].mxu0
      %3015 = vmatprep.mubr.f32.mxu0 0.0
      %3016 = vmatmul.mubr.f32.gmra.mrb[0].mxu0 %v2848
      %v3017 = vpop.f32.mrb[0].mxu0
      %v3018 = vadd.f32 0.0, %v3017
      %v3019 = vpop.f32.mrb[0].mxu0
      %3020 = vmatprep.mubr.f32.mxu0 0.0
      %3021 = vmatmul.mubr.f32.gmra.mrb[0].mxu0 %v2851
      %v3022 = vpop.f32.mrb[0].mxu0
      %v3023 = vadd.f32 0.0, %v3022
      %v3024 = vpop.f32.mrb[0].mxu0
      %3025 = vmatprep.mubr.f32.mxu0 0.0
      %3026 = vmatmul.mubr.f32.gmra.mrb[0].mxu0 %v2854
      %v3027 = vpop.f32.mrb[0].mxu0
      %v3028 = vadd.f32 0.0, %v3027
      %v3029 = vpop.f32.mrb[0].mxu0
      %3030 = vmatprep.mubr.f32.mxu0 0.0
      %3031 = vmatmul.mubr.f32.gmra.mrb[0].mxu0 %v2857
      %v3032 = vpop.f32.mrb[0].mxu0
      %v3033 = vadd.f32 0.0, %v3032
      %v3034 = vpop.f32.mrb[0].mxu0
      %3035 = vmatprep.mubr.f32.mxu0 0.0
      %3036 = vmatmul.mubr.f32.gmra.mrb[0].mxu0 %v2860
      %v3037 = vpop.f32.mrb[0].mxu0
      %v3038 = vadd.f32 0.0, %v3037
      %v3039 = vpop.f32.mrb[0].mxu0
      %3040 = vmatprep.mubr.f32.mxu0 0.0
      %3041 = vmatmul.mubr.f32.gmra.mrb[0].mxu0 %v2863
      %v3042 = vpop.f32.mrb[0].mxu0
      %v3043 = vadd.f32 0.0, %v3042
      %v3044 = vpop.f32.mrb[0].mxu0
      %3045 = vmatprep.mubr.f32.mxu0 0.0
      %3046 = vmatmul.mubr.f32.gmra.mrb[0].mxu0 %v2866
      %v3047 = vpop.f32.mrb[0].mxu0
      %v3048 = vadd.f32 0.0, %v3047
      %v3049 = vpop.f32.mrb[0].mxu0
      %3050 = vmatprep.mubr.f32.mxu0 0.0
      %3051 = vmatmul.mubr.f32.gmra.mrb[0].mxu0 %v2869
      %v3052 = vpop.f32.mrb[0].mxu0
      %v3053 = vadd.f32 0.0, %v3052
      %v3054 = vpop.f32.mrb[0].mxu0
      %3055 = vmatprep.mubr.f32.mxu0 0.0
      %3056 = vmatmul.mubr.f32.gmra.mrb[0].mxu0 %v2872
      %v3057 = vpop.f32.mrb[0].mxu0
      %v3058 = vadd.f32 0.0, %v3057
      %v3059 = vpop.f32.mrb[0].mxu0
      %3060 = vmatprep.mubr.f32.mxu0 0.0
      %3061 = vmatmul.mubr.f32.gmra.mrb[0].mxu0 %v2875
      %v3062 = vpop.f32.mrb[0].mxu0
      %v3063 = vadd.f32 0.0, %v3062
      %v3064 = vpop.f32.mrb[0].mxu0
      %3065 = vmatprep.mubr.f32.mxu0 0.0
      %3066 = vmatmul.mubr.f32.gmra.mrb[0].mxu0 %v2878
      %v3067 = vpop.f32.mrb[0].mxu0
      %v3068 = vadd.f32 0.0, %v3067
      %v3069 = vpop.f32.mrb[0].mxu0
      %3070 = vmatprep.mubr.f32.mxu0 0.0
      %3071 = vmatmul.mubr.f32.gmra.mrb[0].mxu0 %v2881
      %v3072 = vpop.f32.mrb[0].mxu0
      %v3073 = vadd.f32 0.0, %v3072
      %v3074 = vpop.f32.mrb[0].mxu0
      %3075 = vmatprep.mubr.f32.mxu0 0.0
      %3076 = vmatmul.mubr.f32.gmra.mrb[0].mxu0 %v2884
      %v3077 = vpop.f32.mrb[0].mxu0
      %v3078 = vadd.f32 0.0, %v3077
      %v3079 = vpop.f32.mrb[0].mxu0
      %3080 = vmatprep.mubr.f32.mxu0 0.0
      %3081 = vmatmul.mubr.f32.gmra.mrb[0].mxu0 %v2887
      %v3082 = vpop.f32.mrb[0].mxu0
      %v3083 = vadd.f32 0.0, %v3082
      %v3084 = vpop.f32.mrb[0].mxu0
      %3085 = vmatprep.mubr.f32.mxu0 0.0
      %3086 = vmatmul.mubr.f32.gmra.mrb[0].mxu0 %v2890
      %v3087 = vpop.f32.mrb[0].mxu0
      %v3088 = vadd.f32 0.0, %v3087
      %v3089 = vpop.f32.mrb[0].mxu0
      %3090 = vmatprep.mubr.f32.mxu0 0.0
      %3091 = vmatmul.mubr.f32.gmra.mrb[0].mxu0 %v2893
      %v3092 = vpop.f32.mrb[0].mxu0
      %v3093 = vadd.f32 0.0, %v3092
      %v3094 = vpop.f32.mrb[0].mxu0
      %3095 = vmatprep.mubr.f32.mxu0 0.0
      %3096 = vmatmul.mubr.f32.gmra.mrb[0].mxu0 %v2896
      %v3097 = vpop.f32.mrb[0].mxu0
      %v3098 = vadd.f32 0.0, %v3097
      %v3099 = vpop.f32.mrb[0].mxu0
      %3100 = vmatprep.mubr.f32.mxu0 0.0
      %3101 = vmatmul.mubr.f32.gmra.mrb[0].mxu0 %v2899
      %v3102 = vpop.f32.mrb[0].mxu0
      %v3103 = vadd.f32 0.0, %v3102
      %v3104 = vpop.f32.mrb[0].mxu0
      %3105 = vmatprep.mubr.f32.mxu0 0.0
      %3106 = vmatmul.mubr.f32.gmra.mrb[0].mxu0 %v2902
      %v3107 = vpop.f32.mrb[0].mxu0
      %v3108 = vadd.f32 0.0, %v3107
      %v3109 = vpop.f32.mrb[0].mxu0
      %3110 = vmatprep.mubr.f32.mxu0 0.0
      %3111 = vmatmul.mubr.f32.gmra.mrb[0].mxu0 %v2905
      %v3112 = vpop.f32.mrb[0].mxu0
      %v3113 = vadd.f32 0.0, %v3112
      %v3114 = vpop.f32.mrb[0].mxu0
      %3115 = vmatprep.mubr.f32.mxu0 0.0
      %3116 = vmatmul.mubr.f32.gmra.mrb[0].mxu0 %v2908
      %v3117 = vpop.f32.mrb[0].mxu0
      %v3118 = vadd.f32 0.0, %v3117
      %v3119 = vpop.f32.mrb[0].mxu0
      %3120 = vmatprep.mubr.f32.mxu0 0.0
      %3121 = vmatmul.mubr.f32.gmra.mrb[0].mxu0 %v2911
      %v3122 = vpop.f32.mrb[0].mxu0
      %v3123 = vadd.f32 0.0, %v3122
      %v3124 = vpop.f32.mrb[0].mxu0
      %3125 = vmatprep.mubr.f32.mxu0 0.0
      %3126 = vmatmul.mubr.f32.gmra.mrb[0].mxu0 %v2914
      %v3127 = vpop.f32.mrb[0].mxu0
      %v3128 = vadd.f32 0.0, %v3127
      %v3129 = vpop.f32.mrb[0].mxu0
      %3130 = vmatprep.mubr.f32.mxu0 0.0
      %3131 = vmatmul.mubr.f32.gmra.mrb[0].mxu0 %v2917
      %v3132 = vpop.f32.mrb[0].mxu0
      %v3133 = vadd.f32 0.0, %v3132
      %v3134 = vpop.f32.mrb[0].mxu0
      %3135 = vmatprep.mubr.f32.mxu0 0.0
      %3136 = vmatmul.mubr.f32.gmra.mrb[0].mxu0 %v2920
      %v3137 = vpop.f32.mrb[0].mxu0
      %v3138 = vadd.f32 0.0, %v3137
      %v3139 = vpop.f32.mrb[0].mxu0
      %3140 = vmatprep.mubr.f32.mxu0 0.0
      %3141 = vmatmul.mubr.f32.gmra.mrb[0].mxu0 %v2923
      %v3142 = vpop.f32.mrb[0].mxu0
      %v3143 = vadd.f32 0.0, %v3142
      %v3144 = vpop.f32.mrb[0].mxu0
      %3145 = vmatprep.mubr.f32.mxu0 0.0
      %3146 = vmatmul.mubr.f32.gmra.mrb[0].mxu0 %v2926
      %v3147 = vpop.f32.mrb[0].mxu0
      %v3148 = vadd.f32 0.0, %v3147
      %v3149 = vpop.f32.mrb[0].mxu0
      %3150 = vmatprep.mubr.f32.mxu0 0.0
      %3151 = vmatmul.mubr.f32.gmra.mrb[0].mxu0 %v2929
      %v3152 = vpop.f32.mrb[0].mxu0
      %v3153 = vadd.f32 0.0, %v3152
      %v3154 = vpop.f32.mrb[0].mxu0
      %3155 = vdwg.mxu0
      %v3156 = vadd.f32 %v2645, %v2998
      %v3157 = vadd.f32 %v2650, %v3003
      %v3158 = vadd.f32 %v2655, %v3008
      %v3159 = vadd.f32 %v2660, %v3013
      %v3160 = vadd.f32 %v2665, %v3018
      %v3161 = vadd.f32 %v2670, %v3023
      %v3162 = vadd.f32 %v2675, %v3028
      %v3163 = vadd.f32 %v2680, %v3033
      %v3164 = vadd.f32 %v2685, %v3038
      %v3165 = vadd.f32 %v2690, %v3043
      %v3166 = vadd.f32 %v2695, %v3048
      %v3167 = vadd.f32 %v2700, %v3053
      %v3168 = vadd.f32 %v2705, %v3058
      %v3169 = vadd.f32 %v2710, %v3063
      %v3170 = vadd.f32 %v2715, %v3068
      %v3171 = vadd.f32 %v2720, %v3073
      %v3172 = vadd.f32 %v2725, %v3078
      %v3173 = vadd.f32 %v2730, %v3083
      %v3174 = vadd.f32 %v2735, %v3088
      %v3175 = vadd.f32 %v2740, %v3093
      %v3176 = vadd.f32 %v2745, %v3098
      %v3177 = vadd.f32 %v2750, %v3103
      %v3178 = vadd.f32 %v2755, %v3108
      %v3179 = vadd.f32 %v2760, %v3113
      %v3180 = vadd.f32 %v2765, %v3118
      %v3181 = vadd.f32 %v2770, %v3123
      %v3182 = vadd.f32 %v2775, %v3128
      %v3183 = vadd.f32 %v2780, %v3133
      %v3184 = vadd.f32 %v2785, %v3138
      %v3185 = vadd.f32 %v2790, %v3143
      %v3186 = vadd.f32 %v2795, %v3148
      %v3187 = vadd.f32 %v2800, %v3153
      %v3188 = vadd.f32 %v3156, %v1685
      %v3189 = vadd.f32 %v3157, %v1685
      %v3190 = vadd.f32 %v3158, %v1685
      %v3191 = vadd.f32 %v3159, %v1685
      %v3192 = vadd.f32 %v3160, %v1685
      %v3193 = vadd.f32 %v3161, %v1685
      %v3194 = vadd.f32 %v3162, %v1685
      %v3195 = vadd.f32 %v3163, %v1685
      %v3196 = vadd.f32 %v3164, %v1685
      %v3197 = vadd.f32 %v3165, %v1685
      %v3198 = vadd.f32 %v3166, %v1685
      %v3199 = vadd.f32 %v3167, %v1685
      %v3200 = vadd.f32 %v3168, %v1685
      %v3201 = vadd.f32 %v3169, %v1685
      %v3202 = vadd.f32 %v3170, %v1685
      %v3203 = vadd.f32 %v3171, %v1685
      %v3204 = vadd.f32 %v3172, %v1685
      %v3205 = vadd.f32 %v3173, %v1685
      %v3206 = vadd.f32 %v3174, %v1685
      %v3207 = vadd.f32 %v3175, %v1685
      %v3208 = vadd.f32 %v3176, %v1685
      %v3209 = vadd.f32 %v3177, %v1685
      %v3210 = vadd.f32 %v3178, %v1685
      %v3211 = vadd.f32 %v3179, %v1685
      %v3212 = vadd.f32 %v3180, %v1685
      %v3213 = vadd.f32 %v3181, %v1685
      %v3214 = vadd.f32 %v3182, %v1685
      %v3215 = vadd.f32 %v3183, %v1685
      %v3216 = vadd.f32 %v3184, %v1685
      %v3217 = vadd.f32 %v3185, %v1685
      %v3218 = vadd.f32 %v3186, %v1685
      %v3219 = vadd.f32 %v3187, %v1685
      %v3220 = vmax.f32 %v3188, 0.0
      %v3221 = vmax.f32 %v3189, 0.0
      %v3222 = vmax.f32 %v3190, 0.0
      %v3223 = vmax.f32 %v3191, 0.0
      %v3224 = vmax.f32 %v3192, 0.0
      %v3225 = vmax.f32 %v3193, 0.0
      %v3226 = vmax.f32 %v3194, 0.0
      %v3227 = vmax.f32 %v3195, 0.0
      %v3228 = vmax.f32 %v3196, 0.0
      %v3229 = vmax.f32 %v3197, 0.0
      %v3230 = vmax.f32 %v3198, 0.0
      %v3231 = vmax.f32 %v3199, 0.0
      %v3232 = vmax.f32 %v3200, 0.0
      %v3233 = vmax.f32 %v3201, 0.0
      %v3234 = vmax.f32 %v3202, 0.0
      %v3235 = vmax.f32 %v3203, 0.0
      %v3236 = vmax.f32 %v3204, 0.0
      %v3237 = vmax.f32 %v3205, 0.0
      %v3238 = vmax.f32 %v3206, 0.0
      %v3239 = vmax.f32 %v3207, 0.0
      %v3240 = vmax.f32 %v3208, 0.0
      %v3241 = vmax.f32 %v3209, 0.0
      %v3242 = vmax.f32 %v3210, 0.0
      %v3243 = vmax.f32 %v3211, 0.0
      %v3244 = vmax.f32 %v3212, 0.0
      %v3245 = vmax.f32 %v3213, 0.0
      %v3246 = vmax.f32 %v3214, 0.0
      %v3247 = vmax.f32 %v3215, 0.0
      %v3248 = vmax.f32 %v3216, 0.0
      %v3249 = vmax.f32 %v3217, 0.0
      %v3250 = vmax.f32 %v3218, 0.0
      %v3251 = vmax.f32 %v3219, 0.0
      %s3252 = scalar_lea.vmem %s1, 48
      %v3253 = vld [vmem:[%s3252] sm:$0xff]
      %v3254 = vld [vmem:[%s3252 + $0x8] sm:$0xf]
      %v3255 = vld [vmem:[%s3252 + $0x10] sm:$0xff]
      %v3256 = vld [vmem:[%s3252 + $0x18] sm:$0xf]
      %v3257 = vld [vmem:[%s3252 + $0x20] sm:$0xff]
      %v3258 = vld [vmem:[%s3252 + $0x28] sm:$0xf]
      %s3259 = scalar_lea.vmem %s2, 1
      %v3260 = vld [vmem:[%s3259] sm:$0x1]
      %3293 = vrot.lane.b32.xlu0 %v3220, 4
      %v3294 = vpop.permute.xlu0 %3293
      %3295 = vrot.lane.b32.xlu0 %v3221, 4
      %v3296 = vpop.permute.xlu0 %3295
      %3297 = vrot.lane.b32.xlu0 %v3222, 4
      %v3298 = vpop.permute.xlu0 %3297
      %3299 = vrot.lane.b32.xlu0 %v3223, 4
      %v3300 = vpop.permute.xlu0 %3299
      %3301 = vrot.lane.b32.xlu0 %v3224, 4
      %v3302 = vpop.permute.xlu0 %3301
      %3303 = vrot.lane.b32.xlu0 %v3225, 4
      %v3304 = vpop.permute.xlu0 %3303
      %3305 = vrot.lane.b32.xlu0 %v3226, 4
      %v3306 = vpop.permute.xlu0 %3305
      %3307 = vrot.lane.b32.xlu0 %v3227, 4
      %v3308 = vpop.permute.xlu0 %3307
      %3309 = vrot.lane.b32.xlu0 %v3228, 4
      %v3310 = vpop.permute.xlu0 %3309
      %3311 = vrot.lane.b32.xlu0 %v3229, 4
      %v3312 = vpop.permute.xlu0 %3311
      %3313 = vrot.lane.b32.xlu0 %v3230, 4
      %v3314 = vpop.permute.xlu0 %3313
      %3315 = vrot.lane.b32.xlu0 %v3231, 4
      %v3316 = vpop.permute.xlu0 %3315
      %3317 = vrot.lane.b32.xlu0 %v3232, 4
      %v3318 = vpop.permute.xlu0 %3317
      %3319 = vrot.lane.b32.xlu0 %v3233, 4
      %v3320 = vpop.permute.xlu0 %3319
      %3321 = vrot.lane.b32.xlu0 %v3234, 4
      %v3322 = vpop.permute.xlu0 %3321
      %3323 = vrot.lane.b32.xlu0 %v3235, 4
      %v3324 = vpop.permute.xlu0 %3323
      %3325 = vrot.lane.b32.xlu0 %v3236, 4
      %v3326 = vpop.permute.xlu0 %3325
      %3327 = vrot.lane.b32.xlu0 %v3237, 4
      %v3328 = vpop.permute.xlu0 %3327
      %3329 = vrot.lane.b32.xlu0 %v3238, 4
      %v3330 = vpop.permute.xlu0 %3329
      %3331 = vrot.lane.b32.xlu0 %v3239, 4
      %v3332 = vpop.permute.xlu0 %3331
      %3333 = vrot.lane.b32.xlu0 %v3240, 4
      %v3334 = vpop.permute.xlu0 %3333
      %3335 = vrot.lane.b32.xlu0 %v3241, 4
      %v3336 = vpop.permute.xlu0 %3335
      %3337 = vrot.lane.b32.xlu0 %v3242, 4
      %v3338 = vpop.permute.xlu0 %3337
      %3339 = vrot.lane.b32.xlu0 %v3243, 4
      %v3340 = vpop.permute.xlu0 %3339
      %3341 = vrot.lane.b32.xlu0 %v3244, 4
      %v3342 = vpop.permute.xlu0 %3341
      %3343 = vrot.lane.b32.xlu0 %v3245, 4
      %v3344 = vpop.permute.xlu0 %3343
      %3345 = vrot.lane.b32.xlu0 %v3246, 4
      %v3346 = vpop.permute.xlu0 %3345
      %3347 = vrot.lane.b32.xlu0 %v3247, 4
      %v3348 = vpop.permute.xlu0 %3347
      %3349 = vrot.lane.b32.xlu0 %v3248, 4
      %v3350 = vpop.permute.xlu0 %3349
      %3351 = vrot.lane.b32.xlu0 %v3249, 4
      %v3352 = vpop.permute.xlu0 %3351
      %3353 = vrot.lane.b32.xlu0 %v3250, 4
      %v3354 = vpop.permute.xlu0 %3353
      %3355 = vrot.lane.b32.xlu0 %v3251, 4
      %v3356 = vpop.permute.xlu0 %3355
      %3389 = vrot.lane.b32.xlu0 %v3222, 8
      %v3390 = vpop.permute.xlu0 %3389
      %3391 = vrot.lane.b32.xlu0 %v3223, 8
      %v3392 = vpop.permute.xlu0 %3391
      %3393 = vrot.lane.b32.xlu0 %v3224, 8
      %v3394 = vpop.permute.xlu0 %3393
      %3395 = vrot.lane.b32.xlu0 %v3225, 8
      %v3396 = vpop.permute.xlu0 %3395
      %3397 = vrot.lane.b32.xlu0 %v3226, 8
      %v3398 = vpop.permute.xlu0 %3397
      %3399 = vrot.lane.b32.xlu0 %v3227, 8
      %v3400 = vpop.permute.xlu0 %3399
      %3401 = vrot.lane.b32.xlu0 %v3228, 8
      %v3402 = vpop.permute.xlu0 %3401
      %3403 = vrot.lane.b32.xlu0 %v3229, 8
      %v3404 = vpop.permute.xlu0 %3403
      %3405 = vrot.lane.b32.xlu0 %v3230, 8
      %v3406 = vpop.permute.xlu0 %3405
      %3407 = vrot.lane.b32.xlu0 %v3231, 8
      %v3408 = vpop.permute.xlu0 %3407
      %3409 = vrot.lane.b32.xlu0 %v3232, 8
      %v3410 = vpop.permute.xlu0 %3409
      %3411 = vrot.lane.b32.xlu0 %v3233, 8
      %v3412 = vpop.permute.xlu0 %3411
      %3413 = vrot.lane.b32.xlu0 %v3234, 8
      %v3414 = vpop.permute.xlu0 %3413
      %3415 = vrot.lane.b32.xlu0 %v3235, 8
      %v3416 = vpop.permute.xlu0 %3415
      %3417 = vrot.lane.b32.xlu0 %v3236, 8
      %v3418 = vpop.permute.xlu0 %3417
      %3419 = vrot.lane.b32.xlu0 %v3237, 8
      %v3420 = vpop.permute.xlu0 %3419
      %3421 = vrot.lane.b32.xlu0 %v3238, 8
      %v3422 = vpop.permute.xlu0 %3421
      %3423 = vrot.lane.b32.xlu0 %v3239, 8
      %v3424 = vpop.permute.xlu0 %3423
      %3425 = vrot.lane.b32.xlu0 %v3240, 8
      %v3426 = vpop.permute.xlu0 %3425
      %3427 = vrot.lane.b32.xlu0 %v3241, 8
      %v3428 = vpop.permute.xlu0 %3427
      %3429 = vrot.lane.b32.xlu0 %v3242, 8
      %v3430 = vpop.permute.xlu0 %3429
      %3431 = vrot.lane.b32.xlu0 %v3243, 8
      %v3432 = vpop.permute.xlu0 %3431
      %3433 = vrot.lane.b32.xlu0 %v3244, 8
      %v3434 = vpop.permute.xlu0 %3433
      %3435 = vrot.lane.b32.xlu0 %v3245, 8
      %v3436 = vpop.permute.xlu0 %3435
      %3437 = vrot.lane.b32.xlu0 %v3246, 8
      %v3438 = vpop.permute.xlu0 %3437
      %3439 = vrot.lane.b32.xlu0 %v3247, 8
      %v3440 = vpop.permute.xlu0 %3439
      %3441 = vrot.lane.b32.xlu0 %v3248, 8
      %v3442 = vpop.permute.xlu0 %3441
      %3443 = vrot.lane.b32.xlu0 %v3249, 8
      %v3444 = vpop.permute.xlu0 %3443
      %3445 = vrot.lane.b32.xlu0 %v3250, 8
      %v3446 = vpop.permute.xlu0 %3445
      %3447 = vrot.lane.b32.xlu0 %v3251, 8
      %v3448 = vpop.permute.xlu0 %3447
      %v3479 = vsel %vm482, 0.0, %v3294
      %v3480 = vsel %vm482, 0.0, %v3296
      %v3481 = vsel %vm482, %v3220, %v3298
      %v3482 = vsel %vm482, %v3221, %v3300
      %v3483 = vsel %vm482, %v3222, %v3302
      %v3484 = vsel %vm482, %v3223, %v3304
      %v3485 = vsel %vm482, %v3224, %v3306
      %v3486 = vsel %vm482, %v3225, %v3308
      %v3487 = vsel %vm482, %v3226, %v3310
      %v3488 = vsel %vm482, %v3227, %v3312
      %v3489 = vsel %vm482, %v3228, %v3314
      %v3490 = vsel %vm482, %v3229, %v3316
      %v3491 = vsel %vm482, %v3230, %v3318
      %v3492 = vsel %vm482, %v3231, %v3320
      %v3493 = vsel %vm482, %v3232, %v3322
      %v3494 = vsel %vm482, %v3233, %v3324
      %v3495 = vsel %vm482, %v3234, %v3326
      %v3496 = vsel %vm482, %v3235, %v3328
      %v3497 = vsel %vm482, %v3236, %v3330
      %v3498 = vsel %vm482, %v3237, %v3332
      %v3499 = vsel %vm482, %v3238, %v3334
      %v3500 = vsel %vm482, %v3239, %v3336
      %v3501 = vsel %vm482, %v3240, %v3338
      %v3502 = vsel %vm482, %v3241, %v3340
      %v3503 = vsel %vm482, %v3242, %v3342
      %v3504 = vsel %vm482, %v3243, %v3344
      %v3505 = vsel %vm482, %v3244, %v3346
      %v3506 = vsel %vm482, %v3245, %v3348
      %v3507 = vsel %vm482, %v3246, %v3350
      %v3508 = vsel %vm482, %v3247, %v3352
      %v3509 = vsel %vm482, %v3248, %v3354
      %v3510 = vsel %vm482, %v3249, %v3356
      %v3511 = vsel %vm515, %v3479, %v3390
      %v3512 = vsel %vm515, %v3480, %v3392
      %v3513 = vsel %vm515, %v3481, %v3394
      %v3514 = vsel %vm515, %v3482, %v3396
      %v3515 = vsel %vm515, %v3483, %v3398
      %v3516 = vsel %vm515, %v3484, %v3400
      %v3517 = vsel %vm515, %v3485, %v3402
      %v3518 = vsel %vm515, %v3486, %v3404
      %v3519 = vsel %vm515, %v3487, %v3406
      %v3520 = vsel %vm515, %v3488, %v3408
      %v3521 = vsel %vm515, %v3489, %v3410
      %v3522 = vsel %vm515, %v3490, %v3412
      %v3523 = vsel %vm515, %v3491, %v3414
      %v3524 = vsel %vm515, %v3492, %v3416
      %v3525 = vsel %vm515, %v3493, %v3418
      %v3526 = vsel %vm515, %v3494, %v3420
      %v3527 = vsel %vm515, %v3495, %v3422
      %v3528 = vsel %vm515, %v3496, %v3424
      %v3529 = vsel %vm515, %v3497, %v3426
      %v3530 = vsel %vm515, %v3498, %v3428
      %v3531 = vsel %vm515, %v3499, %v3430
      %v3532 = vsel %vm515, %v3500, %v3432
      %v3533 = vsel %vm515, %v3501, %v3434
      %v3534 = vsel %vm515, %v3502, %v3436
      %v3535 = vsel %vm515, %v3503, %v3438
      %v3536 = vsel %vm515, %v3504, %v3440
      %v3537 = vsel %vm515, %v3505, %v3442
      %v3538 = vsel %vm515, %v3506, %v3444
      %v3539 = vsel %vm515, %v3507, %v3446
      %v3540 = vsel %vm515, %v3508, %v3448
      %v3541 = vsel %vm515, %v3509, %v450
      %v3542 = vsel %vm515, %v3510, %v450
      %3543 = vst.msk [vmem:[#allocation2 + $0x1] sm:$0xff] %vm203, %v3511
      %3544 = vst.msk [vmem:[#allocation2 + $0x9] sm:$0xff] %vm203, %v3512
      %3545 = vst.msk [vmem:[#allocation2 + $0x19] sm:$0xff] %vm203, %v3513
      %3546 = vst.msk [vmem:[#allocation2 + $0x21] sm:$0xff] %vm203, %v3514
      %3547 = vst.msk [vmem:[#allocation2 + $0x31] sm:$0xff] %vm203, %v3515
      %3548 = vst.msk [vmem:[#allocation2 + $0x39] sm:$0xff] %vm203, %v3516
      %3549 = vst.msk [vmem:[#allocation2 + $0x49] sm:$0xff] %vm203, %v3517
      %3550 = vst.msk [vmem:[#allocation2 + $0x51] sm:$0xff] %vm203, %v3518
      %3551 = vst.msk [vmem:[#allocation2 + $0x61] sm:$0xff] %vm203, %v3519
      %3552 = vst.msk [vmem:[#allocation2 + $0x69] sm:$0xff] %vm203, %v3520
      %3553 = vst.msk [vmem:[#allocation2 + $0x79] sm:$0xff] %vm203, %v3521
      %3554 = vst.msk [vmem:[#allocation2 + $0x81] sm:$0xff] %vm203, %v3522
      %3555 = vst.msk [vmem:[#allocation2 + $0x91] sm:$0xff] %vm203, %v3523
      %3556 = vst.msk [vmem:[#allocation2 + $0x99] sm:$0xff] %vm203, %v3524
      %3557 = vst.msk [vmem:[#allocation2 + $0xa9] sm:$0xff] %vm203, %v3525
      %3558 = vst.msk [vmem:[#allocation2 + $0xb1] sm:$0xff] %vm203, %v3526
      %3559 = vst.msk [vmem:[#allocation2 + $0xc1] sm:$0xff] %vm203, %v3527
      %3560 = vst.msk [vmem:[#allocation2 + $0xc9] sm:$0xff] %vm203, %v3528
      %3561 = vst.msk [vmem:[#allocation2 + $0xd9] sm:$0xff] %vm203, %v3529
      %3562 = vst.msk [vmem:[#allocation2 + $0xe1] sm:$0xff] %vm203, %v3530
      %3563 = vst.msk [vmem:[#allocation2 + $0xf1] sm:$0xff] %vm203, %v3531
      %3564 = vst.msk [vmem:[#allocation2 + $0xf9] sm:$0xff] %vm203, %v3532
      %3565 = vst.msk [vmem:[#allocation2 + $0x109] sm:$0xff] %vm203, %v3533
      %3566 = vst.msk [vmem:[#allocation2 + $0x111] sm:$0xff] %vm203, %v3534
      %3567 = vst.msk [vmem:[#allocation2 + $0x121] sm:$0xff] %vm203, %v3535
      %3568 = vst.msk [vmem:[#allocation2 + $0x129] sm:$0xff] %vm203, %v3536
      %3569 = vst.msk [vmem:[#allocation2 + $0x139] sm:$0xff] %vm203, %v3537
      %3570 = vst.msk [vmem:[#allocation2 + $0x141] sm:$0xff] %vm203, %v3538
      %3571 = vst.msk [vmem:[#allocation2 + $0x151] sm:$0xff] %vm203, %v3539
      %3572 = vst.msk [vmem:[#allocation2 + $0x159] sm:$0xff] %vm203, %v3540
      %3573 = vst.msk [vmem:[#allocation2 + $0x169] sm:$0xff] %vm203, %v3541
      %3574 = vst.msk [vmem:[#allocation2 + $0x171] sm:$0xff] %vm203, %v3542
      %v3575 = vld [vmem:[#allocation2] sm:$0xff]
      %v3576 = vld [vmem:[#allocation2 + $0x8] sm:$0xff]
      %v3577 = vld [vmem:[#allocation2 + $0x18] sm:$0xff]
      %v3578 = vld [vmem:[#allocation2 + $0x20] sm:$0xff]
      %v3579 = vld [vmem:[#allocation2 + $0x30] sm:$0xff]
      %v3580 = vld [vmem:[#allocation2 + $0x38] sm:$0xff]
      %v3581 = vld [vmem:[#allocation2 + $0x48] sm:$0xff]
      %v3582 = vld [vmem:[#allocation2 + $0x50] sm:$0xff]
      %v3583 = vld [vmem:[#allocation2 + $0x60] sm:$0xff]
      %v3584 = vld [vmem:[#allocation2 + $0x68] sm:$0xff]
      %v3585 = vld [vmem:[#allocation2 + $0x78] sm:$0xff]
      %v3586 = vld [vmem:[#allocation2 + $0x80] sm:$0xff]
      %v3587 = vld [vmem:[#allocation2 + $0x90] sm:$0xff]
      %v3588 = vld [vmem:[#allocation2 + $0x98] sm:$0xff]
      %v3589 = vld [vmem:[#allocation2 + $0xa8] sm:$0xff]
      %v3590 = vld [vmem:[#allocation2 + $0xb0] sm:$0xff]
      %v3591 = vld [vmem:[#allocation2 + $0xc0] sm:$0xff]
      %v3592 = vld [vmem:[#allocation2 + $0xc8] sm:$0xff]
      %v3593 = vld [vmem:[#allocation2 + $0xd8] sm:$0xff]
      %v3594 = vld [vmem:[#allocation2 + $0xe0] sm:$0xff]
      %v3595 = vld [vmem:[#allocation2 + $0xf0] sm:$0xff]
      %v3596 = vld [vmem:[#allocation2 + $0xf8] sm:$0xff]
      %v3597 = vld [vmem:[#allocation2 + $0x108] sm:$0xff]
      %v3598 = vld [vmem:[#allocation2 + $0x110] sm:$0xff]
      %v3599 = vld [vmem:[#allocation2 + $0x120] sm:$0xff]
      %v3600 = vld [vmem:[#allocation2 + $0x128] sm:$0xff]
      %v3601 = vld [vmem:[#allocation2 + $0x138] sm:$0xff]
      %v3602 = vld [vmem:[#allocation2 + $0x140] sm:$0xff]
      %v3603 = vld [vmem:[#allocation2 + $0x150] sm:$0xff]
      %v3604 = vld [vmem:[#allocation2 + $0x158] sm:$0xff]
      %v3605 = vld [vmem:[#allocation2 + $0x168] sm:$0xff]
      %v3606 = vld [vmem:[#allocation2 + $0x170] sm:$0xff]
      %v3607 = vld [vmem:[#allocation2 + $0x1] sm:$0xff]
      %v3608 = vld [vmem:[#allocation2 + $0x9] sm:$0xff]
      %v3609 = vld [vmem:[#allocation2 + $0x19] sm:$0xff]
      %v3610 = vld [vmem:[#allocation2 + $0x21] sm:$0xff]
      %v3611 = vld [vmem:[#allocation2 + $0x31] sm:$0xff]
      %v3612 = vld [vmem:[#allocation2 + $0x39] sm:$0xff]
      %v3613 = vld [vmem:[#allocation2 + $0x49] sm:$0xff]
      %v3614 = vld [vmem:[#allocation2 + $0x51] sm:$0xff]
      %v3615 = vld [vmem:[#allocation2 + $0x61] sm:$0xff]
      %v3616 = vld [vmem:[#allocation2 + $0x69] sm:$0xff]
      %v3617 = vld [vmem:[#allocation2 + $0x79] sm:$0xff]
      %v3618 = vld [vmem:[#allocation2 + $0x81] sm:$0xff]
      %v3619 = vld [vmem:[#allocation2 + $0x91] sm:$0xff]
      %v3620 = vld [vmem:[#allocation2 + $0x99] sm:$0xff]
      %v3621 = vld [vmem:[#allocation2 + $0xa9] sm:$0xff]
      %v3622 = vld [vmem:[#allocation2 + $0xb1] sm:$0xff]
      %v3623 = vld [vmem:[#allocation2 + $0xc1] sm:$0xff]
      %v3624 = vld [vmem:[#allocation2 + $0xc9] sm:$0xff]
      %v3625 = vld [vmem:[#allocation2 + $0xd9] sm:$0xff]
      %v3626 = vld [vmem:[#allocation2 + $0xe1] sm:$0xff]
      %v3627 = vld [vmem:[#allocation2 + $0xf1] sm:$0xff]
      %v3628 = vld [vmem:[#allocation2 + $0xf9] sm:$0xff]
      %v3629 = vld [vmem:[#allocation2 + $0x109] sm:$0xff]
      %v3630 = vld [vmem:[#allocation2 + $0x111] sm:$0xff]
      %v3631 = vld [vmem:[#allocation2 + $0x121] sm:$0xff]
      %v3632 = vld [vmem:[#allocation2 + $0x129] sm:$0xff]
      %v3633 = vld [vmem:[#allocation2 + $0x139] sm:$0xff]
      %v3634 = vld [vmem:[#allocation2 + $0x141] sm:$0xff]
      %v3635 = vld [vmem:[#allocation2 + $0x151] sm:$0xff]
      %v3636 = vld [vmem:[#allocation2 + $0x159] sm:$0xff]
      %v3637 = vld [vmem:[#allocation2 + $0x169] sm:$0xff]
      %v3638 = vld [vmem:[#allocation2 + $0x171] sm:$0xff]
      %v3640 = vsel %vm203, %v3607, 0
      %v3643 = vsel %vm203, %v3608, 0
      %v3646 = vsel %vm203, %v3609, 0
      %v3649 = vsel %vm203, %v3610, 0
      %v3652 = vsel %vm203, %v3611, 0
      %v3655 = vsel %vm203, %v3612, 0
      %v3658 = vsel %vm203, %v3613, 0
      %v3661 = vsel %vm203, %v3614, 0
      %v3664 = vsel %vm203, %v3615, 0
      %v3667 = vsel %vm203, %v3616, 0
      %v3670 = vsel %vm203, %v3617, 0
      %v3673 = vsel %vm203, %v3618, 0
      %v3676 = vsel %vm203, %v3619, 0
      %v3679 = vsel %vm203, %v3620, 0
      %v3682 = vsel %vm203, %v3621, 0
      %v3685 = vsel %vm203, %v3622, 0
      %v3688 = vsel %vm203, %v3623, 0
      %v3691 = vsel %vm203, %v3624, 0
      %v3694 = vsel %vm203, %v3625, 0
      %v3697 = vsel %vm203, %v3626, 0
      %v3700 = vsel %vm203, %v3627, 0
      %v3703 = vsel %vm203, %v3628, 0
      %v3706 = vsel %vm203, %v3629, 0
      %v3709 = vsel %vm203, %v3630, 0
      %v3712 = vsel %vm203, %v3631, 0
      %v3715 = vsel %vm203, %v3632, 0
      %v3718 = vsel %vm203, %v3633, 0
      %v3721 = vsel %vm203, %v3634, 0
      %v3724 = vsel %vm203, %v3635, 0
      %v3727 = vsel %vm203, %v3636, 0
      %v3730 = vsel %vm203, %v3637, 0
      %v3733 = vsel %vm203, %v3638, 0
      %v3736 = vsel %vm740, %v3256, 0
      %3738 = vmatprep.subr.mxu0 0.0
      %3739 = vmatpush1.msra.mxu0 %v3255
      %3740 = vmatprep.subr.mxu0 0.0
      %3741 = vmatpush1.msra.mxu0 %v3736
      %3742 = vmatprep.subr.mxu0 0.0
      %3743 = vmatpush1.msra.mxu0 0.0
      %3744 = vmatprep.subr.mxu0 0.0
      %3745 = vmatpush1.msra.mxu0 0.0
      %3746 = vmatprep.subr.mxu0 0.0
      %3747 = vmatpush1.msra.mxu0 0.0
      %3748 = vmatprep.subr.mxu0 0.0
      %3749 = vmatpush1.msra.mxu0 0.0
      %3750 = vmatprep.subr.mxu0 0.0
      %3751 = vmatpush1.msra.mxu0 0.0
      %3752 = vmatprep.subr.mxu0 0.0
      %3753 = vmatpush1.msra.mxu0 0.0
      %3754 = vmatprep.subr.mxu0 0.0
      %3755 = vmatpush1.msra.mxu0 0.0
      %3756 = vmatprep.subr.mxu0 0.0
      %3757 = vmatpush1.msra.mxu0 0.0
      %3758 = vmatprep.subr.mxu0 0.0
      %3759 = vmatpush1.msra.mxu0 0.0
      %3760 = vmatprep.subr.mxu0 0.0
      %3761 = vmatpush1.msra.mxu0 0.0
      %3762 = vmatprep.subr.mxu0 0.0
      %3763 = vmatpush1.msra.mxu0 0.0
      %3764 = vmatprep.subr.mxu0 0.0
      %3765 = vmatpush1.msra.mxu0 0.0
      %3766 = vmatprep.subr.mxu0 0.0
      %3767 = vmatpush1.msra.mxu0 0.0
      %3768 = vmatprep.subr.mxu0 0.0
      %3769 = vmatpush1.msra.mxu0 0.0
      %3770 = vmatprep.subr.mxu0 0.0
      %3771 = vmatpush1.msra.mxu0 0.0
      %3772 = vmatprep.subr.mxu0 0.0
      %3773 = vmatpush1.msra.mxu0 0.0
      %3774 = vmatprep.subr.mxu0 0.0
      %3775 = vmatpush1.msra.mxu0 0.0
      %3776 = vmatprep.subr.mxu0 0.0
      %3777 = vmatpush1.msra.mxu0 0.0
      %3778 = vmatprep.subr.mxu0 0.0
      %3779 = vmatpush1.msra.mxu0 0.0
      %3780 = vmatprep.subr.mxu0 0.0
      %3781 = vmatpush1.msra.mxu0 0.0
      %3782 = vmatprep.subr.mxu0 0.0
      %3783 = vmatpush1.msra.mxu0 0.0
      %3784 = vmatprep.subr.mxu0 0.0
      %3785 = vmatpush1.msra.mxu0 0.0
      %3786 = vmatprep.subr.mxu0 0.0
      %3787 = vmatpush1.msra.mxu0 0.0
      %3788 = vmatprep.subr.mxu0 0.0
      %3789 = vmatpush1.msra.mxu0 0.0
      %3790 = vmatprep.subr.mxu0 0.0
      %3791 = vmatpush1.msra.mxu0 0.0
      %3792 = vmatprep.subr.mxu0 0.0
      %3793 = vmatpush1.msra.mxu0 0.0
      %3794 = vmatprep.subr.mxu0 0.0
      %3795 = vmatpush1.msra.mxu0 0.0
      %3796 = vmatprep.subr.mxu0 0.0
      %3797 = vmatpush1.msra.mxu0 0.0
      %3798 = vmatprep.subr.mxu0 0.0
      %3799 = vmatpush1.msra.mxu0 0.0
      %3800 = vmatprep.subr.mxu0 0.0
      %3801 = vmatpush1.msra.mxu0 0.0
      %3802 = vmatprep.mubr.f32.mxu0 0.0
      %3803 = vmatmul.mubr.f32.gmra.mrb[0].mxu0 %v3640
      %v3804 = vpop.f32.mrb[0].mxu0
      %v3805 = vadd.f32 0.0, %v3804
      %v3806 = vpop.f32.mrb[0].mxu0
      %3807 = vmatprep.mubr.f32.mxu0 0.0
      %3808 = vmatmul.mubr.f32.gmra.mrb[0].mxu0 %v3643
      %v3809 = vpop.f32.mrb[0].mxu0
      %v3810 = vadd.f32 0.0, %v3809
      %v3811 = vpop.f32.mrb[0].mxu0
      %3812 = vmatprep.mubr.f32.mxu0 0.0
      %3813 = vmatmul.mubr.f32.gmra.mrb[0].mxu0 %v3646
      %v3814 = vpop.f32.mrb[0].mxu0
      %v3815 = vadd.f32 0.0, %v3814
      %v3816 = vpop.f32.mrb[0].mxu0
      %3817 = vmatprep.mubr.f32.mxu0 0.0
      %3818 = vmatmul.mubr.f32.gmra.mrb[0].mxu0 %v3649
      %v3819 = vpop.f32.mrb[0].mxu0
      %v3820 = vadd.f32 0.0, %v3819
      %v3821 = vpop.f32.mrb[0].mxu0
      %3822 = vmatprep.mubr.f32.mxu0 0.0
      %3823 = vmatmul.mubr.f32.gmra.mrb[0].mxu0 %v3652
      %v3824 = vpop.f32.mrb[0].mxu0
      %v3825 = vadd.f32 0.0, %v3824
      %v3826 = vpop.f32.mrb[0].mxu0
      %3827 = vmatprep.mubr.f32.mxu0 0.0
      %3828 = vmatmul.mubr.f32.gmra.mrb[0].mxu0 %v3655
      %v3829 = vpop.f32.mrb[0].mxu0
      %v3830 = vadd.f32 0.0, %v3829
      %v3831 = vpop.f32.mrb[0].mxu0
      %3832 = vmatprep.mubr.f32.mxu0 0.0
      %3833 = vmatmul.mubr.f32.gmra.mrb[0].mxu0 %v3658
      %v3834 = vpop.f32.mrb[0].mxu0
      %v3835 = vadd.f32 0.0, %v3834
      %v3836 = vpop.f32.mrb[0].mxu0
      %3837 = vmatprep.mubr.f32.mxu0 0.0
      %3838 = vmatmul.mubr.f32.gmra.mrb[0].mxu0 %v3661
      %v3839 = vpop.f32.mrb[0].mxu0
      %v3840 = vadd.f32 0.0, %v3839
      %v3841 = vpop.f32.mrb[0].mxu0
      %3842 = vmatprep.mubr.f32.mxu0 0.0
      %3843 = vmatmul.mubr.f32.gmra.mrb[0].mxu0 %v3664
      %v3844 = vpop.f32.mrb[0].mxu0
      %v3845 = vadd.f32 0.0, %v3844
      %v3846 = vpop.f32.mrb[0].mxu0
      %3847 = vmatprep.mubr.f32.mxu0 0.0
      %3848 = vmatmul.mubr.f32.gmra.mrb[0].mxu0 %v3667
      %v3849 = vpop.f32.mrb[0].mxu0
      %v3850 = vadd.f32 0.0, %v3849
      %v3851 = vpop.f32.mrb[0].mxu0
      %3852 = vmatprep.mubr.f32.mxu0 0.0
      %3853 = vmatmul.mubr.f32.gmra.mrb[0].mxu0 %v3670
      %v3854 = vpop.f32.mrb[0].mxu0
      %v3855 = vadd.f32 0.0, %v3854
      %v3856 = vpop.f32.mrb[0].mxu0
      %3857 = vmatprep.mubr.f32.mxu0 0.0
      %3858 = vmatmul.mubr.f32.gmra.mrb[0].mxu0 %v3673
      %v3859 = vpop.f32.mrb[0].mxu0
      %v3860 = vadd.f32 0.0, %v3859
      %v3861 = vpop.f32.mrb[0].mxu0
      %3862 = vmatprep.mubr.f32.mxu0 0.0
      %3863 = vmatmul.mubr.f32.gmra.mrb[0].mxu0 %v3676
      %v3864 = vpop.f32.mrb[0].mxu0
      %v3865 = vadd.f32 0.0, %v3864
      %v3866 = vpop.f32.mrb[0].mxu0
      %3867 = vmatprep.mubr.f32.mxu0 0.0
      %3868 = vmatmul.mubr.f32.gmra.mrb[0].mxu0 %v3679
      %v3869 = vpop.f32.mrb[0].mxu0
      %v3870 = vadd.f32 0.0, %v3869
      %v3871 = vpop.f32.mrb[0].mxu0
      %3872 = vmatprep.mubr.f32.mxu0 0.0
      %3873 = vmatmul.mubr.f32.gmra.mrb[0].mxu0 %v3682
      %v3874 = vpop.f32.mrb[0].mxu0
      %v3875 = vadd.f32 0.0, %v3874
      %v3876 = vpop.f32.mrb[0].mxu0
      %3877 = vmatprep.mubr.f32.mxu0 0.0
      %3878 = vmatmul.mubr.f32.gmra.mrb[0].mxu0 %v3685
      %v3879 = vpop.f32.mrb[0].mxu0
      %v3880 = vadd.f32 0.0, %v3879
      %v3881 = vpop.f32.mrb[0].mxu0
      %3882 = vmatprep.mubr.f32.mxu0 0.0
      %3883 = vmatmul.mubr.f32.gmra.mrb[0].mxu0 %v3688
      %v3884 = vpop.f32.mrb[0].mxu0
      %v3885 = vadd.f32 0.0, %v3884
      %v3886 = vpop.f32.mrb[0].mxu0
      %3887 = vmatprep.mubr.f32.mxu0 0.0
      %3888 = vmatmul.mubr.f32.gmra.mrb[0].mxu0 %v3691
      %v3889 = vpop.f32.mrb[0].mxu0
      %v3890 = vadd.f32 0.0, %v3889
      %v3891 = vpop.f32.mrb[0].mxu0
      %3892 = vmatprep.mubr.f32.mxu0 0.0
      %3893 = vmatmul.mubr.f32.gmra.mrb[0].mxu0 %v3694
      %v3894 = vpop.f32.mrb[0].mxu0
      %v3895 = vadd.f32 0.0, %v3894
      %v3896 = vpop.f32.mrb[0].mxu0
      %3897 = vmatprep.mubr.f32.mxu0 0.0
      %3898 = vmatmul.mubr.f32.gmra.mrb[0].mxu0 %v3697
      %v3899 = vpop.f32.mrb[0].mxu0
      %v3900 = vadd.f32 0.0, %v3899
      %v3901 = vpop.f32.mrb[0].mxu0
      %3902 = vmatprep.mubr.f32.mxu0 0.0
      %3903 = vmatmul.mubr.f32.gmra.mrb[0].mxu0 %v3700
      %v3904 = vpop.f32.mrb[0].mxu0
      %v3905 = vadd.f32 0.0, %v3904
      %v3906 = vpop.f32.mrb[0].mxu0
      %3907 = vmatprep.mubr.f32.mxu0 0.0
      %3908 = vmatmul.mubr.f32.gmra.mrb[0].mxu0 %v3703
      %v3909 = vpop.f32.mrb[0].mxu0
      %v3910 = vadd.f32 0.0, %v3909
      %v3911 = vpop.f32.mrb[0].mxu0
      %3912 = vmatprep.mubr.f32.mxu0 0.0
      %3913 = vmatmul.mubr.f32.gmra.mrb[0].mxu0 %v3706
      %v3914 = vpop.f32.mrb[0].mxu0
      %v3915 = vadd.f32 0.0, %v3914
      %v3916 = vpop.f32.mrb[0].mxu0
      %3917 = vmatprep.mubr.f32.mxu0 0.0
      %3918 = vmatmul.mubr.f32.gmra.mrb[0].mxu0 %v3709
      %v3919 = vpop.f32.mrb[0].mxu0
      %v3920 = vadd.f32 0.0, %v3919
      %v3921 = vpop.f32.mrb[0].mxu0
      %3922 = vmatprep.mubr.f32.mxu0 0.0
      %3923 = vmatmul.mubr.f32.gmra.mrb[0].mxu0 %v3712
      %v3924 = vpop.f32.mrb[0].mxu0
      %v3925 = vadd.f32 0.0, %v3924
      %v3926 = vpop.f32.mrb[0].mxu0
      %3927 = vmatprep.mubr.f32.mxu0 0.0
      %3928 = vmatmul.mubr.f32.gmra.mrb[0].mxu0 %v3715
      %v3929 = vpop.f32.mrb[0].mxu0
      %v3930 = vadd.f32 0.0, %v3929
      %v3931 = vpop.f32.mrb[0].mxu0
      %3932 = vmatprep.mubr.f32.mxu0 0.0
      %3933 = vmatmul.mubr.f32.gmra.mrb[0].mxu0 %v3718
      %v3934 = vpop.f32.mrb[0].mxu0
      %v3935 = vadd.f32 0.0, %v3934
      %v3936 = vpop.f32.mrb[0].mxu0
      %3937 = vmatprep.mubr.f32.mxu0 0.0
      %3938 = vmatmul.mubr.f32.gmra.mrb[0].mxu0 %v3721
      %v3939 = vpop.f32.mrb[0].mxu0
      %v3940 = vadd.f32 0.0, %v3939
      %v3941 = vpop.f32.mrb[0].mxu0
      %3942 = vmatprep.mubr.f32.mxu0 0.0
      %3943 = vmatmul.mubr.f32.gmra.mrb[0].mxu0 %v3724
      %v3944 = vpop.f32.mrb[0].mxu0
      %v3945 = vadd.f32 0.0, %v3944
      %v3946 = vpop.f32.mrb[0].mxu0
      %3947 = vmatprep.mubr.f32.mxu0 0.0
      %3948 = vmatmul.mubr.f32.gmra.mrb[0].mxu0 %v3727
      %v3949 = vpop.f32.mrb[0].mxu0
      %v3950 = vadd.f32 0.0, %v3949
      %v3951 = vpop.f32.mrb[0].mxu0
      %3952 = vmatprep.mubr.f32.mxu0 0.0
      %3953 = vmatmul.mubr.f32.gmra.mrb[0].mxu0 %v3730
      %v3954 = vpop.f32.mrb[0].mxu0
      %v3955 = vadd.f32 0.0, %v3954
      %v3956 = vpop.f32.mrb[0].mxu0
      %3957 = vmatprep.mubr.f32.mxu0 0.0
      %3958 = vmatmul.mubr.f32.gmra.mrb[0].mxu0 %v3733
      %v3959 = vpop.f32.mrb[0].mxu0
      %v3960 = vadd.f32 0.0, %v3959
      %v3961 = vpop.f32.mrb[0].mxu0
      %3962 = vdwg.mxu0
      %v3964 = vsel %vm203, %v3575, 0
      %v3967 = vsel %vm203, %v3576, 0
      %v3970 = vsel %vm203, %v3577, 0
      %v3973 = vsel %vm203, %v3578, 0
      %v3976 = vsel %vm203, %v3579, 0
      %v3979 = vsel %vm203, %v3580, 0
      %v3982 = vsel %vm203, %v3581, 0
      %v3985 = vsel %vm203, %v3582, 0
      %v3988 = vsel %vm203, %v3583, 0
      %v3991 = vsel %vm203, %v3584, 0
      %v3994 = vsel %vm203, %v3585, 0
      %v3997 = vsel %vm203, %v3586, 0
      %v4000 = vsel %vm203, %v3587, 0
      %v4003 = vsel %vm203, %v3588, 0
      %v4006 = vsel %vm203, %v3589, 0
      %v4009 = vsel %vm203, %v3590, 0
      %v4012 = vsel %vm203, %v3591, 0
      %v4015 = vsel %vm203, %v3592, 0
      %v4018 = vsel %vm203, %v3593, 0
      %v4021 = vsel %vm203, %v3594, 0
      %v4024 = vsel %vm203, %v3595, 0
      %v4027 = vsel %vm203, %v3596, 0
      %v4030 = vsel %vm203, %v3597, 0
      %v4033 = vsel %vm203, %v3598, 0
      %v4036 = vsel %vm203, %v3599, 0
      %v4039 = vsel %vm203, %v3600, 0
      %v4042 = vsel %vm203, %v3601, 0
      %v4045 = vsel %vm203, %v3602, 0
      %v4048 = vsel %vm203, %v3603, 0
      %v4051 = vsel %vm203, %v3604, 0
      %v4054 = vsel %vm203, %v3605, 0
      %v4057 = vsel %vm203, %v3606, 0
      %v4060 = vsel %vm740, %v3254, 0
      %4062 = vmatprep.subr.mxu0 0.0
      %4063 = vmatpush1.msra.mxu0 %v3253
      %4064 = vmatprep.subr.mxu0 0.0
      %4065 = vmatpush1.msra.mxu0 %v4060
      %4066 = vmatprep.subr.mxu0 0.0
      %4067 = vmatpush1.msra.mxu0 0.0
      %4068 = vmatprep.subr.mxu0 0.0
      %4069 = vmatpush1.msra.mxu0 0.0
      %4070 = vmatprep.subr.mxu0 0.0
      %4071 = vmatpush1.msra.mxu0 0.0
      %4072 = vmatprep.subr.mxu0 0.0
      %4073 = vmatpush1.msra.mxu0 0.0
      %4074 = vmatprep.subr.mxu0 0.0
      %4075 = vmatpush1.msra.mxu0 0.0
      %4076 = vmatprep.subr.mxu0 0.0
      %4077 = vmatpush1.msra.mxu0 0.0
      %4078 = vmatprep.subr.mxu0 0.0
      %4079 = vmatpush1.msra.mxu0 0.0
      %4080 = vmatprep.subr.mxu0 0.0
      %4081 = vmatpush1.msra.mxu0 0.0
      %4082 = vmatprep.subr.mxu0 0.0
      %4083 = vmatpush1.msra.mxu0 0.0
      %4084 = vmatprep.subr.mxu0 0.0
      %4085 = vmatpush1.msra.mxu0 0.0
      %4086 = vmatprep.subr.mxu0 0.0
      %4087 = vmatpush1.msra.mxu0 0.0
      %4088 = vmatprep.subr.mxu0 0.0
      %4089 = vmatpush1.msra.mxu0 0.0
      %4090 = vmatprep.subr.mxu0 0.0
      %4091 = vmatpush1.msra.mxu0 0.0
      %4092 = vmatprep.subr.mxu0 0.0
      %4093 = vmatpush1.msra.mxu0 0.0
      %4094 = vmatprep.subr.mxu0 0.0
      %4095 = vmatpush1.msra.mxu0 0.0
      %4096 = vmatprep.subr.mxu0 0.0
      %4097 = vmatpush1.msra.mxu0 0.0
      %4098 = vmatprep.subr.mxu0 0.0
      %4099 = vmatpush1.msra.mxu0 0.0
      %4100 = vmatprep.subr.mxu0 0.0
      %4101 = vmatpush1.msra.mxu0 0.0
      %4102 = vmatprep.subr.mxu0 0.0
      %4103 = vmatpush1.msra.mxu0 0.0
      %4104 = vmatprep.subr.mxu0 0.0
      %4105 = vmatpush1.msra.mxu0 0.0
      %4106 = vmatprep.subr.mxu0 0.0
      %4107 = vmatpush1.msra.mxu0 0.0
      %4108 = vmatprep.subr.mxu0 0.0
      %4109 = vmatpush1.msra.mxu0 0.0
      %4110 = vmatprep.subr.mxu0 0.0
      %4111 = vmatpush1.msra.mxu0 0.0
      %4112 = vmatprep.subr.mxu0 0.0
      %4113 = vmatpush1.msra.mxu0 0.0
      %4114 = vmatprep.subr.mxu0 0.0
      %4115 = vmatpush1.msra.mxu0 0.0
      %4116 = vmatprep.subr.mxu0 0.0
      %4117 = vmatpush1.msra.mxu0 0.0
      %4118 = vmatprep.subr.mxu0 0.0
      %4119 = vmatpush1.msra.mxu0 0.0
      %4120 = vmatprep.subr.mxu0 0.0
      %4121 = vmatpush1.msra.mxu0 0.0
      %4122 = vmatprep.subr.mxu0 0.0
      %4123 = vmatpush1.msra.mxu0 0.0
      %4124 = vmatprep.subr.mxu0 0.0
      %4125 = vmatpush1.msra.mxu0 0.0
      %4126 = vmatprep.mubr.f32.mxu0 0.0
      %4127 = vmatmul.mubr.f32.gmra.mrb[0].mxu0 %v3964
      %v4128 = vpop.f32.mrb[0].mxu0
      %v4129 = vadd.f32 %v3805, %v4128
      %v4130 = vpop.f32.mrb[0].mxu0
      %4131 = vmatprep.mubr.f32.mxu0 0.0
      %4132 = vmatmul.mubr.f32.gmra.mrb[0].mxu0 %v3967
      %v4133 = vpop.f32.mrb[0].mxu0
      %v4134 = vadd.f32 %v3810, %v4133
      %v4135 = vpop.f32.mrb[0].mxu0
      %4136 = vmatprep.mubr.f32.mxu0 0.0
      %4137 = vmatmul.mubr.f32.gmra.mrb[0].mxu0 %v3970
      %v4138 = vpop.f32.mrb[0].mxu0
      %v4139 = vadd.f32 %v3815, %v4138
      %v4140 = vpop.f32.mrb[0].mxu0
      %4141 = vmatprep.mubr.f32.mxu0 0.0
      %4142 = vmatmul.mubr.f32.gmra.mrb[0].mxu0 %v3973
      %v4143 = vpop.f32.mrb[0].mxu0
      %v4144 = vadd.f32 %v3820, %v4143
      %v4145 = vpop.f32.mrb[0].mxu0
      %4146 = vmatprep.mubr.f32.mxu0 0.0
      %4147 = vmatmul.mubr.f32.gmra.mrb[0].mxu0 %v3976
      %v4148 = vpop.f32.mrb[0].mxu0
      %v4149 = vadd.f32 %v3825, %v4148
      %v4150 = vpop.f32.mrb[0].mxu0
      %4151 = vmatprep.mubr.f32.mxu0 0.0
      %4152 = vmatmul.mubr.f32.gmra.mrb[0].mxu0 %v3979
      %v4153 = vpop.f32.mrb[0].mxu0
      %v4154 = vadd.f32 %v3830, %v4153
      %v4155 = vpop.f32.mrb[0].mxu0
      %4156 = vmatprep.mubr.f32.mxu0 0.0
      %4157 = vmatmul.mubr.f32.gmra.mrb[0].mxu0 %v3982
      %v4158 = vpop.f32.mrb[0].mxu0
      %v4159 = vadd.f32 %v3835, %v4158
      %v4160 = vpop.f32.mrb[0].mxu0
      %4161 = vmatprep.mubr.f32.mxu0 0.0
      %4162 = vmatmul.mubr.f32.gmra.mrb[0].mxu0 %v3985
      %v4163 = vpop.f32.mrb[0].mxu0
      %v4164 = vadd.f32 %v3840, %v4163
      %v4165 = vpop.f32.mrb[0].mxu0
      %4166 = vmatprep.mubr.f32.mxu0 0.0
      %4167 = vmatmul.mubr.f32.gmra.mrb[0].mxu0 %v3988
      %v4168 = vpop.f32.mrb[0].mxu0
      %v4169 = vadd.f32 %v3845, %v4168
      %v4170 = vpop.f32.mrb[0].mxu0
      %4171 = vmatprep.mubr.f32.mxu0 0.0
      %4172 = vmatmul.mubr.f32.gmra.mrb[0].mxu0 %v3991
      %v4173 = vpop.f32.mrb[0].mxu0
      %v4174 = vadd.f32 %v3850, %v4173
      %v4175 = vpop.f32.mrb[0].mxu0
      %4176 = vmatprep.mubr.f32.mxu0 0.0
      %4177 = vmatmul.mubr.f32.gmra.mrb[0].mxu0 %v3994
      %v4178 = vpop.f32.mrb[0].mxu0
      %v4179 = vadd.f32 %v3855, %v4178
      %v4180 = vpop.f32.mrb[0].mxu0
      %4181 = vmatprep.mubr.f32.mxu0 0.0
      %4182 = vmatmul.mubr.f32.gmra.mrb[0].mxu0 %v3997
      %v4183 = vpop.f32.mrb[0].mxu0
      %v4184 = vadd.f32 %v3860, %v4183
      %v4185 = vpop.f32.mrb[0].mxu0
      %4186 = vmatprep.mubr.f32.mxu0 0.0
      %4187 = vmatmul.mubr.f32.gmra.mrb[0].mxu0 %v4000
      %v4188 = vpop.f32.mrb[0].mxu0
      %v4189 = vadd.f32 %v3865, %v4188
      %v4190 = vpop.f32.mrb[0].mxu0
      %4191 = vmatprep.mubr.f32.mxu0 0.0
      %4192 = vmatmul.mubr.f32.gmra.mrb[0].mxu0 %v4003
      %v4193 = vpop.f32.mrb[0].mxu0
      %v4194 = vadd.f32 %v3870, %v4193
      %v4195 = vpop.f32.mrb[0].mxu0
      %4196 = vmatprep.mubr.f32.mxu0 0.0
      %4197 = vmatmul.mubr.f32.gmra.mrb[0].mxu0 %v4006
      %v4198 = vpop.f32.mrb[0].mxu0
      %v4199 = vadd.f32 %v3875, %v4198
      %v4200 = vpop.f32.mrb[0].mxu0
      %4201 = vmatprep.mubr.f32.mxu0 0.0
      %4202 = vmatmul.mubr.f32.gmra.mrb[0].mxu0 %v4009
      %v4203 = vpop.f32.mrb[0].mxu0
      %v4204 = vadd.f32 %v3880, %v4203
      %v4205 = vpop.f32.mrb[0].mxu0
      %4206 = vmatprep.mubr.f32.mxu0 0.0
      %4207 = vmatmul.mubr.f32.gmra.mrb[0].mxu0 %v4012
      %v4208 = vpop.f32.mrb[0].mxu0
      %v4209 = vadd.f32 %v3885, %v4208
      %v4210 = vpop.f32.mrb[0].mxu0
      %4211 = vmatprep.mubr.f32.mxu0 0.0
      %4212 = vmatmul.mubr.f32.gmra.mrb[0].mxu0 %v4015
      %v4213 = vpop.f32.mrb[0].mxu0
      %v4214 = vadd.f32 %v3890, %v4213
      %v4215 = vpop.f32.mrb[0].mxu0
      %4216 = vmatprep.mubr.f32.mxu0 0.0
      %4217 = vmatmul.mubr.f32.gmra.mrb[0].mxu0 %v4018
      %v4218 = vpop.f32.mrb[0].mxu0
      %v4219 = vadd.f32 %v3895, %v4218
      %v4220 = vpop.f32.mrb[0].mxu0
      %4221 = vmatprep.mubr.f32.mxu0 0.0
      %4222 = vmatmul.mubr.f32.gmra.mrb[0].mxu0 %v4021
      %v4223 = vpop.f32.mrb[0].mxu0
      %v4224 = vadd.f32 %v3900, %v4223
      %v4225 = vpop.f32.mrb[0].mxu0
      %4226 = vmatprep.mubr.f32.mxu0 0.0
      %4227 = vmatmul.mubr.f32.gmra.mrb[0].mxu0 %v4024
      %v4228 = vpop.f32.mrb[0].mxu0
      %v4229 = vadd.f32 %v3905, %v4228
      %v4230 = vpop.f32.mrb[0].mxu0
      %4231 = vmatprep.mubr.f32.mxu0 0.0
      %4232 = vmatmul.mubr.f32.gmra.mrb[0].mxu0 %v4027
      %v4233 = vpop.f32.mrb[0].mxu0
      %v4234 = vadd.f32 %v3910, %v4233
      %v4235 = vpop.f32.mrb[0].mxu0
      %4236 = vmatprep.mubr.f32.mxu0 0.0
      %4237 = vmatmul.mubr.f32.gmra.mrb[0].mxu0 %v4030
      %v4238 = vpop.f32.mrb[0].mxu0
      %v4239 = vadd.f32 %v3915, %v4238
      %v4240 = vpop.f32.mrb[0].mxu0
      %4241 = vmatprep.mubr.f32.mxu0 0.0
      %4242 = vmatmul.mubr.f32.gmra.mrb[0].mxu0 %v4033
      %v4243 = vpop.f32.mrb[0].mxu0
      %v4244 = vadd.f32 %v3920, %v4243
      %v4245 = vpop.f32.mrb[0].mxu0
      %4246 = vmatprep.mubr.f32.mxu0 0.0
      %4247 = vmatmul.mubr.f32.gmra.mrb[0].mxu0 %v4036
      %v4248 = vpop.f32.mrb[0].mxu0
      %v4249 = vadd.f32 %v3925, %v4248
      %v4250 = vpop.f32.mrb[0].mxu0
      %4251 = vmatprep.mubr.f32.mxu0 0.0
      %4252 = vmatmul.mubr.f32.gmra.mrb[0].mxu0 %v4039
      %v4253 = vpop.f32.mrb[0].mxu0
      %v4254 = vadd.f32 %v3930, %v4253
      %v4255 = vpop.f32.mrb[0].mxu0
      %4256 = vmatprep.mubr.f32.mxu0 0.0
      %4257 = vmatmul.mubr.f32.gmra.mrb[0].mxu0 %v4042
      %v4258 = vpop.f32.mrb[0].mxu0
      %v4259 = vadd.f32 %v3935, %v4258
      %v4260 = vpop.f32.mrb[0].mxu0
      %4261 = vmatprep.mubr.f32.mxu0 0.0
      %4262 = vmatmul.mubr.f32.gmra.mrb[0].mxu0 %v4045
      %v4263 = vpop.f32.mrb[0].mxu0
      %v4264 = vadd.f32 %v3940, %v4263
      %v4265 = vpop.f32.mrb[0].mxu0
      %4266 = vmatprep.mubr.f32.mxu0 0.0
      %4267 = vmatmul.mubr.f32.gmra.mrb[0].mxu0 %v4048
      %v4268 = vpop.f32.mrb[0].mxu0
      %v4269 = vadd.f32 %v3945, %v4268
      %v4270 = vpop.f32.mrb[0].mxu0
      %4271 = vmatprep.mubr.f32.mxu0 0.0
      %4272 = vmatmul.mubr.f32.gmra.mrb[0].mxu0 %v4051
      %v4273 = vpop.f32.mrb[0].mxu0
      %v4274 = vadd.f32 %v3950, %v4273
      %v4275 = vpop.f32.mrb[0].mxu0
      %4276 = vmatprep.mubr.f32.mxu0 0.0
      %4277 = vmatmul.mubr.f32.gmra.mrb[0].mxu0 %v4054
      %v4278 = vpop.f32.mrb[0].mxu0
      %v4279 = vadd.f32 %v3955, %v4278
      %v4280 = vpop.f32.mrb[0].mxu0
      %4281 = vmatprep.mubr.f32.mxu0 0.0
      %4282 = vmatmul.mubr.f32.gmra.mrb[0].mxu0 %v4057
      %v4283 = vpop.f32.mrb[0].mxu0
      %v4284 = vadd.f32 %v3960, %v4283
      %v4285 = vpop.f32.mrb[0].mxu0
      %4286 = vdwg.mxu0
      %v4287 = vld [vmem:[#allocation2 + $0x2] sm:$0xff]
      %v4288 = vld [vmem:[#allocation2 + $0xa] sm:$0xff]
      %v4289 = vld [vmem:[#allocation2 + $0x1a] sm:$0xff]
      %v4290 = vld [vmem:[#allocation2 + $0x22] sm:$0xff]
      %v4291 = vld [vmem:[#allocation2 + $0x32] sm:$0xff]
      %v4292 = vld [vmem:[#allocation2 + $0x3a] sm:$0xff]
      %v4293 = vld [vmem:[#allocation2 + $0x4a] sm:$0xff]
      %v4294 = vld [vmem:[#allocation2 + $0x52] sm:$0xff]
      %v4295 = vld [vmem:[#allocation2 + $0x62] sm:$0xff]
      %v4296 = vld [vmem:[#allocation2 + $0x6a] sm:$0xff]
      %v4297 = vld [vmem:[#allocation2 + $0x7a] sm:$0xff]
      %v4298 = vld [vmem:[#allocation2 + $0x82] sm:$0xff]
      %v4299 = vld [vmem:[#allocation2 + $0x92] sm:$0xff]
      %v4300 = vld [vmem:[#allocation2 + $0x9a] sm:$0xff]
      %v4301 = vld [vmem:[#allocation2 + $0xaa] sm:$0xff]
      %v4302 = vld [vmem:[#allocation2 + $0xb2] sm:$0xff]
      %v4303 = vld [vmem:[#allocation2 + $0xc2] sm:$0xff]
      %v4304 = vld [vmem:[#allocation2 + $0xca] sm:$0xff]
      %v4305 = vld [vmem:[#allocation2 + $0xda] sm:$0xff]
      %v4306 = vld [vmem:[#allocation2 + $0xe2] sm:$0xff]
      %v4307 = vld [vmem:[#allocation2 + $0xf2] sm:$0xff]
      %v4308 = vld [vmem:[#allocation2 + $0xfa] sm:$0xff]
      %v4309 = vld [vmem:[#allocation2 + $0x10a] sm:$0xff]
      %v4310 = vld [vmem:[#allocation2 + $0x112] sm:$0xff]
      %v4311 = vld [vmem:[#allocation2 + $0x122] sm:$0xff]
      %v4312 = vld [vmem:[#allocation2 + $0x12a] sm:$0xff]
      %v4313 = vld [vmem:[#allocation2 + $0x13a] sm:$0xff]
      %v4314 = vld [vmem:[#allocation2 + $0x142] sm:$0xff]
      %v4315 = vld [vmem:[#allocation2 + $0x152] sm:$0xff]
      %v4316 = vld [vmem:[#allocation2 + $0x15a] sm:$0xff]
      %v4317 = vld [vmem:[#allocation2 + $0x16a] sm:$0xff]
      %v4318 = vld [vmem:[#allocation2 + $0x172] sm:$0xff]
      %v4320 = vsel %vm203, %v4287, 0
      %v4323 = vsel %vm203, %v4288, 0
      %v4326 = vsel %vm203, %v4289, 0
      %v4329 = vsel %vm203, %v4290, 0
      %v4332 = vsel %vm203, %v4291, 0
      %v4335 = vsel %vm203, %v4292, 0
      %v4338 = vsel %vm203, %v4293, 0
      %v4341 = vsel %vm203, %v4294, 0
      %v4344 = vsel %vm203, %v4295, 0
      %v4347 = vsel %vm203, %v4296, 0
      %v4350 = vsel %vm203, %v4297, 0
      %v4353 = vsel %vm203, %v4298, 0
      %v4356 = vsel %vm203, %v4299, 0
      %v4359 = vsel %vm203, %v4300, 0
      %v4362 = vsel %vm203, %v4301, 0
      %v4365 = vsel %vm203, %v4302, 0
      %v4368 = vsel %vm203, %v4303, 0
      %v4371 = vsel %vm203, %v4304, 0
      %v4374 = vsel %vm203, %v4305, 0
      %v4377 = vsel %vm203, %v4306, 0
      %v4380 = vsel %vm203, %v4307, 0
      %v4383 = vsel %vm203, %v4308, 0
      %v4386 = vsel %vm203, %v4309, 0
      %v4389 = vsel %vm203, %v4310, 0
      %v4392 = vsel %vm203, %v4311, 0
      %v4395 = vsel %vm203, %v4312, 0
      %v4398 = vsel %vm203, %v4313, 0
      %v4401 = vsel %vm203, %v4314, 0
      %v4404 = vsel %vm203, %v4315, 0
      %v4407 = vsel %vm203, %v4316, 0
      %v4410 = vsel %vm203, %v4317, 0
      %v4413 = vsel %vm203, %v4318, 0
      %v4416 = vsel %vm740, %v3258, 0
      %4418 = vmatprep.subr.mxu0 0.0
      %4419 = vmatpush1.msra.mxu0 %v3257
      %4420 = vmatprep.subr.mxu0 0.0
      %4421 = vmatpush1.msra.mxu0 %v4416
      %4422 = vmatprep.subr.mxu0 0.0
      %4423 = vmatpush1.msra.mxu0 0.0
      %4424 = vmatprep.subr.mxu0 0.0
      %4425 = vmatpush1.msra.mxu0 0.0
      %4426 = vmatprep.subr.mxu0 0.0
      %4427 = vmatpush1.msra.mxu0 0.0
      %4428 = vmatprep.subr.mxu0 0.0
      %4429 = vmatpush1.msra.mxu0 0.0
      %4430 = vmatprep.subr.mxu0 0.0
      %4431 = vmatpush1.msra.mxu0 0.0
      %4432 = vmatprep.subr.mxu0 0.0
      %4433 = vmatpush1.msra.mxu0 0.0
      %4434 = vmatprep.subr.mxu0 0.0
      %4435 = vmatpush1.msra.mxu0 0.0
      %4436 = vmatprep.subr.mxu0 0.0
      %4437 = vmatpush1.msra.mxu0 0.0
      %4438 = vmatprep.subr.mxu0 0.0
      %4439 = vmatpush1.msra.mxu0 0.0
      %4440 = vmatprep.subr.mxu0 0.0
      %4441 = vmatpush1.msra.mxu0 0.0
      %4442 = vmatprep.subr.mxu0 0.0
      %4443 = vmatpush1.msra.mxu0 0.0
      %4444 = vmatprep.subr.mxu0 0.0
      %4445 = vmatpush1.msra.mxu0 0.0
      %4446 = vmatprep.subr.mxu0 0.0
      %4447 = vmatpush1.msra.mxu0 0.0
      %4448 = vmatprep.subr.mxu0 0.0
      %4449 = vmatpush1.msra.mxu0 0.0
      %4450 = vmatprep.subr.mxu0 0.0
      %4451 = vmatpush1.msra.mxu0 0.0
      %4452 = vmatprep.subr.mxu0 0.0
      %4453 = vmatpush1.msra.mxu0 0.0
      %4454 = vmatprep.subr.mxu0 0.0
      %4455 = vmatpush1.msra.mxu0 0.0
      %4456 = vmatprep.subr.mxu0 0.0
      %4457 = vmatpush1.msra.mxu0 0.0
      %4458 = vmatprep.subr.mxu0 0.0
      %4459 = vmatpush1.msra.mxu0 0.0
      %4460 = vmatprep.subr.mxu0 0.0
      %4461 = vmatpush1.msra.mxu0 0.0
      %4462 = vmatprep.subr.mxu0 0.0
      %4463 = vmatpush1.msra.mxu0 0.0
      %4464 = vmatprep.subr.mxu0 0.0
      %4465 = vmatpush1.msra.mxu0 0.0
      %4466 = vmatprep.subr.mxu0 0.0
      %4467 = vmatpush1.msra.mxu0 0.0
      %4468 = vmatprep.subr.mxu0 0.0
      %4469 = vmatpush1.msra.mxu0 0.0
      %4470 = vmatprep.subr.mxu0 0.0
      %4471 = vmatpush1.msra.mxu0 0.0
      %4472 = vmatprep.subr.mxu0 0.0
      %4473 = vmatpush1.msra.mxu0 0.0
      %4474 = vmatprep.subr.mxu0 0.0
      %4475 = vmatpush1.msra.mxu0 0.0
      %4476 = vmatprep.subr.mxu0 0.0
      %4477 = vmatpush1.msra.mxu0 0.0
      %4478 = vmatprep.subr.mxu0 0.0
      %4479 = vmatpush1.msra.mxu0 0.0
      %4480 = vmatprep.subr.mxu0 0.0
      %4481 = vmatpush1.msra.mxu0 0.0
      %4482 = vmatprep.mubr.f32.mxu0 0.0
      %4483 = vmatmul.mubr.f32.gmra.mrb[0].mxu0 %v4320
      %v4484 = vpop.f32.mrb[0].mxu0
      %v4485 = vadd.f32 0.0, %v4484
      %v4486 = vpop.f32.mrb[0].mxu0
      %4487 = vmatprep.mubr.f32.mxu0 0.0
      %4488 = vmatmul.mubr.f32.gmra.mrb[0].mxu0 %v4323
      %v4489 = vpop.f32.mrb[0].mxu0
      %v4490 = vadd.f32 0.0, %v4489
      %v4491 = vpop.f32.mrb[0].mxu0
      %4492 = vmatprep.mubr.f32.mxu0 0.0
      %4493 = vmatmul.mubr.f32.gmra.mrb[0].mxu0 %v4326
      %v4494 = vpop.f32.mrb[0].mxu0
      %v4495 = vadd.f32 0.0, %v4494
      %v4496 = vpop.f32.mrb[0].mxu0
      %4497 = vmatprep.mubr.f32.mxu0 0.0
      %4498 = vmatmul.mubr.f32.gmra.mrb[0].mxu0 %v4329
      %v4499 = vpop.f32.mrb[0].mxu0
      %v4500 = vadd.f32 0.0, %v4499
      %v4501 = vpop.f32.mrb[0].mxu0
      %4502 = vmatprep.mubr.f32.mxu0 0.0
      %4503 = vmatmul.mubr.f32.gmra.mrb[0].mxu0 %v4332
      %v4504 = vpop.f32.mrb[0].mxu0
      %v4505 = vadd.f32 0.0, %v4504
      %v4506 = vpop.f32.mrb[0].mxu0
      %4507 = vmatprep.mubr.f32.mxu0 0.0
      %4508 = vmatmul.mubr.f32.gmra.mrb[0].mxu0 %v4335
      %v4509 = vpop.f32.mrb[0].mxu0
      %v4510 = vadd.f32 0.0, %v4509
      %v4511 = vpop.f32.mrb[0].mxu0
      %4512 = vmatprep.mubr.f32.mxu0 0.0
      %4513 = vmatmul.mubr.f32.gmra.mrb[0].mxu0 %v4338
      %v4514 = vpop.f32.mrb[0].mxu0
      %v4515 = vadd.f32 0.0, %v4514
      %v4516 = vpop.f32.mrb[0].mxu0
      %4517 = vmatprep.mubr.f32.mxu0 0.0
      %4518 = vmatmul.mubr.f32.gmra.mrb[0].mxu0 %v4341
      %v4519 = vpop.f32.mrb[0].mxu0
      %v4520 = vadd.f32 0.0, %v4519
      %v4521 = vpop.f32.mrb[0].mxu0
      %4522 = vmatprep.mubr.f32.mxu0 0.0
      %4523 = vmatmul.mubr.f32.gmra.mrb[0].mxu0 %v4344
      %v4524 = vpop.f32.mrb[0].mxu0
      %v4525 = vadd.f32 0.0, %v4524
      %v4526 = vpop.f32.mrb[0].mxu0
      %4527 = vmatprep.mubr.f32.mxu0 0.0
      %4528 = vmatmul.mubr.f32.gmra.mrb[0].mxu0 %v4347
      %v4529 = vpop.f32.mrb[0].mxu0
      %v4530 = vadd.f32 0.0, %v4529
      %v4531 = vpop.f32.mrb[0].mxu0
      %4532 = vmatprep.mubr.f32.mxu0 0.0
      %4533 = vmatmul.mubr.f32.gmra.mrb[0].mxu0 %v4350
      %v4534 = vpop.f32.mrb[0].mxu0
      %v4535 = vadd.f32 0.0, %v4534
      %v4536 = vpop.f32.mrb[0].mxu0
      %4537 = vmatprep.mubr.f32.mxu0 0.0
      %4538 = vmatmul.mubr.f32.gmra.mrb[0].mxu0 %v4353
      %v4539 = vpop.f32.mrb[0].mxu0
      %v4540 = vadd.f32 0.0, %v4539
      %v4541 = vpop.f32.mrb[0].mxu0
      %4542 = vmatprep.mubr.f32.mxu0 0.0
      %4543 = vmatmul.mubr.f32.gmra.mrb[0].mxu0 %v4356
      %v4544 = vpop.f32.mrb[0].mxu0
      %v4545 = vadd.f32 0.0, %v4544
      %v4546 = vpop.f32.mrb[0].mxu0
      %4547 = vmatprep.mubr.f32.mxu0 0.0
      %4548 = vmatmul.mubr.f32.gmra.mrb[0].mxu0 %v4359
      %v4549 = vpop.f32.mrb[0].mxu0
      %v4550 = vadd.f32 0.0, %v4549
      %v4551 = vpop.f32.mrb[0].mxu0
      %4552 = vmatprep.mubr.f32.mxu0 0.0
      %4553 = vmatmul.mubr.f32.gmra.mrb[0].mxu0 %v4362
      %v4554 = vpop.f32.mrb[0].mxu0
      %v4555 = vadd.f32 0.0, %v4554
      %v4556 = vpop.f32.mrb[0].mxu0
      %4557 = vmatprep.mubr.f32.mxu0 0.0
      %4558 = vmatmul.mubr.f32.gmra.mrb[0].mxu0 %v4365
      %v4559 = vpop.f32.mrb[0].mxu0
      %v4560 = vadd.f32 0.0, %v4559
      %v4561 = vpop.f32.mrb[0].mxu0
      %4562 = vmatprep.mubr.f32.mxu0 0.0
      %4563 = vmatmul.mubr.f32.gmra.mrb[0].mxu0 %v4368
      %v4564 = vpop.f32.mrb[0].mxu0
      %v4565 = vadd.f32 0.0, %v4564
      %v4566 = vpop.f32.mrb[0].mxu0
      %4567 = vmatprep.mubr.f32.mxu0 0.0
      %4568 = vmatmul.mubr.f32.gmra.mrb[0].mxu0 %v4371
      %v4569 = vpop.f32.mrb[0].mxu0
      %v4570 = vadd.f32 0.0, %v4569
      %v4571 = vpop.f32.mrb[0].mxu0
      %4572 = vmatprep.mubr.f32.mxu0 0.0
      %4573 = vmatmul.mubr.f32.gmra.mrb[0].mxu0 %v4374
      %v4574 = vpop.f32.mrb[0].mxu0
      %v4575 = vadd.f32 0.0, %v4574
      %v4576 = vpop.f32.mrb[0].mxu0
      %4577 = vmatprep.mubr.f32.mxu0 0.0
      %4578 = vmatmul.mubr.f32.gmra.mrb[0].mxu0 %v4377
      %v4579 = vpop.f32.mrb[0].mxu0
      %v4580 = vadd.f32 0.0, %v4579
      %v4581 = vpop.f32.mrb[0].mxu0
      %4582 = vmatprep.mubr.f32.mxu0 0.0
      %4583 = vmatmul.mubr.f32.gmra.mrb[0].mxu0 %v4380
      %v4584 = vpop.f32.mrb[0].mxu0
      %v4585 = vadd.f32 0.0, %v4584
      %v4586 = vpop.f32.mrb[0].mxu0
      %4587 = vmatprep.mubr.f32.mxu0 0.0
      %4588 = vmatmul.mubr.f32.gmra.mrb[0].mxu0 %v4383
      %v4589 = vpop.f32.mrb[0].mxu0
      %v4590 = vadd.f32 0.0, %v4589
      %v4591 = vpop.f32.mrb[0].mxu0
      %4592 = vmatprep.mubr.f32.mxu0 0.0
      %4593 = vmatmul.mubr.f32.gmra.mrb[0].mxu0 %v4386
      %v4594 = vpop.f32.mrb[0].mxu0
      %v4595 = vadd.f32 0.0, %v4594
      %v4596 = vpop.f32.mrb[0].mxu0
      %4597 = vmatprep.mubr.f32.mxu0 0.0
      %4598 = vmatmul.mubr.f32.gmra.mrb[0].mxu0 %v4389
      %v4599 = vpop.f32.mrb[0].mxu0
      %v4600 = vadd.f32 0.0, %v4599
      %v4601 = vpop.f32.mrb[0].mxu0
      %4602 = vmatprep.mubr.f32.mxu0 0.0
      %4603 = vmatmul.mubr.f32.gmra.mrb[0].mxu0 %v4392
      %v4604 = vpop.f32.mrb[0].mxu0
      %v4605 = vadd.f32 0.0, %v4604
      %v4606 = vpop.f32.mrb[0].mxu0
      %4607 = vmatprep.mubr.f32.mxu0 0.0
      %4608 = vmatmul.mubr.f32.gmra.mrb[0].mxu0 %v4395
      %v4609 = vpop.f32.mrb[0].mxu0
      %v4610 = vadd.f32 0.0, %v4609
      %v4611 = vpop.f32.mrb[0].mxu0
      %4612 = vmatprep.mubr.f32.mxu0 0.0
      %4613 = vmatmul.mubr.f32.gmra.mrb[0].mxu0 %v4398
      %v4614 = vpop.f32.mrb[0].mxu0
      %v4615 = vadd.f32 0.0, %v4614
      %v4616 = vpop.f32.mrb[0].mxu0
      %4617 = vmatprep.mubr.f32.mxu0 0.0
      %4618 = vmatmul.mubr.f32.gmra.mrb[0].mxu0 %v4401
      %v4619 = vpop.f32.mrb[0].mxu0
      %v4620 = vadd.f32 0.0, %v4619
      %v4621 = vpop.f32.mrb[0].mxu0
      %4622 = vmatprep.mubr.f32.mxu0 0.0
      %4623 = vmatmul.mubr.f32.gmra.mrb[0].mxu0 %v4404
      %v4624 = vpop.f32.mrb[0].mxu0
      %v4625 = vadd.f32 0.0, %v4624
      %v4626 = vpop.f32.mrb[0].mxu0
      %4627 = vmatprep.mubr.f32.mxu0 0.0
      %4628 = vmatmul.mubr.f32.gmra.mrb[0].mxu0 %v4407
      %v4629 = vpop.f32.mrb[0].mxu0
      %v4630 = vadd.f32 0.0, %v4629
      %v4631 = vpop.f32.mrb[0].mxu0
      %4632 = vmatprep.mubr.f32.mxu0 0.0
      %4633 = vmatmul.mubr.f32.gmra.mrb[0].mxu0 %v4410
      %v4634 = vpop.f32.mrb[0].mxu0
      %v4635 = vadd.f32 0.0, %v4634
      %v4636 = vpop.f32.mrb[0].mxu0
      %4637 = vmatprep.mubr.f32.mxu0 0.0
      %4638 = vmatmul.mubr.f32.gmra.mrb[0].mxu0 %v4413
      %v4639 = vpop.f32.mrb[0].mxu0
      %v4640 = vadd.f32 0.0, %v4639
      %v4641 = vpop.f32.mrb[0].mxu0
      %4642 = vdwg.mxu0
      %v4643 = vadd.f32 %v4129, %v4485
      %v4644 = vadd.f32 %v4134, %v4490
      %v4645 = vadd.f32 %v4139, %v4495
      %v4646 = vadd.f32 %v4144, %v4500
      %v4647 = vadd.f32 %v4149, %v4505
      %v4648 = vadd.f32 %v4154, %v4510
      %v4649 = vadd.f32 %v4159, %v4515
      %v4650 = vadd.f32 %v4164, %v4520
      %v4651 = vadd.f32 %v4169, %v4525
      %v4652 = vadd.f32 %v4174, %v4530
      %v4653 = vadd.f32 %v4179, %v4535
      %v4654 = vadd.f32 %v4184, %v4540
      %v4655 = vadd.f32 %v4189, %v4545
      %v4656 = vadd.f32 %v4194, %v4550
      %v4657 = vadd.f32 %v4199, %v4555
      %v4658 = vadd.f32 %v4204, %v4560
      %v4659 = vadd.f32 %v4209, %v4565
      %v4660 = vadd.f32 %v4214, %v4570
      %v4661 = vadd.f32 %v4219, %v4575
      %v4662 = vadd.f32 %v4224, %v4580
      %v4663 = vadd.f32 %v4229, %v4585
      %v4664 = vadd.f32 %v4234, %v4590
      %v4665 = vadd.f32 %v4239, %v4595
      %v4666 = vadd.f32 %v4244, %v4600
      %v4667 = vadd.f32 %v4249, %v4605
      %v4668 = vadd.f32 %v4254, %v4610
      %v4669 = vadd.f32 %v4259, %v4615
      %v4670 = vadd.f32 %v4264, %v4620
      %v4671 = vadd.f32 %v4269, %v4625
      %v4672 = vadd.f32 %v4274, %v4630
      %v4673 = vadd.f32 %v4279, %v4635
      %v4674 = vadd.f32 %v4284, %v4640
      %v4676 = vlaneseq
      %v4677 = vshrl.u32 %v4676, 7
      %v4678 = vsub.s32 0, %v4677
      %v4679 = vrot.slane %v3260, %v4678
      %v4681 = vadd.f32 %v4643, %v4679
      %v4682 = vadd.f32 %v4644, %v4679
      %v4683 = vadd.f32 %v4645, %v4679
      %v4684 = vadd.f32 %v4646, %v4679
      %v4685 = vadd.f32 %v4647, %v4679
      %v4686 = vadd.f32 %v4648, %v4679
      %v4687 = vadd.f32 %v4649, %v4679
      %v4688 = vadd.f32 %v4650, %v4679
      %v4689 = vadd.f32 %v4651, %v4679
      %v4690 = vadd.f32 %v4652, %v4679
      %v4691 = vadd.f32 %v4653, %v4679
      %v4692 = vadd.f32 %v4654, %v4679
      %v4693 = vadd.f32 %v4655, %v4679
      %v4694 = vadd.f32 %v4656, %v4679
      %v4695 = vadd.f32 %v4657, %v4679
      %v4696 = vadd.f32 %v4658, %v4679
      %v4697 = vadd.f32 %v4659, %v4679
      %v4698 = vadd.f32 %v4660, %v4679
      %v4699 = vadd.f32 %v4661, %v4679
      %v4700 = vadd.f32 %v4662, %v4679
      %v4701 = vadd.f32 %v4663, %v4679
      %v4702 = vadd.f32 %v4664, %v4679
      %v4703 = vadd.f32 %v4665, %v4679
      %v4704 = vadd.f32 %v4666, %v4679
      %v4705 = vadd.f32 %v4667, %v4679
      %v4706 = vadd.f32 %v4668, %v4679
      %v4707 = vadd.f32 %v4669, %v4679
      %v4708 = vadd.f32 %v4670, %v4679
      %v4709 = vadd.f32 %v4671, %v4679
      %v4710 = vadd.f32 %v4672, %v4679
      %v4711 = vadd.f32 %v4673, %v4679
      %v4712 = vadd.f32 %v4674, %v4679
      %v4713 = vmax.f32 %v4681, 0.0
      %v4714 = vmax.f32 %v4682, 0.0
      %v4715 = vmax.f32 %v4683, 0.0
      %v4716 = vmax.f32 %v4684, 0.0
      %v4717 = vmax.f32 %v4685, 0.0
      %v4718 = vmax.f32 %v4686, 0.0
      %v4719 = vmax.f32 %v4687, 0.0
      %v4720 = vmax.f32 %v4688, 0.0
      %v4721 = vmax.f32 %v4689, 0.0
      %v4722 = vmax.f32 %v4690, 0.0
      %v4723 = vmax.f32 %v4691, 0.0
      %v4724 = vmax.f32 %v4692, 0.0
      %v4725 = vmax.f32 %v4693, 0.0
      %v4726 = vmax.f32 %v4694, 0.0
      %v4727 = vmax.f32 %v4695, 0.0
      %v4728 = vmax.f32 %v4696, 0.0
      %v4729 = vmax.f32 %v4697, 0.0
      %v4730 = vmax.f32 %v4698, 0.0
      %v4731 = vmax.f32 %v4699, 0.0
      %v4732 = vmax.f32 %v4700, 0.0
      %v4733 = vmax.f32 %v4701, 0.0
      %v4734 = vmax.f32 %v4702, 0.0
      %v4735 = vmax.f32 %v4703, 0.0
      %v4736 = vmax.f32 %v4704, 0.0
      %v4737 = vmax.f32 %v4705, 0.0
      %v4738 = vmax.f32 %v4706, 0.0
      %v4739 = vmax.f32 %v4707, 0.0
      %v4740 = vmax.f32 %v4708, 0.0
      %v4741 = vmax.f32 %v4709, 0.0
      %v4742 = vmax.f32 %v4710, 0.0
      %v4743 = vmax.f32 %v4711, 0.0
      %v4744 = vmax.f32 %v4712, 0.0
      %v4745 = vadd.f32 %v3220, %v4713
      %v4746 = vadd.f32 %v3221, %v4714
      %v4747 = vadd.f32 %v3222, %v4715
      %v4748 = vadd.f32 %v3223, %v4716
      %v4749 = vadd.f32 %v3224, %v4717
      %v4750 = vadd.f32 %v3225, %v4718
      %v4751 = vadd.f32 %v3226, %v4719
      %v4752 = vadd.f32 %v3227, %v4720
      %v4753 = vadd.f32 %v3228, %v4721
      %v4754 = vadd.f32 %v3229, %v4722
      %v4755 = vadd.f32 %v3230, %v4723
      %v4756 = vadd.f32 %v3231, %v4724
      %v4757 = vadd.f32 %v3232, %v4725
      %v4758 = vadd.f32 %v3233, %v4726
      %v4759 = vadd.f32 %v3234, %v4727
      %v4760 = vadd.f32 %v3235, %v4728
      %v4761 = vadd.f32 %v3236, %v4729
      %v4762 = vadd.f32 %v3237, %v4730
      %v4763 = vadd.f32 %v3238, %v4731
      %v4764 = vadd.f32 %v3239, %v4732
      %v4765 = vadd.f32 %v3240, %v4733
      %v4766 = vadd.f32 %v3241, %v4734
      %v4767 = vadd.f32 %v3242, %v4735
      %v4768 = vadd.f32 %v3243, %v4736
      %v4769 = vadd.f32 %v3244, %v4737
      %v4770 = vadd.f32 %v3245, %v4738
      %v4771 = vadd.f32 %v3246, %v4739
      %v4772 = vadd.f32 %v3247, %v4740
      %v4773 = vadd.f32 %v3248, %v4741
      %v4774 = vadd.f32 %v3249, %v4742
      %v4775 = vadd.f32 %v3250, %v4743
      %v4776 = vadd.f32 %v3251, %v4744
      %4809 = vrot.lane.b32.xlu0 %v4745, 4
      %v4810 = vpop.permute.xlu0 %4809
      %4811 = vrot.lane.b32.xlu0 %v4746, 4
      %v4812 = vpop.permute.xlu0 %4811
      %4813 = vrot.lane.b32.xlu0 %v4747, 4
      %v4814 = vpop.permute.xlu0 %4813
      %4815 = vrot.lane.b32.xlu0 %v4748, 4
      %v4816 = vpop.permute.xlu0 %4815
      %4817 = vrot.lane.b32.xlu0 %v4749, 4
      %v4818 = vpop.permute.xlu0 %4817
      %4819 = vrot.lane.b32.xlu0 %v4750, 4
      %v4820 = vpop.permute.xlu0 %4819
      %4821 = vrot.lane.b32.xlu0 %v4751, 4
      %v4822 = vpop.permute.xlu0 %4821
      %4823 = vrot.lane.b32.xlu0 %v4752, 4
      %v4824 = vpop.permute.xlu0 %4823
      %4825 = vrot.lane.b32.xlu0 %v4753, 4
      %v4826 = vpop.permute.xlu0 %4825
      %4827 = vrot.lane.b32.xlu0 %v4754, 4
      %v4828 = vpop.permute.xlu0 %4827
      %4829 = vrot.lane.b32.xlu0 %v4755, 4
      %v4830 = vpop.permute.xlu0 %4829
      %4831 = vrot.lane.b32.xlu0 %v4756, 4
      %v4832 = vpop.permute.xlu0 %4831
      %4833 = vrot.lane.b32.xlu0 %v4757, 4
      %v4834 = vpop.permute.xlu0 %4833
      %4835 = vrot.lane.b32.xlu0 %v4758, 4
      %v4836 = vpop.permute.xlu0 %4835
      %4837 = vrot.lane.b32.xlu0 %v4759, 4
      %v4838 = vpop.permute.xlu0 %4837
      %4839 = vrot.lane.b32.xlu0 %v4760, 4
      %v4840 = vpop.permute.xlu0 %4839
      %4841 = vrot.lane.b32.xlu0 %v4761, 4
      %v4842 = vpop.permute.xlu0 %4841
      %4843 = vrot.lane.b32.xlu0 %v4762, 4
      %v4844 = vpop.permute.xlu0 %4843
      %4845 = vrot.lane.b32.xlu0 %v4763, 4
      %v4846 = vpop.permute.xlu0 %4845
      %4847 = vrot.lane.b32.xlu0 %v4764, 4
      %v4848 = vpop.permute.xlu0 %4847
      %4849 = vrot.lane.b32.xlu0 %v4765, 4
      %v4850 = vpop.permute.xlu0 %4849
      %4851 = vrot.lane.b32.xlu0 %v4766, 4
      %v4852 = vpop.permute.xlu0 %4851
      %4853 = vrot.lane.b32.xlu0 %v4767, 4
      %v4854 = vpop.permute.xlu0 %4853
      %4855 = vrot.lane.b32.xlu0 %v4768, 4
      %v4856 = vpop.permute.xlu0 %4855
      %4857 = vrot.lane.b32.xlu0 %v4769, 4
      %v4858 = vpop.permute.xlu0 %4857
      %4859 = vrot.lane.b32.xlu0 %v4770, 4
      %v4860 = vpop.permute.xlu0 %4859
      %4861 = vrot.lane.b32.xlu0 %v4771, 4
      %v4862 = vpop.permute.xlu0 %4861
      %4863 = vrot.lane.b32.xlu0 %v4772, 4
      %v4864 = vpop.permute.xlu0 %4863
      %4865 = vrot.lane.b32.xlu0 %v4773, 4
      %v4866 = vpop.permute.xlu0 %4865
      %4867 = vrot.lane.b32.xlu0 %v4774, 4
      %v4868 = vpop.permute.xlu0 %4867
      %4869 = vrot.lane.b32.xlu0 %v4775, 4
      %v4870 = vpop.permute.xlu0 %4869
      %4871 = vrot.lane.b32.xlu0 %v4776, 4
      %v4872 = vpop.permute.xlu0 %4871
      %4905 = vrot.lane.b32.xlu0 %v4747, 8
      %v4906 = vpop.permute.xlu0 %4905
      %4907 = vrot.lane.b32.xlu0 %v4748, 8
      %v4908 = vpop.permute.xlu0 %4907
      %4909 = vrot.lane.b32.xlu0 %v4749, 8
      %v4910 = vpop.permute.xlu0 %4909
      %4911 = vrot.lane.b32.xlu0 %v4750, 8
      %v4912 = vpop.permute.xlu0 %4911
      %4913 = vrot.lane.b32.xlu0 %v4751, 8
      %v4914 = vpop.permute.xlu0 %4913
      %4915 = vrot.lane.b32.xlu0 %v4752, 8
      %v4916 = vpop.permute.xlu0 %4915
      %4917 = vrot.lane.b32.xlu0 %v4753, 8
      %v4918 = vpop.permute.xlu0 %4917
      %4919 = vrot.lane.b32.xlu0 %v4754, 8
      %v4920 = vpop.permute.xlu0 %4919
      %4921 = vrot.lane.b32.xlu0 %v4755, 8
      %v4922 = vpop.permute.xlu0 %4921
      %4923 = vrot.lane.b32.xlu0 %v4756, 8
      %v4924 = vpop.permute.xlu0 %4923
      %4925 = vrot.lane.b32.xlu0 %v4757, 8
      %v4926 = vpop.permute.xlu0 %4925
      %4927 = vrot.lane.b32.xlu0 %v4758, 8
      %v4928 = vpop.permute.xlu0 %4927
      %4929 = vrot.lane.b32.xlu0 %v4759, 8
      %v4930 = vpop.permute.xlu0 %4929
      %4931 = vrot.lane.b32.xlu0 %v4760, 8
      %v4932 = vpop.permute.xlu0 %4931
      %4933 = vrot.lane.b32.xlu0 %v4761, 8
      %v4934 = vpop.permute.xlu0 %4933
      %4935 = vrot.lane.b32.xlu0 %v4762, 8
      %v4936 = vpop.permute.xlu0 %4935
      %4937 = vrot.lane.b32.xlu0 %v4763, 8
      %v4938 = vpop.permute.xlu0 %4937
      %4939 = vrot.lane.b32.xlu0 %v4764, 8
      %v4940 = vpop.permute.xlu0 %4939
      %4941 = vrot.lane.b32.xlu0 %v4765, 8
      %v4942 = vpop.permute.xlu0 %4941
      %4943 = vrot.lane.b32.xlu0 %v4766, 8
      %v4944 = vpop.permute.xlu0 %4943
      %4945 = vrot.lane.b32.xlu0 %v4767, 8
      %v4946 = vpop.permute.xlu0 %4945
      %4947 = vrot.lane.b32.xlu0 %v4768, 8
      %v4948 = vpop.permute.xlu0 %4947
      %4949 = vrot.lane.b32.xlu0 %v4769, 8
      %v4950 = vpop.permute.xlu0 %4949
      %4951 = vrot.lane.b32.xlu0 %v4770, 8
      %v4952 = vpop.permute.xlu0 %4951
      %4953 = vrot.lane.b32.xlu0 %v4771, 8
      %v4954 = vpop.permute.xlu0 %4953
      %4955 = vrot.lane.b32.xlu0 %v4772, 8
      %v4956 = vpop.permute.xlu0 %4955
      %4957 = vrot.lane.b32.xlu0 %v4773, 8
      %v4958 = vpop.permute.xlu0 %4957
      %4959 = vrot.lane.b32.xlu0 %v4774, 8
      %v4960 = vpop.permute.xlu0 %4959
      %4961 = vrot.lane.b32.xlu0 %v4775, 8
      %v4962 = vpop.permute.xlu0 %4961
      %4963 = vrot.lane.b32.xlu0 %v4776, 8
      %v4964 = vpop.permute.xlu0 %4963
      %v4995 = vsel %vm482, 0.0, %v4810
      %v4996 = vsel %vm482, 0.0, %v4812
      %v4997 = vsel %vm482, %v4745, %v4814
      %v4998 = vsel %vm482, %v4746, %v4816
      %v4999 = vsel %vm482, %v4747, %v4818
      %v5000 = vsel %vm482, %v4748, %v4820
      %v5001 = vsel %vm482, %v4749, %v4822
      %v5002 = vsel %vm482, %v4750, %v4824
      %v5003 = vsel %vm482, %v4751, %v4826
      %v5004 = vsel %vm482, %v4752, %v4828
      %v5005 = vsel %vm482, %v4753, %v4830
      %v5006 = vsel %vm482, %v4754, %v4832
      %v5007 = vsel %vm482, %v4755, %v4834
      %v5008 = vsel %vm482, %v4756, %v4836
      %v5009 = vsel %vm482, %v4757, %v4838
      %v5010 = vsel %vm482, %v4758, %v4840
      %v5011 = vsel %vm482, %v4759, %v4842
      %v5012 = vsel %vm482, %v4760, %v4844
      %v5013 = vsel %vm482, %v4761, %v4846
      %v5014 = vsel %vm482, %v4762, %v4848
      %v5015 = vsel %vm482, %v4763, %v4850
      %v5016 = vsel %vm482, %v4764, %v4852
      %v5017 = vsel %vm482, %v4765, %v4854
      %v5018 = vsel %vm482, %v4766, %v4856
      %v5019 = vsel %vm482, %v4767, %v4858
      %v5020 = vsel %vm482, %v4768, %v4860
      %v5021 = vsel %vm482, %v4769, %v4862
      %v5022 = vsel %vm482, %v4770, %v4864
      %v5023 = vsel %vm482, %v4771, %v4866
      %v5024 = vsel %vm482, %v4772, %v4868
      %v5025 = vsel %vm482, %v4773, %v4870
      %v5026 = vsel %vm482, %v4774, %v4872
      %v5027 = vsel %vm515, %v4995, %v4906
      %v5028 = vsel %vm515, %v4996, %v4908
      %v5029 = vsel %vm515, %v4997, %v4910
      %v5030 = vsel %vm515, %v4998, %v4912
      %v5031 = vsel %vm515, %v4999, %v4914
      %v5032 = vsel %vm515, %v5000, %v4916
      %v5033 = vsel %vm515, %v5001, %v4918
      %v5034 = vsel %vm515, %v5002, %v4920
      %v5035 = vsel %vm515, %v5003, %v4922
      %v5036 = vsel %vm515, %v5004, %v4924
      %v5037 = vsel %vm515, %v5005, %v4926
      %v5038 = vsel %vm515, %v5006, %v4928
      %v5039 = vsel %vm515, %v5007, %v4930
      %v5040 = vsel %vm515, %v5008, %v4932
      %v5041 = vsel %vm515, %v5009, %v4934
      %v5042 = vsel %vm515, %v5010, %v4936
      %v5043 = vsel %vm515, %v5011, %v4938
      %v5044 = vsel %vm515, %v5012, %v4940
      %v5045 = vsel %vm515, %v5013, %v4942
      %v5046 = vsel %vm515, %v5014, %v4944
      %v5047 = vsel %vm515, %v5015, %v4946
      %v5048 = vsel %vm515, %v5016, %v4948
      %v5049 = vsel %vm515, %v5017, %v4950
      %v5050 = vsel %vm515, %v5018, %v4952
      %v5051 = vsel %vm515, %v5019, %v4954
      %v5052 = vsel %vm515, %v5020, %v4956
      %v5053 = vsel %vm515, %v5021, %v4958
      %v5054 = vsel %vm515, %v5022, %v4960
      %v5055 = vsel %vm515, %v5023, %v4962
      %v5056 = vsel %vm515, %v5024, %v4964
      %v5057 = vsel %vm515, %v5025, %v450
      %v5058 = vsel %vm515, %v5026, %v450
      %5059 = vst.msk [vmem:[#allocation2 + $0x1] sm:$0xff] %vm203, %v5027
      %5060 = vst.msk [vmem:[#allocation2 + $0x9] sm:$0xff] %vm203, %v5028
      %5061 = vst.msk [vmem:[#allocation2 + $0x19] sm:$0xff] %vm203, %v5029
      %5062 = vst.msk [vmem:[#allocation2 + $0x21] sm:$0xff] %vm203, %v5030
      %5063 = vst.msk [vmem:[#allocation2 + $0x31] sm:$0xff] %vm203, %v5031
      %5064 = vst.msk [vmem:[#allocation2 + $0x39] sm:$0xff] %vm203, %v5032
      %5065 = vst.msk [vmem:[#allocation2 + $0x49] sm:$0xff] %vm203, %v5033
      %5066 = vst.msk [vmem:[#allocation2 + $0x51] sm:$0xff] %vm203, %v5034
      %5067 = vst.msk [vmem:[#allocation2 + $0x61] sm:$0xff] %vm203, %v5035
      %5068 = vst.msk [vmem:[#allocation2 + $0x69] sm:$0xff] %vm203, %v5036
      %5069 = vst.msk [vmem:[#allocation2 + $0x79] sm:$0xff] %vm203, %v5037
      %5070 = vst.msk [vmem:[#allocation2 + $0x81] sm:$0xff] %vm203, %v5038
      %5071 = vst.msk [vmem:[#allocation2 + $0x91] sm:$0xff] %vm203, %v5039
      %5072 = vst.msk [vmem:[#allocation2 + $0x99] sm:$0xff] %vm203, %v5040
      %5073 = vst.msk [vmem:[#allocation2 + $0xa9] sm:$0xff] %vm203, %v5041
      %5074 = vst.msk [vmem:[#allocation2 + $0xb1] sm:$0xff] %vm203, %v5042
      %5075 = vst.msk [vmem:[#allocation2 + $0xc1] sm:$0xff] %vm203, %v5043
      %5076 = vst.msk [vmem:[#allocation2 + $0xc9] sm:$0xff] %vm203, %v5044
      %5077 = vst.msk [vmem:[#allocation2 + $0xd9] sm:$0xff] %vm203, %v5045
      %5078 = vst.msk [vmem:[#allocation2 + $0xe1] sm:$0xff] %vm203, %v5046
      %5079 = vst.msk [vmem:[#allocation2 + $0xf1] sm:$0xff] %vm203, %v5047
      %5080 = vst.msk [vmem:[#allocation2 + $0xf9] sm:$0xff] %vm203, %v5048
      %5081 = vst.msk [vmem:[#allocation2 + $0x109] sm:$0xff] %vm203, %v5049
      %5082 = vst.msk [vmem:[#allocation2 + $0x111] sm:$0xff] %vm203, %v5050
      %5083 = vst.msk [vmem:[#allocation2 + $0x121] sm:$0xff] %vm203, %v5051
      %5084 = vst.msk [vmem:[#allocation2 + $0x129] sm:$0xff] %vm203, %v5052
      %5085 = vst.msk [vmem:[#allocation2 + $0x139] sm:$0xff] %vm203, %v5053
      %5086 = vst.msk [vmem:[#allocation2 + $0x141] sm:$0xff] %vm203, %v5054
      %5087 = vst.msk [vmem:[#allocation2 + $0x151] sm:$0xff] %vm203, %v5055
      %5088 = vst.msk [vmem:[#allocation2 + $0x159] sm:$0xff] %vm203, %v5056
      %5089 = vst.msk [vmem:[#allocation2 + $0x169] sm:$0xff] %vm203, %v5057
      %5090 = vst.msk [vmem:[#allocation2 + $0x171] sm:$0xff] %vm203, %v5058
      %v5091 = vld [vmem:[#allocation2] sm:$0xff]
      %v5092 = vld [vmem:[#allocation2 + $0x8] sm:$0xff]
      %v5093 = vld [vmem:[#allocation2 + $0x18] sm:$0xff]
      %v5094 = vld [vmem:[#allocation2 + $0x20] sm:$0xff]
      %v5095 = vld [vmem:[#allocation2 + $0x30] sm:$0xff]
      %v5096 = vld [vmem:[#allocation2 + $0x38] sm:$0xff]
      %v5097 = vld [vmem:[#allocation2 + $0x48] sm:$0xff]
      %v5098 = vld [vmem:[#allocation2 + $0x50] sm:$0xff]
      %v5099 = vld [vmem:[#allocation2 + $0x60] sm:$0xff]
      %v5100 = vld [vmem:[#allocation2 + $0x68] sm:$0xff]
      %v5101 = vld [vmem:[#allocation2 + $0x78] sm:$0xff]
      %v5102 = vld [vmem:[#allocation2 + $0x80] sm:$0xff]
      %v5103 = vld [vmem:[#allocation2 + $0x90] sm:$0xff]
      %v5104 = vld [vmem:[#allocation2 + $0x98] sm:$0xff]
      %v5105 = vld [vmem:[#allocation2 + $0xa8] sm:$0xff]
      %v5106 = vld [vmem:[#allocation2 + $0xb0] sm:$0xff]
      %v5107 = vld [vmem:[#allocation2 + $0xc0] sm:$0xff]
      %v5108 = vld [vmem:[#allocation2 + $0xc8] sm:$0xff]
      %v5109 = vld [vmem:[#allocation2 + $0xd8] sm:$0xff]
      %v5110 = vld [vmem:[#allocation2 + $0xe0] sm:$0xff]
      %v5111 = vld [vmem:[#allocation2 + $0xf0] sm:$0xff]
      %v5112 = vld [vmem:[#allocation2 + $0xf8] sm:$0xff]
      %v5113 = vld [vmem:[#allocation2 + $0x108] sm:$0xff]
      %v5114 = vld [vmem:[#allocation2 + $0x110] sm:$0xff]
      %v5115 = vld [vmem:[#allocation2 + $0x120] sm:$0xff]
      %v5116 = vld [vmem:[#allocation2 + $0x128] sm:$0xff]
      %v5117 = vld [vmem:[#allocation2 + $0x138] sm:$0xff]
      %v5118 = vld [vmem:[#allocation2 + $0x140] sm:$0xff]
      %v5119 = vld [vmem:[#allocation2 + $0x150] sm:$0xff]
      %v5120 = vld [vmem:[#allocation2 + $0x158] sm:$0xff]
      %v5121 = vld [vmem:[#allocation2 + $0x168] sm:$0xff]
      %v5122 = vld [vmem:[#allocation2 + $0x170] sm:$0xff]
      %v5123 = vld [vmem:[#allocation2 + $0x1] sm:$0xff]
      %v5124 = vld [vmem:[#allocation2 + $0x9] sm:$0xff]
      %v5125 = vld [vmem:[#allocation2 + $0x19] sm:$0xff]
      %v5126 = vld [vmem:[#allocation2 + $0x21] sm:$0xff]
      %v5127 = vld [vmem:[#allocation2 + $0x31] sm:$0xff]
      %v5128 = vld [vmem:[#allocation2 + $0x39] sm:$0xff]
      %v5129 = vld [vmem:[#allocation2 + $0x49] sm:$0xff]
      %v5130 = vld [vmem:[#allocation2 + $0x51] sm:$0xff]
      %v5131 = vld [vmem:[#allocation2 + $0x61] sm:$0xff]
      %v5132 = vld [vmem:[#allocation2 + $0x69] sm:$0xff]
      %v5133 = vld [vmem:[#allocation2 + $0x79] sm:$0xff]
      %v5134 = vld [vmem:[#allocation2 + $0x81] sm:$0xff]
      %v5135 = vld [vmem:[#allocation2 + $0x91] sm:$0xff]
      %v5136 = vld [vmem:[#allocation2 + $0x99] sm:$0xff]
      %v5137 = vld [vmem:[#allocation2 + $0xa9] sm:$0xff]
      %v5138 = vld [vmem:[#allocation2 + $0xb1] sm:$0xff]
      %v5139 = vld [vmem:[#allocation2 + $0xc1] sm:$0xff]
      %v5140 = vld [vmem:[#allocation2 + $0xc9] sm:$0xff]
      %v5141 = vld [vmem:[#allocation2 + $0xd9] sm:$0xff]
      %v5142 = vld [vmem:[#allocation2 + $0xe1] sm:$0xff]
      %v5143 = vld [vmem:[#allocation2 + $0xf1] sm:$0xff]
      %v5144 = vld [vmem:[#allocation2 + $0xf9] sm:$0xff]
      %v5145 = vld [vmem:[#allocation2 + $0x109] sm:$0xff]
      %v5146 = vld [vmem:[#allocation2 + $0x111] sm:$0xff]
      %v5147 = vld [vmem:[#allocation2 + $0x121] sm:$0xff]
      %v5148 = vld [vmem:[#allocation2 + $0x129] sm:$0xff]
      %v5149 = vld [vmem:[#allocation2 + $0x139] sm:$0xff]
      %v5150 = vld [vmem:[#allocation2 + $0x141] sm:$0xff]
      %v5151 = vld [vmem:[#allocation2 + $0x151] sm:$0xff]
      %v5152 = vld [vmem:[#allocation2 + $0x159] sm:$0xff]
      %v5153 = vld [vmem:[#allocation2 + $0x169] sm:$0xff]
      %v5154 = vld [vmem:[#allocation2 + $0x171] sm:$0xff]
      %v5156 = vsel %vm203, %v5123, 0
      %v5159 = vsel %vm203, %v5124, 0
      %v5162 = vsel %vm203, %v5125, 0
      %v5165 = vsel %vm203, %v5126, 0
      %v5168 = vsel %vm203, %v5127, 0
      %v5171 = vsel %vm203, %v5128, 0
      %v5174 = vsel %vm203, %v5129, 0
      %v5177 = vsel %vm203, %v5130, 0
      %v5180 = vsel %vm203, %v5131, 0
      %v5183 = vsel %vm203, %v5132, 0
      %v5186 = vsel %vm203, %v5133, 0
      %v5189 = vsel %vm203, %v5134, 0
      %v5192 = vsel %vm203, %v5135, 0
      %v5195 = vsel %vm203, %v5136, 0
      %v5198 = vsel %vm203, %v5137, 0
      %v5201 = vsel %vm203, %v5138, 0
      %v5204 = vsel %vm203, %v5139, 0
      %v5207 = vsel %vm203, %v5140, 0
      %v5210 = vsel %vm203, %v5141, 0
      %v5213 = vsel %vm203, %v5142, 0
      %v5216 = vsel %vm203, %v5143, 0
      %v5219 = vsel %vm203, %v5144, 0
      %v5222 = vsel %vm203, %v5145, 0
      %v5225 = vsel %vm203, %v5146, 0
      %v5228 = vsel %vm203, %v5147, 0
      %v5231 = vsel %vm203, %v5148, 0
      %v5234 = vsel %vm203, %v5149, 0
      %v5237 = vsel %vm203, %v5150, 0
      %v5240 = vsel %vm203, %v5151, 0
      %v5243 = vsel %vm203, %v5152, 0
      %v5246 = vsel %vm203, %v5153, 0
      %v5249 = vsel %vm203, %v5154, 0
      %5251 = vmatprep.subr.mxu0 0.0
      %5252 = vmatpush1.msra.mxu0 %v3255
      %5253 = vmatprep.subr.mxu0 0.0
      %5254 = vmatpush1.msra.mxu0 %v3736
      %5255 = vmatprep.subr.mxu0 0.0
      %5256 = vmatpush1.msra.mxu0 0.0
      %5257 = vmatprep.subr.mxu0 0.0
      %5258 = vmatpush1.msra.mxu0 0.0
      %5259 = vmatprep.subr.mxu0 0.0
      %5260 = vmatpush1.msra.mxu0 0.0
      %5261 = vmatprep.subr.mxu0 0.0
      %5262 = vmatpush1.msra.mxu0 0.0
      %5263 = vmatprep.subr.mxu0 0.0
      %5264 = vmatpush1.msra.mxu0 0.0
      %5265 = vmatprep.subr.mxu0 0.0
      %5266 = vmatpush1.msra.mxu0 0.0
      %5267 = vmatprep.subr.mxu0 0.0
      %5268 = vmatpush1.msra.mxu0 0.0
      %5269 = vmatprep.subr.mxu0 0.0
      %5270 = vmatpush1.msra.mxu0 0.0
      %5271 = vmatprep.subr.mxu0 0.0
      %5272 = vmatpush1.msra.mxu0 0.0
      %5273 = vmatprep.subr.mxu0 0.0
      %5274 = vmatpush1.msra.mxu0 0.0
      %5275 = vmatprep.subr.mxu0 0.0
      %5276 = vmatpush1.msra.mxu0 0.0
      %5277 = vmatprep.subr.mxu0 0.0
      %5278 = vmatpush1.msra.mxu0 0.0
      %5279 = vmatprep.subr.mxu0 0.0
      %5280 = vmatpush1.msra.mxu0 0.0
      %5281 = vmatprep.subr.mxu0 0.0
      %5282 = vmatpush1.msra.mxu0 0.0
      %5283 = vmatprep.subr.mxu0 0.0
      %5284 = vmatpush1.msra.mxu0 0.0
      %5285 = vmatprep.subr.mxu0 0.0
      %5286 = vmatpush1.msra.mxu0 0.0
      %5287 = vmatprep.subr.mxu0 0.0
      %5288 = vmatpush1.msra.mxu0 0.0
      %5289 = vmatprep.subr.mxu0 0.0
      %5290 = vmatpush1.msra.mxu0 0.0
      %5291 = vmatprep.subr.mxu0 0.0
      %5292 = vmatpush1.msra.mxu0 0.0
      %5293 = vmatprep.subr.mxu0 0.0
      %5294 = vmatpush1.msra.mxu0 0.0
      %5295 = vmatprep.subr.mxu0 0.0
      %5296 = vmatpush1.msra.mxu0 0.0
      %5297 = vmatprep.subr.mxu0 0.0
      %5298 = vmatpush1.msra.mxu0 0.0
      %5299 = vmatprep.subr.mxu0 0.0
      %5300 = vmatpush1.msra.mxu0 0.0
      %5301 = vmatprep.subr.mxu0 0.0
      %5302 = vmatpush1.msra.mxu0 0.0
      %5303 = vmatprep.subr.mxu0 0.0
      %5304 = vmatpush1.msra.mxu0 0.0
      %5305 = vmatprep.subr.mxu0 0.0
      %5306 = vmatpush1.msra.mxu0 0.0
      %5307 = vmatprep.subr.mxu0 0.0
      %5308 = vmatpush1.msra.mxu0 0.0
      %5309 = vmatprep.subr.mxu0 0.0
      %5310 = vmatpush1.msra.mxu0 0.0
      %5311 = vmatprep.subr.mxu0 0.0
      %5312 = vmatpush1.msra.mxu0 0.0
      %5313 = vmatprep.subr.mxu0 0.0
      %5314 = vmatpush1.msra.mxu0 0.0
      %5315 = vmatprep.mubr.f32.mxu0 0.0
      %5316 = vmatmul.mubr.f32.gmra.mrb[0].mxu0 %v5156
      %v5317 = vpop.f32.mrb[0].mxu0
      %v5318 = vadd.f32 0.0, %v5317
      %v5319 = vpop.f32.mrb[0].mxu0
      %5320 = vmatprep.mubr.f32.mxu0 0.0
      %5321 = vmatmul.mubr.f32.gmra.mrb[0].mxu0 %v5159
      %v5322 = vpop.f32.mrb[0].mxu0
      %v5323 = vadd.f32 0.0, %v5322
      %v5324 = vpop.f32.mrb[0].mxu0
      %5325 = vmatprep.mubr.f32.mxu0 0.0
      %5326 = vmatmul.mubr.f32.gmra.mrb[0].mxu0 %v5162
      %v5327 = vpop.f32.mrb[0].mxu0
      %v5328 = vadd.f32 0.0, %v5327
      %v5329 = vpop.f32.mrb[0].mxu0
      %5330 = vmatprep.mubr.f32.mxu0 0.0
      %5331 = vmatmul.mubr.f32.gmra.mrb[0].mxu0 %v5165
      %v5332 = vpop.f32.mrb[0].mxu0
      %v5333 = vadd.f32 0.0, %v5332
      %v5334 = vpop.f32.mrb[0].mxu0
      %5335 = vmatprep.mubr.f32.mxu0 0.0
      %5336 = vmatmul.mubr.f32.gmra.mrb[0].mxu0 %v5168
      %v5337 = vpop.f32.mrb[0].mxu0
      %v5338 = vadd.f32 0.0, %v5337
      %v5339 = vpop.f32.mrb[0].mxu0
      %5340 = vmatprep.mubr.f32.mxu0 0.0
      %5341 = vmatmul.mubr.f32.gmra.mrb[0].mxu0 %v5171
      %v5342 = vpop.f32.mrb[0].mxu0
      %v5343 = vadd.f32 0.0, %v5342
      %v5344 = vpop.f32.mrb[0].mxu0
      %5345 = vmatprep.mubr.f32.mxu0 0.0
      %5346 = vmatmul.mubr.f32.gmra.mrb[0].mxu0 %v5174
      %v5347 = vpop.f32.mrb[0].mxu0
      %v5348 = vadd.f32 0.0, %v5347
      %v5349 = vpop.f32.mrb[0].mxu0
      %5350 = vmatprep.mubr.f32.mxu0 0.0
      %5351 = vmatmul.mubr.f32.gmra.mrb[0].mxu0 %v5177
      %v5352 = vpop.f32.mrb[0].mxu0
      %v5353 = vadd.f32 0.0, %v5352
      %v5354 = vpop.f32.mrb[0].mxu0
      %5355 = vmatprep.mubr.f32.mxu0 0.0
      %5356 = vmatmul.mubr.f32.gmra.mrb[0].mxu0 %v5180
      %v5357 = vpop.f32.mrb[0].mxu0
      %v5358 = vadd.f32 0.0, %v5357
      %v5359 = vpop.f32.mrb[0].mxu0
      %5360 = vmatprep.mubr.f32.mxu0 0.0
      %5361 = vmatmul.mubr.f32.gmra.mrb[0].mxu0 %v5183
      %v5362 = vpop.f32.mrb[0].mxu0
      %v5363 = vadd.f32 0.0, %v5362
      %v5364 = vpop.f32.mrb[0].mxu0
      %5365 = vmatprep.mubr.f32.mxu0 0.0
      %5366 = vmatmul.mubr.f32.gmra.mrb[0].mxu0 %v5186
      %v5367 = vpop.f32.mrb[0].mxu0
      %v5368 = vadd.f32 0.0, %v5367
      %v5369 = vpop.f32.mrb[0].mxu0
      %5370 = vmatprep.mubr.f32.mxu0 0.0
      %5371 = vmatmul.mubr.f32.gmra.mrb[0].mxu0 %v5189
      %v5372 = vpop.f32.mrb[0].mxu0
      %v5373 = vadd.f32 0.0, %v5372
      %v5374 = vpop.f32.mrb[0].mxu0
      %5375 = vmatprep.mubr.f32.mxu0 0.0
      %5376 = vmatmul.mubr.f32.gmra.mrb[0].mxu0 %v5192
      %v5377 = vpop.f32.mrb[0].mxu0
      %v5378 = vadd.f32 0.0, %v5377
      %v5379 = vpop.f32.mrb[0].mxu0
      %5380 = vmatprep.mubr.f32.mxu0 0.0
      %5381 = vmatmul.mubr.f32.gmra.mrb[0].mxu0 %v5195
      %v5382 = vpop.f32.mrb[0].mxu0
      %v5383 = vadd.f32 0.0, %v5382
      %v5384 = vpop.f32.mrb[0].mxu0
      %5385 = vmatprep.mubr.f32.mxu0 0.0
      %5386 = vmatmul.mubr.f32.gmra.mrb[0].mxu0 %v5198
      %v5387 = vpop.f32.mrb[0].mxu0
      %v5388 = vadd.f32 0.0, %v5387
      %v5389 = vpop.f32.mrb[0].mxu0
      %5390 = vmatprep.mubr.f32.mxu0 0.0
      %5391 = vmatmul.mubr.f32.gmra.mrb[0].mxu0 %v5201
      %v5392 = vpop.f32.mrb[0].mxu0
      %v5393 = vadd.f32 0.0, %v5392
      %v5394 = vpop.f32.mrb[0].mxu0
      %5395 = vmatprep.mubr.f32.mxu0 0.0
      %5396 = vmatmul.mubr.f32.gmra.mrb[0].mxu0 %v5204
      %v5397 = vpop.f32.mrb[0].mxu0
      %v5398 = vadd.f32 0.0, %v5397
      %v5399 = vpop.f32.mrb[0].mxu0
      %5400 = vmatprep.mubr.f32.mxu0 0.0
      %5401 = vmatmul.mubr.f32.gmra.mrb[0].mxu0 %v5207
      %v5402 = vpop.f32.mrb[0].mxu0
      %v5403 = vadd.f32 0.0, %v5402
      %v5404 = vpop.f32.mrb[0].mxu0
      %5405 = vmatprep.mubr.f32.mxu0 0.0
      %5406 = vmatmul.mubr.f32.gmra.mrb[0].mxu0 %v5210
      %v5407 = vpop.f32.mrb[0].mxu0
      %v5408 = vadd.f32 0.0, %v5407
      %v5409 = vpop.f32.mrb[0].mxu0
      %5410 = vmatprep.mubr.f32.mxu0 0.0
      %5411 = vmatmul.mubr.f32.gmra.mrb[0].mxu0 %v5213
      %v5412 = vpop.f32.mrb[0].mxu0
      %v5413 = vadd.f32 0.0, %v5412
      %v5414 = vpop.f32.mrb[0].mxu0
      %5415 = vmatprep.mubr.f32.mxu0 0.0
      %5416 = vmatmul.mubr.f32.gmra.mrb[0].mxu0 %v5216
      %v5417 = vpop.f32.mrb[0].mxu0
      %v5418 = vadd.f32 0.0, %v5417
      %v5419 = vpop.f32.mrb[0].mxu0
      %5420 = vmatprep.mubr.f32.mxu0 0.0
      %5421 = vmatmul.mubr.f32.gmra.mrb[0].mxu0 %v5219
      %v5422 = vpop.f32.mrb[0].mxu0
      %v5423 = vadd.f32 0.0, %v5422
      %v5424 = vpop.f32.mrb[0].mxu0
      %5425 = vmatprep.mubr.f32.mxu0 0.0
      %5426 = vmatmul.mubr.f32.gmra.mrb[0].mxu0 %v5222
      %v5427 = vpop.f32.mrb[0].mxu0
      %v5428 = vadd.f32 0.0, %v5427
      %v5429 = vpop.f32.mrb[0].mxu0
      %5430 = vmatprep.mubr.f32.mxu0 0.0
      %5431 = vmatmul.mubr.f32.gmra.mrb[0].mxu0 %v5225
      %v5432 = vpop.f32.mrb[0].mxu0
      %v5433 = vadd.f32 0.0, %v5432
      %v5434 = vpop.f32.mrb[0].mxu0
      %5435 = vmatprep.mubr.f32.mxu0 0.0
      %5436 = vmatmul.mubr.f32.gmra.mrb[0].mxu0 %v5228
      %v5437 = vpop.f32.mrb[0].mxu0
      %v5438 = vadd.f32 0.0, %v5437
      %v5439 = vpop.f32.mrb[0].mxu0
      %5440 = vmatprep.mubr.f32.mxu0 0.0
      %5441 = vmatmul.mubr.f32.gmra.mrb[0].mxu0 %v5231
      %v5442 = vpop.f32.mrb[0].mxu0
      %v5443 = vadd.f32 0.0, %v5442
      %v5444 = vpop.f32.mrb[0].mxu0
      %5445 = vmatprep.mubr.f32.mxu0 0.0
      %5446 = vmatmul.mubr.f32.gmra.mrb[0].mxu0 %v5234
      %v5447 = vpop.f32.mrb[0].mxu0
      %v5448 = vadd.f32 0.0, %v5447
      %v5449 = vpop.f32.mrb[0].mxu0
      %5450 = vmatprep.mubr.f32.mxu0 0.0
      %5451 = vmatmul.mubr.f32.gmra.mrb[0].mxu0 %v5237
      %v5452 = vpop.f32.mrb[0].mxu0
      %v5453 = vadd.f32 0.0, %v5452
      %v5454 = vpop.f32.mrb[0].mxu0
      %5455 = vmatprep.mubr.f32.mxu0 0.0
      %5456 = vmatmul.mubr.f32.gmra.mrb[0].mxu0 %v5240
      %v5457 = vpop.f32.mrb[0].mxu0
      %v5458 = vadd.f32 0.0, %v5457
      %v5459 = vpop.f32.mrb[0].mxu0
      %5460 = vmatprep.mubr.f32.mxu0 0.0
      %5461 = vmatmul.mubr.f32.gmra.mrb[0].mxu0 %v5243
      %v5462 = vpop.f32.mrb[0].mxu0
      %v5463 = vadd.f32 0.0, %v5462
      %v5464 = vpop.f32.mrb[0].mxu0
      %5465 = vmatprep.mubr.f32.mxu0 0.0
      %5466 = vmatmul.mubr.f32.gmra.mrb[0].mxu0 %v5246
      %v5467 = vpop.f32.mrb[0].mxu0
      %v5468 = vadd.f32 0.0, %v5467
      %v5469 = vpop.f32.mrb[0].mxu0
      %5470 = vmatprep.mubr.f32.mxu0 0.0
      %5471 = vmatmul.mubr.f32.gmra.mrb[0].mxu0 %v5249
      %v5472 = vpop.f32.mrb[0].mxu0
      %v5473 = vadd.f32 0.0, %v5472
      %v5474 = vpop.f32.mrb[0].mxu0
      %5475 = vdwg.mxu0
      %v5477 = vsel %vm203, %v5091, 0
      %v5480 = vsel %vm203, %v5092, 0
      %v5483 = vsel %vm203, %v5093, 0
      %v5486 = vsel %vm203, %v5094, 0
      %v5489 = vsel %vm203, %v5095, 0
      %v5492 = vsel %vm203, %v5096, 0
      %v5495 = vsel %vm203, %v5097, 0
      %v5498 = vsel %vm203, %v5098, 0
      %v5501 = vsel %vm203, %v5099, 0
      %v5504 = vsel %vm203, %v5100, 0
      %v5507 = vsel %vm203, %v5101, 0
      %v5510 = vsel %vm203, %v5102, 0
      %v5513 = vsel %vm203, %v5103, 0
      %v5516 = vsel %vm203, %v5104, 0
      %v5519 = vsel %vm203, %v5105, 0
      %v5522 = vsel %vm203, %v5106, 0
      %v5525 = vsel %vm203, %v5107, 0
      %v5528 = vsel %vm203, %v5108, 0
      %v5531 = vsel %vm203, %v5109, 0
      %v5534 = vsel %vm203, %v5110, 0
      %v5537 = vsel %vm203, %v5111, 0
      %v5540 = vsel %vm203, %v5112, 0
      %v5543 = vsel %vm203, %v5113, 0
      %v5546 = vsel %vm203, %v5114, 0
      %v5549 = vsel %vm203, %v5115, 0
      %v5552 = vsel %vm203, %v5116, 0
      %v5555 = vsel %vm203, %v5117, 0
      %v5558 = vsel %vm203, %v5118, 0
      %v5561 = vsel %vm203, %v5119, 0
      %v5564 = vsel %vm203, %v5120, 0
      %v5567 = vsel %vm203, %v5121, 0
      %v5570 = vsel %vm203, %v5122, 0
      %5572 = vmatprep.subr.mxu0 0.0
      %5573 = vmatpush1.msra.mxu0 %v3253
      %5574 = vmatprep.subr.mxu0 0.0
      %5575 = vmatpush1.msra.mxu0 %v4060
      %5576 = vmatprep.subr.mxu0 0.0
      %5577 = vmatpush1.msra.mxu0 0.0
      %5578 = vmatprep.subr.mxu0 0.0
      %5579 = vmatpush1.msra.mxu0 0.0
      %5580 = vmatprep.subr.mxu0 0.0
      %5581 = vmatpush1.msra.mxu0 0.0
      %5582 = vmatprep.subr.mxu0 0.0
      %5583 = vmatpush1.msra.mxu0 0.0
      %5584 = vmatprep.subr.mxu0 0.0
      %5585 = vmatpush1.msra.mxu0 0.0
      %5586 = vmatprep.subr.mxu0 0.0
      %5587 = vmatpush1.msra.mxu0 0.0
      %5588 = vmatprep.subr.mxu0 0.0
      %5589 = vmatpush1.msra.mxu0 0.0
      %5590 = vmatprep.subr.mxu0 0.0
      %5591 = vmatpush1.msra.mxu0 0.0
      %5592 = vmatprep.subr.mxu0 0.0
      %5593 = vmatpush1.msra.mxu0 0.0
      %5594 = vmatprep.subr.mxu0 0.0
      %5595 = vmatpush1.msra.mxu0 0.0
      %5596 = vmatprep.subr.mxu0 0.0
      %5597 = vmatpush1.msra.mxu0 0.0
      %5598 = vmatprep.subr.mxu0 0.0
      %5599 = vmatpush1.msra.mxu0 0.0
      %5600 = vmatprep.subr.mxu0 0.0
      %5601 = vmatpush1.msra.mxu0 0.0
      %5602 = vmatprep.subr.mxu0 0.0
      %5603 = vmatpush1.msra.mxu0 0.0
      %5604 = vmatprep.subr.mxu0 0.0
      %5605 = vmatpush1.msra.mxu0 0.0
      %5606 = vmatprep.subr.mxu0 0.0
      %5607 = vmatpush1.msra.mxu0 0.0
      %5608 = vmatprep.subr.mxu0 0.0
      %5609 = vmatpush1.msra.mxu0 0.0
      %5610 = vmatprep.subr.mxu0 0.0
      %5611 = vmatpush1.msra.mxu0 0.0
      %5612 = vmatprep.subr.mxu0 0.0
      %5613 = vmatpush1.msra.mxu0 0.0
      %5614 = vmatprep.subr.mxu0 0.0
      %5615 = vmatpush1.msra.mxu0 0.0
      %5616 = vmatprep.subr.mxu0 0.0
      %5617 = vmatpush1.msra.mxu0 0.0
      %5618 = vmatprep.subr.mxu0 0.0
      %5619 = vmatpush1.msra.mxu0 0.0
      %5620 = vmatprep.subr.mxu0 0.0
      %5621 = vmatpush1.msra.mxu0 0.0
      %5622 = vmatprep.subr.mxu0 0.0
      %5623 = vmatpush1.msra.mxu0 0.0
      %5624 = vmatprep.subr.mxu0 0.0
      %5625 = vmatpush1.msra.mxu0 0.0
      %5626 = vmatprep.subr.mxu0 0.0
      %5627 = vmatpush1.msra.mxu0 0.0
      %5628 = vmatprep.subr.mxu0 0.0
      %5629 = vmatpush1.msra.mxu0 0.0
      %5630 = vmatprep.subr.mxu0 0.0
      %5631 = vmatpush1.msra.mxu0 0.0
      %5632 = vmatprep.subr.mxu0 0.0
      %5633 = vmatpush1.msra.mxu0 0.0
      %5634 = vmatprep.subr.mxu0 0.0
      %5635 = vmatpush1.msra.mxu0 0.0
      %5636 = vmatprep.mubr.f32.mxu0 0.0
      %5637 = vmatmul.mubr.f32.gmra.mrb[0].mxu0 %v5477
      %v5638 = vpop.f32.mrb[0].mxu0
      %v5639 = vadd.f32 %v5318, %v5638
      %v5640 = vpop.f32.mrb[0].mxu0
      %5641 = vmatprep.mubr.f32.mxu0 0.0
      %5642 = vmatmul.mubr.f32.gmra.mrb[0].mxu0 %v5480
      %v5643 = vpop.f32.mrb[0].mxu0
      %v5644 = vadd.f32 %v5323, %v5643
      %v5645 = vpop.f32.mrb[0].mxu0
      %5646 = vmatprep.mubr.f32.mxu0 0.0
      %5647 = vmatmul.mubr.f32.gmra.mrb[0].mxu0 %v5483
      %v5648 = vpop.f32.mrb[0].mxu0
      %v5649 = vadd.f32 %v5328, %v5648
      %v5650 = vpop.f32.mrb[0].mxu0
      %5651 = vmatprep.mubr.f32.mxu0 0.0
      %5652 = vmatmul.mubr.f32.gmra.mrb[0].mxu0 %v5486
      %v5653 = vpop.f32.mrb[0].mxu0
      %v5654 = vadd.f32 %v5333, %v5653
      %v5655 = vpop.f32.mrb[0].mxu0
      %5656 = vmatprep.mubr.f32.mxu0 0.0
      %5657 = vmatmul.mubr.f32.gmra.mrb[0].mxu0 %v5489
      %v5658 = vpop.f32.mrb[0].mxu0
      %v5659 = vadd.f32 %v5338, %v5658
      %v5660 = vpop.f32.mrb[0].mxu0
      %5661 = vmatprep.mubr.f32.mxu0 0.0
      %5662 = vmatmul.mubr.f32.gmra.mrb[0].mxu0 %v5492
      %v5663 = vpop.f32.mrb[0].mxu0
      %v5664 = vadd.f32 %v5343, %v5663
      %v5665 = vpop.f32.mrb[0].mxu0
      %5666 = vmatprep.mubr.f32.mxu0 0.0
      %5667 = vmatmul.mubr.f32.gmra.mrb[0].mxu0 %v5495
      %v5668 = vpop.f32.mrb[0].mxu0
      %v5669 = vadd.f32 %v5348, %v5668
      %v5670 = vpop.f32.mrb[0].mxu0
      %5671 = vmatprep.mubr.f32.mxu0 0.0
      %5672 = vmatmul.mubr.f32.gmra.mrb[0].mxu0 %v5498
      %v5673 = vpop.f32.mrb[0].mxu0
      %v5674 = vadd.f32 %v5353, %v5673
      %v5675 = vpop.f32.mrb[0].mxu0
      %5676 = vmatprep.mubr.f32.mxu0 0.0
      %5677 = vmatmul.mubr.f32.gmra.mrb[0].mxu0 %v5501
      %v5678 = vpop.f32.mrb[0].mxu0
      %v5679 = vadd.f32 %v5358, %v5678
      %v5680 = vpop.f32.mrb[0].mxu0
      %5681 = vmatprep.mubr.f32.mxu0 0.0
      %5682 = vmatmul.mubr.f32.gmra.mrb[0].mxu0 %v5504
      %v5683 = vpop.f32.mrb[0].mxu0
      %v5684 = vadd.f32 %v5363, %v5683
      %v5685 = vpop.f32.mrb[0].mxu0
      %5686 = vmatprep.mubr.f32.mxu0 0.0
      %5687 = vmatmul.mubr.f32.gmra.mrb[0].mxu0 %v5507
      %v5688 = vpop.f32.mrb[0].mxu0
      %v5689 = vadd.f32 %v5368, %v5688
      %v5690 = vpop.f32.mrb[0].mxu0
      %5691 = vmatprep.mubr.f32.mxu0 0.0
      %5692 = vmatmul.mubr.f32.gmra.mrb[0].mxu0 %v5510
      %v5693 = vpop.f32.mrb[0].mxu0
      %v5694 = vadd.f32 %v5373, %v5693
      %v5695 = vpop.f32.mrb[0].mxu0
      %5696 = vmatprep.mubr.f32.mxu0 0.0
      %5697 = vmatmul.mubr.f32.gmra.mrb[0].mxu0 %v5513
      %v5698 = vpop.f32.mrb[0].mxu0
      %v5699 = vadd.f32 %v5378, %v5698
      %v5700 = vpop.f32.mrb[0].mxu0
      %5701 = vmatprep.mubr.f32.mxu0 0.0
      %5702 = vmatmul.mubr.f32.gmra.mrb[0].mxu0 %v5516
      %v5703 = vpop.f32.mrb[0].mxu0
      %v5704 = vadd.f32 %v5383, %v5703
      %v5705 = vpop.f32.mrb[0].mxu0
      %5706 = vmatprep.mubr.f32.mxu0 0.0
      %5707 = vmatmul.mubr.f32.gmra.mrb[0].mxu0 %v5519
      %v5708 = vpop.f32.mrb[0].mxu0
      %v5709 = vadd.f32 %v5388, %v5708
      %v5710 = vpop.f32.mrb[0].mxu0
      %5711 = vmatprep.mubr.f32.mxu0 0.0
      %5712 = vmatmul.mubr.f32.gmra.mrb[0].mxu0 %v5522
      %v5713 = vpop.f32.mrb[0].mxu0
      %v5714 = vadd.f32 %v5393, %v5713
      %v5715 = vpop.f32.mrb[0].mxu0
      %5716 = vmatprep.mubr.f32.mxu0 0.0
      %5717 = vmatmul.mubr.f32.gmra.mrb[0].mxu0 %v5525
      %v5718 = vpop.f32.mrb[0].mxu0
      %v5719 = vadd.f32 %v5398, %v5718
      %v5720 = vpop.f32.mrb[0].mxu0
      %5721 = vmatprep.mubr.f32.mxu0 0.0
      %5722 = vmatmul.mubr.f32.gmra.mrb[0].mxu0 %v5528
      %v5723 = vpop.f32.mrb[0].mxu0
      %v5724 = vadd.f32 %v5403, %v5723
      %v5725 = vpop.f32.mrb[0].mxu0
      %5726 = vmatprep.mubr.f32.mxu0 0.0
      %5727 = vmatmul.mubr.f32.gmra.mrb[0].mxu0 %v5531
      %v5728 = vpop.f32.mrb[0].mxu0
      %v5729 = vadd.f32 %v5408, %v5728
      %v5730 = vpop.f32.mrb[0].mxu0
      %5731 = vmatprep.mubr.f32.mxu0 0.0
      %5732 = vmatmul.mubr.f32.gmra.mrb[0].mxu0 %v5534
      %v5733 = vpop.f32.mrb[0].mxu0
      %v5734 = vadd.f32 %v5413, %v5733
      %v5735 = vpop.f32.mrb[0].mxu0
      %5736 = vmatprep.mubr.f32.mxu0 0.0
      %5737 = vmatmul.mubr.f32.gmra.mrb[0].mxu0 %v5537
      %v5738 = vpop.f32.mrb[0].mxu0
      %v5739 = vadd.f32 %v5418, %v5738
      %v5740 = vpop.f32.mrb[0].mxu0
      %5741 = vmatprep.mubr.f32.mxu0 0.0
      %5742 = vmatmul.mubr.f32.gmra.mrb[0].mxu0 %v5540
      %v5743 = vpop.f32.mrb[0].mxu0
      %v5744 = vadd.f32 %v5423, %v5743
      %v5745 = vpop.f32.mrb[0].mxu0
      %5746 = vmatprep.mubr.f32.mxu0 0.0
      %5747 = vmatmul.mubr.f32.gmra.mrb[0].mxu0 %v5543
      %v5748 = vpop.f32.mrb[0].mxu0
      %v5749 = vadd.f32 %v5428, %v5748
      %v5750 = vpop.f32.mrb[0].mxu0
      %5751 = vmatprep.mubr.f32.mxu0 0.0
      %5752 = vmatmul.mubr.f32.gmra.mrb[0].mxu0 %v5546
      %v5753 = vpop.f32.mrb[0].mxu0
      %v5754 = vadd.f32 %v5433, %v5753
      %v5755 = vpop.f32.mrb[0].mxu0
      %5756 = vmatprep.mubr.f32.mxu0 0.0
      %5757 = vmatmul.mubr.f32.gmra.mrb[0].mxu0 %v5549
      %v5758 = vpop.f32.mrb[0].mxu0
      %v5759 = vadd.f32 %v5438, %v5758
      %v5760 = vpop.f32.mrb[0].mxu0
      %5761 = vmatprep.mubr.f32.mxu0 0.0
      %5762 = vmatmul.mubr.f32.gmra.mrb[0].mxu0 %v5552
      %v5763 = vpop.f32.mrb[0].mxu0
      %v5764 = vadd.f32 %v5443, %v5763
      %v5765 = vpop.f32.mrb[0].mxu0
      %5766 = vmatprep.mubr.f32.mxu0 0.0
      %5767 = vmatmul.mubr.f32.gmra.mrb[0].mxu0 %v5555
      %v5768 = vpop.f32.mrb[0].mxu0
      %v5769 = vadd.f32 %v5448, %v5768
      %v5770 = vpop.f32.mrb[0].mxu0
      %5771 = vmatprep.mubr.f32.mxu0 0.0
      %5772 = vmatmul.mubr.f32.gmra.mrb[0].mxu0 %v5558
      %v5773 = vpop.f32.mrb[0].mxu0
      %v5774 = vadd.f32 %v5453, %v5773
      %v5775 = vpop.f32.mrb[0].mxu0
      %5776 = vmatprep.mubr.f32.mxu0 0.0
      %5777 = vmatmul.mubr.f32.gmra.mrb[0].mxu0 %v5561
      %v5778 = vpop.f32.mrb[0].mxu0
      %v5779 = vadd.f32 %v5458, %v5778
      %v5780 = vpop.f32.mrb[0].mxu0
      %5781 = vmatprep.mubr.f32.mxu0 0.0
      %5782 = vmatmul.mubr.f32.gmra.mrb[0].mxu0 %v5564
      %v5783 = vpop.f32.mrb[0].mxu0
      %v5784 = vadd.f32 %v5463, %v5783
      %v5785 = vpop.f32.mrb[0].mxu0
      %5786 = vmatprep.mubr.f32.mxu0 0.0
      %5787 = vmatmul.mubr.f32.gmra.mrb[0].mxu0 %v5567
      %v5788 = vpop.f32.mrb[0].mxu0
      %v5789 = vadd.f32 %v5468, %v5788
      %v5790 = vpop.f32.mrb[0].mxu0
      %5791 = vmatprep.mubr.f32.mxu0 0.0
      %5792 = vmatmul.mubr.f32.gmra.mrb[0].mxu0 %v5570
      %v5793 = vpop.f32.mrb[0].mxu0
      %v5794 = vadd.f32 %v5473, %v5793
      %v5795 = vpop.f32.mrb[0].mxu0
      %5796 = vdwg.mxu0
      %v5797 = vld [vmem:[#allocation2 + $0x2] sm:$0xff]
      %v5798 = vld [vmem:[#allocation2 + $0xa] sm:$0xff]
      %v5799 = vld [vmem:[#allocation2 + $0x1a] sm:$0xff]
      %v5800 = vld [vmem:[#allocation2 + $0x22] sm:$0xff]
      %v5801 = vld [vmem:[#allocation2 + $0x32] sm:$0xff]
      %v5802 = vld [vmem:[#allocation2 + $0x3a] sm:$0xff]
      %v5803 = vld [vmem:[#allocation2 + $0x4a] sm:$0xff]
      %v5804 = vld [vmem:[#allocation2 + $0x52] sm:$0xff]
      %v5805 = vld [vmem:[#allocation2 + $0x62] sm:$0xff]
      %v5806 = vld [vmem:[#allocation2 + $0x6a] sm:$0xff]
      %v5807 = vld [vmem:[#allocation2 + $0x7a] sm:$0xff]
      %v5808 = vld [vmem:[#allocation2 + $0x82] sm:$0xff]
      %v5809 = vld [vmem:[#allocation2 + $0x92] sm:$0xff]
      %v5810 = vld [vmem:[#allocation2 + $0x9a] sm:$0xff]
      %v5811 = vld [vmem:[#allocation2 + $0xaa] sm:$0xff]
      %v5812 = vld [vmem:[#allocation2 + $0xb2] sm:$0xff]
      %v5813 = vld [vmem:[#allocation2 + $0xc2] sm:$0xff]
      %v5814 = vld [vmem:[#allocation2 + $0xca] sm:$0xff]
      %v5815 = vld [vmem:[#allocation2 + $0xda] sm:$0xff]
      %v5816 = vld [vmem:[#allocation2 + $0xe2] sm:$0xff]
      %v5817 = vld [vmem:[#allocation2 + $0xf2] sm:$0xff]
      %v5818 = vld [vmem:[#allocation2 + $0xfa] sm:$0xff]
      %v5819 = vld [vmem:[#allocation2 + $0x10a] sm:$0xff]
      %v5820 = vld [vmem:[#allocation2 + $0x112] sm:$0xff]
      %v5821 = vld [vmem:[#allocation2 + $0x122] sm:$0xff]
      %v5822 = vld [vmem:[#allocation2 + $0x12a] sm:$0xff]
      %v5823 = vld [vmem:[#allocation2 + $0x13a] sm:$0xff]
      %v5824 = vld [vmem:[#allocation2 + $0x142] sm:$0xff]
      %v5825 = vld [vmem:[#allocation2 + $0x152] sm:$0xff]
      %v5826 = vld [vmem:[#allocation2 + $0x15a] sm:$0xff]
      %v5827 = vld [vmem:[#allocation2 + $0x16a] sm:$0xff]
      %v5828 = vld [vmem:[#allocation2 + $0x172] sm:$0xff]
      %v5830 = vsel %vm203, %v5797, 0
      %v5833 = vsel %vm203, %v5798, 0
      %v5836 = vsel %vm203, %v5799, 0
      %v5839 = vsel %vm203, %v5800, 0
      %v5842 = vsel %vm203, %v5801, 0
      %v5845 = vsel %vm203, %v5802, 0
      %v5848 = vsel %vm203, %v5803, 0
      %v5851 = vsel %vm203, %v5804, 0
      %v5854 = vsel %vm203, %v5805, 0
      %v5857 = vsel %vm203, %v5806, 0
      %v5860 = vsel %vm203, %v5807, 0
      %v5863 = vsel %vm203, %v5808, 0
      %v5866 = vsel %vm203, %v5809, 0
      %v5869 = vsel %vm203, %v5810, 0
      %v5872 = vsel %vm203, %v5811, 0
      %v5875 = vsel %vm203, %v5812, 0
      %v5878 = vsel %vm203, %v5813, 0
      %v5881 = vsel %vm203, %v5814, 0
      %v5884 = vsel %vm203, %v5815, 0
      %v5887 = vsel %vm203, %v5816, 0
      %v5890 = vsel %vm203, %v5817, 0
      %v5893 = vsel %vm203, %v5818, 0
      %v5896 = vsel %vm203, %v5819, 0
      %v5899 = vsel %vm203, %v5820, 0
      %v5902 = vsel %vm203, %v5821, 0
      %v5905 = vsel %vm203, %v5822, 0
      %v5908 = vsel %vm203, %v5823, 0
      %v5911 = vsel %vm203, %v5824, 0
      %v5914 = vsel %vm203, %v5825, 0
      %v5917 = vsel %vm203, %v5826, 0
      %v5920 = vsel %vm203, %v5827, 0
      %v5923 = vsel %vm203, %v5828, 0
      %5925 = vmatprep.subr.mxu0 0.0
      %5926 = vmatpush1.msra.mxu0 %v3257
      %5927 = vmatprep.subr.mxu0 0.0
      %5928 = vmatpush1.msra.mxu0 %v4416
      %5929 = vmatprep.subr.mxu0 0.0
      %5930 = vmatpush1.msra.mxu0 0.0
      %5931 = vmatprep.subr.mxu0 0.0
      %5932 = vmatpush1.msra.mxu0 0.0
      %5933 = vmatprep.subr.mxu0 0.0
      %5934 = vmatpush1.msra.mxu0 0.0
      %5935 = vmatprep.subr.mxu0 0.0
      %5936 = vmatpush1.msra.mxu0 0.0
      %5937 = vmatprep.subr.mxu0 0.0
      %5938 = vmatpush1.msra.mxu0 0.0
      %5939 = vmatprep.subr.mxu0 0.0
      %5940 = vmatpush1.msra.mxu0 0.0
      %5941 = vmatprep.subr.mxu0 0.0
      %5942 = vmatpush1.msra.mxu0 0.0
      %5943 = vmatprep.subr.mxu0 0.0
      %5944 = vmatpush1.msra.mxu0 0.0
      %5945 = vmatprep.subr.mxu0 0.0
      %5946 = vmatpush1.msra.mxu0 0.0
      %5947 = vmatprep.subr.mxu0 0.0
      %5948 = vmatpush1.msra.mxu0 0.0
      %5949 = vmatprep.subr.mxu0 0.0
      %5950 = vmatpush1.msra.mxu0 0.0
      %5951 = vmatprep.subr.mxu0 0.0
      %5952 = vmatpush1.msra.mxu0 0.0
      %5953 = vmatprep.subr.mxu0 0.0
      %5954 = vmatpush1.msra.mxu0 0.0
      %5955 = vmatprep.subr.mxu0 0.0
      %5956 = vmatpush1.msra.mxu0 0.0
      %5957 = vmatprep.subr.mxu0 0.0
      %5958 = vmatpush1.msra.mxu0 0.0
      %5959 = vmatprep.subr.mxu0 0.0
      %5960 = vmatpush1.msra.mxu0 0.0
      %5961 = vmatprep.subr.mxu0 0.0
      %5962 = vmatpush1.msra.mxu0 0.0
      %5963 = vmatprep.subr.mxu0 0.0
      %5964 = vmatpush1.msra.mxu0 0.0
      %5965 = vmatprep.subr.mxu0 0.0
      %5966 = vmatpush1.msra.mxu0 0.0
      %5967 = vmatprep.subr.mxu0 0.0
      %5968 = vmatpush1.msra.mxu0 0.0
      %5969 = vmatprep.subr.mxu0 0.0
      %5970 = vmatpush1.msra.mxu0 0.0
      %5971 = vmatprep.subr.mxu0 0.0
      %5972 = vmatpush1.msra.mxu0 0.0
      %5973 = vmatprep.subr.mxu0 0.0
      %5974 = vmatpush1.msra.mxu0 0.0
      %5975 = vmatprep.subr.mxu0 0.0
      %5976 = vmatpush1.msra.mxu0 0.0
      %5977 = vmatprep.subr.mxu0 0.0
      %5978 = vmatpush1.msra.mxu0 0.0
      %5979 = vmatprep.subr.mxu0 0.0
      %5980 = vmatpush1.msra.mxu0 0.0
      %5981 = vmatprep.subr.mxu0 0.0
      %5982 = vmatpush1.msra.mxu0 0.0
      %5983 = vmatprep.subr.mxu0 0.0
      %5984 = vmatpush1.msra.mxu0 0.0
      %5985 = vmatprep.subr.mxu0 0.0
      %5986 = vmatpush1.msra.mxu0 0.0
      %5987 = vmatprep.subr.mxu0 0.0
      %5988 = vmatpush1.msra.mxu0 0.0
      %5989 = vmatprep.mubr.f32.mxu0 0.0
      %5990 = vmatmul.mubr.f32.gmra.mrb[0].mxu0 %v5830
      %v5991 = vpop.f32.mrb[0].mxu0
      %v5992 = vadd.f32 0.0, %v5991
      %v5993 = vpop.f32.mrb[0].mxu0
      %5994 = vmatprep.mubr.f32.mxu0 0.0
      %5995 = vmatmul.mubr.f32.gmra.mrb[0].mxu0 %v5833
      %v5996 = vpop.f32.mrb[0].mxu0
      %v5997 = vadd.f32 0.0, %v5996
      %v5998 = vpop.f32.mrb[0].mxu0
      %5999 = vmatprep.mubr.f32.mxu0 0.0
      %6000 = vmatmul.mubr.f32.gmra.mrb[0].mxu0 %v5836
      %v6001 = vpop.f32.mrb[0].mxu0
      %v6002 = vadd.f32 0.0, %v6001
      %v6003 = vpop.f32.mrb[0].mxu0
      %6004 = vmatprep.mubr.f32.mxu0 0.0
      %6005 = vmatmul.mubr.f32.gmra.mrb[0].mxu0 %v5839
      %v6006 = vpop.f32.mrb[0].mxu0
      %v6007 = vadd.f32 0.0, %v6006
      %v6008 = vpop.f32.mrb[0].mxu0
      %6009 = vmatprep.mubr.f32.mxu0 0.0
      %6010 = vmatmul.mubr.f32.gmra.mrb[0].mxu0 %v5842
      %v6011 = vpop.f32.mrb[0].mxu0
      %v6012 = vadd.f32 0.0, %v6011
      %v6013 = vpop.f32.mrb[0].mxu0
      %6014 = vmatprep.mubr.f32.mxu0 0.0
      %6015 = vmatmul.mubr.f32.gmra.mrb[0].mxu0 %v5845
      %v6016 = vpop.f32.mrb[0].mxu0
      %v6017 = vadd.f32 0.0, %v6016
      %v6018 = vpop.f32.mrb[0].mxu0
      %6019 = vmatprep.mubr.f32.mxu0 0.0
      %6020 = vmatmul.mubr.f32.gmra.mrb[0].mxu0 %v5848
      %v6021 = vpop.f32.mrb[0].mxu0
      %v6022 = vadd.f32 0.0, %v6021
      %v6023 = vpop.f32.mrb[0].mxu0
      %6024 = vmatprep.mubr.f32.mxu0 0.0
      %6025 = vmatmul.mubr.f32.gmra.mrb[0].mxu0 %v5851
      %v6026 = vpop.f32.mrb[0].mxu0
      %v6027 = vadd.f32 0.0, %v6026
      %v6028 = vpop.f32.mrb[0].mxu0
      %6029 = vmatprep.mubr.f32.mxu0 0.0
      %6030 = vmatmul.mubr.f32.gmra.mrb[0].mxu0 %v5854
      %v6031 = vpop.f32.mrb[0].mxu0
      %v6032 = vadd.f32 0.0, %v6031
      %v6033 = vpop.f32.mrb[0].mxu0
      %6034 = vmatprep.mubr.f32.mxu0 0.0
      %6035 = vmatmul.mubr.f32.gmra.mrb[0].mxu0 %v5857
      %v6036 = vpop.f32.mrb[0].mxu0
      %v6037 = vadd.f32 0.0, %v6036
      %v6038 = vpop.f32.mrb[0].mxu0
      %6039 = vmatprep.mubr.f32.mxu0 0.0
      %6040 = vmatmul.mubr.f32.gmra.mrb[0].mxu0 %v5860
      %v6041 = vpop.f32.mrb[0].mxu0
      %v6042 = vadd.f32 0.0, %v6041
      %v6043 = vpop.f32.mrb[0].mxu0
      %6044 = vmatprep.mubr.f32.mxu0 0.0
      %6045 = vmatmul.mubr.f32.gmra.mrb[0].mxu0 %v5863
      %v6046 = vpop.f32.mrb[0].mxu0
      %v6047 = vadd.f32 0.0, %v6046
      %v6048 = vpop.f32.mrb[0].mxu0
      %6049 = vmatprep.mubr.f32.mxu0 0.0
      %6050 = vmatmul.mubr.f32.gmra.mrb[0].mxu0 %v5866
      %v6051 = vpop.f32.mrb[0].mxu0
      %v6052 = vadd.f32 0.0, %v6051
      %v6053 = vpop.f32.mrb[0].mxu0
      %6054 = vmatprep.mubr.f32.mxu0 0.0
      %6055 = vmatmul.mubr.f32.gmra.mrb[0].mxu0 %v5869
      %v6056 = vpop.f32.mrb[0].mxu0
      %v6057 = vadd.f32 0.0, %v6056
      %v6058 = vpop.f32.mrb[0].mxu0
      %6059 = vmatprep.mubr.f32.mxu0 0.0
      %6060 = vmatmul.mubr.f32.gmra.mrb[0].mxu0 %v5872
      %v6061 = vpop.f32.mrb[0].mxu0
      %v6062 = vadd.f32 0.0, %v6061
      %v6063 = vpop.f32.mrb[0].mxu0
      %6064 = vmatprep.mubr.f32.mxu0 0.0
      %6065 = vmatmul.mubr.f32.gmra.mrb[0].mxu0 %v5875
      %v6066 = vpop.f32.mrb[0].mxu0
      %v6067 = vadd.f32 0.0, %v6066
      %v6068 = vpop.f32.mrb[0].mxu0
      %6069 = vmatprep.mubr.f32.mxu0 0.0
      %6070 = vmatmul.mubr.f32.gmra.mrb[0].mxu0 %v5878
      %v6071 = vpop.f32.mrb[0].mxu0
      %v6072 = vadd.f32 0.0, %v6071
      %v6073 = vpop.f32.mrb[0].mxu0
      %6074 = vmatprep.mubr.f32.mxu0 0.0
      %6075 = vmatmul.mubr.f32.gmra.mrb[0].mxu0 %v5881
      %v6076 = vpop.f32.mrb[0].mxu0
      %v6077 = vadd.f32 0.0, %v6076
      %v6078 = vpop.f32.mrb[0].mxu0
      %6079 = vmatprep.mubr.f32.mxu0 0.0
      %6080 = vmatmul.mubr.f32.gmra.mrb[0].mxu0 %v5884
      %v6081 = vpop.f32.mrb[0].mxu0
      %v6082 = vadd.f32 0.0, %v6081
      %v6083 = vpop.f32.mrb[0].mxu0
      %6084 = vmatprep.mubr.f32.mxu0 0.0
      %6085 = vmatmul.mubr.f32.gmra.mrb[0].mxu0 %v5887
      %v6086 = vpop.f32.mrb[0].mxu0
      %v6087 = vadd.f32 0.0, %v6086
      %v6088 = vpop.f32.mrb[0].mxu0
      %6089 = vmatprep.mubr.f32.mxu0 0.0
      %6090 = vmatmul.mubr.f32.gmra.mrb[0].mxu0 %v5890
      %v6091 = vpop.f32.mrb[0].mxu0
      %v6092 = vadd.f32 0.0, %v6091
      %v6093 = vpop.f32.mrb[0].mxu0
      %6094 = vmatprep.mubr.f32.mxu0 0.0
      %6095 = vmatmul.mubr.f32.gmra.mrb[0].mxu0 %v5893
      %v6096 = vpop.f32.mrb[0].mxu0
      %v6097 = vadd.f32 0.0, %v6096
      %v6098 = vpop.f32.mrb[0].mxu0
      %6099 = vmatprep.mubr.f32.mxu0 0.0
      %6100 = vmatmul.mubr.f32.gmra.mrb[0].mxu0 %v5896
      %v6101 = vpop.f32.mrb[0].mxu0
      %v6102 = vadd.f32 0.0, %v6101
      %v6103 = vpop.f32.mrb[0].mxu0
      %6104 = vmatprep.mubr.f32.mxu0 0.0
      %6105 = vmatmul.mubr.f32.gmra.mrb[0].mxu0 %v5899
      %v6106 = vpop.f32.mrb[0].mxu0
      %v6107 = vadd.f32 0.0, %v6106
      %v6108 = vpop.f32.mrb[0].mxu0
      %6109 = vmatprep.mubr.f32.mxu0 0.0
      %6110 = vmatmul.mubr.f32.gmra.mrb[0].mxu0 %v5902
      %v6111 = vpop.f32.mrb[0].mxu0
      %v6112 = vadd.f32 0.0, %v6111
      %v6113 = vpop.f32.mrb[0].mxu0
      %6114 = vmatprep.mubr.f32.mxu0 0.0
      %6115 = vmatmul.mubr.f32.gmra.mrb[0].mxu0 %v5905
      %v6116 = vpop.f32.mrb[0].mxu0
      %v6117 = vadd.f32 0.0, %v6116
      %v6118 = vpop.f32.mrb[0].mxu0
      %6119 = vmatprep.mubr.f32.mxu0 0.0
      %6120 = vmatmul.mubr.f32.gmra.mrb[0].mxu0 %v5908
      %v6121 = vpop.f32.mrb[0].mxu0
      %v6122 = vadd.f32 0.0, %v6121
      %v6123 = vpop.f32.mrb[0].mxu0
      %6124 = vmatprep.mubr.f32.mxu0 0.0
      %6125 = vmatmul.mubr.f32.gmra.mrb[0].mxu0 %v5911
      %v6126 = vpop.f32.mrb[0].mxu0
      %v6127 = vadd.f32 0.0, %v6126
      %v6128 = vpop.f32.mrb[0].mxu0
      %6129 = vmatprep.mubr.f32.mxu0 0.0
      %6130 = vmatmul.mubr.f32.gmra.mrb[0].mxu0 %v5914
      %v6131 = vpop.f32.mrb[0].mxu0
      %v6132 = vadd.f32 0.0, %v6131
      %v6133 = vpop.f32.mrb[0].mxu0
      %6134 = vmatprep.mubr.f32.mxu0 0.0
      %6135 = vmatmul.mubr.f32.gmra.mrb[0].mxu0 %v5917
      %v6136 = vpop.f32.mrb[0].mxu0
      %v6137 = vadd.f32 0.0, %v6136
      %v6138 = vpop.f32.mrb[0].mxu0
      %6139 = vmatprep.mubr.f32.mxu0 0.0
      %6140 = vmatmul.mubr.f32.gmra.mrb[0].mxu0 %v5920
      %v6141 = vpop.f32.mrb[0].mxu0
      %v6142 = vadd.f32 0.0, %v6141
      %v6143 = vpop.f32.mrb[0].mxu0
      %6144 = vmatprep.mubr.f32.mxu0 0.0
      %6145 = vmatmul.mubr.f32.gmra.mrb[0].mxu0 %v5923
      %v6146 = vpop.f32.mrb[0].mxu0
      %v6147 = vadd.f32 0.0, %v6146
      %v6148 = vpop.f32.mrb[0].mxu0
      %6149 = vdwg.mxu0
      %v6150 = vadd.f32 %v5639, %v5992
      %v6151 = vadd.f32 %v5644, %v5997
      %v6152 = vadd.f32 %v5649, %v6002
      %v6153 = vadd.f32 %v5654, %v6007
      %v6154 = vadd.f32 %v5659, %v6012
      %v6155 = vadd.f32 %v5664, %v6017
      %v6156 = vadd.f32 %v5669, %v6022
      %v6157 = vadd.f32 %v5674, %v6027
      %v6158 = vadd.f32 %v5679, %v6032
      %v6159 = vadd.f32 %v5684, %v6037
      %v6160 = vadd.f32 %v5689, %v6042
      %v6161 = vadd.f32 %v5694, %v6047
      %v6162 = vadd.f32 %v5699, %v6052
      %v6163 = vadd.f32 %v5704, %v6057
      %v6164 = vadd.f32 %v5709, %v6062
      %v6165 = vadd.f32 %v5714, %v6067
      %v6166 = vadd.f32 %v5719, %v6072
      %v6167 = vadd.f32 %v5724, %v6077
      %v6168 = vadd.f32 %v5729, %v6082
      %v6169 = vadd.f32 %v5734, %v6087
      %v6170 = vadd.f32 %v5739, %v6092
      %v6171 = vadd.f32 %v5744, %v6097
      %v6172 = vadd.f32 %v5749, %v6102
      %v6173 = vadd.f32 %v5754, %v6107
      %v6174 = vadd.f32 %v5759, %v6112
      %v6175 = vadd.f32 %v5764, %v6117
      %v6176 = vadd.f32 %v5769, %v6122
      %v6177 = vadd.f32 %v5774, %v6127
      %v6178 = vadd.f32 %v5779, %v6132
      %v6179 = vadd.f32 %v5784, %v6137
      %v6180 = vadd.f32 %v5789, %v6142
      %v6181 = vadd.f32 %v5794, %v6147
      %v6182 = vadd.f32 %v6150, %v4679
      %v6183 = vadd.f32 %v6151, %v4679
      %v6184 = vadd.f32 %v6152, %v4679
      %v6185 = vadd.f32 %v6153, %v4679
      %v6186 = vadd.f32 %v6154, %v4679
      %v6187 = vadd.f32 %v6155, %v4679
      %v6188 = vadd.f32 %v6156, %v4679
      %v6189 = vadd.f32 %v6157, %v4679
      %v6190 = vadd.f32 %v6158, %v4679
      %v6191 = vadd.f32 %v6159, %v4679
      %v6192 = vadd.f32 %v6160, %v4679
      %v6193 = vadd.f32 %v6161, %v4679
      %v6194 = vadd.f32 %v6162, %v4679
      %v6195 = vadd.f32 %v6163, %v4679
      %v6196 = vadd.f32 %v6164, %v4679
      %v6197 = vadd.f32 %v6165, %v4679
      %v6198 = vadd.f32 %v6166, %v4679
      %v6199 = vadd.f32 %v6167, %v4679
      %v6200 = vadd.f32 %v6168, %v4679
      %v6201 = vadd.f32 %v6169, %v4679
      %v6202 = vadd.f32 %v6170, %v4679
      %v6203 = vadd.f32 %v6171, %v4679
      %v6204 = vadd.f32 %v6172, %v4679
      %v6205 = vadd.f32 %v6173, %v4679
      %v6206 = vadd.f32 %v6174, %v4679
      %v6207 = vadd.f32 %v6175, %v4679
      %v6208 = vadd.f32 %v6176, %v4679
      %v6209 = vadd.f32 %v6177, %v4679
      %v6210 = vadd.f32 %v6178, %v4679
      %v6211 = vadd.f32 %v6179, %v4679
      %v6212 = vadd.f32 %v6180, %v4679
      %v6213 = vadd.f32 %v6181, %v4679
      %v6214 = vmax.f32 %v6182, 0.0
      %v6215 = vmax.f32 %v6183, 0.0
      %v6216 = vmax.f32 %v6184, 0.0
      %v6217 = vmax.f32 %v6185, 0.0
      %v6218 = vmax.f32 %v6186, 0.0
      %v6219 = vmax.f32 %v6187, 0.0
      %v6220 = vmax.f32 %v6188, 0.0
      %v6221 = vmax.f32 %v6189, 0.0
      %v6222 = vmax.f32 %v6190, 0.0
      %v6223 = vmax.f32 %v6191, 0.0
      %v6224 = vmax.f32 %v6192, 0.0
      %v6225 = vmax.f32 %v6193, 0.0
      %v6226 = vmax.f32 %v6194, 0.0
      %v6227 = vmax.f32 %v6195, 0.0
      %v6228 = vmax.f32 %v6196, 0.0
      %v6229 = vmax.f32 %v6197, 0.0
      %v6230 = vmax.f32 %v6198, 0.0
      %v6231 = vmax.f32 %v6199, 0.0
      %v6232 = vmax.f32 %v6200, 0.0
      %v6233 = vmax.f32 %v6201, 0.0
      %v6234 = vmax.f32 %v6202, 0.0
      %v6235 = vmax.f32 %v6203, 0.0
      %v6236 = vmax.f32 %v6204, 0.0
      %v6237 = vmax.f32 %v6205, 0.0
      %v6238 = vmax.f32 %v6206, 0.0
      %v6239 = vmax.f32 %v6207, 0.0
      %v6240 = vmax.f32 %v6208, 0.0
      %v6241 = vmax.f32 %v6209, 0.0
      %v6242 = vmax.f32 %v6210, 0.0
      %v6243 = vmax.f32 %v6211, 0.0
      %v6244 = vmax.f32 %v6212, 0.0
      %v6245 = vmax.f32 %v6213, 0.0
      %v6246 = vadd.f32 %v171, %v6214
      %v6247 = vadd.f32 %v172, %v6215
      %v6248 = vadd.f32 %v173, %v6216
      %v6249 = vadd.f32 %v174, %v6217
      %v6250 = vadd.f32 %v175, %v6218
      %v6251 = vadd.f32 %v176, %v6219
      %v6252 = vadd.f32 %v177, %v6220
      %v6253 = vadd.f32 %v178, %v6221
      %v6254 = vadd.f32 %v179, %v6222
      %v6255 = vadd.f32 %v180, %v6223
      %v6256 = vadd.f32 %v181, %v6224
      %v6257 = vadd.f32 %v182, %v6225
      %v6258 = vadd.f32 %v183, %v6226
      %v6259 = vadd.f32 %v184, %v6227
      %v6260 = vadd.f32 %v185, %v6228
      %v6261 = vadd.f32 %v186, %v6229
      %v6262 = vadd.f32 %v187, %v6230
      %v6263 = vadd.f32 %v188, %v6231
      %v6264 = vadd.f32 %v189, %v6232
      %v6265 = vadd.f32 %v190, %v6233
      %v6266 = vadd.f32 %v191, %v6234
      %v6267 = vadd.f32 %v192, %v6235
      %v6268 = vadd.f32 %v193, %v6236
      %v6269 = vadd.f32 %v194, %v6237
      %v6270 = vadd.f32 %v195, %v6238
      %v6271 = vadd.f32 %v196, %v6239
      %v6272 = vadd.f32 %v197, %v6240
      %v6273 = vadd.f32 %v198, %v6241
      %v6274 = vadd.f32 %v199, %v6242
      %v6275 = vadd.f32 %v200, %v6243
      %v6276 = vadd.f32 %v201, %v6244
      %v6277 = vadd.f32 %v202, %v6245
      %6278 = vst.msk [vmem:[%s170] sm:$0xff] %vm482, %v6246
      %6279 = vst.msk [vmem:[%s170 + $0x8] sm:$0xff] %vm482, %v6247
      %6280 = vst.msk [vmem:[%s170 + $0x10] sm:$0xff] %vm482, %v6248
      %6281 = vst.msk [vmem:[%s170 + $0x18] sm:$0xff] %vm482, %v6249
      %6282 = vst.msk [vmem:[%s170 + $0x20] sm:$0xff] %vm482, %v6250
      %6283 = vst.msk [vmem:[%s170 + $0x28] sm:$0xff] %vm482, %v6251
      %6284 = vst.msk [vmem:[%s170 + $0x30] sm:$0xff] %vm482, %v6252
      %6285 = vst.msk [vmem:[%s170 + $0x38] sm:$0xff] %vm482, %v6253
      %6286 = vst.msk [vmem:[%s170 + $0x40] sm:$0xff] %vm482, %v6254
      %6287 = vst.msk [vmem:[%s170 + $0x48] sm:$0xff] %vm482, %v6255
      %6288 = vst.msk [vmem:[%s170 + $0x50] sm:$0xff] %vm482, %v6256
      %6289 = vst.msk [vmem:[%s170 + $0x58] sm:$0xff] %vm482, %v6257
      %6290 = vst.msk [vmem:[%s170 + $0x60] sm:$0xff] %vm482, %v6258
      %6291 = vst.msk [vmem:[%s170 + $0x68] sm:$0xff] %vm482, %v6259
      %6292 = vst.msk [vmem:[%s170 + $0x70] sm:$0xff] %vm482, %v6260
      %6293 = vst.msk [vmem:[%s170 + $0x78] sm:$0xff] %vm482, %v6261
      %6294 = vst.msk [vmem:[%s170 + $0x80] sm:$0xff] %vm482, %v6262
      %6295 = vst.msk [vmem:[%s170 + $0x88] sm:$0xff] %vm482, %v6263
      %6296 = vst.msk [vmem:[%s170 + $0x90] sm:$0xff] %vm482, %v6264
      %6297 = vst.msk [vmem:[%s170 + $0x98] sm:$0xff] %vm482, %v6265
      %6298 = vst.msk [vmem:[%s170 + $0xa0] sm:$0xff] %vm482, %v6266
      %6299 = vst.msk [vmem:[%s170 + $0xa8] sm:$0xff] %vm482, %v6267
      %6300 = vst.msk [vmem:[%s170 + $0xb0] sm:$0xff] %vm482, %v6268
      %6301 = vst.msk [vmem:[%s170 + $0xb8] sm:$0xff] %vm482, %v6269
      %6302 = vst.msk [vmem:[%s170 + $0xc0] sm:$0xff] %vm482, %v6270
      %6303 = vst.msk [vmem:[%s170 + $0xc8] sm:$0xff] %vm482, %v6271
      %6304 = vst.msk [vmem:[%s170 + $0xd0] sm:$0xff] %vm482, %v6272
      %6305 = vst.msk [vmem:[%s170 + $0xd8] sm:$0xff] %vm482, %v6273
      %6306 = vst.msk [vmem:[%s170 + $0xe0] sm:$0xff] %vm482, %v6274
      %6307 = vst.msk [vmem:[%s170 + $0xe8] sm:$0xff] %vm482, %v6275
      %6308 = vst.msk [vmem:[%s170 + $0xf0] sm:$0xff] %vm482, %v6276
      %6309 = vst.msk [vmem:[%s170 + $0xf8] sm:$0xff] %vm482, %v6277
      %p6310 = scmp.lt.s32.totalorder %s14, 1
      %s6311 = scalar_select %p6310, %s14, 1
      %s6312 = smul.addr %s6311, 32
      %s6313 = smul.addr %s6312, 8
      %s6314 = scalar_lea.vmem %s3, %s6313
      // Predicated region
      $region33: #{_lambda_.3} parent=31 // pred_check
        %p6315 = pneg %p100
      $region34: #{_lambda_.3} parent=31 // pred_check_branch
        %6317 = sbr.rel (%p6315) target = $region36
      $region35: #{_lambda_.3} parent=31 // pred_region
        _
      $region36: #{_lambda_.3} parent=31 // pred_fallthru
        _
    $region32: #{_lambda_.3} parent=5 // pred_fallthru
      _
    %p6318 = scmp.le.s32.totalorder 2, %s9
    // Predicated region
    $region37: #{_lambda_.3} parent=5 // pred_check
      %p6319 = pneg %p6318
    $region38: #{_lambda_.3} parent=5 // pred_check_branch
      %6321 = sbr.rel (%p6319) target = $region40
    $region39: #{_lambda_.3} parent=5 // pred_region
      %s6322 = ssub.s32 %s9, 2
      // Predicated region
      $region41: #{_lambda_.3} parent=39 // pred_check
        %p6323 = pneg %p106
      $region42: #{_lambda_.3} parent=39 // pred_check_branch
        %6325 = sbr.rel (%p6323) target = $region44
      $region43: #{_lambda_.3} parent=39 // pred_region
        %p6326 = scmp.lt.s32.totalorder %s15, 1
        %s6327 = scalar_select %p6326, %s15, 1
        %s6328 = smul.addr %s6327, 32
        %s6329 = smul.addr %s6328, 8
        %s6330 = scalar_lea.vmem %s3, %s6329
      $region44: #{_lambda_.3} parent=39 // pred_fallthru
        _
    $region40: #{_lambda_.3} parent=5 // pred_fallthru
      _
  $region6: #{_lambda_.3} parent=0 // loop_footer
    %s13 = sadd.s32 1, %s9
  $region7: #{_lambda_.3} parent=0 // loop_footer_branch
    %8 = sbr.rel target = $region3
  $region8: #{_lambda_.3} parent=0 // loop_exit
    _

</llo_original>
